<compile_context>
chip_gen: v7x
topology: tpu7x:2x2x1
jax: 0.10.0
libtpu: 0.0.40
codegen_flags: <defaults>
</compile_context>

<pallas_src>
import functools

import jax
import jax.numpy as jnp
from jax.experimental import pallas as pl
from jax.experimental.pallas import tpu as pltpu

# ---------------- small synthetic hyper-parameters (ViT-L/14 scaled down) ----
IMG = 16            # image side            (original: 224)
CIN = 3             # input channels
PATCH = 4           # patch size            (original: 14)
GRID = IMG // PATCH # 4  -> N = 16 patches  (original: N = 256)
NPATCH = GRID * GRID
DMODEL = 32         # hidden width          (original: 1024)
HEAD_DIM = 16       # per-head dim          (original: 64)
NHEADS = DMODEL // HEAD_DIM
MLP = 4 * DMODEL
NLAYERS = 3         # total resblocks       (original: 24)
CUTOFF = 1          # cutoff_layer
OUTDIM = 16         # visual projection dim (original: 768)
MTA_THRESHOLD = 0.0
NB = 7              # MTA median-fill neighborhood
LN_EPS = 1e-5
NEG_INF = -1e30     # finite large-negative mask value (avoids inf arithmetic)


def _round_up(n, m):
    return ((n + m - 1) // m) * m


def _ln(x, g, b):
    """LayerNorm with f32 statistics.  Pure jnp -> usable inside & outside kernels."""
    mu = jnp.mean(x, axis=-1, keepdims=True)
    var = jnp.mean(jnp.square(x - mu), axis=-1, keepdims=True)
    return (x - mu) * jax.lax.rsqrt(var + LN_EPS) * g + b


# ------------------------------ Pallas kernels -------------------------------
def _stack_kernel(x_ref, m_ref, ln1g_ref, ln1b_ref, wqkv_ref, bqkv_ref,
                  wout_ref, bout_ref, ln2g_ref, ln2b_ref,
                  wfc1_ref, bfc1_ref, wfc2_ref, bfc2_ref, o_ref,
                  *, n_heads, head_dim):
    """One ResidualAttentionBlock per (batch, layer) grid step.

    The residual stream lives in o_ref (same output block index for every layer
    step of a batch element -> resident in VMEM across the whole segment)."""
    f32, bf16 = jnp.float32, jnp.bfloat16

    @pl.when(pl.program_id(1) == 0)
    def _():                                   # load the residual stream once
        o_ref[...] = x_ref[...]

    x = o_ref[0]                               # [S, D] f32, VMEM-resident
    S, D = x.shape

    # ---- attention: LN1 -> fused QKV matmul -> per-head softmax -> out-proj ----
    h = _ln(x, ln1g_ref[0], ln1b_ref[0]).astype(bf16)
    qkv = jnp.dot(h, wqkv_ref[0], preferred_element_type=f32) + bqkv_ref[0]   # [S, 3D]
    mfull = jnp.broadcast_to(m_ref[0], (S, S))          # hoisted key-mask broadcast

    # TODO(synk): at real head counts (16) use a head-batched einsum instead of
    # this tiny static unroll; with 2 heads the unroll is cheapest.
    ctx_heads = []
    for hh in range(n_heads):
        lo = hh * head_dim
        q = qkv[:, lo:lo + head_dim].astype(bf16)        # softmax scale pre-folded into Wq/bq
        k = qkv[:, D + lo:D + lo + head_dim].astype(bf16)
        v = qkv[:, 2 * D + lo:2 * D + lo + head_dim].astype(bf16)
        s = jax.lax.dot_general(q, k, (((1,), (1,)), ((), ())),
                                preferred_element_type=f32) + mfull           # [S, S]
        s = s - jnp.max(s, axis=-1, keepdims=True)
        p = jnp.exp(s)
        p = p * pl.reciprocal(jnp.sum(p, axis=-1, keepdims=True), approx=True)
        ctx_heads.append(jnp.dot(p.astype(bf16), v, preferred_element_type=f32))
    ctx = jnp.concatenate(ctx_heads, axis=-1).astype(bf16)                    # [S, D]
    attn = jnp.dot(ctx, wout_ref[0], preferred_element_type=f32) + bout_ref[0]
    x = x + attn                                                              # residual fused

    # ---- MLP: LN2 -> fc1 + QuickGELU -> fc2 (+ residual) -----------------------
    h2 = _ln(x, ln2g_ref[0], ln2b_ref[0]).astype(bf16)
    f = jnp.dot(h2, wfc1_ref[0], preferred_element_type=f32) + bfc1_ref[0]
    f = f * jax.nn.sigmoid(1.702 * f)                    # QuickGELU (OpenAI CLIP)
    mlp = jnp.dot(f.astype(bf16), wfc2_ref[0], preferred_element_type=f32) + bfc2_ref[0]

    o_ref[0] = (x + mlp).astype(o_ref.dtype)


def run_block_stack(x, stk, mask_add):
    """Run a whole stack of resblocks in one pallas_call.

    x:        [B, S, D] f32 (S already padded to a sublane multiple of 8)
    stk:      dict of per-layer-stacked, pre-laid-out weights (leading dim = L)
    mask_add: [B, 1, S] additive key mask (0 / NEG_INF)."""
    B, S, D = x.shape
    L = stk['wqkv'].shape[0]

    def wspec(arr):
        bs = (1,) + arr.shape[1:]
        nd = arr.ndim
        return pl.BlockSpec(bs, lambda b, l, nd=nd: (l,) + (0,) * (nd - 1))

    weights = [stk['ln1_g'], stk['ln1_b'], stk['wqkv'], stk['bqkv'],
               stk['wout'], stk['bout'], stk['ln2_g'], stk['ln2_b'],
               stk['wfc1'], stk['bfc1'], stk['wfc2'], stk['bfc2']]

    kern = functools.partial(_stack_kernel, n_heads=NHEADS, head_dim=HEAD_DIM)
    return pl.pallas_call(
        kern,
        out_shape=jax.ShapeDtypeStruct((B, S, D), jnp.float32),
        grid=(B, L),
        in_specs=[pl.BlockSpec((1, S, D), lambda b, l: (b, 0, 0)),   # x (read at l==0)
                  pl.BlockSpec((1, 1, S), lambda b, l: (b, 0, 0))]   # additive key mask
                 + [wspec(w) for w in weights],
        out_specs=pl.BlockSpec((1, S, D), lambda b, l: (b, 0, 0)),   # resident across l
        compiler_params=pltpu.CompilerParams(
            dimension_semantics=("parallel", "arbitrary")),
    )(x, mask_add, *weights)


def _embed_kernel(p_ref, w_ref, pos_ref, g_ref, b_ref, o_ref):
    """Patch matmul + positional embedding + ln_pre, whole batch in one grid step."""
    f32 = jnp.float32
    tok = jnp.dot(p_ref[...].astype(jnp.bfloat16), w_ref[...],
                  preferred_element_type=f32)                    # [B*NP, D]
    tok = tok + pos_ref[...]
    o_ref[...] = _ln(tok, g_ref[...], b_ref[...]).astype(o_ref.dtype)


def embed_tokens(patches_flat, conv_w_bf16, pos_tiled, g, b):
    M, K = patches_flat.shape
    D = conv_w_bf16.shape[1]
    return pl.pallas_call(
        _embed_kernel,
        out_shape=jax.ShapeDtypeStruct((M, D), jnp.float32),
        grid=(1,),
        in_specs=[pl.BlockSpec((M, K), lambda i: (0, 0)),
                  pl.BlockSpec((K, D), lambda i: (0, 0)),
                  pl.BlockSpec((M, D), lambda i: (0, 0)),
                  pl.BlockSpec((1, D), lambda i: (0, 0)),
                  pl.BlockSpec((1, D), lambda i: (0, 0))],
        out_specs=pl.BlockSpec((M, D), lambda i: (0, 0)),
    )(patches_flat, conv_w_bf16, pos_tiled, g.reshape(1, D), b.reshape(1, D))


# ------------------------------ parameters -----------------------------------
def init_params(key):
    def nrm(k, shape, std=0.02):
        return std * jax.random.normal(k, shape, jnp.float32)

    keys = iter(jax.random.split(key, 64))
    p = {
        # conv1 weight [D, C, P, P] stored pre-flattened as [C*P*P, D]
        'conv_w': nrm(next(keys), (CIN * PATCH * PATCH, DMODEL)),
        'cls': nrm(next(keys), (DMODEL,)),
        'pos': nrm(next(keys), (NPATCH + 1, DMODEL)),
        'ln_pre_g': jnp.ones((DMODEL,)), 'ln_pre_b': jnp.zeros((DMODEL,)),
        'ln_post_g': jnp.ones((DMODEL,)), 'ln_post_b': jnp.zeros((DMODEL,)),
        'proj': nrm(next(keys), (DMODEL, OUTDIM)),
        'blocks': [],
    }
    for _ in range(NLAYERS):
        p['blocks'].append({
            'ln1_g': jnp.ones((DMODEL,)), 'ln1_b': jnp.zeros((DMODEL,)),
            'qkv_w': nrm(next(keys), (DMODEL, 3 * DMODEL)),
            'qkv_b': jnp.zeros((3 * DMODEL,)),
            'out_w': nrm(next(keys), (DMODEL, DMODEL)),
            'out_b': jnp.zeros((DMODEL,)),
            'ln2_g': jnp.ones((DMODEL,)), 'ln2_b': jnp.zeros((DMODEL,)),
            'fc1_w': nrm(next(keys), (DMODEL, MLP)),
            'fc1_b': jnp.zeros((MLP,)),
            'fc2_w': nrm(next(keys), (MLP, DMODEL)),
            'fc2_b': jnp.zeros((DMODEL,)),
        })
    return p


def prepare_params(params):
    """One-time weight re-layout / dtype cast, run OUTSIDE the jitted forward:
    per-segment layer stacking, bf16 casts for all MXU operands, and folding the
    attention softmax scale into the q columns of the QKV projection."""
    bf16 = jnp.bfloat16
    scale = HEAD_DIM ** -0.5

    def stack_seg(blocks):
        L = len(blocks)
        g = lambda k: jnp.stack([b[k] for b in blocks], 0)
        qkv_w = g('qkv_w')                                   # [L, D, 3D]
        qkv_b = g('qkv_b')                                   # [L, 3D]
        qkv_w = qkv_w.at[:, :, :DMODEL].multiply(scale)      # fold softmax scale into Wq
        qkv_b = qkv_b.at[:, :DMODEL].multiply(scale)         # ... and bq
        return {
            'ln1_g': g('ln1_g').reshape(L, 1, DMODEL),
            'ln1_b': g('ln1_b').reshape(L, 1, DMODEL),
            'wqkv': qkv_w.astype(bf16),
            'bqkv': qkv_b.reshape(L, 1, 3 * DMODEL),
            'wout': g('out_w').astype(bf16),
            'bout': g('out_b').reshape(L, 1, DMODEL),
            'ln2_g': g('ln2_g').reshape(L, 1, DMODEL),
            'ln2_b': g('ln2_b').reshape(L, 1, DMODEL),
            'wfc1': g('fc1_w').astype(bf16),
            'bfc1': g('fc1_b').reshape(L, 1, MLP),
            'wfc2': g('fc2_w').astype(bf16),
            'bfc2': g('fc2_b').reshape(L, 1, DMODEL),
        }

    return {
        'conv_w': params['conv_w'].astype(bf16),
        'cls': params['cls'],
        'pos': params['pos'],
        'ln_pre_g': params['ln_pre_g'], 'ln_pre_b': params['ln_pre_b'],
        'ln_post_g': params['ln_post_g'], 'ln_post_b': params['ln_post_b'],
        'proj': params['proj'],
        'seg1': stack_seg(params['blocks'][:CUTOFF + 1]),
        'seg2': stack_seg(params['blocks'][CUTOFF + 1:]),
    }


# ------------------------------ forward --------------------------------------
def transformer_forward(x, prep):
    """Replicates the custom `new_transformer_forward` (batch_first=True), on device."""
    B, S1, D = x.shape
    N, H, W = NPATCH, GRID, GRID

    # ---- resblocks[:cutoff_layer+1] (one fused pallas_call), padded keys masked ----
    S1P = _round_up(S1, 8)
    x1 = jnp.pad(x, ((0, 0), (0, S1P - S1), (0, 0)))
    col1 = jnp.arange(S1P)
    mask1 = jnp.where(col1[None, None, :] >= S1, NEG_INF, 0.0).astype(jnp.float32)
    mask1 = jnp.broadcast_to(mask1, (B, 1, S1P))
    x = run_block_stack(x1, prep['seg1'], mask1)[:, :S1]

    # ---- MTA detection via top right-singular vector ----
    image_x = x[:, 1:N + 1]                                       # [B, N, D]
    flat = image_x.reshape(-1, D)
    demeaned = flat - jnp.mean(flat, axis=0, keepdims=True)
    # TODO(synk): SVD has no Pallas equivalent; computed with jnp.linalg.svd
    # (sign of the singular vector is arbitrary, as in torch).
    _, _, Vh = jnp.linalg.svd(demeaned, full_matrices=False)
    V = Vh[0]
    projections = jnp.einsum('bnd,d->bn', image_x, V)             # [B, N]
    mta_mask = projections > MTA_THRESHOLD                        # [B, N] bool
    r = jnp.sum(mta_mask.astype(jnp.int32), axis=-1)              # [B]

    # ---- register tokens, padded to the static bound N (padded slots masked) ----
    tok_order = jnp.argsort(jnp.logical_not(mta_mask).astype(jnp.int32),
                            axis=-1, stable=True)                 # MTA indices first
    gathered = jnp.take_along_axis(
        image_x, jnp.broadcast_to(tok_order[..., None], (B, N, D)), axis=1)
    slot_valid = jnp.arange(N)[None, :] < r[:, None]
    register_tokens = jnp.where(slot_valid[..., None], gathered, 0.0)   # [B, N, D]

    # ---- 7x7 neighborhood median fill of masked tokens ----
    mta_grid = mta_mask.reshape(B, H, W)
    img_grid = jnp.transpose(image_x.reshape(B, H, W, D), (0, 3, 1, 2))   # [B,D,H,W]
    pd = NB // 2
    padded_img = jnp.pad(img_grid, ((0, 0), (0, 0), (pd, pd), (pd, pd)), mode='reflect')
    padded_mask = jnp.pad(mta_grid, ((0, 0), (pd, pd), (pd, pd)),
                          mode='constant', constant_values=False)
    nbh = jnp.stack([padded_img[:, :, i:i + H, j:j + W]
                     for i in range(NB) for j in range(NB)], axis=-1)      # [B,D,H,W,49]
    nbh_mask = jnp.stack([padded_mask[:, i:i + H, j:j + W]
                          for i in range(NB) for j in range(NB)], axis=-1)[:, None]
    valid = jnp.where(~nbh_mask, nbh, -jnp.inf)
    norms = jnp.linalg.norm(valid, axis=1)                                 # [B,H,W,49]
    norms_masked = jnp.where(~nbh_mask[:, 0], norms, -jnp.inf)
    sort_idx = jnp.argsort(-norms_masked, axis=-1)                         # descending
    sorted_norms = jnp.take_along_axis(norms_masked, sort_idx, axis=-1)
    valid_sorted = sorted_norms > -jnp.inf
    median_index = jnp.sum(valid_sorted, axis=-1) // 2
    median_indices = jnp.take_along_axis(sort_idx, median_index[..., None], axis=-1)[..., 0]
    idx = jnp.broadcast_to(median_indices[:, None, :, :, None], (B, D, H, W, 1))
    median_neighbors = jnp.take_along_axis(valid, idx, axis=-1)[..., 0]    # [B,D,H,W]
    # NaN guard: if every neighbor of a masked token is itself masked, the median is
    # -inf; fall back to the original token (only deviates from torch in that corner case).
    median_neighbors = jnp.where(jnp.isfinite(median_neighbors), median_neighbors, img_grid)
    filled_grid = jnp.where(mta_grid[:, None], median_neighbors, img_grid)
    image_x_filled = jnp.transpose(filled_grid, (0, 2, 3, 1)).reshape(B, N, D)

    # ---- remaining resblocks (one fused pallas_call) with register-token mask ----
    S2 = N + 1 + N
    S2P = _round_up(S2, 8)
    x2 = jnp.concatenate([x[:, :1], image_x_filled, register_tokens], axis=1)  # [B,S2,D]
    x2 = jnp.pad(x2, ((0, 0), (0, S2P - S2), (0, 0)))
    col2 = jnp.arange(S2P)
    mask2 = jnp.where(col2[None, :] >= (N + 1 + r[:, None]),
                      NEG_INF, 0.0).astype(jnp.float32)[:, None, :]            # [B,1,S2P]
    x2 = run_block_stack(x2, prep['seg2'], mask2)

    return x2, mta_grid


def openclip_vit_forward(x_img, prep):
    """Visual tower + CLIP image-feature normalization.  Returns (feats, mta_masks)."""
    B = x_img.shape[0]
    # conv1 (stride=patch, kernel=patch, bias=False) as a patch matmul
    patches = x_img.reshape(B, CIN, GRID, PATCH, GRID, PATCH)
    patches = jnp.transpose(patches, (0, 2, 4, 1, 3, 5)).reshape(
        B * NPATCH, CIN * PATCH * PATCH)

    # fused patch-embed + pos + ln_pre (one grid step for the whole batch)
    pos_tiled = jnp.broadcast_to(prep['pos'][1:][None], (B, NPATCH, DMODEL)).reshape(
        B * NPATCH, DMODEL)
    tok = embed_tokens(patches, prep['conv_w'], pos_tiled,
                       prep['ln_pre_g'], prep['ln_pre_b']).reshape(B, NPATCH, DMODEL)

    # CLS row is 1 row -> XLA
    cls_row = _ln(prep['cls'][None, None, :] + prep['pos'][0][None, None, :],
                  prep['ln_pre_g'], prep['ln_pre_b'])
    cls_row = jnp.broadcast_to(cls_row, (B, 1, DMODEL))
    x = jnp.concatenate([cls_row, tok], axis=1)                   # [B, NPATCH+1, D]

    x, mta_mask = transformer_forward(x, prep)

    # head: ln_post + visual projection + L2 normalize on the 2-row CLS slab -> XLA
    pooled = x[:, 0]                                              # [B, D]
    h = _ln(pooled, prep['ln_post_g'], prep['ln_post_b'])
    y = jnp.dot(h, prep['proj'])
    feats = y * jax.lax.rsqrt(jnp.sum(y * y, axis=-1, keepdims=True) + 1e-12)
    # TODO(synk): full CLIP.forward also returns text features (None here) and logit_scale.
    return feats, [mta_mask]


if __name__ == "__main__":
    key = jax.random.PRNGKey(0)
    kp, kx = jax.random.split(key)
    params = init_params(kp)
    prep = prepare_params(params)      # one-time layout/cast, outside jit
    x = jax.random.normal(kx, (2, CIN, IMG, IMG), jnp.float32)    # NCHW like the torch module
    fwd = jax.jit(openclip_vit_forward)
    feats, mta_masks = fwd(x, prep)
    jax.block_until_ready(feats)
    jax.block_until_ready(mta_masks[0])
    print("KERNEL_OK")
</pallas_src>

<mosaic_0001>
module attributes {stable_mosaic.version = 11 : i64} {
  func.func private @main(%arg0: i32) attributes {dimension_semantics = [#tpu.dimension_semantics<core_parallel>], iteration_bounds = array<i64: 2>, tpu.core_type = #tpu.core_type<sc_scalar_subcore>, window_params = []} {
    return
  }
}

module attributes {stable_mosaic.version = 11 : i64} {
  func.func private @main(%arg0: i32) attributes {dimension_semantics = [#tpu.dimension_semantics<core_parallel>], iteration_bounds = array<i64: 2>, tpu.core_type = #tpu.core_type<sc_scalar_subcore>, window_params = []} {
    return
  }
}

module attributes {stable_mosaic.version = 11 : i64} {
  func.func @_embed_kernel(%arg0: i32, %arg1: memref<32x48xf32, #tpu.memory_space<vmem>>, %arg2: memref<48x32xbf16, #tpu.memory_space<vmem>>, %arg3: memref<32x32xf32, #tpu.memory_space<vmem>>, %arg4: memref<1x32xf32, #tpu.memory_space<vmem>>, %arg5: memref<1x32xf32, #tpu.memory_space<vmem>>, %arg6: memref<32x32xf32, #tpu.memory_space<vmem>>) attributes {dimension_semantics = [#tpu.dimension_semantics<arbitrary>], iteration_bounds = array<i64: 1>, scalar_prefetch = 0 : i64, scratch_operands = 0 : i64, tpu.core_type = #tpu.core_type<tc>, window_params = [{pipeline_mode = #tpu.pipeline_mode<synchronous>, transform_indices = @transform_0, window_bounds = array<i64: 32, 48>}, {pipeline_mode = #tpu.pipeline_mode<synchronous>, transform_indices = @transform_1, window_bounds = array<i64: 48, 32>}, {pipeline_mode = #tpu.pipeline_mode<synchronous>, transform_indices = @transform_2, window_bounds = array<i64: 32, 32>}, {pipeline_mode = #tpu.pipeline_mode<synchronous>, transform_indices = @transform_3, window_bounds = array<i64: 1, 32>}, {pipeline_mode = #tpu.pipeline_mode<synchronous>, transform_indices = @transform_4, window_bounds = array<i64: 1, 32>}, {pipeline_mode = #tpu.pipeline_mode<synchronous>, transform_indices = @transform_5, window_bounds = array<i64: 32, 32>}]} {
    %c0 = arith.constant 0 : index
    %c0_0 = arith.constant 0 : index
    %0 = vector.load %arg1[%c0, %c0_0] : memref<32x48xf32, #tpu.memory_space<vmem>>, vector<32x48xf32>
    %1 = arith.truncf %0 : vector<32x48xf32> to vector<32x48xbf16>
    %c0_1 = arith.constant 0 : index
    %c0_2 = arith.constant 0 : index
    %2 = vector.load %arg2[%c0_1, %c0_2] : memref<48x32xbf16, #tpu.memory_space<vmem>>, vector<48x32xbf16>
    %cst = arith.constant dense<0.000000e+00> : vector<32x32xf32>
    %3 = tpu.matmul %1, %2, %cst {dimension_numbers = #tpu.dot_dimension_numbers<[1], [0], [0], [1], [0, 0, 1, 1], [], []>} : vector<32x48xbf16>, vector<48x32xbf16>, vector<32x32xf32> -> vector<32x32xf32>
    %c0_3 = arith.constant 0 : index
    %c0_4 = arith.constant 0 : index
    %4 = vector.load %arg3[%c0_3, %c0_4] : memref<32x32xf32, #tpu.memory_space<vmem>>, vector<32x32xf32>
    %5 = arith.addf %3, %4 : vector<32x32xf32>
    %c0_5 = arith.constant 0 : index
    %c0_6 = arith.constant 0 : index
    %6 = vector.load %arg4[%c0_5, %c0_6] : memref<1x32xf32, #tpu.memory_space<vmem>>, vector<1x32xf32>
    %c0_7 = arith.constant 0 : index
    %c0_8 = arith.constant 0 : index
    %7 = vector.load %arg5[%c0_7, %c0_8] : memref<1x32xf32, #tpu.memory_space<vmem>>, vector<1x32xf32>
    %cst_9 = arith.constant dense<0.000000e+00> : vector<32xf32>
    %8 = vector.multi_reduction <add>, %5, %cst_9 [1] : vector<32x32xf32> to vector<32xf32>
    %9 = vector.shape_cast %8 : vector<32xf32> to vector<32x1xf32>
    %cst_10 = arith.constant 3.200000e+01 : f32
    %10 = vector.broadcast %cst_10 : f32 to vector<32x1xf32>
    %11 = arith.divf %9, %10 : vector<32x1xf32>
    %12 = vector.broadcast %11 : vector<32x1xf32> to vector<32x32xf32>
    %13 = arith.subf %5, %12 : vector<32x32xf32>
    %14 = arith.mulf %13, %13 : vector<32x32xf32>
    %cst_11 = arith.constant dense<0.000000e+00> : vector<32xf32>
    %15 = vector.multi_reduction <add>, %14, %cst_11 [1] : vector<32x32xf32> to vector<32xf32>
    %16 = vector.shape_cast %15 : vector<32xf32> to vector<32x1xf32>
    %cst_12 = arith.constant 3.200000e+01 : f32
    %17 = vector.broadcast %cst_12 : f32 to vector<32x1xf32>
    %18 = arith.divf %16, %17 : vector<32x1xf32>
    %19 = vector.broadcast %11 : vector<32x1xf32> to vector<32x32xf32>
    %20 = arith.subf %5, %19 : vector<32x32xf32>
    %cst_13 = arith.constant 9.99999974E-6 : f32
    %21 = vector.broadcast %cst_13 : f32 to vector<32x1xf32>
    %22 = arith.addf %18, %21 : vector<32x1xf32>
    %23 = math.rsqrt %22 : vector<32x1xf32>
    %24 = vector.broadcast %23 : vector<32x1xf32> to vector<32x32xf32>
    %25 = arith.mulf %20, %24 : vector<32x32xf32>
    %26 = vector.broadcast %6 : vector<1x32xf32> to vector<32x32xf32>
    %27 = arith.mulf %25, %26 : vector<32x32xf32>
    %28 = vector.broadcast %7 : vector<1x32xf32> to vector<32x32xf32>
    %29 = arith.addf %27, %28 : vector<32x32xf32>
    %c0_14 = arith.constant 0 : index
    %c0_15 = arith.constant 0 : index
    %30 = vector.load %arg6[%c0_14, %c0_15] : memref<32x32xf32, #tpu.memory_space<vmem>>, vector<32x32xf32>
    tpu.vector_store %arg6[%c0_14, %c0_15], %29 {strides = array<i32>} : memref<32x32xf32, #tpu.memory_space<vmem>>, vector<32x32xf32>,
    return
  }
  func.func @transform_0(%arg0: i32) -> (i32, i32) {
    %c0_i32 = arith.constant 0 : i32
    %c0_i32_0 = arith.constant 0 : i32
    %c0_i32_1 = arith.constant 0 : i32
    return %c0_i32, %c0_i32_0 : i32, i32
  }
  func.func @transform_1(%arg0: i32) -> (i32, i32) {
    %c0_i32 = arith.constant 0 : i32
    %c0_i32_0 = arith.constant 0 : i32
    %c0_i32_1 = arith.constant 0 : i32
    return %c0_i32, %c0_i32_0 : i32, i32
  }
  func.func @transform_2(%arg0: i32) -> (i32, i32) {
    %c0_i32 = arith.constant 0 : i32
    %c0_i32_0 = arith.constant 0 : i32
    %c0_i32_1 = arith.constant 0 : i32
    return %c0_i32, %c0_i32_0 : i32, i32
  }
  func.func @transform_3(%arg0: i32) -> (i32, i32) {
    %c0_i32 = arith.constant 0 : i32
    %c0_i32_0 = arith.constant 0 : i32
    %c0_i32_1 = arith.constant 0 : i32
    return %c0_i32, %c0_i32_0 : i32, i32
  }
  func.func @transform_4(%arg0: i32) -> (i32, i32) {
    %c0_i32 = arith.constant 0 : i32
    %c0_i32_0 = arith.constant 0 : i32
    %c0_i32_1 = arith.constant 0 : i32
    return %c0_i32, %c0_i32_0 : i32, i32
  }
  func.func @transform_5(%arg0: i32) -> (i32, i32) {
    %c0_i32 = arith.constant 0 : i32
    %c0_i32_0 = arith.constant 0 : i32
    %c0_i32_1 = arith.constant 0 : i32
    return %c0_i32, %c0_i32_0 : i32, i32
  }
}

module attributes {stable_mosaic.version = 11 : i64} {
  func.func @_stack_kernel(%arg0: i32, %arg1: i32, %arg2: memref<1x24x32xf32, #tpu.memory_space<vmem>>, %arg3: memref<1x1x24xf32, #tpu.memory_space<vmem>>, %arg4: memref<1x1x32xf32, #tpu.memory_space<vmem>>, %arg5: memref<1x1x32xf32, #tpu.memory_space<vmem>>, %arg6: memref<1x32x96xbf16, #tpu.memory_space<vmem>>, %arg7: memref<1x1x96xf32, #tpu.memory_space<vmem>>, %arg8: memref<1x32x32xbf16, #tpu.memory_space<vmem>>, %arg9: memref<1x1x32xf32, #tpu.memory_space<vmem>>, %arg10: memref<1x1x32xf32, #tpu.memory_space<vmem>>, %arg11: memref<1x1x32xf32, #tpu.memory_space<vmem>>, %arg12: memref<1x32x128xbf16, #tpu.memory_space<vmem>>, %arg13: memref<1x1x128xf32, #tpu.memory_space<vmem>>, %arg14: memref<1x128x32xbf16, #tpu.memory_space<vmem>>, %arg15: memref<1x1x32xf32, #tpu.memory_space<vmem>>, %arg16: memref<1x24x32xf32, #tpu.memory_space<vmem>>) attributes {dimension_semantics = [#tpu.dimension_semantics<parallel>, #tpu.dimension_semantics<arbitrary>], iteration_bounds = array<i64: 2, 2>, scalar_prefetch = 0 : i64, scratch_operands = 0 : i64, tpu.core_type = #tpu.core_type<tc>, window_params = [{transform_indices = @transform_0, window_bounds = array<i64: 1, 24, 32>}, {transform_indices = @transform_1, window_bounds = array<i64: 1, 1, 24>}, {transform_indices = @transform_2, window_bounds = array<i64: 1, 1, 32>}, {transform_indices = @transform_3, window_bounds = array<i64: 1, 1, 32>}, {transform_indices = @transform_4, window_bounds = array<i64: 1, 32, 96>}, {transform_indices = @transform_5, window_bounds = array<i64: 1, 1, 96>}, {transform_indices = @transform_6, window_bounds = array<i64: 1, 32, 32>}, {transform_indices = @transform_7, window_bounds = array<i64: 1, 1, 32>}, {transform_indices = @transform_8, window_bounds = array<i64: 1, 1, 32>}, {transform_indices = @transform_9, window_bounds = array<i64: 1, 1, 32>}, {transform_indices = @transform_10, window_bounds = array<i64: 1, 32, 128>}, {transform_indices = @transform_11, window_bounds = array<i64: 1, 1, 128>}, {transform_indices = @transform_12, window_bounds = array<i64: 1, 128, 32>}, {transform_indices = @transform_13, window_bounds = array<i64: 1, 1, 32>}, {transform_indices = @transform_14, window_bounds = array<i64: 1, 24, 32>}]} {
    %c0_i32 = arith.constant 0 : i32
    %0 = arith.cmpi eq, %arg1, %c0_i32 : i32
    %1 = arith.extui %0 : i1 to i32
    %c0_i32_0 = arith.constant 0 : i32
    %2 = arith.cmpi ne, %1, %c0_i32_0 : i32
    scf.if %2 {
      %c0_68 = arith.constant 0 : index
      %c0_69 = arith.constant 0 : index
      %c0_70 = arith.constant 0 : index
      %147 = vector.load %arg2[%c0_68, %c0_69, %c0_70] : memref<1x24x32xf32, #tpu.memory_space<vmem>>, vector<1x24x32xf32>
      %c0_71 = arith.constant 0 : index
      %c0_72 = arith.constant 0 : index
      %c0_73 = arith.constant 0 : index
      %148 = vector.load %arg16[%c0_71, %c0_72, %c0_73] : memref<1x24x32xf32, #tpu.memory_space<vmem>>, vector<1x24x32xf32>
      tpu.vector_store %arg16[%c0_71, %c0_72, %c0_73], %147 {strides = array<i32>} : memref<1x24x32xf32, #tpu.memory_space<vmem>>, vector<1x24x32xf32>,
    } else {
    }
    %c0 = arith.constant 0 : index
    %c0_1 = arith.constant 0 : index
    %c0_2 = arith.constant 0 : index
    %3 = vector.load %arg16[%c0, %c0_1, %c0_2] : memref<1x24x32xf32, #tpu.memory_space<vmem>>, vector<1x24x32xf32>
    %4 = vector.shape_cast %3 : vector<1x24x32xf32> to vector<24x32xf32>
    %c0_3 = arith.constant 0 : index
    %c0_4 = arith.constant 0 : index
    %c0_5 = arith.constant 0 : index
    %5 = vector.load %arg4[%c0_3, %c0_4, %c0_5] : memref<1x1x32xf32, #tpu.memory_space<vmem>>, vector<1x1x32xf32>
    %6 = vector.shape_cast %5 : vector<1x1x32xf32> to vector<1x32xf32>
    %c0_6 = arith.constant 0 : index
    %c0_7 = arith.constant 0 : index
    %c0_8 = arith.constant 0 : index
    %7 = vector.load %arg5[%c0_6, %c0_7, %c0_8] : memref<1x1x32xf32, #tpu.memory_space<vmem>>, vector<1x1x32xf32>
    %8 = vector.shape_cast %7 : vector<1x1x32xf32> to vector<1x32xf32>
    %cst = arith.constant dense<0.000000e+00> : vector<24xf32>
    %9 = vector.multi_reduction <add>, %4, %cst [1] : vector<24x32xf32> to vector<24xf32>
    %10 = vector.shape_cast %9 : vector<24xf32> to vector<24x1xf32>
    %cst_9 = arith.constant 3.200000e+01 : f32
    %11 = vector.broadcast %cst_9 : f32 to vector<24x1xf32>
    %12 = arith.divf %10, %11 : vector<24x1xf32>
    %13 = vector.broadcast %12 : vector<24x1xf32> to vector<24x32xf32>
    %14 = arith.subf %4, %13 : vector<24x32xf32>
    %15 = arith.mulf %14, %14 : vector<24x32xf32>
    %cst_10 = arith.constant dense<0.000000e+00> : vector<24xf32>
    %16 = vector.multi_reduction <add>, %15, %cst_10 [1] : vector<24x32xf32> to vector<24xf32>
    %17 = vector.shape_cast %16 : vector<24xf32> to vector<24x1xf32>
    %cst_11 = arith.constant 3.200000e+01 : f32
    %18 = vector.broadcast %cst_11 : f32 to vector<24x1xf32>
    %19 = arith.divf %17, %18 : vector<24x1xf32>
    %20 = vector.broadcast %12 : vector<24x1xf32> to vector<24x32xf32>
    %21 = arith.subf %4, %20 : vector<24x32xf32>
    %cst_12 = arith.constant 9.99999974E-6 : f32
    %22 = vector.broadcast %cst_12 : f32 to vector<24x1xf32>
    %23 = arith.addf %19, %22 : vector<24x1xf32>
    %24 = math.rsqrt %23 : vector<24x1xf32>
    %25 = vector.broadcast %24 : vector<24x1xf32> to vector<24x32xf32>
    %26 = arith.mulf %21, %25 : vector<24x32xf32>
    %27 = vector.broadcast %6 : vector<1x32xf32> to vector<24x32xf32>
    %28 = arith.mulf %26, %27 : vector<24x32xf32>
    %29 = vector.broadcast %8 : vector<1x32xf32> to vector<24x32xf32>
    %30 = arith.addf %28, %29 : vector<24x32xf32>
    %31 = arith.truncf %30 : vector<24x32xf32> to vector<24x32xbf16>
    %c0_13 = arith.constant 0 : index
    %c0_14 = arith.constant 0 : index
    %c0_15 = arith.constant 0 : index
    %32 = vector.load %arg6[%c0_13, %c0_14, %c0_15] : memref<1x32x96xbf16, #tpu.memory_space<vmem>>, vector<1x32x96xbf16>
    %33 = vector.shape_cast %32 : vector<1x32x96xbf16> to vector<32x96xbf16>
    %cst_16 = arith.constant dense<0.000000e+00> : vector<24x96xf32>
    %34 = tpu.matmul %31, %33, %cst_16 {dimension_numbers = #tpu.dot_dimension_numbers<[1], [0], [0], [1], [0, 0, 1, 1], [], []>} : vector<24x32xbf16>, vector<32x96xbf16>, vector<24x96xf32> -> vector<24x96xf32>
    %c0_17 = arith.constant 0 : index
    %c0_18 = arith.constant 0 : index
    %c0_19 = arith.constant 0 : index
    %35 = vector.load %arg7[%c0_17, %c0_18, %c0_19] : memref<1x1x96xf32, #tpu.memory_space<vmem>>, vector<1x1x96xf32>
    %36 = vector.shape_cast %35 : vector<1x1x96xf32> to vector<1x96xf32>
    %37 = vector.broadcast %36 : vector<1x96xf32> to vector<24x96xf32>
    %38 = arith.addf %34, %37 : vector<24x96xf32>
    %c0_20 = arith.constant 0 : index
    %c0_21 = arith.constant 0 : index
    %c0_22 = arith.constant 0 : index
    %39 = vector.load %arg3[%c0_20, %c0_21, %c0_22] : memref<1x1x24xf32, #tpu.memory_space<vmem>>, vector<1x1x24xf32>
    %40 = vector.shape_cast %39 : vector<1x1x24xf32> to vector<1x24xf32>
    %41 = vector.shape_cast %40 : vector<1x24xf32> to vector<1x24xf32>
    %42 = vector.broadcast %41 : vector<1x24xf32> to vector<24x24xf32>
    %43 = vector.extract_strided_slice %38 {offsets = [0, 0], sizes = [24, 16], strides = [1, 1]} : vector<24x96xf32> to vector<24x16xf32>
    %44 = arith.truncf %43 : vector<24x16xf32> to vector<24x16xbf16>
    %45 = vector.extract_strided_slice %38 {offsets = [0, 32], sizes = [24, 16], strides = [1, 1]} : vector<24x96xf32> to vector<24x16xf32>
    %46 = arith.truncf %45 : vector<24x16xf32> to vector<24x16xbf16>
    %47 = vector.extract_strided_slice %38 {offsets = [0, 64], sizes = [24, 16], strides = [1, 1]} : vector<24x96xf32> to vector<24x16xf32>
    %48 = arith.truncf %47 : vector<24x16xf32> to vector<24x16xbf16>
    %cst_23 = arith.constant dense<0.000000e+00> : vector<24x24xf32>
    %49 = tpu.matmul %44, %46, %cst_23 {dimension_numbers = #tpu.dot_dimension_numbers<[1], [1], [0], [0], [0, 0, 1, 0], [], []>} : vector<24x16xbf16>, vector<24x16xbf16>, vector<24x24xf32> -> vector<24x24xf32>
    %50 = arith.addf %49, %42 : vector<24x24xf32>
    %cst_24 = arith.constant dense<0xFF800000> : vector<24xf32>
    %51 = vector.multi_reduction <maximumf>, %50, %cst_24 [1] : vector<24x24xf32> to vector<24xf32>
    %52 = vector.shape_cast %51 : vector<24xf32> to vector<24x1xf32>
    %53 = vector.broadcast %52 : vector<24x1xf32> to vector<24x24xf32>
    %54 = arith.subf %50, %53 : vector<24x24xf32>
    %55 = math.exp %54 : vector<24x24xf32>
    %cst_25 = arith.constant dense<0.000000e+00> : vector<24xf32>
    %56 = vector.multi_reduction <add>, %55, %cst_25 [1] : vector<24x24xf32> to vector<24xf32>
    %57 = vector.shape_cast %56 : vector<24xf32> to vector<24x1xf32>
    %58 = tpu.reciprocal %57 {approx = true} : vector<24x1xf32> -> vector<24x1xf32>
    %59 = vector.broadcast %58 : vector<24x1xf32> to vector<24x24xf32>
    %60 = arith.mulf %55, %59 : vector<24x24xf32>
    %61 = arith.truncf %60 : vector<24x24xf32> to vector<24x24xbf16>
    %cst_26 = arith.constant dense<0.000000e+00> : vector<24x16xf32>
    %62 = tpu.matmul %61, %48, %cst_26 {dimension_numbers = #tpu.dot_dimension_numbers<[1], [0], [0], [1], [0, 0, 1, 1], [], []>} : vector<24x24xbf16>, vector<24x16xbf16>, vector<24x16xf32> -> vector<24x16xf32>
    %63 = vector.extract_strided_slice %38 {offsets = [0, 16], sizes = [24, 16], strides = [1, 1]} : vector<24x96xf32> to vector<24x16xf32>
    %64 = arith.truncf %63 : vector<24x16xf32> to vector<24x16xbf16>
    %65 = vector.extract_strided_slice %38 {offsets = [0, 48], sizes = [24, 16], strides = [1, 1]} : vector<24x96xf32> to vector<24x16xf32>
    %66 = arith.truncf %65 : vector<24x16xf32> to vector<24x16xbf16>
    %67 = vector.extract_strided_slice %38 {offsets = [0, 80], sizes = [24, 16], strides = [1, 1]} : vector<24x96xf32> to vector<24x16xf32>
    %68 = arith.truncf %67 : vector<24x16xf32> to vector<24x16xbf16>
    %cst_27 = arith.constant dense<0.000000e+00> : vector<24x24xf32>
    %69 = tpu.matmul %64, %66, %cst_27 {dimension_numbers = #tpu.dot_dimension_numbers<[1], [1], [0], [0], [0, 0, 1, 0], [], []>} : vector<24x16xbf16>, vector<24x16xbf16>, vector<24x24xf32> -> vector<24x24xf32>
    %70 = arith.addf %69, %42 : vector<24x24xf32>
    %cst_28 = arith.constant dense<0xFF800000> : vector<24xf32>
    %71 = vector.multi_reduction <maximumf>, %70, %cst_28 [1] : vector<24x24xf32> to vector<24xf32>
    %72 = vector.shape_cast %71 : vector<24xf32> to vector<24x1xf32>
    %73 = vector.broadcast %72 : vector<24x1xf32> to vector<24x24xf32>
    %74 = arith.subf %70, %73 : vector<24x24xf32>
    %75 = math.exp %74 : vector<24x24xf32>
    %cst_29 = arith.constant dense<0.000000e+00> : vector<24xf32>
    %76 = vector.multi_reduction <add>, %75, %cst_29 [1] : vector<24x24xf32> to vector<24xf32>
    %77 = vector.shape_cast %76 : vector<24xf32> to vector<24x1xf32>
    %78 = tpu.reciprocal %77 {approx = true} : vector<24x1xf32> -> vector<24x1xf32>
    %79 = vector.broadcast %78 : vector<24x1xf32> to vector<24x24xf32>
    %80 = arith.mulf %75, %79 : vector<24x24xf32>
    %81 = arith.truncf %80 : vector<24x24xf32> to vector<24x24xbf16>
    %cst_30 = arith.constant dense<0.000000e+00> : vector<24x16xf32>
    %82 = tpu.matmul %81, %68, %cst_30 {dimension_numbers = #tpu.dot_dimension_numbers<[1], [0], [0], [1], [0, 0, 1, 1], [], []>} : vector<24x24xbf16>, vector<24x16xbf16>, vector<24x16xf32> -> vector<24x16xf32>
    %83 = tpu.concatenate %62, %82 in 1 : vector<24x16xf32>, vector<24x16xf32> -> vector<24x32xf32>
    %84 = arith.truncf %83 : vector<24x32xf32> to vector<24x32xbf16>
    %c0_31 = arith.constant 0 : index
    %c0_32 = arith.constant 0 : index
    %c0_33 = arith.constant 0 : index
    %85 = vector.load %arg8[%c0_31, %c0_32, %c0_33] : memref<1x32x32xbf16, #tpu.memory_space<vmem>>, vector<1x32x32xbf16>
    %86 = vector.shape_cast %85 : vector<1x32x32xbf16> to vector<32x32xbf16>
    %cst_34 = arith.constant dense<0.000000e+00> : vector<24x32xf32>
    %87 = tpu.matmul %84, %86, %cst_34 {dimension_numbers = #tpu.dot_dimension_numbers<[1], [0], [0], [1], [0, 0, 1, 1], [], []>} : vector<24x32xbf16>, vector<32x32xbf16>, vector<24x32xf32> -> vector<24x32xf32>
    %c0_35 = arith.constant 0 : index
    %c0_36 = arith.constant 0 : index
    %c0_37 = arith.constant 0 : index
    %88 = vector.load %arg9[%c0_35, %c0_36, %c0_37] : memref<1x1x32xf32, #tpu.memory_space<vmem>>, vector<1x1x32xf32>
    %89 = vector.shape_cast %88 : vector<1x1x32xf32> to vector<1x32xf32>
    %90 = vector.broadcast %89 : vector<1x32xf32> to vector<24x32xf32>
    %91 = arith.addf %87, %90 : vector<24x32xf32>
    %92 = arith.addf %4, %91 : vector<24x32xf32>
    %c0_38 = arith.constant 0 : index
    %c0_39 = arith.constant 0 : index
    %c0_40 = arith.constant 0 : index
    %93 = vector.load %arg10[%c0_38, %c0_39, %c0_40] : memref<1x1x32xf32, #tpu.memory_space<vmem>>, vector<1x1x32xf32>
    %94 = vector.shape_cast %93 : vector<1x1x32xf32> to vector<1x32xf32>
    %c0_41 = arith.constant 0 : index
    %c0_42 = arith.constant 0 : index
    %c0_43 = arith.constant 0 : index
    %95 = vector.load %arg11[%c0_41, %c0_42, %c0_43] : memref<1x1x32xf32, #tpu.memory_space<vmem>>, vector<1x1x32xf32>
    %96 = vector.shape_cast %95 : vector<1x1x32xf32> to vector<1x32xf32>
    %cst_44 = arith.constant dense<0.000000e+00> : vector<24xf32>
    %97 = vector.multi_reduction <add>, %92, %cst_44 [1] : vector<24x32xf32> to vector<24xf32>
    %98 = vector.shape_cast %97 : vector<24xf32> to vector<24x1xf32>
    %cst_45 = arith.constant 3.200000e+01 : f32
    %99 = vector.broadcast %cst_45 : f32 to vector<24x1xf32>
    %100 = arith.divf %98, %99 : vector<24x1xf32>
    %101 = vector.broadcast %100 : vector<24x1xf32> to vector<24x32xf32>
    %102 = arith.subf %92, %101 : vector<24x32xf32>
    %103 = arith.mulf %102, %102 : vector<24x32xf32>
    %cst_46 = arith.constant dense<0.000000e+00> : vector<24xf32>
    %104 = vector.multi_reduction <add>, %103, %cst_46 [1] : vector<24x32xf32> to vector<24xf32>
    %105 = vector.shape_cast %104 : vector<24xf32> to vector<24x1xf32>
    %cst_47 = arith.constant 3.200000e+01 : f32
    %106 = vector.broadcast %cst_47 : f32 to vector<24x1xf32>
    %107 = arith.divf %105, %106 : vector<24x1xf32>
    %108 = vector.broadcast %100 : vector<24x1xf32> to vector<24x32xf32>
    %109 = arith.subf %92, %108 : vector<24x32xf32>
    %cst_48 = arith.constant 9.99999974E-6 : f32
    %110 = vector.broadcast %cst_48 : f32 to vector<24x1xf32>
    %111 = arith.addf %107, %110 : vector<24x1xf32>
    %112 = math.rsqrt %111 : vector<24x1xf32>
    %113 = vector.broadcast %112 : vector<24x1xf32> to vector<24x32xf32>
    %114 = arith.mulf %109, %113 : vector<24x32xf32>
    %115 = vector.broadcast %94 : vector<1x32xf32> to vector<24x32xf32>
    %116 = arith.mulf %114, %115 : vector<24x32xf32>
    %117 = vector.broadcast %96 : vector<1x32xf32> to vector<24x32xf32>
    %118 = arith.addf %116, %117 : vector<24x32xf32>
    %119 = arith.truncf %118 : vector<24x32xf32> to vector<24x32xbf16>
    %c0_49 = arith.constant 0 : index
    %c0_50 = arith.constant 0 : index
    %c0_51 = arith.constant 0 : index
    %120 = vector.load %arg12[%c0_49, %c0_50, %c0_51] : memref<1x32x128xbf16, #tpu.memory_space<vmem>>, vector<1x32x128xbf16>
    %121 = vector.shape_cast %120 : vector<1x32x128xbf16> to vector<32x128xbf16>
    %cst_52 = arith.constant dense<0.000000e+00> : vector<24x128xf32>
    %122 = tpu.matmul %119, %121, %cst_52 {dimension_numbers = #tpu.dot_dimension_numbers<[1], [0], [0], [1], [0, 0, 1, 1], [], []>} : vector<24x32xbf16>, vector<32x128xbf16>, vector<24x128xf32> -> vector<24x128xf32>
    %c0_53 = arith.constant 0 : index
    %c0_54 = arith.constant 0 : index
    %c0_55 = arith.constant 0 : index
    %123 = vector.load %arg13[%c0_53, %c0_54, %c0_55] : memref<1x1x128xf32, #tpu.memory_space<vmem>>, vector<1x1x128xf32>
    %124 = vector.shape_cast %123 : vector<1x1x128xf32> to vector<1x128xf32>
    %125 = vector.broadcast %124 : vector<1x128xf32> to vector<24x128xf32>
    %126 = arith.addf %122, %125 : vector<24x128xf32>
    %cst_56 = arith.constant 1.702000e+00 : f32
    %127 = vector.broadcast %cst_56 : f32 to vector<24x128xf32>
    %128 = arith.mulf %127, %126 : vector<24x128xf32>
    %129 = arith.negf %128 : vector<24x128xf32>
    %130 = math.exp %129 : vector<24x128xf32>
    %cst_57 = arith.constant 1.000000e+00 : f32
    %131 = vector.broadcast %cst_57 : f32 to vector<24x128xf32>
    %132 = arith.addf %131, %130 : vector<24x128xf32>
    %133 = arith.divf %131, %132 : vector<24x128xf32>
    %134 = arith.mulf %126, %133 : vector<24x128xf32>
    %135 = arith.truncf %134 : vector<24x128xf32> to vector<24x128xbf16>
    %c0_58 = arith.constant 0 : index
    %c0_59 = arith.constant 0 : index
    %c0_60 = arith.constant 0 : index
    %136 = vector.load %arg14[%c0_58, %c0_59, %c0_60] : memref<1x128x32xbf16, #tpu.memory_space<vmem>>, vector<1x128x32xbf16>
    %137 = vector.shape_cast %136 : vector<1x128x32xbf16> to vector<128x32xbf16>
    %cst_61 = arith.constant dense<0.000000e+00> : vector<24x32xf32>
    %138 = tpu.matmul %135, %137, %cst_61 {dimension_numbers = #tpu.dot_dimension_numbers<[1], [0], [0], [1], [0, 0, 1, 1], [], []>} : vector<24x128xbf16>, vector<128x32xbf16>, vector<24x32xf32> -> vector<24x32xf32>
    %c0_62 = arith.constant 0 : index
    %c0_63 = arith.constant 0 : index
    %c0_64 = arith.constant 0 : index
    %139 = vector.load %arg15[%c0_62, %c0_63, %c0_64] : memref<1x1x32xf32, #tpu.memory_space<vmem>>, vector<1x1x32xf32>
    %140 = vector.shape_cast %139 : vector<1x1x32xf32> to vector<1x32xf32>
    %141 = vector.broadcast %140 : vector<1x32xf32> to vector<24x32xf32>
    %142 = arith.addf %138, %141 : vector<24x32xf32>
    %143 = arith.addf %92, %142 : vector<24x32xf32>
    %c0_65 = arith.constant 0 : index
    %c0_66 = arith.constant 0 : index
    %c0_67 = arith.constant 0 : index
    %144 = vector.load %arg16[%c0_65, %c0_66, %c0_67] : memref<1x24x32xf32, #tpu.memory_space<vmem>>, vector<1x24x32xf32>
    %145 = vector.shape_cast %144 : vector<1x24x32xf32> to vector<24x32xf32>
    %146 = vector.shape_cast %143 : vector<24x32xf32> to vector<1x24x32xf32>
    tpu.vector_store %arg16[%c0_65, %c0_66, %c0_67], %146 {strides = array<i32>} : memref<1x24x32xf32, #tpu.memory_space<vmem>>, vector<1x24x32xf32>,
    return
  }
  func.func @transform_0(%arg0: i32, %arg1: i32) -> (i32, i32, i32) {
    %c0_i32 = arith.constant 0 : i32
    %c0_i32_0 = arith.constant 0 : i32
    %c0_i32_1 = arith.constant 0 : i32
    return %arg0, %c0_i32, %c0_i32_0 : i32, i32, i32
  }
  func.func @transform_1(%arg0: i32, %arg1: i32) -> (i32, i32, i32) {
    %c0_i32 = arith.constant 0 : i32
    %c0_i32_0 = arith.constant 0 : i32
    %c0_i32_1 = arith.constant 0 : i32
    return %arg0, %c0_i32, %c0_i32_0 : i32, i32, i32
  }
  func.func @transform_2(%arg0: i32, %arg1: i32) -> (i32, i32, i32) {
    %c0_i32 = arith.constant 0 : i32
    %c0_i32_0 = arith.constant 0 : i32
    %c0_i32_1 = arith.constant 0 : i32
    return %arg1, %c0_i32, %c0_i32_0 : i32, i32, i32
  }
  func.func @transform_3(%arg0: i32, %arg1: i32) -> (i32, i32, i32) {
    %c0_i32 = arith.constant 0 : i32
    %c0_i32_0 = arith.constant 0 : i32
    %c0_i32_1 = arith.constant 0 : i32
    return %arg1, %c0_i32, %c0_i32_0 : i32, i32, i32
  }
  func.func @transform_4(%arg0: i32, %arg1: i32) -> (i32, i32, i32) {
    %c0_i32 = arith.constant 0 : i32
    %c0_i32_0 = arith.constant 0 : i32
    %c0_i32_1 = arith.constant 0 : i32
    return %arg1, %c0_i32, %c0_i32_0 : i32, i32, i32
  }
  func.func @transform_5(%arg0: i32, %arg1: i32) -> (i32, i32, i32) {
    %c0_i32 = arith.constant 0 : i32
    %c0_i32_0 = arith.constant 0 : i32
    %c0_i32_1 = arith.constant 0 : i32
    return %arg1, %c0_i32, %c0_i32_0 : i32, i32, i32
  }
  func.func @transform_6(%arg0: i32, %arg1: i32) -> (i32, i32, i32) {
    %c0_i32 = arith.constant 0 : i32
    %c0_i32_0 = arith.constant 0 : i32
    %c0_i32_1 = arith.constant 0 : i32
    return %arg1, %c0_i32, %c0_i32_0 : i32, i32, i32
  }
  func.func @transform_7(%arg0: i32, %arg1: i32) -> (i32, i32, i32) {
    %c0_i32 = arith.constant 0 : i32
    %c0_i32_0 = arith.constant 0 : i32
    %c0_i32_1 = arith.constant 0 : i32
    return %arg1, %c0_i32, %c0_i32_0 : i32, i32, i32
  }
  func.func @transform_8(%arg0: i32, %arg1: i32) -> (i32, i32, i32) {
    %c0_i32 = arith.constant 0 : i32
    %c0_i32_0 = arith.constant 0 : i32
    %c0_i32_1 = arith.constant 0 : i32
    return %arg1, %c0_i32, %c0_i32_0 : i32, i32, i32
  }
  func.func @transform_9(%arg0: i32, %arg1: i32) -> (i32, i32, i32) {
    %c0_i32 = arith.constant 0 : i32
    %c0_i32_0 = arith.constant 0 : i32
    %c0_i32_1 = arith.constant 0 : i32
    return %arg1, %c0_i32, %c0_i32_0 : i32, i32, i32
  }
  func.func @transform_10(%arg0: i32, %arg1: i32) -> (i32, i32, i32) {
    %c0_i32 = arith.constant 0 : i32
    %c0_i32_0 = arith.constant 0 : i32
    %c0_i32_1 = arith.constant 0 : i32
    return %arg1, %c0_i32, %c0_i32_0 : i32, i32, i32
  }
  func.func @transform_11(%arg0: i32, %arg1: i32) -> (i32, i32, i32) {
    %c0_i32 = arith.constant 0 : i32
    %c0_i32_0 = arith.constant 0 : i32
    %c0_i32_1 = arith.constant 0 : i32
    return %arg1, %c0_i32, %c0_i32_0 : i32, i32, i32
  }
  func.func @transform_12(%arg0: i32, %arg1: i32) -> (i32, i32, i32) {
    %c0_i32 = arith.constant 0 : i32
    %c0_i32_0 = arith.constant 0 : i32
    %c0_i32_1 = arith.constant 0 : i32
    return %arg1, %c0_i32, %c0_i32_0 : i32, i32, i32
  }
  func.func @transform_13(%arg0: i32, %arg1: i32) -> (i32, i32, i32) {
    %c0_i32 = arith.constant 0 : i32
    %c0_i32_0 = arith.constant 0 : i32
    %c0_i32_1 = arith.constant 0 : i32
    return %arg1, %c0_i32, %c0_i32_0 : i32, i32, i32
  }
  func.func @transform_14(%arg0: i32, %arg1: i32) -> (i32, i32, i32) {
    %c0_i32 = arith.constant 0 : i32
    %c0_i32_0 = arith.constant 0 : i32
    %c0_i32_1 = arith.constant 0 : i32
    return %arg0, %c0_i32, %c0_i32_0 : i32, i32, i32
  }
}

module attributes {stable_mosaic.version = 11 : i64} {
  func.func @_stack_kernel(%arg0: i32, %arg1: i32, %arg2: memref<1x40x32xf32, #tpu.memory_space<vmem>>, %arg3: memref<1x1x40xf32, #tpu.memory_space<vmem>>, %arg4: memref<1x1x32xf32, #tpu.memory_space<vmem>>, %arg5: memref<1x1x32xf32, #tpu.memory_space<vmem>>, %arg6: memref<1x32x96xbf16, #tpu.memory_space<vmem>>, %arg7: memref<1x1x96xf32, #tpu.memory_space<vmem>>, %arg8: memref<1x32x32xbf16, #tpu.memory_space<vmem>>, %arg9: memref<1x1x32xf32, #tpu.memory_space<vmem>>, %arg10: memref<1x1x32xf32, #tpu.memory_space<vmem>>, %arg11: memref<1x1x32xf32, #tpu.memory_space<vmem>>, %arg12: memref<1x32x128xbf16, #tpu.memory_space<vmem>>, %arg13: memref<1x1x128xf32, #tpu.memory_space<vmem>>, %arg14: memref<1x128x32xbf16, #tpu.memory_space<vmem>>, %arg15: memref<1x1x32xf32, #tpu.memory_space<vmem>>, %arg16: memref<1x40x32xf32, #tpu.memory_space<vmem>>) attributes {dimension_semantics = [#tpu.dimension_semantics<parallel>, #tpu.dimension_semantics<arbitrary>], iteration_bounds = array<i64: 2, 1>, scalar_prefetch = 0 : i64, scratch_operands = 0 : i64, tpu.core_type = #tpu.core_type<tc>, window_params = [{transform_indices = @transform_0, window_bounds = array<i64: 1, 40, 32>}, {transform_indices = @transform_1, window_bounds = array<i64: 1, 1, 40>}, {transform_indices = @transform_2, window_bounds = array<i64: 1, 1, 32>}, {transform_indices = @transform_3, window_bounds = array<i64: 1, 1, 32>}, {transform_indices = @transform_4, window_bounds = array<i64: 1, 32, 96>}, {transform_indices = @transform_5, window_bounds = array<i64: 1, 1, 96>}, {transform_indices = @transform_6, window_bounds = array<i64: 1, 32, 32>}, {transform_indices = @transform_7, window_bounds = array<i64: 1, 1, 32>}, {transform_indices = @transform_8, window_bounds = array<i64: 1, 1, 32>}, {transform_indices = @transform_9, window_bounds = array<i64: 1, 1, 32>}, {transform_indices = @transform_10, window_bounds = array<i64: 1, 32, 128>}, {transform_indices = @transform_11, window_bounds = array<i64: 1, 1, 128>}, {transform_indices = @transform_12, window_bounds = array<i64: 1, 128, 32>}, {transform_indices = @transform_13, window_bounds = array<i64: 1, 1, 32>}, {transform_indices = @transform_14, window_bounds = array<i64: 1, 40, 32>}]} {
    %c0_i32 = arith.constant 0 : i32
    %0 = arith.cmpi eq, %arg1, %c0_i32 : i32
    %1 = arith.extui %0 : i1 to i32
    %c0_i32_0 = arith.constant 0 : i32
    %2 = arith.cmpi ne, %1, %c0_i32_0 : i32
    scf.if %2 {
      %c0_68 = arith.constant 0 : index
      %c0_69 = arith.constant 0 : index
      %c0_70 = arith.constant 0 : index
      %147 = vector.load %arg2[%c0_68, %c0_69, %c0_70] : memref<1x40x32xf32, #tpu.memory_space<vmem>>, vector<1x40x32xf32>
      %c0_71 = arith.constant 0 : index
      %c0_72 = arith.constant 0 : index
      %c0_73 = arith.constant 0 : index
      %148 = vector.load %arg16[%c0_71, %c0_72, %c0_73] : memref<1x40x32xf32, #tpu.memory_space<vmem>>, vector<1x40x32xf32>
      tpu.vector_store %arg16[%c0_71, %c0_72, %c0_73], %147 {strides = array<i32>} : memref<1x40x32xf32, #tpu.memory_space<vmem>>, vector<1x40x32xf32>,
    } else {
    }
    %c0 = arith.constant 0 : index
    %c0_1 = arith.constant 0 : index
    %c0_2 = arith.constant 0 : index
    %3 = vector.load %arg16[%c0, %c0_1, %c0_2] : memref<1x40x32xf32, #tpu.memory_space<vmem>>, vector<1x40x32xf32>
    %4 = vector.shape_cast %3 : vector<1x40x32xf32> to vector<40x32xf32>
    %c0_3 = arith.constant 0 : index
    %c0_4 = arith.constant 0 : index
    %c0_5 = arith.constant 0 : index
    %5 = vector.load %arg4[%c0_3, %c0_4, %c0_5] : memref<1x1x32xf32, #tpu.memory_space<vmem>>, vector<1x1x32xf32>
    %6 = vector.shape_cast %5 : vector<1x1x32xf32> to vector<1x32xf32>
    %c0_6 = arith.constant 0 : index
    %c0_7 = arith.constant 0 : index
    %c0_8 = arith.constant 0 : index
    %7 = vector.load %arg5[%c0_6, %c0_7, %c0_8] : memref<1x1x32xf32, #tpu.memory_space<vmem>>, vector<1x1x32xf32>
    %8 = vector.shape_cast %7 : vector<1x1x32xf32> to vector<1x32xf32>
    %cst = arith.constant dense<0.000000e+00> : vector<40xf32>
    %9 = vector.multi_reduction <add>, %4, %cst [1] : vector<40x32xf32> to vector<40xf32>
    %10 = vector.shape_cast %9 : vector<40xf32> to vector<40x1xf32>
    %cst_9 = arith.constant 3.200000e+01 : f32
    %11 = vector.broadcast %cst_9 : f32 to vector<40x1xf32>
    %12 = arith.divf %10, %11 : vector<40x1xf32>
    %13 = vector.broadcast %12 : vector<40x1xf32> to vector<40x32xf32>
    %14 = arith.subf %4, %13 : vector<40x32xf32>
    %15 = arith.mulf %14, %14 : vector<40x32xf32>
    %cst_10 = arith.constant dense<0.000000e+00> : vector<40xf32>
    %16 = vector.multi_reduction <add>, %15, %cst_10 [1] : vector<40x32xf32> to vector<40xf32>
    %17 = vector.shape_cast %16 : vector<40xf32> to vector<40x1xf32>
    %cst_11 = arith.constant 3.200000e+01 : f32
    %18 = vector.broadcast %cst_11 : f32 to vector<40x1xf32>
    %19 = arith.divf %17, %18 : vector<40x1xf32>
    %20 = vector.broadcast %12 : vector<40x1xf32> to vector<40x32xf32>
    %21 = arith.subf %4, %20 : vector<40x32xf32>
    %cst_12 = arith.constant 9.99999974E-6 : f32
    %22 = vector.broadcast %cst_12 : f32 to vector<40x1xf32>
    %23 = arith.addf %19, %22 : vector<40x1xf32>
    %24 = math.rsqrt %23 : vector<40x1xf32>
    %25 = vector.broadcast %24 : vector<40x1xf32> to vector<40x32xf32>
    %26 = arith.mulf %21, %25 : vector<40x32xf32>
    %27 = vector.broadcast %6 : vector<1x32xf32> to vector<40x32xf32>
    %28 = arith.mulf %26, %27 : vector<40x32xf32>
    %29 = vector.broadcast %8 : vector<1x32xf32> to vector<40x32xf32>
    %30 = arith.addf %28, %29 : vector<40x32xf32>
    %31 = arith.truncf %30 : vector<40x32xf32> to vector<40x32xbf16>
    %c0_13 = arith.constant 0 : index
    %c0_14 = arith.constant 0 : index
    %c0_15 = arith.constant 0 : index
    %32 = vector.load %arg6[%c0_13, %c0_14, %c0_15] : memref<1x32x96xbf16, #tpu.memory_space<vmem>>, vector<1x32x96xbf16>
    %33 = vector.shape_cast %32 : vector<1x32x96xbf16> to vector<32x96xbf16>
    %cst_16 = arith.constant dense<0.000000e+00> : vector<40x96xf32>
    %34 = tpu.matmul %31, %33, %cst_16 {dimension_numbers = #tpu.dot_dimension_numbers<[1], [0], [0], [1], [0, 0, 1, 1], [], []>} : vector<40x32xbf16>, vector<32x96xbf16>, vector<40x96xf32> -> vector<40x96xf32>
    %c0_17 = arith.constant 0 : index
    %c0_18 = arith.constant 0 : index
    %c0_19 = arith.constant 0 : index
    %35 = vector.load %arg7[%c0_17, %c0_18, %c0_19] : memref<1x1x96xf32, #tpu.memory_space<vmem>>, vector<1x1x96xf32>
    %36 = vector.shape_cast %35 : vector<1x1x96xf32> to vector<1x96xf32>
    %37 = vector.broadcast %36 : vector<1x96xf32> to vector<40x96xf32>
    %38 = arith.addf %34, %37 : vector<40x96xf32>
    %c0_20 = arith.constant 0 : index
    %c0_21 = arith.constant 0 : index
    %c0_22 = arith.constant 0 : index
    %39 = vector.load %arg3[%c0_20, %c0_21, %c0_22] : memref<1x1x40xf32, #tpu.memory_space<vmem>>, vector<1x1x40xf32>
    %40 = vector.shape_cast %39 : vector<1x1x40xf32> to vector<1x40xf32>
    %41 = vector.shape_cast %40 : vector<1x40xf32> to vector<1x40xf32>
    %42 = vector.broadcast %41 : vector<1x40xf32> to vector<40x40xf32>
    %43 = vector.extract_strided_slice %38 {offsets = [0, 0], sizes = [40, 16], strides = [1, 1]} : vector<40x96xf32> to vector<40x16xf32>
    %44 = arith.truncf %43 : vector<40x16xf32> to vector<40x16xbf16>
    %45 = vector.extract_strided_slice %38 {offsets = [0, 32], sizes = [40, 16], strides = [1, 1]} : vector<40x96xf32> to vector<40x16xf32>
    %46 = arith.truncf %45 : vector<40x16xf32> to vector<40x16xbf16>
    %47 = vector.extract_strided_slice %38 {offsets = [0, 64], sizes = [40, 16], strides = [1, 1]} : vector<40x96xf32> to vector<40x16xf32>
    %48 = arith.truncf %47 : vector<40x16xf32> to vector<40x16xbf16>
    %cst_23 = arith.constant dense<0.000000e+00> : vector<40x40xf32>
    %49 = tpu.matmul %44, %46, %cst_23 {dimension_numbers = #tpu.dot_dimension_numbers<[1], [1], [0], [0], [0, 0, 1, 0], [], []>} : vector<40x16xbf16>, vector<40x16xbf16>, vector<40x40xf32> -> vector<40x40xf32>
    %50 = arith.addf %49, %42 : vector<40x40xf32>
    %cst_24 = arith.constant dense<0xFF800000> : vector<40xf32>
    %51 = vector.multi_reduction <maximumf>, %50, %cst_24 [1] : vector<40x40xf32> to vector<40xf32>
    %52 = vector.shape_cast %51 : vector<40xf32> to vector<40x1xf32>
    %53 = vector.broadcast %52 : vector<40x1xf32> to vector<40x40xf32>
    %54 = arith.subf %50, %53 : vector<40x40xf32>
    %55 = math.exp %54 : vector<40x40xf32>
    %cst_25 = arith.constant dense<0.000000e+00> : vector<40xf32>
    %56 = vector.multi_reduction <add>, %55, %cst_25 [1] : vector<40x40xf32> to vector<40xf32>
    %57 = vector.shape_cast %56 : vector<40xf32> to vector<40x1xf32>
    %58 = tpu.reciprocal %57 {approx = true} : vector<40x1xf32> -> vector<40x1xf32>
    %59 = vector.broadcast %58 : vector<40x1xf32> to vector<40x40xf32>
    %60 = arith.mulf %55, %59 : vector<40x40xf32>
    %61 = arith.truncf %60 : vector<40x40xf32> to vector<40x40xbf16>
    %cst_26 = arith.constant dense<0.000000e+00> : vector<40x16xf32>
    %62 = tpu.matmul %61, %48, %cst_26 {dimension_numbers = #tpu.dot_dimension_numbers<[1], [0], [0], [1], [0, 0, 1, 1], [], []>} : vector<40x40xbf16>, vector<40x16xbf16>, vector<40x16xf32> -> vector<40x16xf32>
    %63 = vector.extract_strided_slice %38 {offsets = [0, 16], sizes = [40, 16], strides = [1, 1]} : vector<40x96xf32> to vector<40x16xf32>
    %64 = arith.truncf %63 : vector<40x16xf32> to vector<40x16xbf16>
    %65 = vector.extract_strided_slice %38 {offsets = [0, 48], sizes = [40, 16], strides = [1, 1]} : vector<40x96xf32> to vector<40x16xf32>
    %66 = arith.truncf %65 : vector<40x16xf32> to vector<40x16xbf16>
    %67 = vector.extract_strided_slice %38 {offsets = [0, 80], sizes = [40, 16], strides = [1, 1]} : vector<40x96xf32> to vector<40x16xf32>
    %68 = arith.truncf %67 : vector<40x16xf32> to vector<40x16xbf16>
    %cst_27 = arith.constant dense<0.000000e+00> : vector<40x40xf32>
    %69 = tpu.matmul %64, %66, %cst_27 {dimension_numbers = #tpu.dot_dimension_numbers<[1], [1], [0], [0], [0, 0, 1, 0], [], []>} : vector<40x16xbf16>, vector<40x16xbf16>, vector<40x40xf32> -> vector<40x40xf32>
    %70 = arith.addf %69, %42 : vector<40x40xf32>
    %cst_28 = arith.constant dense<0xFF800000> : vector<40xf32>
    %71 = vector.multi_reduction <maximumf>, %70, %cst_28 [1] : vector<40x40xf32> to vector<40xf32>
    %72 = vector.shape_cast %71 : vector<40xf32> to vector<40x1xf32>
    %73 = vector.broadcast %72 : vector<40x1xf32> to vector<40x40xf32>
    %74 = arith.subf %70, %73 : vector<40x40xf32>
    %75 = math.exp %74 : vector<40x40xf32>
    %cst_29 = arith.constant dense<0.000000e+00> : vector<40xf32>
    %76 = vector.multi_reduction <add>, %75, %cst_29 [1] : vector<40x40xf32> to vector<40xf32>
    %77 = vector.shape_cast %76 : vector<40xf32> to vector<40x1xf32>
    %78 = tpu.reciprocal %77 {approx = true} : vector<40x1xf32> -> vector<40x1xf32>
    %79 = vector.broadcast %78 : vector<40x1xf32> to vector<40x40xf32>
    %80 = arith.mulf %75, %79 : vector<40x40xf32>
    %81 = arith.truncf %80 : vector<40x40xf32> to vector<40x40xbf16>
    %cst_30 = arith.constant dense<0.000000e+00> : vector<40x16xf32>
    %82 = tpu.matmul %81, %68, %cst_30 {dimension_numbers = #tpu.dot_dimension_numbers<[1], [0], [0], [1], [0, 0, 1, 1], [], []>} : vector<40x40xbf16>, vector<40x16xbf16>, vector<40x16xf32> -> vector<40x16xf32>
    %83 = tpu.concatenate %62, %82 in 1 : vector<40x16xf32>, vector<40x16xf32> -> vector<40x32xf32>
    %84 = arith.truncf %83 : vector<40x32xf32> to vector<40x32xbf16>
    %c0_31 = arith.constant 0 : index
    %c0_32 = arith.constant 0 : index
    %c0_33 = arith.constant 0 : index
    %85 = vector.load %arg8[%c0_31, %c0_32, %c0_33] : memref<1x32x32xbf16, #tpu.memory_space<vmem>>, vector<1x32x32xbf16>
    %86 = vector.shape_cast %85 : vector<1x32x32xbf16> to vector<32x32xbf16>
    %cst_34 = arith.constant dense<0.000000e+00> : vector<40x32xf32>
    %87 = tpu.matmul %84, %86, %cst_34 {dimension_numbers = #tpu.dot_dimension_numbers<[1], [0], [0], [1], [0, 0, 1, 1], [], []>} : vector<40x32xbf16>, vector<32x32xbf16>, vector<40x32xf32> -> vector<40x32xf32>
    %c0_35 = arith.constant 0 : index
    %c0_36 = arith.constant 0 : index
    %c0_37 = arith.constant 0 : index
    %88 = vector.load %arg9[%c0_35, %c0_36, %c0_37] : memref<1x1x32xf32, #tpu.memory_space<vmem>>, vector<1x1x32xf32>
    %89 = vector.shape_cast %88 : vector<1x1x32xf32> to vector<1x32xf32>
    %90 = vector.broadcast %89 : vector<1x32xf32> to vector<40x32xf32>
    %91 = arith.addf %87, %90 : vector<40x32xf32>
    %92 = arith.addf %4, %91 : vector<40x32xf32>
    %c0_38 = arith.constant 0 : index
    %c0_39 = arith.constant 0 : index
    %c0_40 = arith.constant 0 : index
    %93 = vector.load %arg10[%c0_38, %c0_39, %c0_40] : memref<1x1x32xf32, #tpu.memory_space<vmem>>, vector<1x1x32xf32>
    %94 = vector.shape_cast %93 : vector<1x1x32xf32> to vector<1x32xf32>
    %c0_41 = arith.constant 0 : index
    %c0_42 = arith.constant 0 : index
    %c0_43 = arith.constant 0 : index
    %95 = vector.load %arg11[%c0_41, %c0_42, %c0_43] : memref<1x1x32xf32, #tpu.memory_space<vmem>>, vector<1x1x32xf32>
    %96 = vector.shape_cast %95 : vector<1x1x32xf32> to vector<1x32xf32>
    %cst_44 = arith.constant dense<0.000000e+00> : vector<40xf32>
    %97 = vector.multi_reduction <add>, %92, %cst_44 [1] : vector<40x32xf32> to vector<40xf32>
    %98 = vector.shape_cast %97 : vector<40xf32> to vector<40x1xf32>
    %cst_45 = arith.constant 3.200000e+01 : f32
    %99 = vector.broadcast %cst_45 : f32 to vector<40x1xf32>
    %100 = arith.divf %98, %99 : vector<40x1xf32>
    %101 = vector.broadcast %100 : vector<40x1xf32> to vector<40x32xf32>
    %102 = arith.subf %92, %101 : vector<40x32xf32>
    %103 = arith.mulf %102, %102 : vector<40x32xf32>
    %cst_46 = arith.constant dense<0.000000e+00> : vector<40xf32>
    %104 = vector.multi_reduction <add>, %103, %cst_46 [1] : vector<40x32xf32> to vector<40xf32>
    %105 = vector.shape_cast %104 : vector<40xf32> to vector<40x1xf32>
    %cst_47 = arith.constant 3.200000e+01 : f32
    %106 = vector.broadcast %cst_47 : f32 to vector<40x1xf32>
    %107 = arith.divf %105, %106 : vector<40x1xf32>
    %108 = vector.broadcast %100 : vector<40x1xf32> to vector<40x32xf32>
    %109 = arith.subf %92, %108 : vector<40x32xf32>
    %cst_48 = arith.constant 9.99999974E-6 : f32
    %110 = vector.broadcast %cst_48 : f32 to vector<40x1xf32>
    %111 = arith.addf %107, %110 : vector<40x1xf32>
    %112 = math.rsqrt %111 : vector<40x1xf32>
    %113 = vector.broadcast %112 : vector<40x1xf32> to vector<40x32xf32>
    %114 = arith.mulf %109, %113 : vector<40x32xf32>
    %115 = vector.broadcast %94 : vector<1x32xf32> to vector<40x32xf32>
    %116 = arith.mulf %114, %115 : vector<40x32xf32>
    %117 = vector.broadcast %96 : vector<1x32xf32> to vector<40x32xf32>
    %118 = arith.addf %116, %117 : vector<40x32xf32>
    %119 = arith.truncf %118 : vector<40x32xf32> to vector<40x32xbf16>
    %c0_49 = arith.constant 0 : index
    %c0_50 = arith.constant 0 : index
    %c0_51 = arith.constant 0 : index
    %120 = vector.load %arg12[%c0_49, %c0_50, %c0_51] : memref<1x32x128xbf16, #tpu.memory_space<vmem>>, vector<1x32x128xbf16>
    %121 = vector.shape_cast %120 : vector<1x32x128xbf16> to vector<32x128xbf16>
    %cst_52 = arith.constant dense<0.000000e+00> : vector<40x128xf32>
    %122 = tpu.matmul %119, %121, %cst_52 {dimension_numbers = #tpu.dot_dimension_numbers<[1], [0], [0], [1], [0, 0, 1, 1], [], []>} : vector<40x32xbf16>, vector<32x128xbf16>, vector<40x128xf32> -> vector<40x128xf32>
    %c0_53 = arith.constant 0 : index
    %c0_54 = arith.constant 0 : index
    %c0_55 = arith.constant 0 : index
    %123 = vector.load %arg13[%c0_53, %c0_54, %c0_55] : memref<1x1x128xf32, #tpu.memory_space<vmem>>, vector<1x1x128xf32>
    %124 = vector.shape_cast %123 : vector<1x1x128xf32> to vector<1x128xf32>
    %125 = vector.broadcast %124 : vector<1x128xf32> to vector<40x128xf32>
    %126 = arith.addf %122, %125 : vector<40x128xf32>
    %cst_56 = arith.constant 1.702000e+00 : f32
    %127 = vector.broadcast %cst_56 : f32 to vector<40x128xf32>
    %128 = arith.mulf %127, %126 : vector<40x128xf32>
    %129 = arith.negf %128 : vector<40x128xf32>
    %130 = math.exp %129 : vector<40x128xf32>
    %cst_57 = arith.constant 1.000000e+00 : f32
    %131 = vector.broadcast %cst_57 : f32 to vector<40x128xf32>
    %132 = arith.addf %131, %130 : vector<40x128xf32>
    %133 = arith.divf %131, %132 : vector<40x128xf32>
    %134 = arith.mulf %126, %133 : vector<40x128xf32>
    %135 = arith.truncf %134 : vector<40x128xf32> to vector<40x128xbf16>
    %c0_58 = arith.constant 0 : index
    %c0_59 = arith.constant 0 : index
    %c0_60 = arith.constant 0 : index
    %136 = vector.load %arg14[%c0_58, %c0_59, %c0_60] : memref<1x128x32xbf16, #tpu.memory_space<vmem>>, vector<1x128x32xbf16>
    %137 = vector.shape_cast %136 : vector<1x128x32xbf16> to vector<128x32xbf16>
    %cst_61 = arith.constant dense<0.000000e+00> : vector<40x32xf32>
    %138 = tpu.matmul %135, %137, %cst_61 {dimension_numbers = #tpu.dot_dimension_numbers<[1], [0], [0], [1], [0, 0, 1, 1], [], []>} : vector<40x128xbf16>, vector<128x32xbf16>, vector<40x32xf32> -> vector<40x32xf32>
    %c0_62 = arith.constant 0 : index
    %c0_63 = arith.constant 0 : index
    %c0_64 = arith.constant 0 : index
    %139 = vector.load %arg15[%c0_62, %c0_63, %c0_64] : memref<1x1x32xf32, #tpu.memory_space<vmem>>, vector<1x1x32xf32>
    %140 = vector.shape_cast %139 : vector<1x1x32xf32> to vector<1x32xf32>
    %141 = vector.broadcast %140 : vector<1x32xf32> to vector<40x32xf32>
    %142 = arith.addf %138, %141 : vector<40x32xf32>
    %143 = arith.addf %92, %142 : vector<40x32xf32>
    %c0_65 = arith.constant 0 : index
    %c0_66 = arith.constant 0 : index
    %c0_67 = arith.constant 0 : index
    %144 = vector.load %arg16[%c0_65, %c0_66, %c0_67] : memref<1x40x32xf32, #tpu.memory_space<vmem>>, vector<1x40x32xf32>
    %145 = vector.shape_cast %144 : vector<1x40x32xf32> to vector<40x32xf32>
    %146 = vector.shape_cast %143 : vector<40x32xf32> to vector<1x40x32xf32>
    tpu.vector_store %arg16[%c0_65, %c0_66, %c0_67], %146 {strides = array<i32>} : memref<1x40x32xf32, #tpu.memory_space<vmem>>, vector<1x40x32xf32>,
    return
  }
  func.func @transform_0(%arg0: i32, %arg1: i32) -> (i32, i32, i32) {
    %c0_i32 = arith.constant 0 : i32
    %c0_i32_0 = arith.constant 0 : i32
    %c0_i32_1 = arith.constant 0 : i32
    return %arg0, %c0_i32, %c0_i32_0 : i32, i32, i32
  }
  func.func @transform_1(%arg0: i32, %arg1: i32) -> (i32, i32, i32) {
    %c0_i32 = arith.constant 0 : i32
    %c0_i32_0 = arith.constant 0 : i32
    %c0_i32_1 = arith.constant 0 : i32
    return %arg0, %c0_i32, %c0_i32_0 : i32, i32, i32
  }
  func.func @transform_2(%arg0: i32, %arg1: i32) -> (i32, i32, i32) {
    %c0_i32 = arith.constant 0 : i32
    %c0_i32_0 = arith.constant 0 : i32
    %c0_i32_1 = arith.constant 0 : i32
    return %arg1, %c0_i32, %c0_i32_0 : i32, i32, i32
  }
  func.func @transform_3(%arg0: i32, %arg1: i32) -> (i32, i32, i32) {
    %c0_i32 = arith.constant 0 : i32
    %c0_i32_0 = arith.constant 0 : i32
    %c0_i32_1 = arith.constant 0 : i32
    return %arg1, %c0_i32, %c0_i32_0 : i32, i32, i32
  }
  func.func @transform_4(%arg0: i32, %arg1: i32) -> (i32, i32, i32) {
    %c0_i32 = arith.constant 0 : i32
    %c0_i32_0 = arith.constant 0 : i32
    %c0_i32_1 = arith.constant 0 : i32
    return %arg1, %c0_i32, %c0_i32_0 : i32, i32, i32
  }
  func.func @transform_5(%arg0: i32, %arg1: i32) -> (i32, i32, i32) {
    %c0_i32 = arith.constant 0 : i32
    %c0_i32_0 = arith.constant 0 : i32
    %c0_i32_1 = arith.constant 0 : i32
    return %arg1, %c0_i32, %c0_i32_0 : i32, i32, i32
  }
  func.func @transform_6(%arg0: i32, %arg1: i32) -> (i32, i32, i32) {
    %c0_i32 = arith.constant 0 : i32
    %c0_i32_0 = arith.constant 0 : i32
    %c0_i32_1 = arith.constant 0 : i32
    return %arg1, %c0_i32, %c0_i32_0 : i32, i32, i32
  }
  func.func @transform_7(%arg0: i32, %arg1: i32) -> (i32, i32, i32) {
    %c0_i32 = arith.constant 0 : i32
    %c0_i32_0 = arith.constant 0 : i32
    %c0_i32_1 = arith.constant 0 : i32
    return %arg1, %c0_i32, %c0_i32_0 : i32, i32, i32
  }
  func.func @transform_8(%arg0: i32, %arg1: i32) -> (i32, i32, i32) {
    %c0_i32 = arith.constant 0 : i32
    %c0_i32_0 = arith.constant 0 : i32
    %c0_i32_1 = arith.constant 0 : i32
    return %arg1, %c0_i32, %c0_i32_0 : i32, i32, i32
  }
  func.func @transform_9(%arg0: i32, %arg1: i32) -> (i32, i32, i32) {
    %c0_i32 = arith.constant 0 : i32
    %c0_i32_0 = arith.constant 0 : i32
    %c0_i32_1 = arith.constant 0 : i32
    return %arg1, %c0_i32, %c0_i32_0 : i32, i32, i32
  }
  func.func @transform_10(%arg0: i32, %arg1: i32) -> (i32, i32, i32) {
    %c0_i32 = arith.constant 0 : i32
    %c0_i32_0 = arith.constant 0 : i32
    %c0_i32_1 = arith.constant 0 : i32
    return %arg1, %c0_i32, %c0_i32_0 : i32, i32, i32
  }
  func.func @transform_11(%arg0: i32, %arg1: i32) -> (i32, i32, i32) {
    %c0_i32 = arith.constant 0 : i32
    %c0_i32_0 = arith.constant 0 : i32
    %c0_i32_1 = arith.constant 0 : i32
    return %arg1, %c0_i32, %c0_i32_0 : i32, i32, i32
  }
  func.func @transform_12(%arg0: i32, %arg1: i32) -> (i32, i32, i32) {
    %c0_i32 = arith.constant 0 : i32
    %c0_i32_0 = arith.constant 0 : i32
    %c0_i32_1 = arith.constant 0 : i32
    return %arg1, %c0_i32, %c0_i32_0 : i32, i32, i32
  }
  func.func @transform_13(%arg0: i32, %arg1: i32) -> (i32, i32, i32) {
    %c0_i32 = arith.constant 0 : i32
    %c0_i32_0 = arith.constant 0 : i32
    %c0_i32_1 = arith.constant 0 : i32
    return %arg1, %c0_i32, %c0_i32_0 : i32, i32, i32
  }
  func.func @transform_14(%arg0: i32, %arg1: i32) -> (i32, i32, i32) {
    %c0_i32 = arith.constant 0 : i32
    %c0_i32_0 = arith.constant 0 : i32
    %c0_i32_1 = arith.constant 0 : i32
    return %arg0, %c0_i32, %c0_i32_0 : i32, i32, i32
  }
}

</mosaic_0001>

<llo_original>
// kernel: custom-call.68
$region0: #{custom-call.68}
  %s0 = inlined_call_operand.vmem [shape: f32[64,32], index: 0, kind: input, shape index: {}]
  %s1 = inlined_call_operand.vmem [shape: f32[64,32], index: 1, kind: output, shape index: {0}]
  %s2 = inlined_call_operand.vmem [shape: f32[32], index: 2, kind: output, shape index: {1}]
  %3 = xla_tuple %s1, %s2
  $region1: #{custom-call.68} parent=0
    #allocation0 [shape = 'u8[32768]{0}', space=vmem, size = 0x8000, scoped, tag = 'operand span for operand 0']
    #allocation1 [shape = 'u8[32768]{0}', space=vmem, size = 0x8000, scoped, tag = 'operand span for operand 1']
    #allocation2 [shape = 'u8[4096]{0}', space=vmem, size = 0x1000, scoped, tag = 'operand span for operand 2']
    #allocation3 [shape = 'u8[512]{0}', space=vmem, size = 0x400, scoped, tag = 'packed  for operand 2']
    #allocation4 [shape = 'f32[64,128]{1,0}', space=vmem, size = 0x8000, scoped, tag = 'scratch for Householder reflectors']
    // Predicated region
    $region2: #{custom-call.68} parent=1 // pred_check
      _
    $region3: #{custom-call.68} parent=1 // pred_check_branch
      %5 = sbr.rel (0) target = $region5
    $region4: #{custom-call.68} parent=1 // pred_region
      // Predicated region
      $region6: #{custom-call.68} parent=4 // pred_check
        _
      $region7: #{custom-call.68} parent=4 // pred_check_branch
        %7 = sbr.rel (0) target = $region9
      $region8: #{custom-call.68} parent=4 // pred_region
        // Predicated region
        $region21: #{custom-call.68} parent=8 // pred_check
          _
        $region22: #{custom-call.68} parent=8 // pred_check_branch
          %36 = sbr.rel (0) target = $region24
        $region23: #{custom-call.68} parent=8 // pred_region
          loop: start=0, step=1, limit=1
          $region25: #{custom-call.68} parent=23 // loop_pre_header
            _
          $region26: #{custom-call.68} parent=23 // loop_header
            %s38 = sphi 0, %s42
            %p39 = scmp.ge.s32.totalorder %s38, 1
            %s43 = sphi %s0, %s0
            %s44 = sphi [#allocation0], [#allocation0]
          $region27: #{custom-call.68} parent=23 // loop_header_branch
            %41 = sbr.rel (%p39) target = $region31
          $region28: #{custom-call.68} parent=23 // loop_body
            %v45 = vld [vmem:[%s43] sm:$0xff]
            %46 = vst [vmem:[%s44] sm:$0xff] %v45
            %v47 = vld [vmem:[%s43 + $0x8] sm:$0xff]
            %48 = vst [vmem:[%s44 + $0x8] sm:$0xff] %v47
            %v49 = vld [vmem:[%s43 + $0x10] sm:$0xff]
            %50 = vst [vmem:[%s44 + $0x10] sm:$0xff] %v49
            %v51 = vld [vmem:[%s43 + $0x18] sm:$0xff]
            %52 = vst [vmem:[%s44 + $0x18] sm:$0xff] %v51
            %v53 = vld [vmem:[%s43 + $0x20] sm:$0xff]
            %54 = vst [vmem:[%s44 + $0x20] sm:$0xff] %v53
            %v55 = vld [vmem:[%s43 + $0x28] sm:$0xff]
            %56 = vst [vmem:[%s44 + $0x28] sm:$0xff] %v55
            %v57 = vld [vmem:[%s43 + $0x30] sm:$0xff]
            %58 = vst [vmem:[%s44 + $0x30] sm:$0xff] %v57
            %v59 = vld [vmem:[%s43 + $0x38] sm:$0xff]
            %60 = vst [vmem:[%s44 + $0x38] sm:$0xff] %v59
          $region29: #{custom-call.68} parent=23 // loop_footer
            %s42 = sadd.s32 1, %s38
          $region30: #{custom-call.68} parent=23 // loop_footer_branch
            %37 = sbr.rel target = $region26
          $region31: #{custom-call.68} parent=23 // loop_exit
            _
        $region24: #{custom-call.68} parent=8 // pred_fallthru
          _
        // Predicated region
        $region32: #{custom-call.68} parent=8 // pred_check
          _
        $region33: #{custom-call.68} parent=8 // pred_check_branch
          %62 = sbr.rel target = $region35
        $region34: #{custom-call.68} parent=8 // pred_region
          _
        $region35: #{custom-call.68} parent=8 // pred_fallthru
          _
      $region9: #{custom-call.68} parent=4 // pred_fallthru
        _
      // Predicated region
      $region10: #{custom-call.68} parent=4 // pred_check
        _
      $region11: #{custom-call.68} parent=4 // pred_check_branch
        %9 = sbr.rel target = $region13
      $region12: #{custom-call.68} parent=4 // pred_region
        loop: start=0, step=1, limit=1
        $region14: #{custom-call.68} parent=12 // loop_pre_header
          _
        $region15: #{custom-call.68} parent=12 // loop_header
          %s12 = sphi 0, %s16
          %p13 = scmp.ge.s32.totalorder %s12, 1
          %s17 = sphi %s0, %s0
          %s18 = sphi [#allocation0], [#allocation0]
        $region16: #{custom-call.68} parent=12 // loop_header_branch
          %15 = sbr.rel (%p13) target = $region20
        $region17: #{custom-call.68} parent=12 // loop_body
          %v19 = vld [vmem:[%s17] sm:$0xff]
          %20 = vst [vmem:[%s18] sm:$0xff] %v19
          %v21 = vld [vmem:[%s17 + $0x8] sm:$0xff]
          %22 = vst [vmem:[%s18 + $0x8] sm:$0xff] %v21
          %v23 = vld [vmem:[%s17 + $0x10] sm:$0xff]
          %24 = vst [vmem:[%s18 + $0x10] sm:$0xff] %v23
          %v25 = vld [vmem:[%s17 + $0x18] sm:$0xff]
          %26 = vst [vmem:[%s18 + $0x18] sm:$0xff] %v25
          %v27 = vld [vmem:[%s17 + $0x20] sm:$0xff]
          %28 = vst [vmem:[%s18 + $0x20] sm:$0xff] %v27
          %v29 = vld [vmem:[%s17 + $0x28] sm:$0xff]
          %30 = vst [vmem:[%s18 + $0x28] sm:$0xff] %v29
          %v31 = vld [vmem:[%s17 + $0x30] sm:$0xff]
          %32 = vst [vmem:[%s18 + $0x30] sm:$0xff] %v31
          %v33 = vld [vmem:[%s17 + $0x38] sm:$0xff]
          %34 = vst [vmem:[%s18 + $0x38] sm:$0xff] %v33
        $region18: #{custom-call.68} parent=12 // loop_footer
          %s16 = sadd.s32 1, %s12
        $region19: #{custom-call.68} parent=12 // loop_footer_branch
          %11 = sbr.rel target = $region15
        $region20: #{custom-call.68} parent=12 // loop_exit
          _
      $region13: #{custom-call.68} parent=4 // pred_fallthru
        _
    $region5: #{custom-call.68} parent=1 // pred_fallthru
      _
    %63 = vnop
    %v64 = vld [vmem:[#allocation0] sm:$0xff]
    %65 = vst [vmem:[#allocation1] sm:$0xff] %v64
    %s66 = scalar_lea.vmem [#allocation1], 8
    %s67 = scalar_lea.vmem [#allocation0], 8
    %v68 = vld [vmem:[%s67] sm:$0xff]
    %69 = vst [vmem:[%s66] sm:$0xff] %v68
    %s70 = scalar_lea.vmem [#allocation1], 16
    %s71 = scalar_lea.vmem [#allocation0], 16
    %v72 = vld [vmem:[%s71] sm:$0xff]
    %73 = vst [vmem:[%s70] sm:$0xff] %v72
    %s74 = scalar_lea.vmem [#allocation1], 24
    %s75 = scalar_lea.vmem [#allocation0], 24
    %v76 = vld [vmem:[%s75] sm:$0xff]
    %77 = vst [vmem:[%s74] sm:$0xff] %v76
    %s78 = scalar_lea.vmem [#allocation1], 32
    %s79 = scalar_lea.vmem [#allocation0], 32
    %v80 = vld [vmem:[%s79] sm:$0xff]
    %81 = vst [vmem:[%s78] sm:$0xff] %v80
    %s82 = scalar_lea.vmem [#allocation1], 40
    %s83 = scalar_lea.vmem [#allocation0], 40
    %v84 = vld [vmem:[%s83] sm:$0xff]
    %85 = vst [vmem:[%s82] sm:$0xff] %v84
    %s86 = scalar_lea.vmem [#allocation1], 48
    %s87 = scalar_lea.vmem [#allocation0], 48
    %v88 = vld [vmem:[%s87] sm:$0xff]
    %89 = vst [vmem:[%s86] sm:$0xff] %v88
    %s90 = scalar_lea.vmem [#allocation1], 56
    %s91 = scalar_lea.vmem [#allocation0], 56
    %v92 = vld [vmem:[%s91] sm:$0xff]
    %93 = vst [vmem:[%s90] sm:$0xff] %v92
    %94 = vst [vmem:[#allocation2] sm:$0x1] 0.0
    loop: start=0, step=1, limit=32
    $region36: #{custom-call.68} parent=1 // loop_pre_header
      _
    $region37: #{custom-call.68} parent=1 // loop_header
      %s96 = sphi 0, %s100
      %p97 = scmp.ge.s32.totalorder %s96, 32
    $region38: #{custom-call.68} parent=1 // loop_header_branch
      %99 = sbr.rel (%p97) target = $region42
    $region39: #{custom-call.68} parent=1 // loop_body
      %v101 = vld [vmem:[#allocation1] sm:$0xff]
      %v102 = vlaneseq
      %v103 = vshrl.u32 %v102, 7
      %v105 = vstv %s96
      %vm106 = vcmp.gt.s32.totalorder %v103, %v105
      %v107 = vsel %vm106, %v101, 0.0
      %v108 = vmul.f32 %v107, %v107
      %s109 = scalar_lea.vmem [#allocation1], 8
      %v110 = vld [vmem:[%s109] sm:$0xff]
      %v111 = vlaneseq
      %v112 = vshrl.u32 %v111, 7
      %v113 = vadd.s32 %v112, 8
      %v114 = vstv %s96
      %vm115 = vcmp.gt.s32.totalorder %v113, %v114
      %v116 = vsel %vm115, %v110, 0.0
      %v117 = vmul.f32 %v116, %v116
      %v118 = vadd.f32 %v108, %v117
      %s119 = scalar_lea.vmem [#allocation1], 16
      %v120 = vld [vmem:[%s119] sm:$0xff]
      %v121 = vlaneseq
      %v122 = vshrl.u32 %v121, 7
      %v123 = vadd.s32 %v122, 16
      %v124 = vstv %s96
      %vm125 = vcmp.gt.s32.totalorder %v123, %v124
      %v126 = vsel %vm125, %v120, 0.0
      %v127 = vmul.f32 %v126, %v126
      %v128 = vadd.f32 %v118, %v127
      %s129 = scalar_lea.vmem [#allocation1], 24
      %v130 = vld [vmem:[%s129] sm:$0xff]
      %v131 = vlaneseq
      %v132 = vshrl.u32 %v131, 7
      %v133 = vadd.s32 %v132, 24
      %v134 = vstv %s96
      %vm135 = vcmp.gt.s32.totalorder %v133, %v134
      %v136 = vsel %vm135, %v130, 0.0
      %v137 = vmul.f32 %v136, %v136
      %v138 = vadd.f32 %v128, %v137
      %s139 = scalar_lea.vmem [#allocation1], 32
      %v140 = vld [vmem:[%s139] sm:$0xff]
      %v141 = vlaneseq
      %v142 = vshrl.u32 %v141, 7
      %v143 = vadd.s32 %v142, 32
      %v144 = vstv %s96
      %vm145 = vcmp.gt.s32.totalorder %v143, %v144
      %v146 = vsel %vm145, %v140, 0.0
      %v147 = vmul.f32 %v146, %v146
      %v148 = vadd.f32 %v138, %v147
      %s149 = scalar_lea.vmem [#allocation1], 40
      %v150 = vld [vmem:[%s149] sm:$0xff]
      %v151 = vlaneseq
      %v152 = vshrl.u32 %v151, 7
      %v153 = vadd.s32 %v152, 40
      %v154 = vstv %s96
      %vm155 = vcmp.gt.s32.totalorder %v153, %v154
      %v156 = vsel %vm155, %v150, 0.0
      %v157 = vmul.f32 %v156, %v156
      %v158 = vadd.f32 %v148, %v157
      %s159 = scalar_lea.vmem [#allocation1], 48
      %v160 = vld [vmem:[%s159] sm:$0xff]
      %v161 = vlaneseq
      %v162 = vshrl.u32 %v161, 7
      %v163 = vadd.s32 %v162, 48
      %v164 = vstv %s96
      %vm165 = vcmp.gt.s32.totalorder %v163, %v164
      %v166 = vsel %vm165, %v160, 0.0
      %v167 = vmul.f32 %v166, %v166
      %v168 = vadd.f32 %v158, %v167
      %s169 = scalar_lea.vmem [#allocation1], 56
      %v170 = vld [vmem:[%s169] sm:$0xff]
      %v171 = vlaneseq
      %v172 = vshrl.u32 %v171, 7
      %v173 = vadd.s32 %v172, 56
      %v174 = vstv %s96
      %vm175 = vcmp.gt.s32.totalorder %v173, %v174
      %vm176 = vcmp.lt.s32.totalorder %v173, 64
      %vm177 = vmand %vm175, %vm176
      %v178 = vsel %vm177, %v170, 0.0
      %v179 = vmul.f32 %v178, %v178
      %v180 = vadd.f32 %v168, %v179
      %v181 = vrot.slane %v180, 4
      %v182 = vadd.f32 %v180, %v181
      %v183 = vrot.slane %v182, 2
      %v184 = vadd.f32 %v182, %v183
      %v185 = vrot.slane %v184, 1
      %v186 = vadd.f32 %v184, %v185
      %v187 = vrsqrt.pop %v186
      %v188 = vmul.f32 %v186, %v187
      %vm189 = vcmp.eq.f32.partialorder %v186, inf
      %v190 = vsel %vm189, %v186, %v188
      %vm191 = vcmp.eq.f32.partialorder %v186, 0.0
      %v192 = vand.u32 %v186, 2147483648
      %v193 = vsel %vm191, %v192, %v190
      %vm194 = vcmp.eq.f32.partialorder %v186, 0.0
      %s195 = sshrl.u32 %s96, 3
      %s196 = sand.u32 %s96, 7
      %s197 = smul.addr %s195, 8
      %s198 = sadd.s32 %s196, %s197
      %s199 = scalar_lea.vmem [#allocation1], %s198
      %v200 = vld [vmem:[%s199] ss:$0 sm:$0xff]
      %v201 = vand.u32 2147483647, %v200
      %v202 = vmax.f32 %v201, 0.0
      %v203 = vand.u32 2147483647, %v193
      %v204 = vmax.f32 %v202, %v203
      %v205 = vrcp.pop %v204
      %v206 = vmul.f32 %v201, %v205
      %v207 = vmul.f32 %v206, %v206
      %v208 = vrcp.pop %v204
      %v209 = vmul.f32 0.0, %v208
      %v210 = vmul.f32 %v209, %v209
      %v211 = vadd.f32 %v207, %v210
      %v212 = vrcp.pop %v204
      %v213 = vmul.f32 %v203, %v212
      %v214 = vmul.f32 %v213, %v213
      %v215 = vadd.f32 %v211, %v214
      %vm216 = vcmp.eq.f32.partialorder %v204, 0.0
      %v217 = vrsqrt.pop %v215
      %v218 = vmul.f32 %v215, %v217
      %vm219 = vcmp.eq.f32.partialorder %v215, inf
      %v220 = vsel %vm219, %v215, %v218
      %vm221 = vcmp.eq.f32.partialorder %v215, 0.0
      %v222 = vand.u32 %v215, 2147483648
      %v223 = vsel %vm221, %v222, %v220
      %v224 = vmul.f32 %v204, %v223
      %v225 = vsel %vm216, 0.0, %v224
      %vm226 = vcmp.lt.f32.partialorder %v200, 0.0
      %v227 = vxor.u32 %v225, 2147483648
      %v228 = vsel %vm226, %v225, %v227
      %v229 = vsub.f32 %v228, %v200
      %v230 = vrcp.pop %v228
      %v231 = vmul.f32 %v229, %v230
      %v232 = vsel %vm194, %v200, %v228
      %v233 = vsel %vm194, 0.0, %v231
      %v234 = vsub.f32 %v200, %v232
      %s235 = smov [#allocation1]
      %v236 = vlaneseq
      %v237 = vshrl.u32 %v236, 7
      %v238 = vmov %v237
      %v239 = vld [vmem:[%s235] sm:$0xff]
      %v241 = vstv %s96
      %vm242 = vcmp.gt.s32.totalorder %v238, %v241
      %v243 = vsel %vm242, %v239, 0.0
      %v244 = vrcp.pop %v234
      %v245 = vmul.f32 %v243, %v244
      %v246 = vsel %vm194, 0.0, %v245
      %v247 = vstv %s96
      %v248 = vlaneseq
      %v249 = vand.u32 %v248, 127
      %vm250 = vcmp.eq.s32.totalorder %v249, %v247
      %v251 = vsel %vm250, %v246, 0.0
      %252 = vadd.xlane.f32.xlu0 %v251
      %v253 = vpop.xlane.xlu0 %252
      %254 = vst [vmem:[#allocation4] sm:$0xff] %v253
      %s255 = scalar_lea.vmem %s235, 8
      %v256 = vld [vmem:[%s255] sm:$0xff]
      %v257 = vadd.s32 %v238, 8
      %v258 = vstv %s96
      %vm259 = vcmp.gt.s32.totalorder %v257, %v258
      %v260 = vsel %vm259, %v256, 0.0
      %v261 = vrcp.pop %v234
      %v262 = vmul.f32 %v260, %v261
      %v263 = vsel %vm194, 0.0, %v262
      %v264 = vstv %s96
      %v265 = vlaneseq
      %v266 = vand.u32 %v265, 127
      %vm267 = vcmp.eq.s32.totalorder %v266, %v264
      %v268 = vsel %vm267, %v263, 0.0
      %269 = vadd.xlane.f32.xlu0 %v268
      %v270 = vpop.xlane.xlu0 %269
      %s271 = scalar_lea.vmem [#allocation4], 8
      %272 = vst [vmem:[%s271] sm:$0xff] %v270
      %s273 = scalar_lea.vmem %s235, 16
      %v274 = vld [vmem:[%s273] sm:$0xff]
      %v275 = vadd.s32 %v238, 16
      %v276 = vstv %s96
      %vm277 = vcmp.gt.s32.totalorder %v275, %v276
      %v278 = vsel %vm277, %v274, 0.0
      %v279 = vrcp.pop %v234
      %v280 = vmul.f32 %v278, %v279
      %v281 = vsel %vm194, 0.0, %v280
      %v282 = vstv %s96
      %v283 = vlaneseq
      %v284 = vand.u32 %v283, 127
      %vm285 = vcmp.eq.s32.totalorder %v284, %v282
      %v286 = vsel %vm285, %v281, 0.0
      %287 = vadd.xlane.f32.xlu0 %v286
      %v288 = vpop.xlane.xlu0 %287
      %s289 = scalar_lea.vmem [#allocation4], 16
      %290 = vst [vmem:[%s289] sm:$0xff] %v288
      %s291 = scalar_lea.vmem %s235, 24
      %v292 = vld [vmem:[%s291] sm:$0xff]
      %v293 = vadd.s32 %v238, 24
      %v294 = vstv %s96
      %vm295 = vcmp.gt.s32.totalorder %v293, %v294
      %v296 = vsel %vm295, %v292, 0.0
      %v297 = vrcp.pop %v234
      %v298 = vmul.f32 %v296, %v297
      %v299 = vsel %vm194, 0.0, %v298
      %v300 = vstv %s96
      %v301 = vlaneseq
      %v302 = vand.u32 %v301, 127
      %vm303 = vcmp.eq.s32.totalorder %v302, %v300
      %v304 = vsel %vm303, %v299, 0.0
      %305 = vadd.xlane.f32.xlu0 %v304
      %v306 = vpop.xlane.xlu0 %305
      %s307 = scalar_lea.vmem [#allocation4], 24
      %308 = vst [vmem:[%s307] sm:$0xff] %v306
      %s309 = scalar_lea.vmem %s235, 32
      %v310 = vld [vmem:[%s309] sm:$0xff]
      %v311 = vadd.s32 %v238, 32
      %v312 = vstv %s96
      %vm313 = vcmp.gt.s32.totalorder %v311, %v312
      %v314 = vsel %vm313, %v310, 0.0
      %v315 = vrcp.pop %v234
      %v316 = vmul.f32 %v314, %v315
      %v317 = vsel %vm194, 0.0, %v316
      %v318 = vstv %s96
      %v319 = vlaneseq
      %v320 = vand.u32 %v319, 127
      %vm321 = vcmp.eq.s32.totalorder %v320, %v318
      %v322 = vsel %vm321, %v317, 0.0
      %323 = vadd.xlane.f32.xlu0 %v322
      %v324 = vpop.xlane.xlu0 %323
      %s325 = scalar_lea.vmem [#allocation4], 32
      %326 = vst [vmem:[%s325] sm:$0xff] %v324
      %s327 = scalar_lea.vmem %s235, 40
      %v328 = vld [vmem:[%s327] sm:$0xff]
      %v329 = vadd.s32 %v238, 40
      %v330 = vstv %s96
      %vm331 = vcmp.gt.s32.totalorder %v329, %v330
      %v332 = vsel %vm331, %v328, 0.0
      %v333 = vrcp.pop %v234
      %v334 = vmul.f32 %v332, %v333
      %v335 = vsel %vm194, 0.0, %v334
      %v336 = vstv %s96
      %v337 = vlaneseq
      %v338 = vand.u32 %v337, 127
      %vm339 = vcmp.eq.s32.totalorder %v338, %v336
      %v340 = vsel %vm339, %v335, 0.0
      %341 = vadd.xlane.f32.xlu0 %v340
      %v342 = vpop.xlane.xlu0 %341
      %s343 = scalar_lea.vmem [#allocation4], 40
      %344 = vst [vmem:[%s343] sm:$0xff] %v342
      %s345 = scalar_lea.vmem %s235, 48
      %v346 = vld [vmem:[%s345] sm:$0xff]
      %v347 = vadd.s32 %v238, 48
      %v348 = vstv %s96
      %vm349 = vcmp.gt.s32.totalorder %v347, %v348
      %v350 = vsel %vm349, %v346, 0.0
      %v351 = vrcp.pop %v234
      %v352 = vmul.f32 %v350, %v351
      %v353 = vsel %vm194, 0.0, %v352
      %v354 = vstv %s96
      %v355 = vlaneseq
      %v356 = vand.u32 %v355, 127
      %vm357 = vcmp.eq.s32.totalorder %v356, %v354
      %v358 = vsel %vm357, %v353, 0.0
      %359 = vadd.xlane.f32.xlu0 %v358
      %v360 = vpop.xlane.xlu0 %359
      %s361 = scalar_lea.vmem [#allocation4], 48
      %362 = vst [vmem:[%s361] sm:$0xff] %v360
      %s363 = scalar_lea.vmem %s235, 56
      %v364 = vld [vmem:[%s363] sm:$0xff]
      %v365 = vadd.s32 %v238, 56
      %v366 = vstv %s96
      %vm367 = vcmp.gt.s32.totalorder %v365, %v366
      %vm368 = vcmp.lt.s32.totalorder %v365, 64
      %vm369 = vmand %vm367, %vm368
      %v370 = vsel %vm369, %v364, 0.0
      %v371 = vrcp.pop %v234
      %v372 = vmul.f32 %v370, %v371
      %v373 = vsel %vm194, 0.0, %v372
      %v374 = vstv %s96
      %v375 = vlaneseq
      %v376 = vand.u32 %v375, 127
      %vm377 = vcmp.eq.s32.totalorder %v376, %v374
      %v378 = vsel %vm377, %v373, 0.0
      %379 = vadd.xlane.f32.xlu0 %v378
      %v380 = vpop.xlane.xlu0 %379
      %s381 = scalar_lea.vmem [#allocation4], 56
      %382 = vst [vmem:[%s381] sm:$0xff] %v380
      %s383 = scalar_lea.vmem [#allocation4], %s96
      %384 = vst [vmem:[%s383] sm:$0x1] 1.0
      %v385 = vstv %s96
      %v386 = vlaneseq
      %v387 = vand.u32 %v386, 127
      %vm388 = vcmp.eq.s32.totalorder %v387, %v385
      %v389 = vsel %vm388, %v233, 0.0
      %390 = vadd.xlane.f32.xlu0 %v389
      %v391 = vpop.xlane.xlu0 %390
      %v392 = vstv %s96
      %v393 = vlaneseq
      %v394 = vand.u32 %v393, 127
      %vm395 = vcmp.eq.s32.totalorder %v394, %v392
      %v396 = vld [vmem:[#allocation2] ss:$0 sm:$0xff]
      %v397 = vsel %vm395, %v391, %v396
      %398 = vst [vmem:[#allocation2] sm:$0x1] %v397
      %s399 = smov [#allocation1]
      %s400 = smov [#allocation4]
      %v401 = vlaneseq
      %v402 = vshrl.u32 %v401, 7
      %v403 = vmov %v402
      %v405 = vld [vmem:[%s400] sm:$0xff]
      %v406 = vld [vmem:[%s399] sm:$0xff]
      %v407 = vmul.f32 %v405, %v406
      %v408 = vadd.s32 %v403, 8
      %s409 = scalar_lea.vmem %s400, 8
      %v410 = vld [vmem:[%s409] sm:$0xff]
      %s411 = scalar_lea.vmem %s399, 8
      %v412 = vld [vmem:[%s411] sm:$0xff]
      %v413 = vmul.f32 %v410, %v412
      %v414 = vadd.f32 %v407, %v413
      %v415 = vadd.s32 %v403, 16
      %s416 = scalar_lea.vmem %s400, 16
      %v417 = vld [vmem:[%s416] sm:$0xff]
      %s418 = scalar_lea.vmem %s399, 16
      %v419 = vld [vmem:[%s418] sm:$0xff]
      %v420 = vmul.f32 %v417, %v419
      %v421 = vadd.f32 %v414, %v420
      %v422 = vadd.s32 %v403, 24
      %s423 = scalar_lea.vmem %s400, 24
      %v424 = vld [vmem:[%s423] sm:$0xff]
      %s425 = scalar_lea.vmem %s399, 24
      %v426 = vld [vmem:[%s425] sm:$0xff]
      %v427 = vmul.f32 %v424, %v426
      %v428 = vadd.f32 %v421, %v427
      %v429 = vadd.s32 %v403, 32
      %s430 = scalar_lea.vmem %s400, 32
      %v431 = vld [vmem:[%s430] sm:$0xff]
      %s432 = scalar_lea.vmem %s399, 32
      %v433 = vld [vmem:[%s432] sm:$0xff]
      %v434 = vmul.f32 %v431, %v433
      %v435 = vadd.f32 %v428, %v434
      %v436 = vadd.s32 %v403, 40
      %s437 = scalar_lea.vmem %s400, 40
      %v438 = vld [vmem:[%s437] sm:$0xff]
      %s439 = scalar_lea.vmem %s399, 40
      %v440 = vld [vmem:[%s439] sm:$0xff]
      %v441 = vmul.f32 %v438, %v440
      %v442 = vadd.f32 %v435, %v441
      %v443 = vadd.s32 %v403, 48
      %s444 = scalar_lea.vmem %s400, 48
      %v445 = vld [vmem:[%s444] sm:$0xff]
      %s446 = scalar_lea.vmem %s399, 48
      %v447 = vld [vmem:[%s446] sm:$0xff]
      %v448 = vmul.f32 %v445, %v447
      %v449 = vadd.f32 %v442, %v448
      %v450 = vadd.s32 %v403, 56
      %s451 = scalar_lea.vmem %s400, 56
      %v452 = vld [vmem:[%s451] sm:$0xff]
      %s453 = scalar_lea.vmem %s399, 56
      %v454 = vld [vmem:[%s453] sm:$0xff]
      %v455 = vmul.f32 %v452, %v454
      %vm456 = vcmp.lt.s32.totalorder %v450, 64
      %v457 = vsel %vm456, %v455, 0.0
      %v458 = vadd.f32 %v449, %v457
      %v459 = vrot.slane %v458, 4
      %v460 = vadd.f32 %v458, %v459
      %v461 = vrot.slane %v460, 2
      %v462 = vadd.f32 %v460, %v461
      %v463 = vrot.slane %v462, 1
      %v464 = vadd.f32 %v462, %v463
      %s465 = smov %s399
      %s466 = smov %s400
      %v467 = vlaneseq
      %v468 = vshrl.u32 %v467, 7
      %v469 = vmov %v468
      %v470 = vmul.f32 %v464, %v391
      %v472 = vlaneseq
      %v473 = vand.u32 %v472, 127
      %v474 = vld [vmem:[%s466] sm:$0xff]
      %v475 = vmul.f32 %v474, %v470
      %v476 = vld [vmem:[%s465] sm:$0xff]
      %v477 = vstv %s96
      %vm478 = vcmp.gt.s32.totalorder %v473, %v477
      %v479 = vsub.f32 %v476, %v475
      %v480 = vsel %vm478, %v479, %v476
      %v481 = vstv %s96
      %v482 = vlaneseq
      %v483 = vand.u32 %v482, 127
      %vm484 = vcmp.eq.s32.totalorder %v483, %v481
      %v485 = vstv %s96
      %vm486 = vcmp.ge.s32.totalorder %v469, %v485
      %vm487 = vmand %vm484, %vm486
      %v488 = vsel %vm487, %v474, %v480
      %489 = vst [vmem:[%s465] sm:$0xff] %v488
      %v490 = vadd.s32 %v469, 8
      %v491 = vlaneseq
      %v492 = vand.u32 %v491, 127
      %s493 = scalar_lea.vmem %s466, 8
      %v494 = vld [vmem:[%s493] sm:$0xff]
      %v495 = vmul.f32 %v494, %v470
      %s496 = scalar_lea.vmem %s465, 8
      %v497 = vld [vmem:[%s496] sm:$0xff]
      %v498 = vstv %s96
      %vm499 = vcmp.gt.s32.totalorder %v492, %v498
      %v500 = vsub.f32 %v497, %v495
      %v501 = vsel %vm499, %v500, %v497
      %v502 = vstv %s96
      %v503 = vlaneseq
      %v504 = vand.u32 %v503, 127
      %vm505 = vcmp.eq.s32.totalorder %v504, %v502
      %v506 = vstv %s96
      %vm507 = vcmp.ge.s32.totalorder %v490, %v506
      %vm508 = vmand %vm505, %vm507
      %v509 = vsel %vm508, %v494, %v501
      %510 = vst [vmem:[%s496] sm:$0xff] %v509
      %v511 = vadd.s32 %v469, 16
      %v512 = vlaneseq
      %v513 = vand.u32 %v512, 127
      %s514 = scalar_lea.vmem %s466, 16
      %v515 = vld [vmem:[%s514] sm:$0xff]
      %v516 = vmul.f32 %v515, %v470
      %s517 = scalar_lea.vmem %s465, 16
      %v518 = vld [vmem:[%s517] sm:$0xff]
      %v519 = vstv %s96
      %vm520 = vcmp.gt.s32.totalorder %v513, %v519
      %v521 = vsub.f32 %v518, %v516
      %v522 = vsel %vm520, %v521, %v518
      %v523 = vstv %s96
      %v524 = vlaneseq
      %v525 = vand.u32 %v524, 127
      %vm526 = vcmp.eq.s32.totalorder %v525, %v523
      %v527 = vstv %s96
      %vm528 = vcmp.ge.s32.totalorder %v511, %v527
      %vm529 = vmand %vm526, %vm528
      %v530 = vsel %vm529, %v515, %v522
      %531 = vst [vmem:[%s517] sm:$0xff] %v530
      %v532 = vadd.s32 %v469, 24
      %v533 = vlaneseq
      %v534 = vand.u32 %v533, 127
      %s535 = scalar_lea.vmem %s466, 24
      %v536 = vld [vmem:[%s535] sm:$0xff]
      %v537 = vmul.f32 %v536, %v470
      %s538 = scalar_lea.vmem %s465, 24
      %v539 = vld [vmem:[%s538] sm:$0xff]
      %v540 = vstv %s96
      %vm541 = vcmp.gt.s32.totalorder %v534, %v540
      %v542 = vsub.f32 %v539, %v537
      %v543 = vsel %vm541, %v542, %v539
      %v544 = vstv %s96
      %v545 = vlaneseq
      %v546 = vand.u32 %v545, 127
      %vm547 = vcmp.eq.s32.totalorder %v546, %v544
      %v548 = vstv %s96
      %vm549 = vcmp.ge.s32.totalorder %v532, %v548
      %vm550 = vmand %vm547, %vm549
      %v551 = vsel %vm550, %v536, %v543
      %552 = vst [vmem:[%s538] sm:$0xff] %v551
      %v553 = vadd.s32 %v469, 32
      %v554 = vlaneseq
      %v555 = vand.u32 %v554, 127
      %s556 = scalar_lea.vmem %s466, 32
      %v557 = vld [vmem:[%s556] sm:$0xff]
      %v558 = vmul.f32 %v557, %v470
      %s559 = scalar_lea.vmem %s465, 32
      %v560 = vld [vmem:[%s559] sm:$0xff]
      %v561 = vstv %s96
      %vm562 = vcmp.gt.s32.totalorder %v555, %v561
      %v563 = vsub.f32 %v560, %v558
      %v564 = vsel %vm562, %v563, %v560
      %v565 = vstv %s96
      %v566 = vlaneseq
      %v567 = vand.u32 %v566, 127
      %vm568 = vcmp.eq.s32.totalorder %v567, %v565
      %v569 = vstv %s96
      %vm570 = vcmp.ge.s32.totalorder %v553, %v569
      %vm571 = vmand %vm568, %vm570
      %v572 = vsel %vm571, %v557, %v564
      %573 = vst [vmem:[%s559] sm:$0xff] %v572
      %v574 = vadd.s32 %v469, 40
      %v575 = vlaneseq
      %v576 = vand.u32 %v575, 127
      %s577 = scalar_lea.vmem %s466, 40
      %v578 = vld [vmem:[%s577] sm:$0xff]
      %v579 = vmul.f32 %v578, %v470
      %s580 = scalar_lea.vmem %s465, 40
      %v581 = vld [vmem:[%s580] sm:$0xff]
      %v582 = vstv %s96
      %vm583 = vcmp.gt.s32.totalorder %v576, %v582
      %v584 = vsub.f32 %v581, %v579
      %v585 = vsel %vm583, %v584, %v581
      %v586 = vstv %s96
      %v587 = vlaneseq
      %v588 = vand.u32 %v587, 127
      %vm589 = vcmp.eq.s32.totalorder %v588, %v586
      %v590 = vstv %s96
      %vm591 = vcmp.ge.s32.totalorder %v574, %v590
      %vm592 = vmand %vm589, %vm591
      %v593 = vsel %vm592, %v578, %v585
      %594 = vst [vmem:[%s580] sm:$0xff] %v593
      %v595 = vadd.s32 %v469, 48
      %v596 = vlaneseq
      %v597 = vand.u32 %v596, 127
      %s598 = scalar_lea.vmem %s466, 48
      %v599 = vld [vmem:[%s598] sm:$0xff]
      %v600 = vmul.f32 %v599, %v470
      %s601 = scalar_lea.vmem %s465, 48
      %v602 = vld [vmem:[%s601] sm:$0xff]
      %v603 = vstv %s96
      %vm604 = vcmp.gt.s32.totalorder %v597, %v603
      %v605 = vsub.f32 %v602, %v600
      %v606 = vsel %vm604, %v605, %v602
      %v607 = vstv %s96
      %v608 = vlaneseq
      %v609 = vand.u32 %v608, 127
      %vm610 = vcmp.eq.s32.totalorder %v609, %v607
      %v611 = vstv %s96
      %vm612 = vcmp.ge.s32.totalorder %v595, %v611
      %vm613 = vmand %vm610, %vm612
      %v614 = vsel %vm613, %v599, %v606
      %615 = vst [vmem:[%s601] sm:$0xff] %v614
      %v616 = vadd.s32 %v469, 56
      %v617 = vlaneseq
      %v618 = vand.u32 %v617, 127
      %s619 = scalar_lea.vmem %s466, 56
      %v620 = vld [vmem:[%s619] sm:$0xff]
      %v621 = vmul.f32 %v620, %v470
      %s622 = scalar_lea.vmem %s465, 56
      %v623 = vld [vmem:[%s622] sm:$0xff]
      %v624 = vstv %s96
      %vm625 = vcmp.gt.s32.totalorder %v618, %v624
      %v626 = vsub.f32 %v623, %v621
      %v627 = vsel %vm625, %v626, %v623
      %v628 = vstv %s96
      %v629 = vlaneseq
      %v630 = vand.u32 %v629, 127
      %vm631 = vcmp.eq.s32.totalorder %v630, %v628
      %v632 = vstv %s96
      %vm633 = vcmp.ge.s32.totalorder %v616, %v632
      %vm634 = vmand %vm631, %vm633
      %v635 = vsel %vm634, %v620, %v627
      %636 = vst [vmem:[%s622] sm:$0xff] %v635
      %s637 = scalar_lea.vmem %s465, %s96
      %v638 = vld [vmem:[%s637] ss:$0 sm:$0xff]
      %v639 = vstv %s96
      %v640 = vlaneseq
      %v641 = vand.u32 %v640, 127
      %vm642 = vcmp.eq.s32.totalorder %v641, %v639
      %v643 = vsel %vm642, %v232, %v638
      %644 = vst [vmem:[%s637] sm:$0x1] %v643
    $region40: #{custom-call.68} parent=1 // loop_footer
      %s100 = sadd.s32 1, %s96
    $region41: #{custom-call.68} parent=1 // loop_footer_branch
      %95 = sbr.rel target = $region37
    $region42: #{custom-call.68} parent=1 // loop_exit
      _
    %s646 = sshllo.u32 0, 1
    %v648 = vld [vmem:[#allocation2] sm:%s646]
    %s649 = sshllo.u32 0, 1
    %650 = vst [vmem:[#allocation3] sm:%s649] %v648
    // Predicated region
    $region43: #{custom-call.68} parent=1 // pred_check
      _
    $region44: #{custom-call.68} parent=1 // pred_check_branch
      %652 = sbr.rel (0) target = $region46
    $region45: #{custom-call.68} parent=1 // pred_region
      // Predicated region
      $region47: #{custom-call.68} parent=45 // pred_check
        _
      $region48: #{custom-call.68} parent=45 // pred_check_branch
        %654 = sbr.rel (0) target = $region50
      $region49: #{custom-call.68} parent=45 // pred_region
        // Predicated region
        $region62: #{custom-call.68} parent=49 // pred_check
          _
        $region63: #{custom-call.68} parent=49 // pred_check_branch
          %683 = sbr.rel (0) target = $region65
        $region64: #{custom-call.68} parent=49 // pred_region
          loop: start=0, step=1, limit=1
          $region66: #{custom-call.68} parent=64 // loop_pre_header
            _
          $region67: #{custom-call.68} parent=64 // loop_header
            %s685 = sphi 0, %s689
            %p686 = scmp.ge.s32.totalorder %s685, 1
            %s690 = sphi [#allocation1], [#allocation1]
            %s691 = sphi %s1, %s1
          $region68: #{custom-call.68} parent=64 // loop_header_branch
            %688 = sbr.rel (%p686) target = $region72
          $region69: #{custom-call.68} parent=64 // loop_body
            %v692 = vld [vmem:[%s690] sm:$0xff]
            %693 = vst [vmem:[%s691] sm:$0xff] %v692
            %v694 = vld [vmem:[%s690 + $0x8] sm:$0xff]
            %695 = vst [vmem:[%s691 + $0x8] sm:$0xff] %v694
            %v696 = vld [vmem:[%s690 + $0x10] sm:$0xff]
            %697 = vst [vmem:[%s691 + $0x10] sm:$0xff] %v696
            %v698 = vld [vmem:[%s690 + $0x18] sm:$0xff]
            %699 = vst [vmem:[%s691 + $0x18] sm:$0xff] %v698
            %v700 = vld [vmem:[%s690 + $0x20] sm:$0xff]
            %701 = vst [vmem:[%s691 + $0x20] sm:$0xff] %v700
            %v702 = vld [vmem:[%s690 + $0x28] sm:$0xff]
            %703 = vst [vmem:[%s691 + $0x28] sm:$0xff] %v702
            %v704 = vld [vmem:[%s690 + $0x30] sm:$0xff]
            %705 = vst [vmem:[%s691 + $0x30] sm:$0xff] %v704
            %v706 = vld [vmem:[%s690 + $0x38] sm:$0xff]
            %707 = vst [vmem:[%s691 + $0x38] sm:$0xff] %v706
          $region70: #{custom-call.68} parent=64 // loop_footer
            %s689 = sadd.s32 1, %s685
          $region71: #{custom-call.68} parent=64 // loop_footer_branch
            %684 = sbr.rel target = $region67
          $region72: #{custom-call.68} parent=64 // loop_exit
            _
        $region65: #{custom-call.68} parent=49 // pred_fallthru
          _
        // Predicated region
        $region73: #{custom-call.68} parent=49 // pred_check
          _
        $region74: #{custom-call.68} parent=49 // pred_check_branch
          %709 = sbr.rel target = $region76
        $region75: #{custom-call.68} parent=49 // pred_region
          _
        $region76: #{custom-call.68} parent=49 // pred_fallthru
          _
      $region50: #{custom-call.68} parent=45 // pred_fallthru
        _
      // Predicated region
      $region51: #{custom-call.68} parent=45 // pred_check
        _
      $region52: #{custom-call.68} parent=45 // pred_check_branch
        %656 = sbr.rel target = $region54
      $region53: #{custom-call.68} parent=45 // pred_region
        loop: start=0, step=1, limit=1
        $region55: #{custom-call.68} parent=53 // loop_pre_header
          _
        $region56: #{custom-call.68} parent=53 // loop_header
          %s659 = sphi 0, %s663
          %p660 = scmp.ge.s32.totalorder %s659, 1
          %s664 = sphi [#allocation1], [#allocation1]
          %s665 = sphi %s1, %s1
        $region57: #{custom-call.68} parent=53 // loop_header_branch
          %662 = sbr.rel (%p660) target = $region61
        $region58: #{custom-call.68} parent=53 // loop_body
          %v666 = vld [vmem:[%s664] sm:$0xff]
          %667 = vst [vmem:[%s665] sm:$0xff] %v666
          %v668 = vld [vmem:[%s664 + $0x8] sm:$0xff]
          %669 = vst [vmem:[%s665 + $0x8] sm:$0xff] %v668
          %v670 = vld [vmem:[%s664 + $0x10] sm:$0xff]
          %671 = vst [vmem:[%s665 + $0x10] sm:$0xff] %v670
          %v672 = vld [vmem:[%s664 + $0x18] sm:$0xff]
          %673 = vst [vmem:[%s665 + $0x18] sm:$0xff] %v672
          %v674 = vld [vmem:[%s664 + $0x20] sm:$0xff]
          %675 = vst [vmem:[%s665 + $0x20] sm:$0xff] %v674
          %v676 = vld [vmem:[%s664 + $0x28] sm:$0xff]
          %677 = vst [vmem:[%s665 + $0x28] sm:$0xff] %v676
          %v678 = vld [vmem:[%s664 + $0x30] sm:$0xff]
          %679 = vst [vmem:[%s665 + $0x30] sm:$0xff] %v678
          %v680 = vld [vmem:[%s664 + $0x38] sm:$0xff]
          %681 = vst [vmem:[%s665 + $0x38] sm:$0xff] %v680
        $region59: #{custom-call.68} parent=53 // loop_footer
          %s663 = sadd.s32 1, %s659
        $region60: #{custom-call.68} parent=53 // loop_footer_branch
          %658 = sbr.rel target = $region56
        $region61: #{custom-call.68} parent=53 // loop_exit
          _
      $region54: #{custom-call.68} parent=45 // pred_fallthru
        _
    $region46: #{custom-call.68} parent=1 // pred_fallthru
      _
    %710 = vnop
    // Predicated region
    $region77: #{custom-call.68} parent=1 // pred_check
      _
    $region78: #{custom-call.68} parent=1 // pred_check_branch
      %712 = sbr.rel (0) target = $region80
    $region79: #{custom-call.68} parent=1 // pred_region
      // Predicated region
      $region81: #{custom-call.68} parent=79 // pred_check
        _
      $region82: #{custom-call.68} parent=79 // pred_check_branch
        %714 = sbr.rel (0) target = $region84
      $region83: #{custom-call.68} parent=79 // pred_region
        // Predicated region
        $region85: #{custom-call.68} parent=83 // pred_check
          _
        $region86: #{custom-call.68} parent=83 // pred_check_branch
          %716 = sbr.rel target = $region88
        $region87: #{custom-call.68} parent=83 // pred_region
          // Predicated region
          $region100: #{custom-call.68} parent=87 // pred_check
            _
          $region101: #{custom-call.68} parent=87 // pred_check_branch
            %731 = sbr.rel (0) target = $region103
          $region102: #{custom-call.68} parent=87 // pred_region
            loop: start=0, step=1, limit=1
            $region104: #{custom-call.68} parent=102 // loop_pre_header
              _
            $region105: #{custom-call.68} parent=102 // loop_header
              %s734 = sphi 0, %s738
              %p735 = scmp.ge.s32.totalorder %s734, 1
              %s739 = sphi [#allocation3], [#allocation3]
              %s740 = sphi %s2, %s2
            $region106: #{custom-call.68} parent=102 // loop_header_branch
              %737 = sbr.rel (%p735) target = $region110
            $region107: #{custom-call.68} parent=102 // loop_body
              %v741 = vld [vmem:[%s739] sm:$0x1]
              %742 = vst [vmem:[%s740] sm:$0x1] %v741
            $region108: #{custom-call.68} parent=102 // loop_footer
              %s738 = sadd.s32 1, %s734
            $region109: #{custom-call.68} parent=102 // loop_footer_branch
              %733 = sbr.rel target = $region105
            $region110: #{custom-call.68} parent=102 // loop_exit
              _
          $region103: #{custom-call.68} parent=87 // pred_fallthru
            _
        $region88: #{custom-call.68} parent=83 // pred_fallthru
          _
        // Predicated region
        $region89: #{custom-call.68} parent=83 // pred_check
          _
        $region90: #{custom-call.68} parent=83 // pred_check_branch
          %718 = sbr.rel (0) target = $region92
        $region91: #{custom-call.68} parent=83 // pred_region
          loop: start=0, step=1, limit=1
          $region93: #{custom-call.68} parent=91 // loop_pre_header
            _
          $region94: #{custom-call.68} parent=91 // loop_header
            %s721 = sphi 0, %s725
            %p722 = scmp.ge.s32.totalorder %s721, 1
            %s726 = sphi [#allocation3], [#allocation3]
            %s727 = sphi %s2, %s2
          $region95: #{custom-call.68} parent=91 // loop_header_branch
            %724 = sbr.rel (%p722) target = $region99
          $region96: #{custom-call.68} parent=91 // loop_body
            %v728 = vld [vmem:[%s726] sm:$0x1]
            %729 = vst [vmem:[%s727] sm:$0x1] %v728
          $region97: #{custom-call.68} parent=91 // loop_footer
            %s725 = sadd.s32 1, %s721
          $region98: #{custom-call.68} parent=91 // loop_footer_branch
            %720 = sbr.rel target = $region94
          $region99: #{custom-call.68} parent=91 // loop_exit
            _
        $region92: #{custom-call.68} parent=83 // pred_fallthru
          _
      $region84: #{custom-call.68} parent=79 // pred_fallthru
        _
      %743 = vnop
    $region80: #{custom-call.68} parent=1 // pred_fallthru
      _
    // Predicated region
    $region111: #{custom-call.68} parent=1 // pred_check
      _
    $region112: #{custom-call.68} parent=1 // pred_check_branch
      %745 = sbr.rel (0) target = $region114
    $region113: #{custom-call.68} parent=1 // pred_region
      _
    $region114: #{custom-call.68} parent=1 // pred_fallthru
      _

// kernel: openclip_vit_forward.3
$region0: #{openclip_vit_forward.3}
  #allocation0 [shape = 'u32[]', space=smem, size = 0x4, offset = 0x4, fixed_abs, tag = 'smem constant byte address 0x4 - core index']
  #allocation1 [shape = 'u32[144,128]{1,0:T(1,128)}', space=vmem, size = 0x12000, scoped, tag = 'internal scratch']
  %s0 = inlined_call_operand.vmem [shape: f32[32,48], index: 0, kind: input, shape index: {}]
  %s1 = inlined_call_operand.vmem [shape: bf16[48,32], index: 1, kind: input, shape index: {}]
  %s2 = inlined_call_operand.vmem [shape: f32[32,32], index: 2, kind: input, shape index: {}]
  %s3 = inlined_call_operand.vmem [shape: f32[1,32], index: 3, kind: input, shape index: {}]
  %s4 = inlined_call_operand.vmem [shape: f32[1,32], index: 4, kind: input, shape index: {}]
  %s5 = inlined_call_operand.vmem [shape: f32[32,32], index: 5, kind: output, shape index: {}]
  %s6 = sld [smem:[#allocation0]]
  $region30: #{openclip_vit_forward.3} parent=0
    _
  %s8 = ssub.s32 1, %s6
  %s9 = scalar_select 0, %s8, %s6
  // Predicated region
  $region2: #{openclip_vit_forward.3} parent=0 // pred_check
    _
  $region3: #{openclip_vit_forward.3} parent=0 // pred_check_branch
    %11 = sbr.rel (0) target = $region5
  $region4: #{openclip_vit_forward.3} parent=0 // pred_region
    _
  $region5: #{openclip_vit_forward.3} parent=0 // pred_fallthru
    _
  // Predicated region
  $region6: #{openclip_vit_forward.3} parent=0 // pred_check
    _
  $region7: #{openclip_vit_forward.3} parent=0 // pred_check_branch
    %13 = sbr.rel (0) target = $region9
  $region8: #{openclip_vit_forward.3} parent=0 // pred_region
    _
  $region9: #{openclip_vit_forward.3} parent=0 // pred_fallthru
    _
  // Predicated region
  $region10: #{openclip_vit_forward.3} parent=0 // pred_check
    _
  $region11: #{openclip_vit_forward.3} parent=0 // pred_check_branch
    %15 = sbr.rel (0) target = $region13
  $region12: #{openclip_vit_forward.3} parent=0 // pred_region
    _
  $region13: #{openclip_vit_forward.3} parent=0 // pred_fallthru
    _
  // Predicated region
  $region14: #{openclip_vit_forward.3} parent=0 // pred_check
    _
  $region15: #{openclip_vit_forward.3} parent=0 // pred_check_branch
    %17 = sbr.rel (0) target = $region17
  $region16: #{openclip_vit_forward.3} parent=0 // pred_region
    _
  $region17: #{openclip_vit_forward.3} parent=0 // pred_fallthru
    _
  // Predicated region
  $region18: #{openclip_vit_forward.3} parent=0 // pred_check
    _
  $region19: #{openclip_vit_forward.3} parent=0 // pred_check_branch
    %19 = sbr.rel (0) target = $region21
  $region20: #{openclip_vit_forward.3} parent=0 // pred_region
    _
  $region21: #{openclip_vit_forward.3} parent=0 // pred_fallthru
    _
  %v21 = vld [vmem:[%s0] sm:$0xff]
  %v22 = vld [vmem:[%s0 + $0x8] sm:$0xff]
  %v23 = vld [vmem:[%s0 + $0x10] sm:$0xff]
  %v24 = vld [vmem:[%s0 + $0x18] sm:$0xff]
  %v25 = vpack.c.bf16 %v22, %v21
  %v26 = vpack.c.bf16 %v24, %v23
  %v27 = vld [vmem:[%s1] sm:$0xf]
  %v28 = vld [vmem:[%s1 + $0x4] sm:$0xf]
  %v29 = vld [vmem:[%s1 + $0x8] sm:$0xf]
  %v30 = vld [vmem:[%s1 + $0xc] sm:$0xf]
  %v31 = vld [vmem:[%s1 + $0x10] sm:$0xf]
  %v32 = vld [vmem:[%s1 + $0x14] sm:$0xf]
  %v33 = vld [vmem:[%s2] sm:$0xff]
  %v34 = vld [vmem:[%s2 + $0x8] sm:$0xff]
  %v35 = vld [vmem:[%s2 + $0x10] sm:$0xff]
  %v36 = vld [vmem:[%s2 + $0x18] sm:$0xff]
  %v43 = vunpack.c.l.b16 %v27
  %v44 = vunpack.c.l.b16 %v28
  %v45 = vunpack.c.l.b16 %v29
  %v46 = vunpack.c.l.b16 %v30
  %v47 = vunpack.c.l.b16 %v31
  %v48 = vunpack.c.l.b16 %v32
  %v49 = vpack.c.b16 %v44, %v43
  %v50 = vpack.c.b16 %v46, %v45
  %v51 = vpack.c.b16 %v48, %v47
  %vm55 = vcmask 392192
  %v57 = vsel %vm55, %v25, 0
  %v60 = vsel %vm55, %v26, 0
  %62 = vmatprep.subr.bf16.mxu0 0
  %63 = vmatpush1.bf16.msra.mxu0 %v49
  %64 = vmatprep.subr.bf16.mxu0 0
  %65 = vmatpush1.bf16.msra.mxu0 %v50
  %66 = vmatprep.subr.bf16.mxu0 0
  %67 = vmatpush1.bf16.msra.mxu0 %v51
  %68 = vmatprep.subr.bf16.mxu0 0
  %69 = vmatpush1.bf16.msra.mxu0 0
  %70 = vmatprep.subr.bf16.mxu0 0
  %71 = vmatpush1.bf16.msra.mxu0 0
  %72 = vmatprep.subr.bf16.mxu0 0
  %73 = vmatpush1.bf16.msra.mxu0 0
  %74 = vmatprep.subr.bf16.mxu0 0
  %75 = vmatpush1.bf16.msra.mxu0 0
  %76 = vmatprep.subr.bf16.mxu0 0
  %77 = vmatpush1.bf16.msra.mxu0 0
  %78 = vmatprep.subr.bf16.mxu0 0
  %79 = vmatpush1.bf16.msra.mxu0 0
  %80 = vmatprep.subr.bf16.mxu0 0
  %81 = vmatpush1.bf16.msra.mxu0 0
  %82 = vmatprep.subr.bf16.mxu0 0
  %83 = vmatpush1.bf16.msra.mxu0 0
  %84 = vmatprep.subr.bf16.mxu0 0
  %85 = vmatpush1.bf16.msra.mxu0 0
  %86 = vmatprep.subr.bf16.mxu0 0
  %87 = vmatpush1.bf16.msra.mxu0 0
  %88 = vmatprep.subr.bf16.mxu0 0
  %89 = vmatpush1.bf16.msra.mxu0 0
  %90 = vmatprep.subr.bf16.mxu0 0
  %91 = vmatpush1.bf16.msra.mxu0 0
  %92 = vmatprep.subr.bf16.mxu0 0
  %93 = vmatpush1.bf16.msra.mxu0 0
  %94 = vmatprep.mubr.bf16.mxu0 0
  %95 = vmatmul.mubr.bf16.gmra.mrb[0].mxu0 %v57
  %v96 = vpop.f32.mrb[0].mxu0
  %v97 = vadd.f32 %v33, %v96
  %v98 = vpop.f32.mrb[0].mxu0
  %v99 = vpop.f32.mrb[0].mxu0
  %v100 = vadd.f32 %v34, %v99
  %v101 = vpop.f32.mrb[0].mxu0
  %102 = vmatprep.mubr.bf16.mxu0 0
  %103 = vmatmul.mubr.bf16.gmra.mrb[0].mxu0 %v60
  %v104 = vpop.f32.mrb[0].mxu0
  %v105 = vadd.f32 %v35, %v104
  %v106 = vpop.f32.mrb[0].mxu0
  %v107 = vpop.f32.mrb[0].mxu0
  %v108 = vadd.f32 %v36, %v107
  %v109 = vpop.f32.mrb[0].mxu0
  %110 = vdwg.mxu0
  %v111 = vld [vmem:[%s3] sm:$0x1]
  %v112 = vld [vmem:[%s4] sm:$0x1]
  %vm113 = vcmask 261120
  %v114 = vsel %vm113, %v97, 0.0
  %115 = vadd.xlane.f32.xlu0 %v114
  %v116 = vpop.xlane.xlu0 %115
  %v117 = vsel %vm113, %v100, 0.0
  %118 = vadd.xlane.f32.xlu0 %v117
  %v119 = vpop.xlane.xlu0 %118
  %v120 = vsel %vm113, %v105, 0.0
  %121 = vadd.xlane.f32.xlu0 %v120
  %v122 = vpop.xlane.xlu0 %121
  %v123 = vsel %vm113, %v108, 0.0
  %124 = vadd.xlane.f32.xlu0 %v123
  %v125 = vpop.xlane.xlu0 %124
  %v126 = vrcp.pop 32.0
  %v127 = vmul.f32 %v116, %v126
  %v128 = vmul.f32 %v119, %v126
  %v129 = vmul.f32 %v122, %v126
  %v130 = vmul.f32 %v125, %v126
  %v131 = vsub.f32 %v97, %v127
  %v132 = vsub.f32 %v100, %v128
  %v133 = vsub.f32 %v105, %v129
  %v134 = vsub.f32 %v108, %v130
  %v135 = vmul.f32 %v131, %v131
  %v136 = vmul.f32 %v132, %v132
  %v137 = vmul.f32 %v133, %v133
  %v138 = vmul.f32 %v134, %v134
  %v139 = vsel %vm113, %v135, 0.0
  %140 = vadd.xlane.f32.xlu0 %v139
  %v141 = vpop.xlane.xlu0 %140
  %v142 = vsel %vm113, %v136, 0.0
  %143 = vadd.xlane.f32.xlu0 %v142
  %v144 = vpop.xlane.xlu0 %143
  %v145 = vsel %vm113, %v137, 0.0
  %146 = vadd.xlane.f32.xlu0 %v145
  %v147 = vpop.xlane.xlu0 %146
  %v148 = vsel %vm113, %v138, 0.0
  %149 = vadd.xlane.f32.xlu0 %v148
  %v150 = vpop.xlane.xlu0 %149
  %v151 = vmul.f32 %v141, %v126
  %v152 = vmul.f32 %v144, %v126
  %v153 = vmul.f32 %v147, %v126
  %v154 = vmul.f32 %v150, %v126
  %v155 = vadd.f32 %v151, 1e-05
  %v156 = vadd.f32 %v152, 1e-05
  %v157 = vadd.f32 %v153, 1e-05
  %v158 = vadd.f32 %v154, 1e-05
  %v159 = vrsqrt.pop %v155
  %v160 = vrsqrt.pop %v156
  %v161 = vrsqrt.pop %v157
  %v162 = vrsqrt.pop %v158
  %v163 = vmul.f32 %v131, %v159
  %v164 = vmul.f32 %v132, %v160
  %v165 = vmul.f32 %v133, %v161
  %v166 = vmul.f32 %v134, %v162
  %v168 = vlaneseq
  %v169 = vshrl.u32 %v168, 7
  %v170 = vsub.s32 0, %v169
  %v171 = vrot.slane %v111, %v170
  %v173 = vmul.f32 %v163, %v171
  %v174 = vmul.f32 %v164, %v171
  %v175 = vmul.f32 %v165, %v171
  %v176 = vmul.f32 %v166, %v171
  %v178 = vlaneseq
  %v179 = vshrl.u32 %v178, 7
  %v180 = vsub.s32 0, %v179
  %v181 = vrot.slane %v112, %v180
  %v183 = vadd.f32 %v173, %v181
  %v184 = vadd.f32 %v174, %v181
  %v185 = vadd.f32 %v175, %v181
  %v186 = vadd.f32 %v176, %v181
  %187 = vst.msk [vmem:[%s5] sm:$0xff] %vm113, %v183
  %188 = vst.msk [vmem:[%s5 + $0x8] sm:$0xff] %vm113, %v184
  %189 = vst.msk [vmem:[%s5 + $0x10] sm:$0xff] %vm113, %v185
  %190 = vst.msk [vmem:[%s5 + $0x18] sm:$0xff] %vm113, %v186
  // Predicated region
  $region22: #{openclip_vit_forward.3} parent=0 // pred_check
    _
  $region23: #{openclip_vit_forward.3} parent=0 // pred_check_branch
    %192 = sbr.rel (0) target = $region25
  $region24: #{openclip_vit_forward.3} parent=0 // pred_region
    _
  $region25: #{openclip_vit_forward.3} parent=0 // pred_fallthru
    _
  // Predicated region
  $region26: #{openclip_vit_forward.3} parent=0 // pred_check
    _
  $region27: #{openclip_vit_forward.3} parent=0 // pred_check_branch
    %194 = sbr.rel (0) target = $region29
  $region28: #{openclip_vit_forward.3} parent=0 // pred_region
    _
  $region29: #{openclip_vit_forward.3} parent=0 // pred_fallthru
    _

// kernel: custom-call.69
$region0: #{custom-call.69}
  %s0 = inlined_call_operand.vmem [shape: f32[32,32], index: 0, kind: input, shape index: {}]
  %s1 = inlined_call_operand.vmem [shape: f32[32,32], index: 1, kind: output, shape index: {}]
  $region1: #{custom-call.69} parent=0
    #allocation0 [shape = 'u8[16384]{0}', space=vmem, size = 0x4000, scoped, tag = 'operand span for operand 0']
    #allocation1 [shape = 'u8[16384]{0}', space=vmem, size = 0x4000, scoped, tag = 'operand span for operand 1']
    %p3 = scmp.gt.s32.totalorder 32, 0
    // Predicated region
    $region2: #{custom-call.69} parent=1 // pred_check
      %p4 = pneg %p3
    $region3: #{custom-call.69} parent=1 // pred_check_branch
      %6 = sbr.rel (%p4) target = $region5
    $region4: #{custom-call.69} parent=1 // pred_region
      %s7 = sshra.s32 32, 3
      %p8 = scmp.gt.s32.totalorder %s7, 0
      // Predicated region
      $region6: #{custom-call.69} parent=4 // pred_check
        %p9 = pneg %p8
      $region7: #{custom-call.69} parent=4 // pred_check_branch
        %11 = sbr.rel (%p9) target = $region9
      $region8: #{custom-call.69} parent=4 // pred_region
        %s12 = ssub.s32 %s7, 1
        %s13 = smul.u32 %s12, 128
        %s14 = sshra.s32 %s13, 4
        %s15 = scalar_lea.vmem %s0, %s14
        %v16 = vld [vmem:[%s0] sm:$0xff]
        // While loop
        $region10: #{custom-call.69} parent=8 // loop_pre_header
          _
        $region11: #{custom-call.69} parent=8 // loop_header
          %s17 = sphi %s0, %s39
          %s18 = sphi [#allocation0], %s40
          %v19 = vphi %v16, %v41
          %s20 = ssub.s32 %s15, 64
          %p21 = scmp.gt.s32.totalorder %s17, %s20
        $region12: #{custom-call.69} parent=8 // loop_header_branch
          %23 = sbr.rel (%p21) target = $region16
        $region13: #{custom-call.69} parent=8 // loop_body
          %24 = vst [vmem:[%s18] sm:$0xff] %v19
          %v25 = vld [vmem:[%s17 + $0x8] sm:$0xff]
          %26 = vst [vmem:[%s18 + $0x8] sm:$0xff] %v25
          %v27 = vld [vmem:[%s17 + $0x10] sm:$0xff]
          %28 = vst [vmem:[%s18 + $0x10] sm:$0xff] %v27
          %v29 = vld [vmem:[%s17 + $0x18] sm:$0xff]
          %30 = vst [vmem:[%s18 + $0x18] sm:$0xff] %v29
          %v31 = vld [vmem:[%s17 + $0x20] sm:$0xff]
          %32 = vst [vmem:[%s18 + $0x20] sm:$0xff] %v31
          %v33 = vld [vmem:[%s17 + $0x28] sm:$0xff]
          %34 = vst [vmem:[%s18 + $0x28] sm:$0xff] %v33
          %v35 = vld [vmem:[%s17 + $0x30] sm:$0xff]
          %36 = vst [vmem:[%s18 + $0x30] sm:$0xff] %v35
          %v37 = vld [vmem:[%s17 + $0x38] sm:$0xff]
          %38 = vst [vmem:[%s18 + $0x38] sm:$0xff] %v37
        $region14: #{custom-call.69} parent=8 // loop_footer
          %s39 = scalar_lea.vmem %s17, 64
          %s40 = scalar_lea.vmem %s18, 64
          %v41 = vld [vmem:[%s17 + $0x40] sm:$0xff]
        $region15: #{custom-call.69} parent=8 // loop_footer_branch
          %42 = sbr.rel target = $region11
        $region16: #{custom-call.69} parent=8 // loop_exit
          _
        // While loop
        $region17: #{custom-call.69} parent=8 // loop_pre_header
          _
        $region18: #{custom-call.69} parent=8 // loop_header
          %s43 = sphi %s17, %s51
          %s44 = sphi %s18, %s52
          %v45 = vphi %v19, %v45
          %p46 = scmp.gt.s32.totalorder %s43, %s15
        $region19: #{custom-call.69} parent=8 // loop_header_branch
          %48 = sbr.rel (%p46) target = $region23
        $region20: #{custom-call.69} parent=8 // loop_body
          %v49 = vld [vmem:[%s43] sm:$0xff]
          %50 = vst [vmem:[%s44] sm:$0xff] %v49
        $region21: #{custom-call.69} parent=8 // loop_footer
          %s51 = scalar_lea.vmem %s43, 8
          %s52 = scalar_lea.vmem %s44, 8
        $region22: #{custom-call.69} parent=8 // loop_footer_branch
          %53 = sbr.rel target = $region18
        $region23: #{custom-call.69} parent=8 // loop_exit
          _
      $region9: #{custom-call.69} parent=4 // pred_fallthru
        _
      %s54 = sand.u32 32, 7
      %s55 = sshllo.u32 0, %s54
      %s56 = smul.u32 %s7, 128
      %s57 = sshra.s32 %s56, 4
      %s58 = scalar_lea.vmem [#allocation0], %s57
      %s59 = smul.u32 %s7, 128
      %s60 = sshra.s32 %s59, 4
      %s61 = scalar_lea.vmem %s0, %s60
      %v62 = vld [vmem:[%s61] sm:%s55]
      %63 = vst [vmem:[%s58] sm:%s55] %v62
    $region5: #{custom-call.69} parent=1 // pred_fallthru
      _
    %v64 = vlaneseq
    %v65 = vand.u32 %v64, 127
    %v66 = vlaneseq
    %v67 = vshrl.u32 %v66, 7
    %vm69 = vcmp.eq.s32.totalorder %v65, %v67
    %v70 = vld [vmem:[#allocation0] sm:$0xff]
    %v71 = vlaneseq
    %v72 = vand.u32 %v71, 127
    %vm73 = vcmp.eq.s32.totalorder %v72, 0
    %v74 = vsel %vm73, %v70, 1.0
    %v75 = vsel %vm69, %v74, 0.0
    %v76 = vlaneseq
    %v77 = vand.u32 %v76, 127
    %v78 = vlaneseq
    %v79 = vshrl.u32 %v78, 7
    %v80 = vadd.s32 %v79, 8
    %vm81 = vcmp.eq.s32.totalorder %v77, %v80
    %v82 = vsel %vm81, 1.0, 0.0
    %v83 = vlaneseq
    %v84 = vand.u32 %v83, 127
    %v85 = vlaneseq
    %v86 = vshrl.u32 %v85, 7
    %v87 = vadd.s32 %v86, 16
    %vm88 = vcmp.eq.s32.totalorder %v84, %v87
    %v89 = vsel %vm88, 1.0, 0.0
    %v90 = vlaneseq
    %v91 = vand.u32 %v90, 127
    %v92 = vlaneseq
    %v93 = vshrl.u32 %v92, 7
    %v94 = vadd.s32 %v93, 24
    %vm95 = vcmp.eq.s32.totalorder %v91, %v94
    %v96 = vsel %vm95, 1.0, 0.0
    %s97 = scalar_lea.vmem [#allocation0], 1
    %v98 = vld [vmem:[%s97] ss:$0 sm:$0xff]
    %vm99 = vcmask 261120
    %v100 = vsel %vm99, %v98, 0.0
    %v101 = vlaneseq
    %v102 = vand.u32 %v101, 127
    %vm103 = vcmp.eq.s32.totalorder %v102, 1
    %v104 = vmul.f32 %v100, %v75
    %105 = vadd.xlane.f32.xlu0 %v104
    %v106 = vpop.xlane.xlu0 %105
    %v107 = vsel %vm103, %v106, %v75
    %s108 = scalar_lea.vmem [#allocation0], 2
    %v109 = vld [vmem:[%s108] ss:$0 sm:$0xff]
    %vm110 = vcmask 261120
    %v111 = vsel %vm110, %v109, 0.0
    %v112 = vlaneseq
    %v113 = vand.u32 %v112, 127
    %vm114 = vcmp.eq.s32.totalorder %v113, 2
    %v115 = vmul.f32 %v111, %v107
    %116 = vadd.xlane.f32.xlu0 %v115
    %v117 = vpop.xlane.xlu0 %116
    %v118 = vsel %vm114, %v117, %v107
    %s119 = scalar_lea.vmem [#allocation0], 3
    %v120 = vld [vmem:[%s119] ss:$0 sm:$0xff]
    %vm121 = vcmask 261120
    %v122 = vsel %vm121, %v120, 0.0
    %v123 = vlaneseq
    %v124 = vand.u32 %v123, 127
    %vm125 = vcmp.eq.s32.totalorder %v124, 3
    %v126 = vmul.f32 %v122, %v118
    %127 = vadd.xlane.f32.xlu0 %v126
    %v128 = vpop.xlane.xlu0 %127
    %v129 = vsel %vm125, %v128, %v118
    %s130 = scalar_lea.vmem [#allocation0], 4
    %v131 = vld [vmem:[%s130] ss:$0 sm:$0xff]
    %vm132 = vcmask 261120
    %v133 = vsel %vm132, %v131, 0.0
    %v134 = vlaneseq
    %v135 = vand.u32 %v134, 127
    %vm136 = vcmp.eq.s32.totalorder %v135, 4
    %v137 = vmul.f32 %v133, %v129
    %138 = vadd.xlane.f32.xlu0 %v137
    %v139 = vpop.xlane.xlu0 %138
    %v140 = vsel %vm136, %v139, %v129
    %s141 = scalar_lea.vmem [#allocation0], 5
    %v142 = vld [vmem:[%s141] ss:$0 sm:$0xff]
    %vm143 = vcmask 261120
    %v144 = vsel %vm143, %v142, 0.0
    %v145 = vlaneseq
    %v146 = vand.u32 %v145, 127
    %vm147 = vcmp.eq.s32.totalorder %v146, 5
    %v148 = vmul.f32 %v144, %v140
    %149 = vadd.xlane.f32.xlu0 %v148
    %v150 = vpop.xlane.xlu0 %149
    %v151 = vsel %vm147, %v150, %v140
    %s152 = scalar_lea.vmem [#allocation0], 6
    %v153 = vld [vmem:[%s152] ss:$0 sm:$0xff]
    %vm154 = vcmask 261120
    %v155 = vsel %vm154, %v153, 0.0
    %v156 = vlaneseq
    %v157 = vand.u32 %v156, 127
    %vm158 = vcmp.eq.s32.totalorder %v157, 6
    %v159 = vmul.f32 %v155, %v151
    %160 = vadd.xlane.f32.xlu0 %v159
    %v161 = vpop.xlane.xlu0 %160
    %v162 = vsel %vm158, %v161, %v151
    %s163 = scalar_lea.vmem [#allocation0], 7
    %v164 = vld [vmem:[%s163] ss:$0 sm:$0xff]
    %vm165 = vcmask 261120
    %v166 = vsel %vm165, %v164, 0.0
    %v167 = vlaneseq
    %v168 = vand.u32 %v167, 127
    %vm169 = vcmp.eq.s32.totalorder %v168, 7
    %v170 = vmul.f32 %v166, %v162
    %171 = vadd.xlane.f32.xlu0 %v170
    %v172 = vpop.xlane.xlu0 %171
    %v173 = vsel %vm169, %v172, %v162
    %s174 = scalar_lea.vmem [#allocation0], 8
    %v175 = vld [vmem:[%s174] ss:$0 sm:$0xff]
    %vm176 = vcmask 261120
    %v177 = vsel %vm176, %v175, 0.0
    %v178 = vlaneseq
    %v179 = vand.u32 %v178, 127
    %vm180 = vcmp.eq.s32.totalorder %v179, 8
    %v181 = vmul.f32 %v177, %v173
    %182 = vadd.xlane.f32.xlu0 %v181
    %v183 = vpop.xlane.xlu0 %182
    %v184 = vsel %vm180, %v183, %v173
    %v185 = vmul.f32 %v177, %v82
    %186 = vadd.xlane.f32.xlu0 %v185
    %v187 = vpop.xlane.xlu0 %186
    %v188 = vsel %vm180, %v187, %v82
    %s189 = scalar_lea.vmem [#allocation0], 9
    %v190 = vld [vmem:[%s189] ss:$0 sm:$0xff]
    %vm191 = vcmask 261120
    %v192 = vsel %vm191, %v190, 0.0
    %v193 = vlaneseq
    %v194 = vand.u32 %v193, 127
    %vm195 = vcmp.eq.s32.totalorder %v194, 9
    %v196 = vmul.f32 %v192, %v184
    %197 = vadd.xlane.f32.xlu0 %v196
    %v198 = vpop.xlane.xlu0 %197
    %v199 = vsel %vm195, %v198, %v184
    %v200 = vmul.f32 %v192, %v188
    %201 = vadd.xlane.f32.xlu0 %v200
    %v202 = vpop.xlane.xlu0 %201
    %v203 = vsel %vm195, %v202, %v188
    %s204 = scalar_lea.vmem [#allocation0], 10
    %v205 = vld [vmem:[%s204] ss:$0 sm:$0xff]
    %vm206 = vcmask 261120
    %v207 = vsel %vm206, %v205, 0.0
    %v208 = vlaneseq
    %v209 = vand.u32 %v208, 127
    %vm210 = vcmp.eq.s32.totalorder %v209, 10
    %v211 = vmul.f32 %v207, %v199
    %212 = vadd.xlane.f32.xlu0 %v211
    %v213 = vpop.xlane.xlu0 %212
    %v214 = vsel %vm210, %v213, %v199
    %v215 = vmul.f32 %v207, %v203
    %216 = vadd.xlane.f32.xlu0 %v215
    %v217 = vpop.xlane.xlu0 %216
    %v218 = vsel %vm210, %v217, %v203
    %s219 = scalar_lea.vmem [#allocation0], 11
    %v220 = vld [vmem:[%s219] ss:$0 sm:$0xff]
    %vm221 = vcmask 261120
    %v222 = vsel %vm221, %v220, 0.0
    %v223 = vlaneseq
    %v224 = vand.u32 %v223, 127
    %vm225 = vcmp.eq.s32.totalorder %v224, 11
    %v226 = vmul.f32 %v222, %v214
    %227 = vadd.xlane.f32.xlu0 %v226
    %v228 = vpop.xlane.xlu0 %227
    %v229 = vsel %vm225, %v228, %v214
    %v230 = vmul.f32 %v222, %v218
    %231 = vadd.xlane.f32.xlu0 %v230
    %v232 = vpop.xlane.xlu0 %231
    %v233 = vsel %vm225, %v232, %v218
    %s234 = scalar_lea.vmem [#allocation0], 12
    %v235 = vld [vmem:[%s234] ss:$0 sm:$0xff]
    %vm236 = vcmask 261120
    %v237 = vsel %vm236, %v235, 0.0
    %v238 = vlaneseq
    %v239 = vand.u32 %v238, 127
    %vm240 = vcmp.eq.s32.totalorder %v239, 12
    %v241 = vmul.f32 %v237, %v229
    %242 = vadd.xlane.f32.xlu0 %v241
    %v243 = vpop.xlane.xlu0 %242
    %v244 = vsel %vm240, %v243, %v229
    %v245 = vmul.f32 %v237, %v233
    %246 = vadd.xlane.f32.xlu0 %v245
    %v247 = vpop.xlane.xlu0 %246
    %v248 = vsel %vm240, %v247, %v233
    %s249 = scalar_lea.vmem [#allocation0], 13
    %v250 = vld [vmem:[%s249] ss:$0 sm:$0xff]
    %vm251 = vcmask 261120
    %v252 = vsel %vm251, %v250, 0.0
    %v253 = vlaneseq
    %v254 = vand.u32 %v253, 127
    %vm255 = vcmp.eq.s32.totalorder %v254, 13
    %v256 = vmul.f32 %v252, %v244
    %257 = vadd.xlane.f32.xlu0 %v256
    %v258 = vpop.xlane.xlu0 %257
    %v259 = vsel %vm255, %v258, %v244
    %v260 = vmul.f32 %v252, %v248
    %261 = vadd.xlane.f32.xlu0 %v260
    %v262 = vpop.xlane.xlu0 %261
    %v263 = vsel %vm255, %v262, %v248
    %s264 = scalar_lea.vmem [#allocation0], 14
    %v265 = vld [vmem:[%s264] ss:$0 sm:$0xff]
    %vm266 = vcmask 261120
    %v267 = vsel %vm266, %v265, 0.0
    %v268 = vlaneseq
    %v269 = vand.u32 %v268, 127
    %vm270 = vcmp.eq.s32.totalorder %v269, 14
    %v271 = vmul.f32 %v267, %v259
    %272 = vadd.xlane.f32.xlu0 %v271
    %v273 = vpop.xlane.xlu0 %272
    %v274 = vsel %vm270, %v273, %v259
    %v275 = vmul.f32 %v267, %v263
    %276 = vadd.xlane.f32.xlu0 %v275
    %v277 = vpop.xlane.xlu0 %276
    %v278 = vsel %vm270, %v277, %v263
    %s279 = scalar_lea.vmem [#allocation0], 15
    %v280 = vld [vmem:[%s279] ss:$0 sm:$0xff]
    %vm281 = vcmask 261120
    %v282 = vsel %vm281, %v280, 0.0
    %v283 = vlaneseq
    %v284 = vand.u32 %v283, 127
    %vm285 = vcmp.eq.s32.totalorder %v284, 15
    %v286 = vmul.f32 %v282, %v274
    %287 = vadd.xlane.f32.xlu0 %v286
    %v288 = vpop.xlane.xlu0 %287
    %v289 = vsel %vm285, %v288, %v274
    %v290 = vmul.f32 %v282, %v278
    %291 = vadd.xlane.f32.xlu0 %v290
    %v292 = vpop.xlane.xlu0 %291
    %v293 = vsel %vm285, %v292, %v278
    %s294 = scalar_lea.vmem [#allocation0], 16
    %v295 = vld [vmem:[%s294] ss:$0 sm:$0xff]
    %vm296 = vcmask 261120
    %v297 = vsel %vm296, %v295, 0.0
    %v298 = vlaneseq
    %v299 = vand.u32 %v298, 127
    %vm300 = vcmp.eq.s32.totalorder %v299, 16
    %v301 = vmul.f32 %v297, %v289
    %302 = vadd.xlane.f32.xlu0 %v301
    %v303 = vpop.xlane.xlu0 %302
    %v304 = vsel %vm300, %v303, %v289
    %v305 = vmul.f32 %v297, %v293
    %306 = vadd.xlane.f32.xlu0 %v305
    %v307 = vpop.xlane.xlu0 %306
    %v308 = vsel %vm300, %v307, %v293
    %v309 = vmul.f32 %v297, %v89
    %310 = vadd.xlane.f32.xlu0 %v309
    %v311 = vpop.xlane.xlu0 %310
    %v312 = vsel %vm300, %v311, %v89
    %s313 = scalar_lea.vmem [#allocation0], 17
    %v314 = vld [vmem:[%s313] ss:$0 sm:$0xff]
    %vm315 = vcmask 261120
    %v316 = vsel %vm315, %v314, 0.0
    %v317 = vlaneseq
    %v318 = vand.u32 %v317, 127
    %vm319 = vcmp.eq.s32.totalorder %v318, 17
    %v320 = vmul.f32 %v316, %v304
    %321 = vadd.xlane.f32.xlu0 %v320
    %v322 = vpop.xlane.xlu0 %321
    %v323 = vsel %vm319, %v322, %v304
    %v324 = vmul.f32 %v316, %v308
    %325 = vadd.xlane.f32.xlu0 %v324
    %v326 = vpop.xlane.xlu0 %325
    %v327 = vsel %vm319, %v326, %v308
    %v328 = vmul.f32 %v316, %v312
    %329 = vadd.xlane.f32.xlu0 %v328
    %v330 = vpop.xlane.xlu0 %329
    %v331 = vsel %vm319, %v330, %v312
    %s332 = scalar_lea.vmem [#allocation0], 18
    %v333 = vld [vmem:[%s332] ss:$0 sm:$0xff]
    %vm334 = vcmask 261120
    %v335 = vsel %vm334, %v333, 0.0
    %v336 = vlaneseq
    %v337 = vand.u32 %v336, 127
    %vm338 = vcmp.eq.s32.totalorder %v337, 18
    %v339 = vmul.f32 %v335, %v323
    %340 = vadd.xlane.f32.xlu0 %v339
    %v341 = vpop.xlane.xlu0 %340
    %v342 = vsel %vm338, %v341, %v323
    %v343 = vmul.f32 %v335, %v327
    %344 = vadd.xlane.f32.xlu0 %v343
    %v345 = vpop.xlane.xlu0 %344
    %v346 = vsel %vm338, %v345, %v327
    %v347 = vmul.f32 %v335, %v331
    %348 = vadd.xlane.f32.xlu0 %v347
    %v349 = vpop.xlane.xlu0 %348
    %v350 = vsel %vm338, %v349, %v331
    %s351 = scalar_lea.vmem [#allocation0], 19
    %v352 = vld [vmem:[%s351] ss:$0 sm:$0xff]
    %vm353 = vcmask 261120
    %v354 = vsel %vm353, %v352, 0.0
    %v355 = vlaneseq
    %v356 = vand.u32 %v355, 127
    %vm357 = vcmp.eq.s32.totalorder %v356, 19
    %v358 = vmul.f32 %v354, %v342
    %359 = vadd.xlane.f32.xlu0 %v358
    %v360 = vpop.xlane.xlu0 %359
    %v361 = vsel %vm357, %v360, %v342
    %v362 = vmul.f32 %v354, %v346
    %363 = vadd.xlane.f32.xlu0 %v362
    %v364 = vpop.xlane.xlu0 %363
    %v365 = vsel %vm357, %v364, %v346
    %v366 = vmul.f32 %v354, %v350
    %367 = vadd.xlane.f32.xlu0 %v366
    %v368 = vpop.xlane.xlu0 %367
    %v369 = vsel %vm357, %v368, %v350
    %s370 = scalar_lea.vmem [#allocation0], 20
    %v371 = vld [vmem:[%s370] ss:$0 sm:$0xff]
    %vm372 = vcmask 261120
    %v373 = vsel %vm372, %v371, 0.0
    %v374 = vlaneseq
    %v375 = vand.u32 %v374, 127
    %vm376 = vcmp.eq.s32.totalorder %v375, 20
    %v377 = vmul.f32 %v373, %v361
    %378 = vadd.xlane.f32.xlu0 %v377
    %v379 = vpop.xlane.xlu0 %378
    %v380 = vsel %vm376, %v379, %v361
    %v381 = vmul.f32 %v373, %v365
    %382 = vadd.xlane.f32.xlu0 %v381
    %v383 = vpop.xlane.xlu0 %382
    %v384 = vsel %vm376, %v383, %v365
    %v385 = vmul.f32 %v373, %v369
    %386 = vadd.xlane.f32.xlu0 %v385
    %v387 = vpop.xlane.xlu0 %386
    %v388 = vsel %vm376, %v387, %v369
    %s389 = scalar_lea.vmem [#allocation0], 21
    %v390 = vld [vmem:[%s389] ss:$0 sm:$0xff]
    %vm391 = vcmask 261120
    %v392 = vsel %vm391, %v390, 0.0
    %v393 = vlaneseq
    %v394 = vand.u32 %v393, 127
    %vm395 = vcmp.eq.s32.totalorder %v394, 21
    %v396 = vmul.f32 %v392, %v380
    %397 = vadd.xlane.f32.xlu0 %v396
    %v398 = vpop.xlane.xlu0 %397
    %v399 = vsel %vm395, %v398, %v380
    %v400 = vmul.f32 %v392, %v384
    %401 = vadd.xlane.f32.xlu0 %v400
    %v402 = vpop.xlane.xlu0 %401
    %v403 = vsel %vm395, %v402, %v384
    %v404 = vmul.f32 %v392, %v388
    %405 = vadd.xlane.f32.xlu0 %v404
    %v406 = vpop.xlane.xlu0 %405
    %v407 = vsel %vm395, %v406, %v388
    %s408 = scalar_lea.vmem [#allocation0], 22
    %v409 = vld [vmem:[%s408] ss:$0 sm:$0xff]
    %vm410 = vcmask 261120
    %v411 = vsel %vm410, %v409, 0.0
    %v412 = vlaneseq
    %v413 = vand.u32 %v412, 127
    %vm414 = vcmp.eq.s32.totalorder %v413, 22
    %v415 = vmul.f32 %v411, %v399
    %416 = vadd.xlane.f32.xlu0 %v415
    %v417 = vpop.xlane.xlu0 %416
    %v418 = vsel %vm414, %v417, %v399
    %v419 = vmul.f32 %v411, %v403
    %420 = vadd.xlane.f32.xlu0 %v419
    %v421 = vpop.xlane.xlu0 %420
    %v422 = vsel %vm414, %v421, %v403
    %v423 = vmul.f32 %v411, %v407
    %424 = vadd.xlane.f32.xlu0 %v423
    %v425 = vpop.xlane.xlu0 %424
    %v426 = vsel %vm414, %v425, %v407
    %s427 = scalar_lea.vmem [#allocation0], 23
    %v428 = vld [vmem:[%s427] ss:$0 sm:$0xff]
    %vm429 = vcmask 261120
    %v430 = vsel %vm429, %v428, 0.0
    %v431 = vlaneseq
    %v432 = vand.u32 %v431, 127
    %vm433 = vcmp.eq.s32.totalorder %v432, 23
    %v434 = vmul.f32 %v430, %v418
    %435 = vadd.xlane.f32.xlu0 %v434
    %v436 = vpop.xlane.xlu0 %435
    %v437 = vsel %vm433, %v436, %v418
    %v438 = vmul.f32 %v430, %v422
    %439 = vadd.xlane.f32.xlu0 %v438
    %v440 = vpop.xlane.xlu0 %439
    %v441 = vsel %vm433, %v440, %v422
    %v442 = vmul.f32 %v430, %v426
    %443 = vadd.xlane.f32.xlu0 %v442
    %v444 = vpop.xlane.xlu0 %443
    %v445 = vsel %vm433, %v444, %v426
    %s446 = scalar_lea.vmem [#allocation0], 24
    %v447 = vld [vmem:[%s446] ss:$0 sm:$0xff]
    %vm448 = vcmask 261120
    %v449 = vsel %vm448, %v447, 0.0
    %v450 = vlaneseq
    %v451 = vand.u32 %v450, 127
    %vm452 = vcmp.eq.s32.totalorder %v451, 24
    %v453 = vmul.f32 %v449, %v437
    %454 = vadd.xlane.f32.xlu0 %v453
    %v455 = vpop.xlane.xlu0 %454
    %v456 = vsel %vm452, %v455, %v437
    %v457 = vmul.f32 %v449, %v441
    %458 = vadd.xlane.f32.xlu0 %v457
    %v459 = vpop.xlane.xlu0 %458
    %v460 = vsel %vm452, %v459, %v441
    %v461 = vmul.f32 %v449, %v445
    %462 = vadd.xlane.f32.xlu0 %v461
    %v463 = vpop.xlane.xlu0 %462
    %v464 = vsel %vm452, %v463, %v445
    %v465 = vmul.f32 %v449, %v96
    %466 = vadd.xlane.f32.xlu0 %v465
    %v467 = vpop.xlane.xlu0 %466
    %v468 = vsel %vm452, %v467, %v96
    %s469 = scalar_lea.vmem [#allocation0], 25
    %v470 = vld [vmem:[%s469] ss:$0 sm:$0xff]
    %vm471 = vcmask 261120
    %v472 = vsel %vm471, %v470, 0.0
    %v473 = vlaneseq
    %v474 = vand.u32 %v473, 127
    %vm475 = vcmp.eq.s32.totalorder %v474, 25
    %v476 = vmul.f32 %v472, %v456
    %477 = vadd.xlane.f32.xlu0 %v476
    %v478 = vpop.xlane.xlu0 %477
    %v479 = vsel %vm475, %v478, %v456
    %v480 = vmul.f32 %v472, %v460
    %481 = vadd.xlane.f32.xlu0 %v480
    %v482 = vpop.xlane.xlu0 %481
    %v483 = vsel %vm475, %v482, %v460
    %v484 = vmul.f32 %v472, %v464
    %485 = vadd.xlane.f32.xlu0 %v484
    %v486 = vpop.xlane.xlu0 %485
    %v487 = vsel %vm475, %v486, %v464
    %v488 = vmul.f32 %v472, %v468
    %489 = vadd.xlane.f32.xlu0 %v488
    %v490 = vpop.xlane.xlu0 %489
    %v491 = vsel %vm475, %v490, %v468
    %s492 = scalar_lea.vmem [#allocation0], 26
    %v493 = vld [vmem:[%s492] ss:$0 sm:$0xff]
    %vm494 = vcmask 261120
    %v495 = vsel %vm494, %v493, 0.0
    %v496 = vlaneseq
    %v497 = vand.u32 %v496, 127
    %vm498 = vcmp.eq.s32.totalorder %v497, 26
    %v499 = vmul.f32 %v495, %v479
    %500 = vadd.xlane.f32.xlu0 %v499
    %v501 = vpop.xlane.xlu0 %500
    %v502 = vsel %vm498, %v501, %v479
    %v503 = vmul.f32 %v495, %v483
    %504 = vadd.xlane.f32.xlu0 %v503
    %v505 = vpop.xlane.xlu0 %504
    %v506 = vsel %vm498, %v505, %v483
    %v507 = vmul.f32 %v495, %v487
    %508 = vadd.xlane.f32.xlu0 %v507
    %v509 = vpop.xlane.xlu0 %508
    %v510 = vsel %vm498, %v509, %v487
    %v511 = vmul.f32 %v495, %v491
    %512 = vadd.xlane.f32.xlu0 %v511
    %v513 = vpop.xlane.xlu0 %512
    %v514 = vsel %vm498, %v513, %v491
    %s515 = scalar_lea.vmem [#allocation0], 27
    %v516 = vld [vmem:[%s515] ss:$0 sm:$0xff]
    %vm517 = vcmask 261120
    %v518 = vsel %vm517, %v516, 0.0
    %v519 = vlaneseq
    %v520 = vand.u32 %v519, 127
    %vm521 = vcmp.eq.s32.totalorder %v520, 27
    %v522 = vmul.f32 %v518, %v502
    %523 = vadd.xlane.f32.xlu0 %v522
    %v524 = vpop.xlane.xlu0 %523
    %v525 = vsel %vm521, %v524, %v502
    %v526 = vmul.f32 %v518, %v506
    %527 = vadd.xlane.f32.xlu0 %v526
    %v528 = vpop.xlane.xlu0 %527
    %v529 = vsel %vm521, %v528, %v506
    %v530 = vmul.f32 %v518, %v510
    %531 = vadd.xlane.f32.xlu0 %v530
    %v532 = vpop.xlane.xlu0 %531
    %v533 = vsel %vm521, %v532, %v510
    %v534 = vmul.f32 %v518, %v514
    %535 = vadd.xlane.f32.xlu0 %v534
    %v536 = vpop.xlane.xlu0 %535
    %v537 = vsel %vm521, %v536, %v514
    %s538 = scalar_lea.vmem [#allocation0], 28
    %v539 = vld [vmem:[%s538] ss:$0 sm:$0xff]
    %vm540 = vcmask 261120
    %v541 = vsel %vm540, %v539, 0.0
    %v542 = vlaneseq
    %v543 = vand.u32 %v542, 127
    %vm544 = vcmp.eq.s32.totalorder %v543, 28
    %v545 = vmul.f32 %v541, %v525
    %546 = vadd.xlane.f32.xlu0 %v545
    %v547 = vpop.xlane.xlu0 %546
    %v548 = vsel %vm544, %v547, %v525
    %v549 = vmul.f32 %v541, %v529
    %550 = vadd.xlane.f32.xlu0 %v549
    %v551 = vpop.xlane.xlu0 %550
    %v552 = vsel %vm544, %v551, %v529
    %v553 = vmul.f32 %v541, %v533
    %554 = vadd.xlane.f32.xlu0 %v553
    %v555 = vpop.xlane.xlu0 %554
    %v556 = vsel %vm544, %v555, %v533
    %v557 = vmul.f32 %v541, %v537
    %558 = vadd.xlane.f32.xlu0 %v557
    %v559 = vpop.xlane.xlu0 %558
    %v560 = vsel %vm544, %v559, %v537
    %s561 = scalar_lea.vmem [#allocation0], 29
    %v562 = vld [vmem:[%s561] ss:$0 sm:$0xff]
    %vm563 = vcmask 261120
    %v564 = vsel %vm563, %v562, 0.0
    %v565 = vlaneseq
    %v566 = vand.u32 %v565, 127
    %vm567 = vcmp.eq.s32.totalorder %v566, 29
    %v568 = vmul.f32 %v564, %v548
    %569 = vadd.xlane.f32.xlu0 %v568
    %v570 = vpop.xlane.xlu0 %569
    %v571 = vsel %vm567, %v570, %v548
    %v572 = vmul.f32 %v564, %v552
    %573 = vadd.xlane.f32.xlu0 %v572
    %v574 = vpop.xlane.xlu0 %573
    %v575 = vsel %vm567, %v574, %v552
    %v576 = vmul.f32 %v564, %v556
    %577 = vadd.xlane.f32.xlu0 %v576
    %v578 = vpop.xlane.xlu0 %577
    %v579 = vsel %vm567, %v578, %v556
    %v580 = vmul.f32 %v564, %v560
    %581 = vadd.xlane.f32.xlu0 %v580
    %v582 = vpop.xlane.xlu0 %581
    %v583 = vsel %vm567, %v582, %v560
    %s584 = scalar_lea.vmem [#allocation0], 30
    %v585 = vld [vmem:[%s584] ss:$0 sm:$0xff]
    %vm586 = vcmask 261120
    %v587 = vsel %vm586, %v585, 0.0
    %v588 = vlaneseq
    %v589 = vand.u32 %v588, 127
    %vm590 = vcmp.eq.s32.totalorder %v589, 30
    %v591 = vmul.f32 %v587, %v571
    %592 = vadd.xlane.f32.xlu0 %v591
    %v593 = vpop.xlane.xlu0 %592
    %v594 = vsel %vm590, %v593, %v571
    %v595 = vmul.f32 %v587, %v575
    %596 = vadd.xlane.f32.xlu0 %v595
    %v597 = vpop.xlane.xlu0 %596
    %v598 = vsel %vm590, %v597, %v575
    %v599 = vmul.f32 %v587, %v579
    %600 = vadd.xlane.f32.xlu0 %v599
    %v601 = vpop.xlane.xlu0 %600
    %v602 = vsel %vm590, %v601, %v579
    %v603 = vmul.f32 %v587, %v583
    %604 = vadd.xlane.f32.xlu0 %v603
    %v605 = vpop.xlane.xlu0 %604
    %v606 = vsel %vm590, %v605, %v583
    %s607 = scalar_lea.vmem [#allocation0], 31
    %v608 = vld [vmem:[%s607] ss:$0 sm:$0xff]
    %vm609 = vcmask 261120
    %v610 = vsel %vm609, %v608, 0.0
    %v611 = vlaneseq
    %v612 = vand.u32 %v611, 127
    %vm613 = vcmp.eq.s32.totalorder %v612, 31
    %v614 = vmul.f32 %v610, %v594
    %615 = vadd.xlane.f32.xlu0 %v614
    %v616 = vpop.xlane.xlu0 %615
    %v617 = vsel %vm613, %v616, %v594
    %v618 = vmul.f32 %v610, %v598
    %619 = vadd.xlane.f32.xlu0 %v618
    %v620 = vpop.xlane.xlu0 %619
    %v621 = vsel %vm613, %v620, %v598
    %v622 = vmul.f32 %v610, %v602
    %623 = vadd.xlane.f32.xlu0 %v622
    %v624 = vpop.xlane.xlu0 %623
    %v625 = vsel %vm613, %v624, %v602
    %v626 = vmul.f32 %v610, %v606
    %627 = vadd.xlane.f32.xlu0 %v626
    %v628 = vpop.xlane.xlu0 %627
    %v629 = vsel %vm613, %v628, %v606
    %630 = vst [vmem:[#allocation1] sm:$0xff] %v617
    %s631 = scalar_lea.vmem [#allocation1], 8
    %632 = vst [vmem:[%s631] sm:$0xff] %v621
    %s633 = scalar_lea.vmem [#allocation1], 16
    %634 = vst [vmem:[%s633] sm:$0xff] %v625
    %s635 = scalar_lea.vmem [#allocation1], 24
    %636 = vst [vmem:[%s635] sm:$0xff] %v629
    %p638 = scmp.gt.s32.totalorder 32, 0
    // Predicated region
    $region24: #{custom-call.69} parent=1 // pred_check
      %p639 = pneg %p638
    $region25: #{custom-call.69} parent=1 // pred_check_branch
      %641 = sbr.rel (%p639) target = $region27
    $region26: #{custom-call.69} parent=1 // pred_region
      %s642 = sshra.s32 32, 3
      %p643 = scmp.gt.s32.totalorder %s642, 0
      // Predicated region
      $region28: #{custom-call.69} parent=26 // pred_check
        %p644 = pneg %p643
      $region29: #{custom-call.69} parent=26 // pred_check_branch
        %646 = sbr.rel (%p644) target = $region31
      $region30: #{custom-call.69} parent=26 // pred_region
        %s647 = ssub.s32 %s642, 1
        %s648 = smul.u32 %s647, 128
        %s649 = sshra.s32 %s648, 4
        %s650 = scalar_lea.vmem [#allocation1], %s649
        %v651 = vld [vmem:[#allocation1] sm:$0xff]
        // While loop
        $region32: #{custom-call.69} parent=30 // loop_pre_header
          _
        $region33: #{custom-call.69} parent=30 // loop_header
          %s652 = sphi [#allocation1], %s674
          %s653 = sphi %s1, %s675
          %v654 = vphi %v651, %v676
          %s655 = ssub.s32 %s650, 64
          %p656 = scmp.gt.s32.totalorder %s652, %s655
        $region34: #{custom-call.69} parent=30 // loop_header_branch
          %658 = sbr.rel (%p656) target = $region38
        $region35: #{custom-call.69} parent=30 // loop_body
          %659 = vst [vmem:[%s653] sm:$0xff] %v654
          %v660 = vld [vmem:[%s652 + $0x8] sm:$0xff]
          %661 = vst [vmem:[%s653 + $0x8] sm:$0xff] %v660
          %v662 = vld [vmem:[%s652 + $0x10] sm:$0xff]
          %663 = vst [vmem:[%s653 + $0x10] sm:$0xff] %v662
          %v664 = vld [vmem:[%s652 + $0x18] sm:$0xff]
          %665 = vst [vmem:[%s653 + $0x18] sm:$0xff] %v664
          %v666 = vld [vmem:[%s652 + $0x20] sm:$0xff]
          %667 = vst [vmem:[%s653 + $0x20] sm:$0xff] %v666
          %v668 = vld [vmem:[%s652 + $0x28] sm:$0xff]
          %669 = vst [vmem:[%s653 + $0x28] sm:$0xff] %v668
          %v670 = vld [vmem:[%s652 + $0x30] sm:$0xff]
          %671 = vst [vmem:[%s653 + $0x30] sm:$0xff] %v670
          %v672 = vld [vmem:[%s652 + $0x38] sm:$0xff]
          %673 = vst [vmem:[%s653 + $0x38] sm:$0xff] %v672
        $region36: #{custom-call.69} parent=30 // loop_footer
          %s674 = scalar_lea.vmem %s652, 64
          %s675 = scalar_lea.vmem %s653, 64
          %v676 = vld [vmem:[%s652 + $0x40] sm:$0xff]
        $region37: #{custom-call.69} parent=30 // loop_footer_branch
          %677 = sbr.rel target = $region33
        $region38: #{custom-call.69} parent=30 // loop_exit
          _
        // While loop
        $region39: #{custom-call.69} parent=30 // loop_pre_header
          _
        $region40: #{custom-call.69} parent=30 // loop_header
          %s678 = sphi %s652, %s686
          %s679 = sphi %s653, %s687
          %v680 = vphi %v654, %v680
          %p681 = scmp.gt.s32.totalorder %s678, %s650
        $region41: #{custom-call.69} parent=30 // loop_header_branch
          %683 = sbr.rel (%p681) target = $region45
        $region42: #{custom-call.69} parent=30 // loop_body
          %v684 = vld [vmem:[%s678] sm:$0xff]
          %685 = vst [vmem:[%s679] sm:$0xff] %v684
        $region43: #{custom-call.69} parent=30 // loop_footer
          %s686 = scalar_lea.vmem %s678, 8
          %s687 = scalar_lea.vmem %s679, 8
        $region44: #{custom-call.69} parent=30 // loop_footer_branch
          %688 = sbr.rel target = $region40
        $region45: #{custom-call.69} parent=30 // loop_exit
          _
      $region31: #{custom-call.69} parent=26 // pred_fallthru
        _
      %s689 = sand.u32 32, 7
      %s690 = sshllo.u32 0, %s689
      %s691 = smul.u32 %s642, 128
      %s692 = sshra.s32 %s691, 4
      %s693 = scalar_lea.vmem %s1, %s692
      %s694 = smul.u32 %s642, 128
      %s695 = sshra.s32 %s694, 4
      %s696 = scalar_lea.vmem [#allocation1], %s695
      %v697 = vld [vmem:[%s696] sm:%s690]
      %698 = vst [vmem:[%s693] sm:%s690] %v697
    $region27: #{custom-call.69} parent=1 // pred_fallthru
      _

// kernel: openclip_vit_forward.4
$region0: #{openclip_vit_forward.4}
  #allocation0 [shape = 'u32[]', space=smem, size = 0x4, offset = 0x4, fixed_abs, tag = 'smem constant byte address 0x4 - core index']
  #allocation1 [shape = 'u32[144,128]{1,0:T(1,128)}', space=vmem, size = 0x12000, scoped, tag = 'internal scratch']
  %s0 = inlined_call_operand.vmem [shape: f32[2,24,32], index: 0, kind: input, shape index: {}]
  %s1 = inlined_call_operand.vmem [shape: f32[2,1,24], index: 1, kind: input, shape index: {}]
  %s2 = inlined_call_operand.vmem [shape: f32[2,1,32], index: 2, kind: input, shape index: {}]
  %s3 = inlined_call_operand.vmem [shape: f32[2,1,32], index: 3, kind: input, shape index: {}]
  %s4 = inlined_call_operand.vmem [shape: bf16[2,32,96], index: 4, kind: input, shape index: {}]
  %s5 = inlined_call_operand.vmem [shape: f32[2,1,96], index: 5, kind: input, shape index: {}]
  %s6 = inlined_call_operand.vmem [shape: bf16[2,32,32], index: 6, kind: input, shape index: {}]
  %s7 = inlined_call_operand.vmem [shape: f32[2,1,32], index: 7, kind: input, shape index: {}]
  %s8 = inlined_call_operand.vmem [shape: f32[2,1,32], index: 8, kind: input, shape index: {}]
  %s9 = inlined_call_operand.vmem [shape: f32[2,1,32], index: 9, kind: input, shape index: {}]
  %s10 = inlined_call_operand.vmem [shape: bf16[2,32,128], index: 10, kind: input, shape index: {}]
  %s11 = inlined_call_operand.vmem [shape: f32[2,1,128], index: 11, kind: input, shape index: {}]
  %s12 = inlined_call_operand.vmem [shape: bf16[2,128,32], index: 12, kind: input, shape index: {}]
  %s13 = inlined_call_operand.vmem [shape: f32[2,1,32], index: 13, kind: input, shape index: {}]
  %s14 = inlined_call_operand.vmem [shape: f32[2,24,32], index: 14, kind: output, shape index: {}]
  %s15 = sld [smem:[#allocation0]]
  $region93: #{openclip_vit_forward.4} parent=0
    _
  %s17 = ssub.s32 1, %s15
  %s18 = scalar_select 0, %s17, %s15
  loop: start=0, step=1, limit=6
  $region2: #{openclip_vit_forward.4} parent=0 // loop_pre_header
    _
  $region3: #{openclip_vit_forward.4} parent=0 // loop_header
    %s20 = sphi 0, %s24
    %p21 = scmp.ge.s32.totalorder %s20, 6
    %s27 = sphi 0, %s39
    %s28 = sphi 0, %s35
    %s29 = sphi 0, %s27
    %s30 = sphi 0, %s28
    %s31 = sphi 0, %s29
    %s32 = sphi 0, %s30
    %s42 = sphi 0, %s44
    %s45 = sphi 0, %s42
    %s46 = sphi 0, %s45
    %s62 = sphi 0, %s46
    %s68 = sphi 0, %s70
    %s71 = sphi 0, %s68
    %s72 = sphi 0, %s71
    %s88 = sphi 0, %s72
    %s94 = sphi 0, %s96
    %s97 = sphi 0, %s94
    %s98 = sphi 0, %s97
    %s114 = sphi 0, %s98
    %s120 = sphi 0, %s122
    %s123 = sphi 0, %s120
    %s124 = sphi 0, %s123
    %s140 = sphi 0, %s124
    %s146 = sphi 0, %s148
    %s149 = sphi 0, %s146
    %s150 = sphi 0, %s149
    %s166 = sphi 0, %s150
    %s172 = sphi 0, %s174
    %s175 = sphi 0, %s172
    %s176 = sphi 0, %s175
    %s192 = sphi 0, %s176
    %s198 = sphi 0, %s200
    %s201 = sphi 0, %s198
    %s202 = sphi 0, %s201
    %s218 = sphi 0, %s202
    %s224 = sphi 0, %s226
    %s227 = sphi 0, %s224
    %s228 = sphi 0, %s227
    %s244 = sphi 0, %s228
    %s250 = sphi 0, %s252
    %s253 = sphi 0, %s250
    %s254 = sphi 0, %s253
    %s270 = sphi 0, %s254
    %s276 = sphi 0, %s278
    %s279 = sphi 0, %s276
    %s280 = sphi 0, %s279
    %s296 = sphi 0, %s280
    %s302 = sphi 0, %s304
    %s305 = sphi 0, %s302
    %s306 = sphi 0, %s305
    %s322 = sphi 0, %s306
    %s328 = sphi 0, %s330
    %s331 = sphi 0, %s328
    %s332 = sphi 0, %s331
    %s348 = sphi 0, %s332
    %s354 = sphi 0, %s356
    %s357 = sphi 0, %s354
    %s358 = sphi 0, %s357
    %s374 = sphi 0, %s358
    %s380 = sphi 0, %s382
    %s383 = sphi 0, %s380
    %s384 = sphi 0, %s383
    %s400 = sphi 0, %s384
    %s406 = sphi 0, %s408
    %s409 = sphi 0, %s406
    %s410 = sphi 0, %s409
    %s426 = sphi 0, %s410
  $region4: #{openclip_vit_forward.4} parent=0 // loop_header_branch
    %23 = sbr.rel (%p21) target = $region8
  $region5: #{openclip_vit_forward.4} parent=0 // loop_body
    %s25 = ssub.s32 %s20, 1
    %s26 = ssub.s32 %s20, 2
    %s33 = sadd.s32 1, %s28
    %p34 = scmp.ge.s32.totalorder %s33, 2
    %s35 = scalar_select %p34, 0, %s33
    %s36 = sadd.s32 1, %s27
    %s37 = scalar_select %p34, %s36, %s27
    %p38 = scmp.ge.s32.totalorder %s37, 2
    %s39 = scalar_select %p38, 0, %s37
    %s40 = ssub.s32 %s27, %s39
    %p41 = scmp.eq.s32.totalorder %s40, 0
    %s43 = sadd.s32 %s42, 1
    %s44 = scalar_select %p41, %s42, %s43
    %p47 = pneg %p41
    %p48 = scmp.eq.s32.totalorder %s20, 3
    %p49 = por %p47, %p48
    %p50 = scmp.ne.s32.totalorder %s42, %s45
    %p51 = scmp.eq.s32.totalorder %s20, 0
    %p52 = por %p50, %p51
    %p53 = scmp.ne.s32.totalorder %s42, %s45
    %p54 = scmp.eq.s32.totalorder %s25, 3
    %p55 = por %p53, %p54
    %p56 = scmp.ne.s32.totalorder %s45, %s46
    %p57 = scmp.eq.s32.totalorder %s25, 0
    %p58 = por %p56, %p57
    %p59 = scmp.ne.s32.totalorder %s45, %s46
    %p60 = scmp.eq.s32.totalorder %s26, 3
    %p61 = por %p59, %p60
    %p63 = scmp.ne.s32.totalorder %s46, %s62
    %p64 = scmp.eq.s32.totalorder %s26, 0
    %p65 = por %p63, %p64
    %s66 = ssub.s32 %s27, %s39
    %p67 = scmp.eq.s32.totalorder %s66, 0
    %s69 = sadd.s32 %s68, 1
    %s70 = scalar_select %p67, %s68, %s69
    %p73 = pneg %p67
    %p74 = scmp.eq.s32.totalorder %s20, 3
    %p75 = por %p73, %p74
    %p76 = scmp.ne.s32.totalorder %s68, %s71
    %p77 = scmp.eq.s32.totalorder %s20, 0
    %p78 = por %p76, %p77
    %p79 = scmp.ne.s32.totalorder %s68, %s71
    %p80 = scmp.eq.s32.totalorder %s25, 3
    %p81 = por %p79, %p80
    %p82 = scmp.ne.s32.totalorder %s71, %s72
    %p83 = scmp.eq.s32.totalorder %s25, 0
    %p84 = por %p82, %p83
    %p85 = scmp.ne.s32.totalorder %s71, %s72
    %p86 = scmp.eq.s32.totalorder %s26, 3
    %p87 = por %p85, %p86
    %p89 = scmp.ne.s32.totalorder %s72, %s88
    %p90 = scmp.eq.s32.totalorder %s26, 0
    %p91 = por %p89, %p90
    %s92 = ssub.s32 %s28, %s35
    %p93 = scmp.eq.s32.totalorder %s92, 0
    %s95 = sadd.s32 %s94, 1
    %s96 = scalar_select %p93, %s94, %s95
    %p99 = pneg %p93
    %p100 = scmp.eq.s32.totalorder %s20, 3
    %p101 = por %p99, %p100
    %p102 = scmp.ne.s32.totalorder %s94, %s97
    %p103 = scmp.eq.s32.totalorder %s20, 0
    %p104 = por %p102, %p103
    %p105 = scmp.ne.s32.totalorder %s94, %s97
    %p106 = scmp.eq.s32.totalorder %s25, 3
    %p107 = por %p105, %p106
    %p108 = scmp.ne.s32.totalorder %s97, %s98
    %p109 = scmp.eq.s32.totalorder %s25, 0
    %p110 = por %p108, %p109
    %p111 = scmp.ne.s32.totalorder %s97, %s98
    %p112 = scmp.eq.s32.totalorder %s26, 3
    %p113 = por %p111, %p112
    %p115 = scmp.ne.s32.totalorder %s98, %s114
    %p116 = scmp.eq.s32.totalorder %s26, 0
    %p117 = por %p115, %p116
    %s118 = ssub.s32 %s28, %s35
    %p119 = scmp.eq.s32.totalorder %s118, 0
    %s121 = sadd.s32 %s120, 1
    %s122 = scalar_select %p119, %s120, %s121
    %p125 = pneg %p119
    %p126 = scmp.eq.s32.totalorder %s20, 3
    %p127 = por %p125, %p126
    %p128 = scmp.ne.s32.totalorder %s120, %s123
    %p129 = scmp.eq.s32.totalorder %s20, 0
    %p130 = por %p128, %p129
    %p131 = scmp.ne.s32.totalorder %s120, %s123
    %p132 = scmp.eq.s32.totalorder %s25, 3
    %p133 = por %p131, %p132
    %p134 = scmp.ne.s32.totalorder %s123, %s124
    %p135 = scmp.eq.s32.totalorder %s25, 0
    %p136 = por %p134, %p135
    %p137 = scmp.ne.s32.totalorder %s123, %s124
    %p138 = scmp.eq.s32.totalorder %s26, 3
    %p139 = por %p137, %p138
    %p141 = scmp.ne.s32.totalorder %s124, %s140
    %p142 = scmp.eq.s32.totalorder %s26, 0
    %p143 = por %p141, %p142
    %s144 = ssub.s32 %s28, %s35
    %p145 = scmp.eq.s32.totalorder %s144, 0
    %s147 = sadd.s32 %s146, 1
    %s148 = scalar_select %p145, %s146, %s147
    %p151 = pneg %p145
    %p152 = scmp.eq.s32.totalorder %s20, 3
    %p153 = por %p151, %p152
    %p154 = scmp.ne.s32.totalorder %s146, %s149
    %p155 = scmp.eq.s32.totalorder %s20, 0
    %p156 = por %p154, %p155
    %p157 = scmp.ne.s32.totalorder %s146, %s149
    %p158 = scmp.eq.s32.totalorder %s25, 3
    %p159 = por %p157, %p158
    %p160 = scmp.ne.s32.totalorder %s149, %s150
    %p161 = scmp.eq.s32.totalorder %s25, 0
    %p162 = por %p160, %p161
    %p163 = scmp.ne.s32.totalorder %s149, %s150
    %p164 = scmp.eq.s32.totalorder %s26, 3
    %p165 = por %p163, %p164
    %p167 = scmp.ne.s32.totalorder %s150, %s166
    %p168 = scmp.eq.s32.totalorder %s26, 0
    %p169 = por %p167, %p168
    %s170 = ssub.s32 %s28, %s35
    %p171 = scmp.eq.s32.totalorder %s170, 0
    %s173 = sadd.s32 %s172, 1
    %s174 = scalar_select %p171, %s172, %s173
    %p177 = pneg %p171
    %p178 = scmp.eq.s32.totalorder %s20, 3
    %p179 = por %p177, %p178
    %p180 = scmp.ne.s32.totalorder %s172, %s175
    %p181 = scmp.eq.s32.totalorder %s20, 0
    %p182 = por %p180, %p181
    %p183 = scmp.ne.s32.totalorder %s172, %s175
    %p184 = scmp.eq.s32.totalorder %s25, 3
    %p185 = por %p183, %p184
    %p186 = scmp.ne.s32.totalorder %s175, %s176
    %p187 = scmp.eq.s32.totalorder %s25, 0
    %p188 = por %p186, %p187
    %p189 = scmp.ne.s32.totalorder %s175, %s176
    %p190 = scmp.eq.s32.totalorder %s26, 3
    %p191 = por %p189, %p190
    %p193 = scmp.ne.s32.totalorder %s176, %s192
    %p194 = scmp.eq.s32.totalorder %s26, 0
    %p195 = por %p193, %p194
    %s196 = ssub.s32 %s28, %s35
    %p197 = scmp.eq.s32.totalorder %s196, 0
    %s199 = sadd.s32 %s198, 1
    %s200 = scalar_select %p197, %s198, %s199
    %p203 = pneg %p197
    %p204 = scmp.eq.s32.totalorder %s20, 3
    %p205 = por %p203, %p204
    %p206 = scmp.ne.s32.totalorder %s198, %s201
    %p207 = scmp.eq.s32.totalorder %s20, 0
    %p208 = por %p206, %p207
    %p209 = scmp.ne.s32.totalorder %s198, %s201
    %p210 = scmp.eq.s32.totalorder %s25, 3
    %p211 = por %p209, %p210
    %p212 = scmp.ne.s32.totalorder %s201, %s202
    %p213 = scmp.eq.s32.totalorder %s25, 0
    %p214 = por %p212, %p213
    %p215 = scmp.ne.s32.totalorder %s201, %s202
    %p216 = scmp.eq.s32.totalorder %s26, 3
    %p217 = por %p215, %p216
    %p219 = scmp.ne.s32.totalorder %s202, %s218
    %p220 = scmp.eq.s32.totalorder %s26, 0
    %p221 = por %p219, %p220
    %s222 = ssub.s32 %s28, %s35
    %p223 = scmp.eq.s32.totalorder %s222, 0
    %s225 = sadd.s32 %s224, 1
    %s226 = scalar_select %p223, %s224, %s225
    %p229 = pneg %p223
    %p230 = scmp.eq.s32.totalorder %s20, 3
    %p231 = por %p229, %p230
    %p232 = scmp.ne.s32.totalorder %s224, %s227
    %p233 = scmp.eq.s32.totalorder %s20, 0
    %p234 = por %p232, %p233
    %p235 = scmp.ne.s32.totalorder %s224, %s227
    %p236 = scmp.eq.s32.totalorder %s25, 3
    %p237 = por %p235, %p236
    %p238 = scmp.ne.s32.totalorder %s227, %s228
    %p239 = scmp.eq.s32.totalorder %s25, 0
    %p240 = por %p238, %p239
    %p241 = scmp.ne.s32.totalorder %s227, %s228
    %p242 = scmp.eq.s32.totalorder %s26, 3
    %p243 = por %p241, %p242
    %p245 = scmp.ne.s32.totalorder %s228, %s244
    %p246 = scmp.eq.s32.totalorder %s26, 0
    %p247 = por %p245, %p246
    %s248 = ssub.s32 %s28, %s35
    %p249 = scmp.eq.s32.totalorder %s248, 0
    %s251 = sadd.s32 %s250, 1
    %s252 = scalar_select %p249, %s250, %s251
    %p255 = pneg %p249
    %p256 = scmp.eq.s32.totalorder %s20, 3
    %p257 = por %p255, %p256
    %p258 = scmp.ne.s32.totalorder %s250, %s253
    %p259 = scmp.eq.s32.totalorder %s20, 0
    %p260 = por %p258, %p259
    %p261 = scmp.ne.s32.totalorder %s250, %s253
    %p262 = scmp.eq.s32.totalorder %s25, 3
    %p263 = por %p261, %p262
    %p264 = scmp.ne.s32.totalorder %s253, %s254
    %p265 = scmp.eq.s32.totalorder %s25, 0
    %p266 = por %p264, %p265
    %p267 = scmp.ne.s32.totalorder %s253, %s254
    %p268 = scmp.eq.s32.totalorder %s26, 3
    %p269 = por %p267, %p268
    %p271 = scmp.ne.s32.totalorder %s254, %s270
    %p272 = scmp.eq.s32.totalorder %s26, 0
    %p273 = por %p271, %p272
    %s274 = ssub.s32 %s28, %s35
    %p275 = scmp.eq.s32.totalorder %s274, 0
    %s277 = sadd.s32 %s276, 1
    %s278 = scalar_select %p275, %s276, %s277
    %p281 = pneg %p275
    %p282 = scmp.eq.s32.totalorder %s20, 3
    %p283 = por %p281, %p282
    %p284 = scmp.ne.s32.totalorder %s276, %s279
    %p285 = scmp.eq.s32.totalorder %s20, 0
    %p286 = por %p284, %p285
    %p287 = scmp.ne.s32.totalorder %s276, %s279
    %p288 = scmp.eq.s32.totalorder %s25, 3
    %p289 = por %p287, %p288
    %p290 = scmp.ne.s32.totalorder %s279, %s280
    %p291 = scmp.eq.s32.totalorder %s25, 0
    %p292 = por %p290, %p291
    %p293 = scmp.ne.s32.totalorder %s279, %s280
    %p294 = scmp.eq.s32.totalorder %s26, 3
    %p295 = por %p293, %p294
    %p297 = scmp.ne.s32.totalorder %s280, %s296
    %p298 = scmp.eq.s32.totalorder %s26, 0
    %p299 = por %p297, %p298
    %s300 = ssub.s32 %s28, %s35
    %p301 = scmp.eq.s32.totalorder %s300, 0
    %s303 = sadd.s32 %s302, 1
    %s304 = scalar_select %p301, %s302, %s303
    %p307 = pneg %p301
    %p308 = scmp.eq.s32.totalorder %s20, 3
    %p309 = por %p307, %p308
    %p310 = scmp.ne.s32.totalorder %s302, %s305
    %p311 = scmp.eq.s32.totalorder %s20, 0
    %p312 = por %p310, %p311
    %p313 = scmp.ne.s32.totalorder %s302, %s305
    %p314 = scmp.eq.s32.totalorder %s25, 3
    %p315 = por %p313, %p314
    %p316 = scmp.ne.s32.totalorder %s305, %s306
    %p317 = scmp.eq.s32.totalorder %s25, 0
    %p318 = por %p316, %p317
    %p319 = scmp.ne.s32.totalorder %s305, %s306
    %p320 = scmp.eq.s32.totalorder %s26, 3
    %p321 = por %p319, %p320
    %p323 = scmp.ne.s32.totalorder %s306, %s322
    %p324 = scmp.eq.s32.totalorder %s26, 0
    %p325 = por %p323, %p324
    %s326 = ssub.s32 %s28, %s35
    %p327 = scmp.eq.s32.totalorder %s326, 0
    %s329 = sadd.s32 %s328, 1
    %s330 = scalar_select %p327, %s328, %s329
    %p333 = pneg %p327
    %p334 = scmp.eq.s32.totalorder %s20, 3
    %p335 = por %p333, %p334
    %p336 = scmp.ne.s32.totalorder %s328, %s331
    %p337 = scmp.eq.s32.totalorder %s20, 0
    %p338 = por %p336, %p337
    %p339 = scmp.ne.s32.totalorder %s328, %s331
    %p340 = scmp.eq.s32.totalorder %s25, 3
    %p341 = por %p339, %p340
    %p342 = scmp.ne.s32.totalorder %s331, %s332
    %p343 = scmp.eq.s32.totalorder %s25, 0
    %p344 = por %p342, %p343
    %p345 = scmp.ne.s32.totalorder %s331, %s332
    %p346 = scmp.eq.s32.totalorder %s26, 3
    %p347 = por %p345, %p346
    %p349 = scmp.ne.s32.totalorder %s332, %s348
    %p350 = scmp.eq.s32.totalorder %s26, 0
    %p351 = por %p349, %p350
    %s352 = ssub.s32 %s28, %s35
    %p353 = scmp.eq.s32.totalorder %s352, 0
    %s355 = sadd.s32 %s354, 1
    %s356 = scalar_select %p353, %s354, %s355
    %p359 = pneg %p353
    %p360 = scmp.eq.s32.totalorder %s20, 3
    %p361 = por %p359, %p360
    %p362 = scmp.ne.s32.totalorder %s354, %s357
    %p363 = scmp.eq.s32.totalorder %s20, 0
    %p364 = por %p362, %p363
    %p365 = scmp.ne.s32.totalorder %s354, %s357
    %p366 = scmp.eq.s32.totalorder %s25, 3
    %p367 = por %p365, %p366
    %p368 = scmp.ne.s32.totalorder %s357, %s358
    %p369 = scmp.eq.s32.totalorder %s25, 0
    %p370 = por %p368, %p369
    %p371 = scmp.ne.s32.totalorder %s357, %s358
    %p372 = scmp.eq.s32.totalorder %s26, 3
    %p373 = por %p371, %p372
    %p375 = scmp.ne.s32.totalorder %s358, %s374
    %p376 = scmp.eq.s32.totalorder %s26, 0
    %p377 = por %p375, %p376
    %s378 = ssub.s32 %s28, %s35
    %p379 = scmp.eq.s32.totalorder %s378, 0
    %s381 = sadd.s32 %s380, 1
    %s382 = scalar_select %p379, %s380, %s381
    %p385 = pneg %p379
    %p386 = scmp.eq.s32.totalorder %s20, 3
    %p387 = por %p385, %p386
    %p388 = scmp.ne.s32.totalorder %s380, %s383
    %p389 = scmp.eq.s32.totalorder %s20, 0
    %p390 = por %p388, %p389
    %p391 = scmp.ne.s32.totalorder %s380, %s383
    %p392 = scmp.eq.s32.totalorder %s25, 3
    %p393 = por %p391, %p392
    %p394 = scmp.ne.s32.totalorder %s383, %s384
    %p395 = scmp.eq.s32.totalorder %s25, 0
    %p396 = por %p394, %p395
    %p397 = scmp.ne.s32.totalorder %s383, %s384
    %p398 = scmp.eq.s32.totalorder %s26, 3
    %p399 = por %p397, %p398
    %p401 = scmp.ne.s32.totalorder %s384, %s400
    %p402 = scmp.eq.s32.totalorder %s26, 0
    %p403 = por %p401, %p402
    %s404 = ssub.s32 %s27, %s39
    %p405 = scmp.eq.s32.totalorder %s404, 0
    %s407 = sadd.s32 %s406, 1
    %s408 = scalar_select %p405, %s406, %s407
    %p411 = pneg %p405
    %p412 = scmp.eq.s32.totalorder %s20, 3
    %p413 = por %p411, %p412
    %p414 = scmp.ne.s32.totalorder %s406, %s409
    %p415 = scmp.eq.s32.totalorder %s20, 0
    %p416 = por %p414, %p415
    %p417 = scmp.ne.s32.totalorder %s406, %s409
    %p418 = scmp.eq.s32.totalorder %s25, 3
    %p419 = por %p417, %p418
    %p420 = scmp.ne.s32.totalorder %s409, %s410
    %p421 = scmp.eq.s32.totalorder %s25, 0
    %p422 = por %p420, %p421
    %p423 = scmp.ne.s32.totalorder %s409, %s410
    %p424 = scmp.eq.s32.totalorder %s26, 3
    %p425 = por %p423, %p424
    %p427 = scmp.ne.s32.totalorder %s410, %s426
    %p428 = scmp.eq.s32.totalorder %s26, 0
    %p429 = por %p427, %p428
    %p430 = scmp.le.s32.totalorder 1, %s20
    %p431 = scmp.lt.s32.totalorder %s20, 5
    %p432 = pnand %p430, %p431
    %p433 = pneg %p432
    // Predicated region
    $region9: #{openclip_vit_forward.4} parent=5 // pred_check
      _
    $region10: #{openclip_vit_forward.4} parent=5 // pred_check_branch
      %435 = sbr.rel (%p432) target = $region12
    $region11: #{openclip_vit_forward.4} parent=5 // pred_region
      %s436 = ssub.s32 %s20, 1
    $region12: #{openclip_vit_forward.4} parent=5 // pred_fallthru
      _
    %p437 = scmp.lt.s32.totalorder %s20, 4
    // Predicated region
    $region13: #{openclip_vit_forward.4} parent=5 // pred_check
      %p438 = pneg %p437
    $region14: #{openclip_vit_forward.4} parent=5 // pred_check_branch
      %440 = sbr.rel (%p438) target = $region16
    $region15: #{openclip_vit_forward.4} parent=5 // pred_region
      // Predicated region
      $region17: #{openclip_vit_forward.4} parent=15 // pred_check
        %p441 = pneg %p52
      $region18: #{openclip_vit_forward.4} parent=15 // pred_check_branch
        %443 = sbr.rel (%p441) target = $region20
      $region19: #{openclip_vit_forward.4} parent=15 // pred_region
        %p444 = scmp.lt.s32.totalorder %s27, 1
        %s445 = scalar_select %p444, %s27, 1
        %s446 = smul.addr %s445, 3
        %s447 = smul.addr %s446, 8
        %s448 = scalar_lea.vmem %s0, %s447
      $region20: #{openclip_vit_forward.4} parent=15 // pred_fallthru
        _
      // Predicated region
      $region21: #{openclip_vit_forward.4} parent=15 // pred_check
        %p449 = pneg %p78
      $region22: #{openclip_vit_forward.4} parent=15 // pred_check_branch
        %451 = sbr.rel (%p449) target = $region24
      $region23: #{openclip_vit_forward.4} parent=15 // pred_region
        %p452 = scmp.lt.s32.totalorder %s27, 1
        %s453 = scalar_select %p452, %s27, 1
        %s454 = scalar_lea.vmem %s1, %s453
      $region24: #{openclip_vit_forward.4} parent=15 // pred_fallthru
        _
      // Predicated region
      $region25: #{openclip_vit_forward.4} parent=15 // pred_check
        %p455 = pneg %p104
      $region26: #{openclip_vit_forward.4} parent=15 // pred_check_branch
        %457 = sbr.rel (%p455) target = $region28
      $region27: #{openclip_vit_forward.4} parent=15 // pred_region
        %p458 = scmp.lt.s32.totalorder %s28, 1
        %s459 = scalar_select %p458, %s28, 1
        %s460 = scalar_lea.vmem %s2, %s459
      $region28: #{openclip_vit_forward.4} parent=15 // pred_fallthru
        _
      // Predicated region
      $region29: #{openclip_vit_forward.4} parent=15 // pred_check
        %p461 = pneg %p130
      $region30: #{openclip_vit_forward.4} parent=15 // pred_check_branch
        %463 = sbr.rel (%p461) target = $region32
      $region31: #{openclip_vit_forward.4} parent=15 // pred_region
        %p464 = scmp.lt.s32.totalorder %s28, 1
        %s465 = scalar_select %p464, %s28, 1
        %s466 = scalar_lea.vmem %s3, %s465
      $region32: #{openclip_vit_forward.4} parent=15 // pred_fallthru
        _
      // Predicated region
      $region33: #{openclip_vit_forward.4} parent=15 // pred_check
        %p467 = pneg %p156
      $region34: #{openclip_vit_forward.4} parent=15 // pred_check_branch
        %469 = sbr.rel (%p467) target = $region36
      $region35: #{openclip_vit_forward.4} parent=15 // pred_region
        %p470 = scmp.lt.s32.totalorder %s28, 1
        %s471 = scalar_select %p470, %s28, 1
        %s472 = smul.addr %s471, 4
        %s473 = smul.addr %s472, 4
        %s474 = scalar_lea.vmem %s4, %s473
      $region36: #{openclip_vit_forward.4} parent=15 // pred_fallthru
        _
      // Predicated region
      $region37: #{openclip_vit_forward.4} parent=15 // pred_check
        %p475 = pneg %p182
      $region38: #{openclip_vit_forward.4} parent=15 // pred_check_branch
        %477 = sbr.rel (%p475) target = $region40
      $region39: #{openclip_vit_forward.4} parent=15 // pred_region
        %p478 = scmp.lt.s32.totalorder %s28, 1
        %s479 = scalar_select %p478, %s28, 1
        %s480 = scalar_lea.vmem %s5, %s479
      $region40: #{openclip_vit_forward.4} parent=15 // pred_fallthru
        _
      // Predicated region
      $region41: #{openclip_vit_forward.4} parent=15 // pred_check
        %p481 = pneg %p208
      $region42: #{openclip_vit_forward.4} parent=15 // pred_check_branch
        %483 = sbr.rel (%p481) target = $region44
      $region43: #{openclip_vit_forward.4} parent=15 // pred_region
        %p484 = scmp.lt.s32.totalorder %s28, 1
        %s485 = scalar_select %p484, %s28, 1
        %s486 = smul.addr %s485, 4
        %s487 = smul.addr %s486, 4
        %s488 = scalar_lea.vmem %s6, %s487
      $region44: #{openclip_vit_forward.4} parent=15 // pred_fallthru
        _
      // Predicated region
      $region45: #{openclip_vit_forward.4} parent=15 // pred_check
        %p489 = pneg %p234
      $region46: #{openclip_vit_forward.4} parent=15 // pred_check_branch
        %491 = sbr.rel (%p489) target = $region48
      $region47: #{openclip_vit_forward.4} parent=15 // pred_region
        %p492 = scmp.lt.s32.totalorder %s28, 1
        %s493 = scalar_select %p492, %s28, 1
        %s494 = scalar_lea.vmem %s7, %s493
      $region48: #{openclip_vit_forward.4} parent=15 // pred_fallthru
        _
      // Predicated region
      $region49: #{openclip_vit_forward.4} parent=15 // pred_check
        %p495 = pneg %p260
      $region50: #{openclip_vit_forward.4} parent=15 // pred_check_branch
        %497 = sbr.rel (%p495) target = $region52
      $region51: #{openclip_vit_forward.4} parent=15 // pred_region
        %p498 = scmp.lt.s32.totalorder %s28, 1
        %s499 = scalar_select %p498, %s28, 1
        %s500 = scalar_lea.vmem %s8, %s499
      $region52: #{openclip_vit_forward.4} parent=15 // pred_fallthru
        _
      // Predicated region
      $region53: #{openclip_vit_forward.4} parent=15 // pred_check
        %p501 = pneg %p286
      $region54: #{openclip_vit_forward.4} parent=15 // pred_check_branch
        %503 = sbr.rel (%p501) target = $region56
      $region55: #{openclip_vit_forward.4} parent=15 // pred_region
        %p504 = scmp.lt.s32.totalorder %s28, 1
        %s505 = scalar_select %p504, %s28, 1
        %s506 = scalar_lea.vmem %s9, %s505
      $region56: #{openclip_vit_forward.4} parent=15 // pred_fallthru
        _
      // Predicated region
      $region57: #{openclip_vit_forward.4} parent=15 // pred_check
        %p507 = pneg %p312
      $region58: #{openclip_vit_forward.4} parent=15 // pred_check_branch
        %509 = sbr.rel (%p507) target = $region60
      $region59: #{openclip_vit_forward.4} parent=15 // pred_region
        %p510 = scmp.lt.s32.totalorder %s28, 1
        %s511 = scalar_select %p510, %s28, 1
        %s512 = smul.addr %s511, 4
        %s513 = smul.addr %s512, 4
        %s514 = scalar_lea.vmem %s10, %s513
      $region60: #{openclip_vit_forward.4} parent=15 // pred_fallthru
        _
      // Predicated region
      $region61: #{openclip_vit_forward.4} parent=15 // pred_check
        %p515 = pneg %p338
      $region62: #{openclip_vit_forward.4} parent=15 // pred_check_branch
        %517 = sbr.rel (%p515) target = $region64
      $region63: #{openclip_vit_forward.4} parent=15 // pred_region
        %p518 = scmp.lt.s32.totalorder %s28, 1
        %s519 = scalar_select %p518, %s28, 1
        %s520 = scalar_lea.vmem %s11, %s519
      $region64: #{openclip_vit_forward.4} parent=15 // pred_fallthru
        _
      // Predicated region
      $region65: #{openclip_vit_forward.4} parent=15 // pred_check
        %p521 = pneg %p364
      $region66: #{openclip_vit_forward.4} parent=15 // pred_check_branch
        %523 = sbr.rel (%p521) target = $region68
      $region67: #{openclip_vit_forward.4} parent=15 // pred_region
        %p524 = scmp.lt.s32.totalorder %s28, 1
        %s525 = scalar_select %p524, %s28, 1
        %s526 = smul.addr %s525, 16
        %s527 = smul.addr %s526, 4
        %s528 = scalar_lea.vmem %s12, %s527
      $region68: #{openclip_vit_forward.4} parent=15 // pred_fallthru
        _
      // Predicated region
      $region69: #{openclip_vit_forward.4} parent=15 // pred_check
        %p529 = pneg %p390
      $region70: #{openclip_vit_forward.4} parent=15 // pred_check_branch
        %531 = sbr.rel (%p529) target = $region72
      $region71: #{openclip_vit_forward.4} parent=15 // pred_region
        %p532 = scmp.lt.s32.totalorder %s28, 1
        %s533 = scalar_select %p532, %s28, 1
        %s534 = scalar_lea.vmem %s13, %s533
      $region72: #{openclip_vit_forward.4} parent=15 // pred_fallthru
        _
    $region16: #{openclip_vit_forward.4} parent=5 // pred_fallthru
      _
    %p535 = scmp.le.s32.totalorder 1, %s20
    %p536 = scmp.lt.s32.totalorder %s20, 5
    %p537 = pnand %p535, %p536
    %p538 = pneg %p537
    // Predicated region
    $region73: #{openclip_vit_forward.4} parent=5 // pred_check
      _
    $region74: #{openclip_vit_forward.4} parent=5 // pred_check_branch
      %540 = sbr.rel (%p537) target = $region76
    $region75: #{openclip_vit_forward.4} parent=5 // pred_region
      %s541 = ssub.s32 %s20, 1
      %p542 = scmp.lt.s32.totalorder %s29, 1
      %s543 = scalar_select %p542, %s29, 1
      %s544 = smul.addr %s543, 3
      %s545 = smul.addr %s544, 8
      %s546 = scalar_lea.vmem %s0, %s545
      %p547 = pneg %p58
      %p548 = pneg %p55
      %p549 = scmp.lt.s32.totalorder %s29, 1
      %s550 = scalar_select %p549, %s29, 1
      %s551 = scalar_lea.vmem %s1, %s550
      %p552 = pneg %p84
      %p553 = pneg %p81
      %p554 = scmp.lt.s32.totalorder %s30, 1
      %s555 = scalar_select %p554, %s30, 1
      %s556 = scalar_lea.vmem %s2, %s555
      %p557 = pneg %p110
      %p558 = pneg %p107
      %p559 = scmp.lt.s32.totalorder %s30, 1
      %s560 = scalar_select %p559, %s30, 1
      %s561 = scalar_lea.vmem %s3, %s560
      %p562 = pneg %p136
      %p563 = pneg %p133
      %p564 = scmp.lt.s32.totalorder %s30, 1
      %s565 = scalar_select %p564, %s30, 1
      %s566 = smul.addr %s565, 4
      %s567 = smul.addr %s566, 4
      %s568 = scalar_lea.vmem %s4, %s567
      %p569 = pneg %p162
      %p570 = pneg %p159
      %p571 = scmp.lt.s32.totalorder %s30, 1
      %s572 = scalar_select %p571, %s30, 1
      %s573 = scalar_lea.vmem %s5, %s572
      %p574 = pneg %p188
      %p575 = pneg %p185
      %p576 = scmp.lt.s32.totalorder %s30, 1
      %s577 = scalar_select %p576, %s30, 1
      %s578 = smul.addr %s577, 4
      %s579 = smul.addr %s578, 4
      %s580 = scalar_lea.vmem %s6, %s579
      %p581 = pneg %p214
      %p582 = pneg %p211
      %p583 = scmp.lt.s32.totalorder %s30, 1
      %s584 = scalar_select %p583, %s30, 1
      %s585 = scalar_lea.vmem %s7, %s584
      %p586 = pneg %p240
      %p587 = pneg %p237
      %p588 = scmp.lt.s32.totalorder %s30, 1
      %s589 = scalar_select %p588, %s30, 1
      %s590 = scalar_lea.vmem %s8, %s589
      %p591 = pneg %p266
      %p592 = pneg %p263
      %p593 = scmp.lt.s32.totalorder %s30, 1
      %s594 = scalar_select %p593, %s30, 1
      %s595 = scalar_lea.vmem %s9, %s594
      %p596 = pneg %p292
      %p597 = pneg %p289
      %p598 = scmp.lt.s32.totalorder %s30, 1
      %s599 = scalar_select %p598, %s30, 1
      %s600 = smul.addr %s599, 4
      %s601 = smul.addr %s600, 4
      %s602 = scalar_lea.vmem %s10, %s601
      %p603 = pneg %p318
      %p604 = pneg %p315
      %p605 = scmp.lt.s32.totalorder %s30, 1
      %s606 = scalar_select %p605, %s30, 1
      %s607 = scalar_lea.vmem %s11, %s606
      %p608 = pneg %p344
      %p609 = pneg %p341
      %p610 = scmp.lt.s32.totalorder %s30, 1
      %s611 = scalar_select %p610, %s30, 1
      %s612 = smul.addr %s611, 16
      %s613 = smul.addr %s612, 4
      %s614 = scalar_lea.vmem %s12, %s613
      %p615 = pneg %p370
      %p616 = pneg %p367
      %p617 = scmp.lt.s32.totalorder %s30, 1
      %s618 = scalar_select %p617, %s30, 1
      %s619 = scalar_lea.vmem %s13, %s618
      %p620 = pneg %p396
      %p621 = pneg %p393
      %p622 = pneg %p422
      %p623 = pneg %p419
      %p624 = scmp.lt.s32.totalorder %s29, 1
      %s625 = scalar_select %p624, %s29, 1
      %s626 = smul.addr %s625, 3
      %s627 = smul.addr %s626, 8
      %s628 = scalar_lea.vmem %s14, %s627
      %p629 = scmp.lt.s32.totalorder %s29, 1
      %s630 = scalar_select %p629, %s29, 1
      %s631 = smul.addr %s630, 3
      %s632 = smul.addr %s631, 8
      %s633 = scalar_lea.vmem %s0, %s632
      %p634 = scmp.lt.s32.totalorder %s29, 1
      %s635 = scalar_select %p634, %s29, 1
      %s636 = scalar_lea.vmem %s1, %s635
      %p637 = scmp.lt.s32.totalorder %s30, 1
      %s638 = scalar_select %p637, %s30, 1
      %s639 = scalar_lea.vmem %s2, %s638
      %p640 = scmp.lt.s32.totalorder %s30, 1
      %s641 = scalar_select %p640, %s30, 1
      %s642 = scalar_lea.vmem %s3, %s641
      %p643 = scmp.lt.s32.totalorder %s30, 1
      %s644 = scalar_select %p643, %s30, 1
      %s645 = smul.addr %s644, 4
      %s646 = smul.addr %s645, 4
      %s647 = scalar_lea.vmem %s4, %s646
      %p648 = scmp.lt.s32.totalorder %s30, 1
      %s649 = scalar_select %p648, %s30, 1
      %s650 = scalar_lea.vmem %s5, %s649
      %p651 = scmp.lt.s32.totalorder %s30, 1
      %s652 = scalar_select %p651, %s30, 1
      %s653 = smul.addr %s652, 4
      %s654 = smul.addr %s653, 4
      %s655 = scalar_lea.vmem %s6, %s654
      %p656 = scmp.lt.s32.totalorder %s30, 1
      %s657 = scalar_select %p656, %s30, 1
      %s658 = scalar_lea.vmem %s7, %s657
      %p659 = scmp.lt.s32.totalorder %s30, 1
      %s660 = scalar_select %p659, %s30, 1
      %s661 = scalar_lea.vmem %s8, %s660
      %p662 = scmp.lt.s32.totalorder %s30, 1
      %s663 = scalar_select %p662, %s30, 1
      %s664 = scalar_lea.vmem %s9, %s663
      %p665 = scmp.lt.s32.totalorder %s30, 1
      %s666 = scalar_select %p665, %s30, 1
      %s667 = smul.addr %s666, 4
      %s668 = smul.addr %s667, 4
      %s669 = scalar_lea.vmem %s10, %s668
      %p670 = scmp.lt.s32.totalorder %s30, 1
      %s671 = scalar_select %p670, %s30, 1
      %s672 = scalar_lea.vmem %s11, %s671
      %p673 = scmp.lt.s32.totalorder %s30, 1
      %s674 = scalar_select %p673, %s30, 1
      %s675 = smul.addr %s674, 16
      %s676 = smul.addr %s675, 4
      %s677 = scalar_lea.vmem %s12, %s676
      %p678 = scmp.lt.s32.totalorder %s30, 1
      %s679 = scalar_select %p678, %s30, 1
      %s680 = scalar_lea.vmem %s13, %s679
      %p681 = scmp.lt.s32.totalorder %s29, 1
      %s682 = scalar_select %p681, %s29, 1
      %s683 = smul.addr %s682, 3
      %s684 = smul.addr %s683, 8
      %s685 = scalar_lea.vmem %s14, %s684
      %p687 = scmp.eq.s32.totalorder %s30, 0
      // Predicated region
      $region77: #{openclip_vit_forward.4} parent=75 // pred_check
        %p688 = pneg %p687
      $region78: #{openclip_vit_forward.4} parent=75 // pred_check_branch
        %690 = sbr.rel (%p688) target = $region80
      $region79: #{openclip_vit_forward.4} parent=75 // pred_region
        %v691 = vld [vmem:[%s633] sm:$0xff]
        %v692 = vld [vmem:[%s633 + $0x8] sm:$0xff]
        %v693 = vld [vmem:[%s633 + $0x10] sm:$0xff]
        %vm694 = vcmask 261120
        %695 = vst.msk [vmem:[%s685] sm:$0xff] %vm694, %v691
        %696 = vst.msk [vmem:[%s685 + $0x8] sm:$0xff] %vm694, %v692
        %697 = vst.msk [vmem:[%s685 + $0x10] sm:$0xff] %vm694, %v693
      $region80: #{openclip_vit_forward.4} parent=75 // pred_fallthru
        _
      %v698 = vld [vmem:[%s685] sm:$0xff]
      %v699 = vld [vmem:[%s685 + $0x8] sm:$0xff]
      %v700 = vld [vmem:[%s685 + $0x10] sm:$0xff]
      %v701 = vld [vmem:[%s639] sm:$0x1]
      %v702 = vld [vmem:[%s642] sm:$0x1]
      %vm703 = vcmask 261120
      %v704 = vsel %vm703, %v698, 0.0
      %705 = vadd.xlane.f32.xlu0 %v704
      %v706 = vpop.xlane.xlu0 %705
      %v707 = vsel %vm703, %v699, 0.0
      %708 = vadd.xlane.f32.xlu0 %v707
      %v709 = vpop.xlane.xlu0 %708
      %v710 = vsel %vm703, %v700, 0.0
      %711 = vadd.xlane.f32.xlu0 %v710
      %v712 = vpop.xlane.xlu0 %711
      %v713 = vrcp.pop 32.0
      %v714 = vmul.f32 %v706, %v713
      %v715 = vmul.f32 %v709, %v713
      %v716 = vmul.f32 %v712, %v713
      %v717 = vsub.f32 %v698, %v714
      %v718 = vsub.f32 %v699, %v715
      %v719 = vsub.f32 %v700, %v716
      %v720 = vmul.f32 %v717, %v717
      %v721 = vmul.f32 %v718, %v718
      %v722 = vmul.f32 %v719, %v719
      %v723 = vsel %vm703, %v720, 0.0
      %724 = vadd.xlane.f32.xlu0 %v723
      %v725 = vpop.xlane.xlu0 %724
      %v726 = vsel %vm703, %v721, 0.0
      %727 = vadd.xlane.f32.xlu0 %v726
      %v728 = vpop.xlane.xlu0 %727
      %v729 = vsel %vm703, %v722, 0.0
      %730 = vadd.xlane.f32.xlu0 %v729
      %v731 = vpop.xlane.xlu0 %730
      %v732 = vmul.f32 %v725, %v713
      %v733 = vmul.f32 %v728, %v713
      %v734 = vmul.f32 %v731, %v713
      %v735 = vadd.f32 %v732, 1e-05
      %v736 = vadd.f32 %v733, 1e-05
      %v737 = vadd.f32 %v734, 1e-05
      %v738 = vrsqrt.pop %v735
      %v739 = vrsqrt.pop %v736
      %v740 = vrsqrt.pop %v737
      %v741 = vmul.f32 %v717, %v738
      %v742 = vmul.f32 %v718, %v739
      %v743 = vmul.f32 %v719, %v740
      %v745 = vlaneseq
      %v746 = vshrl.u32 %v745, 7
      %v747 = vsub.s32 0, %v746
      %v748 = vrot.slane %v701, %v747
      %v750 = vmul.f32 %v741, %v748
      %v751 = vmul.f32 %v742, %v748
      %v752 = vmul.f32 %v743, %v748
      %v754 = vlaneseq
      %v755 = vshrl.u32 %v754, 7
      %v756 = vsub.s32 0, %v755
      %v757 = vrot.slane %v702, %v756
      %v759 = vadd.f32 %v750, %v757
      %v760 = vadd.f32 %v751, %v757
      %v761 = vadd.f32 %v752, %v757
      %v762 = vpack.c.bf16 %v760, %v759
      %v763 = vpack.c.bf16 %v761, %v761
      %v764 = vld [vmem:[%s647] sm:$0xf]
      %v765 = vld [vmem:[%s647 + $0x4] sm:$0xf]
      %v766 = vld [vmem:[%s647 + $0x8] sm:$0xf]
      %v767 = vld [vmem:[%s647 + $0xc] sm:$0xf]
      %v768 = vld [vmem:[%s650] sm:$0x1]
      %v770 = vlaneseq
      %v771 = vshrl.u32 %v770, 7
      %v772 = vsub.s32 0, %v771
      %v773 = vrot.slane %v768, %v772
      %v779 = vunpack.c.l.b16 %v764
      %v780 = vunpack.c.l.b16 %v765
      %v781 = vunpack.c.l.b16 %v766
      %v782 = vunpack.c.l.b16 %v767
      %v783 = vpack.c.b16 %v780, %v779
      %v784 = vpack.c.b16 %v782, %v781
      %v788 = vsel %vm703, %v762, 0
      %v791 = vsel %vm703, %v763, 0
      %793 = vmatprep.subr.bf16.mxu0 0
      %794 = vmatpush1.bf16.msra.mxu0 %v783
      %795 = vmatprep.subr.bf16.mxu0 0
      %796 = vmatpush1.bf16.msra.mxu0 %v784
      %797 = vmatprep.subr.bf16.mxu0 0
      %798 = vmatpush1.bf16.msra.mxu0 0
      %799 = vmatprep.subr.bf16.mxu0 0
      %800 = vmatpush1.bf16.msra.mxu0 0
      %801 = vmatprep.subr.bf16.mxu0 0
      %802 = vmatpush1.bf16.msra.mxu0 0
      %803 = vmatprep.subr.bf16.mxu0 0
      %804 = vmatpush1.bf16.msra.mxu0 0
      %805 = vmatprep.subr.bf16.mxu0 0
      %806 = vmatpush1.bf16.msra.mxu0 0
      %807 = vmatprep.subr.bf16.mxu0 0
      %808 = vmatpush1.bf16.msra.mxu0 0
      %809 = vmatprep.subr.bf16.mxu0 0
      %810 = vmatpush1.bf16.msra.mxu0 0
      %811 = vmatprep.subr.bf16.mxu0 0
      %812 = vmatpush1.bf16.msra.mxu0 0
      %813 = vmatprep.subr.bf16.mxu0 0
      %814 = vmatpush1.bf16.msra.mxu0 0
      %815 = vmatprep.subr.bf16.mxu0 0
      %816 = vmatpush1.bf16.msra.mxu0 0
      %817 = vmatprep.subr.bf16.mxu0 0
      %818 = vmatpush1.bf16.msra.mxu0 0
      %819 = vmatprep.subr.bf16.mxu0 0
      %820 = vmatpush1.bf16.msra.mxu0 0
      %821 = vmatprep.subr.bf16.mxu0 0
      %822 = vmatpush1.bf16.msra.mxu0 0
      %823 = vmatprep.subr.bf16.mxu0 0
      %824 = vmatpush1.bf16.msra.mxu0 0
      %825 = vmatprep.mubr.bf16.mxu0 0
      %826 = vmatmul.mubr.bf16.gmra.mrb[0].mxu0 %v788
      %v827 = vpop.f32.mrb[0].mxu0
      %v828 = vadd.f32 %v773, %v827
      %v829 = vpop.f32.mrb[0].mxu0
      %v830 = vpop.f32.mrb[0].mxu0
      %v831 = vadd.f32 %v773, %v830
      %v832 = vpop.f32.mrb[0].mxu0
      %833 = vmatprep.mubr.bf16.mxu0 0
      %834 = vmatmul.mubr.bf16.gmra.mrb[0].mxu0 %v791
      %v835 = vpop.f32.mrb[0].mxu0
      %v836 = vadd.f32 %v773, %v835
      %v837 = vpop.f32.mrb[0].mxu0
      %v838 = vpop.f32.mrb[0].mxu0
      %v839 = vpop.f32.mrb[0].mxu0
      %840 = vdwg.mxu0
      %v841 = vld [vmem:[%s636] sm:$0x1]
      %v843 = vlaneseq
      %v844 = vshrl.u32 %v843, 7
      %v845 = vsub.s32 0, %v844
      %v846 = vrot.slane %v841, %v845
      %v848 = vpack.c.bf16 %v831, %v828
      %v849 = vpack.c.bf16 %v836, %v836
      %852 = vrot.lane.b32.xlu0 %v848, 96
      %v853 = vpop.permute.xlu0 %852
      %854 = vrot.lane.b32.xlu0 %v849, 96
      %v855 = vpop.permute.xlu0 %854
      %vm856 = vcmask 130048
      %v858 = vsel %vm856, %v848, 0
      %v861 = vsel %vm856, %v849, 0
      %v864 = vsel %vm856, %v853, 0
      %v867 = vsel %vm856, %v855, 0
      %869 = vmatprep.subr.bf16.mxu0 0
      %870 = vmatpush1.bf16.xpose.msra.mxu0 %v864
      %871 = vmatprep.subr.bf16.mxu0 0
      %872 = vmatpush1.bf16.xpose.msra.mxu0 %v867
      %873 = vmatprep.subr.bf16.mxu0 0
      %874 = vmatpush1.bf16.xpose.msra.mxu0 0
      %875 = vmatprep.subr.bf16.mxu0 0
      %876 = vmatpush1.bf16.xpose.msra.mxu0 0
      %877 = vmatprep.subr.bf16.mxu0 0
      %878 = vmatpush1.bf16.xpose.msra.mxu0 0
      %879 = vmatprep.subr.bf16.mxu0 0
      %880 = vmatpush1.bf16.xpose.msra.mxu0 0
      %881 = vmatprep.subr.bf16.mxu0 0
      %882 = vmatpush1.bf16.xpose.msra.mxu0 0
      %883 = vmatprep.subr.bf16.mxu0 0
      %884 = vmatpush1.bf16.xpose.msra.mxu0 0
      %885 = vmatprep.subr.bf16.mxu0 0
      %886 = vmatpush1.bf16.xpose.msra.mxu0 0
      %887 = vmatprep.subr.bf16.mxu0 0
      %888 = vmatpush1.bf16.xpose.msra.mxu0 0
      %889 = vmatprep.subr.bf16.mxu0 0
      %890 = vmatpush1.bf16.xpose.msra.mxu0 0
      %891 = vmatprep.subr.bf16.mxu0 0
      %892 = vmatpush1.bf16.xpose.msra.mxu0 0
      %893 = vmatprep.subr.bf16.mxu0 0
      %894 = vmatpush1.bf16.xpose.msra.mxu0 0
      %895 = vmatprep.subr.bf16.mxu0 0
      %896 = vmatpush1.bf16.xpose.msra.mxu0 0
      %897 = vmatprep.subr.bf16.mxu0 0
      %898 = vmatpush1.bf16.xpose.msra.mxu0 0
      %899 = vmatprep.subr.bf16.mxu0 0
      %900 = vmatpush1.bf16.xpose.msra.mxu0 0
      %901 = vmatprep.mubr.bf16.mxu0 0
      %902 = vmatmul.mubr.bf16.gmra.mrb[0].mxu0 %v858
      %v903 = vpop.f32.mrb[0].mxu0
      %v904 = vadd.f32 %v846, %v903
      %v905 = vpop.f32.mrb[0].mxu0
      %v906 = vpop.f32.mrb[0].mxu0
      %v907 = vadd.f32 %v846, %v906
      %v908 = vpop.f32.mrb[0].mxu0
      %909 = vmatprep.mubr.bf16.mxu0 0
      %910 = vmatmul.mubr.bf16.gmra.mrb[0].mxu0 %v861
      %v911 = vpop.f32.mrb[0].mxu0
      %v912 = vadd.f32 %v846, %v911
      %v913 = vpop.f32.mrb[0].mxu0
      %v914 = vpop.f32.mrb[0].mxu0
      %v915 = vpop.f32.mrb[0].mxu0
      %916 = vdwg.mxu0
      %vm917 = vcmask 195584
      %v918 = vsel %vm917, %v904, -inf
      %919 = vmax.xlane.f32.xlu0 %v918
      %v920 = vpop.xlane.xlu0 %919
      %v921 = vsel %vm917, %v907, -inf
      %922 = vmax.xlane.f32.xlu0 %v921
      %v923 = vpop.xlane.xlu0 %922
      %v924 = vsel %vm917, %v912, -inf
      %925 = vmax.xlane.f32.xlu0 %v924
      %v926 = vpop.xlane.xlu0 %925
      %v927 = vsub.f32 %v904, %v920
      %v928 = vsub.f32 %v907, %v923
      %v929 = vsub.f32 %v912, %v926
      %v930 = vmul.f32 %v927, 1.442695
      %v931 = vpow.pop %v930
      %v932 = vmul.f32 %v928, 1.442695
      %v933 = vpow.pop %v932
      %v934 = vmul.f32 %v929, 1.442695
      %v935 = vpow.pop %v934
      %v936 = vsel %vm917, %v931, 0.0
      %937 = vadd.xlane.f32.xlu0 %v936
      %v938 = vpop.xlane.xlu0 %937
      %v939 = vsel %vm917, %v933, 0.0
      %940 = vadd.xlane.f32.xlu0 %v939
      %v941 = vpop.xlane.xlu0 %940
      %v942 = vsel %vm917, %v935, 0.0
      %943 = vadd.xlane.f32.xlu0 %v942
      %v944 = vpop.xlane.xlu0 %943
      %v945 = vrcp.pop %v938
      %v946 = vrcp.pop %v941
      %v947 = vrcp.pop %v944
      %v948 = vmul.f32 %v931, %v945
      %v949 = vmul.f32 %v933, %v946
      %v950 = vmul.f32 %v935, %v947
      %v951 = vpack.c.bf16 %v949, %v948
      %v952 = vpack.c.bf16 %v950, %v950
      %953 = vrot.lane.b32.xlu0 %v848, 64
      %v954 = vpop.permute.xlu0 %953
      %955 = vrot.lane.b32.xlu0 %v849, 64
      %v956 = vpop.permute.xlu0 %955
      %v959 = vsel %vm917, %v951, 0
      %v962 = vsel %vm917, %v952, 0
      %vm964 = vcmask 1043456
      %v966 = vsel %vm964, %v956, 0
      %968 = vmatprep.subr.bf16.mxu0 0
      %969 = vmatpush1.bf16.msra.mxu0 %v954
      %970 = vmatprep.subr.bf16.mxu0 0
      %971 = vmatpush1.bf16.msra.mxu0 %v966
      %972 = vmatprep.subr.bf16.mxu0 0
      %973 = vmatpush1.bf16.msra.mxu0 0
      %974 = vmatprep.subr.bf16.mxu0 0
      %975 = vmatpush1.bf16.msra.mxu0 0
      %976 = vmatprep.subr.bf16.mxu0 0
      %977 = vmatpush1.bf16.msra.mxu0 0
      %978 = vmatprep.subr.bf16.mxu0 0
      %979 = vmatpush1.bf16.msra.mxu0 0
      %980 = vmatprep.subr.bf16.mxu0 0
      %981 = vmatpush1.bf16.msra.mxu0 0
      %982 = vmatprep.subr.bf16.mxu0 0
      %983 = vmatpush1.bf16.msra.mxu0 0
      %984 = vmatprep.subr.bf16.mxu0 0
      %985 = vmatpush1.bf16.msra.mxu0 0
      %986 = vmatprep.subr.bf16.mxu0 0
      %987 = vmatpush1.bf16.msra.mxu0 0
      %988 = vmatprep.subr.bf16.mxu0 0
      %989 = vmatpush1.bf16.msra.mxu0 0
      %990 = vmatprep.subr.bf16.mxu0 0
      %991 = vmatpush1.bf16.msra.mxu0 0
      %992 = vmatprep.subr.bf16.mxu0 0
      %993 = vmatpush1.bf16.msra.mxu0 0
      %994 = vmatprep.subr.bf16.mxu0 0
      %995 = vmatpush1.bf16.msra.mxu0 0
      %996 = vmatprep.subr.bf16.mxu0 0
      %997 = vmatpush1.bf16.msra.mxu0 0
      %998 = vmatprep.subr.bf16.mxu0 0
      %999 = vmatpush1.bf16.msra.mxu0 0
      %1000 = vmatprep.mubr.bf16.mxu0 0
      %1001 = vmatmul.mubr.bf16.gmra.mrb[0].mxu0 %v959
      %v1002 = vpop.f32.mrb[0].mxu0
      %v1003 = vadd.f32 0.0, %v1002
      %v1004 = vpop.f32.mrb[0].mxu0
      %v1005 = vpop.f32.mrb[0].mxu0
      %v1006 = vadd.f32 0.0, %v1005
      %v1007 = vpop.f32.mrb[0].mxu0
      %1008 = vmatprep.mubr.bf16.mxu0 0
      %1009 = vmatmul.mubr.bf16.gmra.mrb[0].mxu0 %v962
      %v1010 = vpop.f32.mrb[0].mxu0
      %v1011 = vadd.f32 0.0, %v1010
      %v1012 = vpop.f32.mrb[0].mxu0
      %v1013 = vpop.f32.mrb[0].mxu0
      %v1014 = vpop.f32.mrb[0].mxu0
      %1015 = vdwg.mxu0
      %1016 = vrot.lane.b32.xlu0 %v848, 112
      %v1017 = vpop.permute.xlu0 %1016
      %1018 = vrot.lane.b32.xlu0 %v849, 112
      %v1019 = vpop.permute.xlu0 %1018
      %1020 = vrot.lane.b32.xlu0 %v848, 80
      %v1021 = vpop.permute.xlu0 %1020
      %1022 = vrot.lane.b32.xlu0 %v849, 80
      %v1023 = vpop.permute.xlu0 %1022
      %v1025 = vsel %vm856, %v1017, 0
      %v1028 = vsel %vm856, %v1019, 0
      %v1031 = vsel %vm856, %v1021, 0
      %v1034 = vsel %vm856, %v1023, 0
      %1036 = vmatprep.subr.bf16.mxu0 0
      %1037 = vmatpush1.bf16.xpose.msra.mxu0 %v1031
      %1038 = vmatprep.subr.bf16.mxu0 0
      %1039 = vmatpush1.bf16.xpose.msra.mxu0 %v1034
      %1040 = vmatprep.subr.bf16.mxu0 0
      %1041 = vmatpush1.bf16.xpose.msra.mxu0 0
      %1042 = vmatprep.subr.bf16.mxu0 0
      %1043 = vmatpush1.bf16.xpose.msra.mxu0 0
      %1044 = vmatprep.subr.bf16.mxu0 0
      %1045 = vmatpush1.bf16.xpose.msra.mxu0 0
      %1046 = vmatprep.subr.bf16.mxu0 0
      %1047 = vmatpush1.bf16.xpose.msra.mxu0 0
      %1048 = vmatprep.subr.bf16.mxu0 0
      %1049 = vmatpush1.bf16.xpose.msra.mxu0 0
      %1050 = vmatprep.subr.bf16.mxu0 0
      %1051 = vmatpush1.bf16.xpose.msra.mxu0 0
      %1052 = vmatprep.subr.bf16.mxu0 0
      %1053 = vmatpush1.bf16.xpose.msra.mxu0 0
      %1054 = vmatprep.subr.bf16.mxu0 0
      %1055 = vmatpush1.bf16.xpose.msra.mxu0 0
      %1056 = vmatprep.subr.bf16.mxu0 0
      %1057 = vmatpush1.bf16.xpose.msra.mxu0 0
      %1058 = vmatprep.subr.bf16.mxu0 0
      %1059 = vmatpush1.bf16.xpose.msra.mxu0 0
      %1060 = vmatprep.subr.bf16.mxu0 0
      %1061 = vmatpush1.bf16.xpose.msra.mxu0 0
      %1062 = vmatprep.subr.bf16.mxu0 0
      %1063 = vmatpush1.bf16.xpose.msra.mxu0 0
      %1064 = vmatprep.subr.bf16.mxu0 0
      %1065 = vmatpush1.bf16.xpose.msra.mxu0 0
      %1066 = vmatprep.subr.bf16.mxu0 0
      %1067 = vmatpush1.bf16.xpose.msra.mxu0 0
      %1068 = vmatprep.mubr.bf16.mxu0 0
      %1069 = vmatmul.mubr.bf16.gmra.mrb[0].mxu0 %v1025
      %v1070 = vpop.f32.mrb[0].mxu0
      %v1071 = vadd.f32 %v846, %v1070
      %v1072 = vpop.f32.mrb[0].mxu0
      %v1073 = vpop.f32.mrb[0].mxu0
      %v1074 = vadd.f32 %v846, %v1073
      %v1075 = vpop.f32.mrb[0].mxu0
      %1076 = vmatprep.mubr.bf16.mxu0 0
      %1077 = vmatmul.mubr.bf16.gmra.mrb[0].mxu0 %v1028
      %v1078 = vpop.f32.mrb[0].mxu0
      %v1079 = vadd.f32 %v846, %v1078
      %v1080 = vpop.f32.mrb[0].mxu0
      %v1081 = vpop.f32.mrb[0].mxu0
      %v1082 = vpop.f32.mrb[0].mxu0
      %1083 = vdwg.mxu0
      %v1084 = vsel %vm917, %v1071, -inf
      %1085 = vmax.xlane.f32.xlu0 %v1084
      %v1086 = vpop.xlane.xlu0 %1085
      %v1087 = vsel %vm917, %v1074, -inf
      %1088 = vmax.xlane.f32.xlu0 %v1087
      %v1089 = vpop.xlane.xlu0 %1088
      %v1090 = vsel %vm917, %v1079, -inf
      %1091 = vmax.xlane.f32.xlu0 %v1090
      %v1092 = vpop.xlane.xlu0 %1091
      %v1093 = vsub.f32 %v1071, %v1086
      %v1094 = vsub.f32 %v1074, %v1089
      %v1095 = vsub.f32 %v1079, %v1092
      %v1096 = vmul.f32 %v1093, 1.442695
      %v1097 = vpow.pop %v1096
      %v1098 = vmul.f32 %v1094, 1.442695
      %v1099 = vpow.pop %v1098
      %v1100 = vmul.f32 %v1095, 1.442695
      %v1101 = vpow.pop %v1100
      %v1102 = vsel %vm917, %v1097, 0.0
      %1103 = vadd.xlane.f32.xlu0 %v1102
      %v1104 = vpop.xlane.xlu0 %1103
      %v1105 = vsel %vm917, %v1099, 0.0
      %1106 = vadd.xlane.f32.xlu0 %v1105
      %v1107 = vpop.xlane.xlu0 %1106
      %v1108 = vsel %vm917, %v1101, 0.0
      %1109 = vadd.xlane.f32.xlu0 %v1108
      %v1110 = vpop.xlane.xlu0 %1109
      %v1111 = vrcp.pop %v1104
      %v1112 = vrcp.pop %v1107
      %v1113 = vrcp.pop %v1110
      %v1114 = vmul.f32 %v1097, %v1111
      %v1115 = vmul.f32 %v1099, %v1112
      %v1116 = vmul.f32 %v1101, %v1113
      %v1117 = vpack.c.bf16 %v1115, %v1114
      %v1118 = vpack.c.bf16 %v1116, %v1116
      %1119 = vrot.lane.b32.xlu0 %v848, 48
      %v1120 = vpop.permute.xlu0 %1119
      %1121 = vrot.lane.b32.xlu0 %v849, 48
      %v1122 = vpop.permute.xlu0 %1121
      %v1125 = vsel %vm917, %v1117, 0
      %v1128 = vsel %vm917, %v1118, 0
      %v1131 = vsel %vm964, %v1122, 0
      %1133 = vmatprep.subr.bf16.mxu0 0
      %1134 = vmatpush1.bf16.msra.mxu0 %v1120
      %1135 = vmatprep.subr.bf16.mxu0 0
      %1136 = vmatpush1.bf16.msra.mxu0 %v1131
      %1137 = vmatprep.subr.bf16.mxu0 0
      %1138 = vmatpush1.bf16.msra.mxu0 0
      %1139 = vmatprep.subr.bf16.mxu0 0
      %1140 = vmatpush1.bf16.msra.mxu0 0
      %1141 = vmatprep.subr.bf16.mxu0 0
      %1142 = vmatpush1.bf16.msra.mxu0 0
      %1143 = vmatprep.subr.bf16.mxu0 0
      %1144 = vmatpush1.bf16.msra.mxu0 0
      %1145 = vmatprep.subr.bf16.mxu0 0
      %1146 = vmatpush1.bf16.msra.mxu0 0
      %1147 = vmatprep.subr.bf16.mxu0 0
      %1148 = vmatpush1.bf16.msra.mxu0 0
      %1149 = vmatprep.subr.bf16.mxu0 0
      %1150 = vmatpush1.bf16.msra.mxu0 0
      %1151 = vmatprep.subr.bf16.mxu0 0
      %1152 = vmatpush1.bf16.msra.mxu0 0
      %1153 = vmatprep.subr.bf16.mxu0 0
      %1154 = vmatpush1.bf16.msra.mxu0 0
      %1155 = vmatprep.subr.bf16.mxu0 0
      %1156 = vmatpush1.bf16.msra.mxu0 0
      %1157 = vmatprep.subr.bf16.mxu0 0
      %1158 = vmatpush1.bf16.msra.mxu0 0
      %1159 = vmatprep.subr.bf16.mxu0 0
      %1160 = vmatpush1.bf16.msra.mxu0 0
      %1161 = vmatprep.subr.bf16.mxu0 0
      %1162 = vmatpush1.bf16.msra.mxu0 0
      %1163 = vmatprep.subr.bf16.mxu0 0
      %1164 = vmatpush1.bf16.msra.mxu0 0
      %1165 = vmatprep.mubr.bf16.mxu0 0
      %1166 = vmatmul.mubr.bf16.gmra.mrb[0].mxu0 %v1125
      %v1167 = vpop.f32.mrb[0].mxu0
      %v1168 = vadd.f32 0.0, %v1167
      %v1169 = vpop.f32.mrb[0].mxu0
      %v1170 = vpop.f32.mrb[0].mxu0
      %v1171 = vadd.f32 0.0, %v1170
      %v1172 = vpop.f32.mrb[0].mxu0
      %1173 = vmatprep.mubr.bf16.mxu0 0
      %1174 = vmatmul.mubr.bf16.gmra.mrb[0].mxu0 %v1128
      %v1175 = vpop.f32.mrb[0].mxu0
      %v1176 = vadd.f32 0.0, %v1175
      %v1177 = vpop.f32.mrb[0].mxu0
      %v1178 = vpop.f32.mrb[0].mxu0
      %v1179 = vpop.f32.mrb[0].mxu0
      %1180 = vdwg.mxu0
      %1184 = vrot.lane.b32.xlu0 %v1168, 16
      %v1185 = vpop.permute.xlu0 %1184
      %1186 = vrot.lane.b32.xlu0 %v1171, 16
      %v1187 = vpop.permute.xlu0 %1186
      %1188 = vrot.lane.b32.xlu0 %v1176, 16
      %v1189 = vpop.permute.xlu0 %1188
      %v1193 = vsel %vm856, %v1003, %v1185
      %v1194 = vsel %vm856, %v1006, %v1187
      %v1195 = vsel %vm856, %v1011, %v1189
      %v1196 = vpack.c.bf16 %v1194, %v1193
      %v1197 = vpack.c.bf16 %v1195, %v1195
      %v1198 = vld [vmem:[%s655] sm:$0xf]
      %v1199 = vld [vmem:[%s655 + $0x4] sm:$0xf]
      %v1200 = vld [vmem:[%s655 + $0x8] sm:$0xf]
      %v1201 = vld [vmem:[%s655 + $0xc] sm:$0xf]
      %v1202 = vld [vmem:[%s658] sm:$0x1]
      %v1204 = vlaneseq
      %v1205 = vshrl.u32 %v1204, 7
      %v1206 = vsub.s32 0, %v1205
      %v1207 = vrot.slane %v1202, %v1206
      %v1213 = vunpack.c.l.b16 %v1198
      %v1214 = vunpack.c.l.b16 %v1199
      %v1215 = vunpack.c.l.b16 %v1200
      %v1216 = vunpack.c.l.b16 %v1201
      %v1217 = vpack.c.b16 %v1214, %v1213
      %v1218 = vpack.c.b16 %v1216, %v1215
      %v1222 = vsel %vm703, %v1196, 0
      %v1225 = vsel %vm703, %v1197, 0
      %1227 = vmatprep.subr.bf16.mxu0 0
      %1228 = vmatpush1.bf16.msra.mxu0 %v1217
      %1229 = vmatprep.subr.bf16.mxu0 0
      %1230 = vmatpush1.bf16.msra.mxu0 %v1218
      %1231 = vmatprep.subr.bf16.mxu0 0
      %1232 = vmatpush1.bf16.msra.mxu0 0
      %1233 = vmatprep.subr.bf16.mxu0 0
      %1234 = vmatpush1.bf16.msra.mxu0 0
      %1235 = vmatprep.subr.bf16.mxu0 0
      %1236 = vmatpush1.bf16.msra.mxu0 0
      %1237 = vmatprep.subr.bf16.mxu0 0
      %1238 = vmatpush1.bf16.msra.mxu0 0
      %1239 = vmatprep.subr.bf16.mxu0 0
      %1240 = vmatpush1.bf16.msra.mxu0 0
      %1241 = vmatprep.subr.bf16.mxu0 0
      %1242 = vmatpush1.bf16.msra.mxu0 0
      %1243 = vmatprep.subr.bf16.mxu0 0
      %1244 = vmatpush1.bf16.msra.mxu0 0
      %1245 = vmatprep.subr.bf16.mxu0 0
      %1246 = vmatpush1.bf16.msra.mxu0 0
      %1247 = vmatprep.subr.bf16.mxu0 0
      %1248 = vmatpush1.bf16.msra.mxu0 0
      %1249 = vmatprep.subr.bf16.mxu0 0
      %1250 = vmatpush1.bf16.msra.mxu0 0
      %1251 = vmatprep.subr.bf16.mxu0 0
      %1252 = vmatpush1.bf16.msra.mxu0 0
      %1253 = vmatprep.subr.bf16.mxu0 0
      %1254 = vmatpush1.bf16.msra.mxu0 0
      %1255 = vmatprep.subr.bf16.mxu0 0
      %1256 = vmatpush1.bf16.msra.mxu0 0
      %1257 = vmatprep.subr.bf16.mxu0 0
      %1258 = vmatpush1.bf16.msra.mxu0 0
      %1259 = vmatprep.mubr.bf16.mxu0 0
      %1260 = vmatmul.mubr.bf16.gmra.mrb[0].mxu0 %v1222
      %v1261 = vpop.f32.mrb[0].mxu0
      %v1262 = vadd.f32 %v1207, %v1261
      %v1263 = vpop.f32.mrb[0].mxu0
      %v1264 = vpop.f32.mrb[0].mxu0
      %v1265 = vadd.f32 %v1207, %v1264
      %v1266 = vpop.f32.mrb[0].mxu0
      %1267 = vmatprep.mubr.bf16.mxu0 0
      %1268 = vmatmul.mubr.bf16.gmra.mrb[0].mxu0 %v1225
      %v1269 = vpop.f32.mrb[0].mxu0
      %v1270 = vadd.f32 %v1207, %v1269
      %v1271 = vpop.f32.mrb[0].mxu0
      %v1272 = vpop.f32.mrb[0].mxu0
      %v1273 = vpop.f32.mrb[0].mxu0
      %1274 = vdwg.mxu0
      %v1275 = vadd.f32 %v698, %v1262
      %v1276 = vadd.f32 %v699, %v1265
      %v1277 = vadd.f32 %v700, %v1270
      %v1278 = vld [vmem:[%s661] sm:$0x1]
      %v1279 = vld [vmem:[%s664] sm:$0x1]
      %v1280 = vsel %vm703, %v1275, 0.0
      %1281 = vadd.xlane.f32.xlu0 %v1280
      %v1282 = vpop.xlane.xlu0 %1281
      %v1283 = vsel %vm703, %v1276, 0.0
      %1284 = vadd.xlane.f32.xlu0 %v1283
      %v1285 = vpop.xlane.xlu0 %1284
      %v1286 = vsel %vm703, %v1277, 0.0
      %1287 = vadd.xlane.f32.xlu0 %v1286
      %v1288 = vpop.xlane.xlu0 %1287
      %v1289 = vmul.f32 %v1282, %v713
      %v1290 = vmul.f32 %v1285, %v713
      %v1291 = vmul.f32 %v1288, %v713
      %v1292 = vsub.f32 %v1275, %v1289
      %v1293 = vsub.f32 %v1276, %v1290
      %v1294 = vsub.f32 %v1277, %v1291
      %v1295 = vmul.f32 %v1292, %v1292
      %v1296 = vmul.f32 %v1293, %v1293
      %v1297 = vmul.f32 %v1294, %v1294
      %v1298 = vsel %vm703, %v1295, 0.0
      %1299 = vadd.xlane.f32.xlu0 %v1298
      %v1300 = vpop.xlane.xlu0 %1299
      %v1301 = vsel %vm703, %v1296, 0.0
      %1302 = vadd.xlane.f32.xlu0 %v1301
      %v1303 = vpop.xlane.xlu0 %1302
      %v1304 = vsel %vm703, %v1297, 0.0
      %1305 = vadd.xlane.f32.xlu0 %v1304
      %v1306 = vpop.xlane.xlu0 %1305
      %v1307 = vmul.f32 %v1300, %v713
      %v1308 = vmul.f32 %v1303, %v713
      %v1309 = vmul.f32 %v1306, %v713
      %v1310 = vadd.f32 %v1307, 1e-05
      %v1311 = vadd.f32 %v1308, 1e-05
      %v1312 = vadd.f32 %v1309, 1e-05
      %v1313 = vrsqrt.pop %v1310
      %v1314 = vrsqrt.pop %v1311
      %v1315 = vrsqrt.pop %v1312
      %v1316 = vmul.f32 %v1292, %v1313
      %v1317 = vmul.f32 %v1293, %v1314
      %v1318 = vmul.f32 %v1294, %v1315
      %v1320 = vlaneseq
      %v1321 = vshrl.u32 %v1320, 7
      %v1322 = vsub.s32 0, %v1321
      %v1323 = vrot.slane %v1278, %v1322
      %v1325 = vmul.f32 %v1316, %v1323
      %v1326 = vmul.f32 %v1317, %v1323
      %v1327 = vmul.f32 %v1318, %v1323
      %v1329 = vlaneseq
      %v1330 = vshrl.u32 %v1329, 7
      %v1331 = vsub.s32 0, %v1330
      %v1332 = vrot.slane %v1279, %v1331
      %v1334 = vadd.f32 %v1325, %v1332
      %v1335 = vadd.f32 %v1326, %v1332
      %v1336 = vadd.f32 %v1327, %v1332
      %v1337 = vpack.c.bf16 %v1335, %v1334
      %v1338 = vpack.c.bf16 %v1336, %v1336
      %v1339 = vld [vmem:[%s669] sm:$0xf]
      %v1340 = vld [vmem:[%s669 + $0x4] sm:$0xf]
      %v1341 = vld [vmem:[%s669 + $0x8] sm:$0xf]
      %v1342 = vld [vmem:[%s669 + $0xc] sm:$0xf]
      %v1343 = vld [vmem:[%s672] sm:$0x1]
      %v1345 = vlaneseq
      %v1346 = vshrl.u32 %v1345, 7
      %v1347 = vsub.s32 0, %v1346
      %v1348 = vrot.slane %v1343, %v1347
      %v1354 = vunpack.c.l.b16 %v1339
      %v1355 = vunpack.c.l.b16 %v1340
      %v1356 = vunpack.c.l.b16 %v1341
      %v1357 = vunpack.c.l.b16 %v1342
      %v1358 = vpack.c.b16 %v1355, %v1354
      %v1359 = vpack.c.b16 %v1357, %v1356
      %v1363 = vsel %vm703, %v1337, 0
      %v1366 = vsel %vm703, %v1338, 0
      %1368 = vmatprep.subr.bf16.mxu0 0
      %1369 = vmatpush1.bf16.msra.mxu0 %v1358
      %1370 = vmatprep.subr.bf16.mxu0 0
      %1371 = vmatpush1.bf16.msra.mxu0 %v1359
      %1372 = vmatprep.subr.bf16.mxu0 0
      %1373 = vmatpush1.bf16.msra.mxu0 0
      %1374 = vmatprep.subr.bf16.mxu0 0
      %1375 = vmatpush1.bf16.msra.mxu0 0
      %1376 = vmatprep.subr.bf16.mxu0 0
      %1377 = vmatpush1.bf16.msra.mxu0 0
      %1378 = vmatprep.subr.bf16.mxu0 0
      %1379 = vmatpush1.bf16.msra.mxu0 0
      %1380 = vmatprep.subr.bf16.mxu0 0
      %1381 = vmatpush1.bf16.msra.mxu0 0
      %1382 = vmatprep.subr.bf16.mxu0 0
      %1383 = vmatpush1.bf16.msra.mxu0 0
      %1384 = vmatprep.subr.bf16.mxu0 0
      %1385 = vmatpush1.bf16.msra.mxu0 0
      %1386 = vmatprep.subr.bf16.mxu0 0
      %1387 = vmatpush1.bf16.msra.mxu0 0
      %1388 = vmatprep.subr.bf16.mxu0 0
      %1389 = vmatpush1.bf16.msra.mxu0 0
      %1390 = vmatprep.subr.bf16.mxu0 0
      %1391 = vmatpush1.bf16.msra.mxu0 0
      %1392 = vmatprep.subr.bf16.mxu0 0
      %1393 = vmatpush1.bf16.msra.mxu0 0
      %1394 = vmatprep.subr.bf16.mxu0 0
      %1395 = vmatpush1.bf16.msra.mxu0 0
      %1396 = vmatprep.subr.bf16.mxu0 0
      %1397 = vmatpush1.bf16.msra.mxu0 0
      %1398 = vmatprep.subr.bf16.mxu0 0
      %1399 = vmatpush1.bf16.msra.mxu0 0
      %1400 = vmatprep.mubr.bf16.mxu0 0
      %1401 = vmatmul.mubr.bf16.gmra.mrb[0].mxu0 %v1363
      %v1402 = vpop.f32.mrb[0].mxu0
      %v1403 = vadd.f32 %v1348, %v1402
      %v1404 = vpop.f32.mrb[0].mxu0
      %v1405 = vpop.f32.mrb[0].mxu0
      %v1406 = vadd.f32 %v1348, %v1405
      %v1407 = vpop.f32.mrb[0].mxu0
      %1408 = vmatprep.mubr.bf16.mxu0 0
      %1409 = vmatmul.mubr.bf16.gmra.mrb[0].mxu0 %v1366
      %v1410 = vpop.f32.mrb[0].mxu0
      %v1411 = vadd.f32 %v1348, %v1410
      %v1412 = vpop.f32.mrb[0].mxu0
      %v1413 = vpop.f32.mrb[0].mxu0
      %v1414 = vpop.f32.mrb[0].mxu0
      %1415 = vdwg.mxu0
      %v1416 = vmul.f32 %v1403, 1.702
      %v1417 = vmul.f32 %v1406, 1.702
      %v1418 = vmul.f32 %v1411, 1.702
      %v1419 = vxor.u32 %v1416, 2147483648
      %v1420 = vxor.u32 %v1417, 2147483648
      %v1421 = vxor.u32 %v1418, 2147483648
      %v1422 = vmul.f32 %v1419, 1.442695
      %v1423 = vpow.pop %v1422
      %v1424 = vmul.f32 %v1420, 1.442695
      %v1425 = vpow.pop %v1424
      %v1426 = vmul.f32 %v1421, 1.442695
      %v1427 = vpow.pop %v1426
      %v1428 = vadd.f32 %v1423, 1.0
      %v1429 = vadd.f32 %v1425, 1.0
      %v1430 = vadd.f32 %v1427, 1.0
      %v1431 = vrcp.pop %v1428
      %v1432 = vmul.f32 1.0, %v1431
      %v1433 = vrcp.pop %v1429
      %v1434 = vmul.f32 1.0, %v1433
      %v1435 = vrcp.pop %v1430
      %v1436 = vmul.f32 1.0, %v1435
      %v1437 = vmul.f32 %v1403, %v1432
      %v1438 = vmul.f32 %v1406, %v1434
      %v1439 = vmul.f32 %v1411, %v1436
      %v1440 = vpack.c.bf16 %v1438, %v1437
      %v1441 = vpack.c.bf16 %v1439, %v1439
      %v1442 = vld [vmem:[%s677] sm:$0xf]
      %v1443 = vld [vmem:[%s677 + $0x4] sm:$0xf]
      %v1444 = vld [vmem:[%s677 + $0x8] sm:$0xf]
      %v1445 = vld [vmem:[%s677 + $0xc] sm:$0xf]
      %v1446 = vld [vmem:[%s677 + $0x10] sm:$0xf]
      %v1447 = vld [vmem:[%s677 + $0x14] sm:$0xf]
      %v1448 = vld [vmem:[%s677 + $0x18] sm:$0xf]
      %v1449 = vld [vmem:[%s677 + $0x1c] sm:$0xf]
      %v1450 = vld [vmem:[%s677 + $0x20] sm:$0xf]
      %v1451 = vld [vmem:[%s677 + $0x24] sm:$0xf]
      %v1452 = vld [vmem:[%s677 + $0x28] sm:$0xf]
      %v1453 = vld [vmem:[%s677 + $0x2c] sm:$0xf]
      %v1454 = vld [vmem:[%s677 + $0x30] sm:$0xf]
      %v1455 = vld [vmem:[%s677 + $0x34] sm:$0xf]
      %v1456 = vld [vmem:[%s677 + $0x38] sm:$0xf]
      %v1457 = vld [vmem:[%s677 + $0x3c] sm:$0xf]
      %v1458 = vld [vmem:[%s680] sm:$0x1]
      %v1460 = vlaneseq
      %v1461 = vshrl.u32 %v1460, 7
      %v1462 = vsub.s32 0, %v1461
      %v1463 = vrot.slane %v1458, %v1462
      %v1481 = vunpack.c.l.b16 %v1442
      %v1482 = vunpack.c.l.b16 %v1443
      %v1483 = vunpack.c.l.b16 %v1444
      %v1484 = vunpack.c.l.b16 %v1445
      %v1485 = vunpack.c.l.b16 %v1446
      %v1486 = vunpack.c.l.b16 %v1447
      %v1487 = vunpack.c.l.b16 %v1448
      %v1488 = vunpack.c.l.b16 %v1449
      %v1489 = vunpack.c.l.b16 %v1450
      %v1490 = vunpack.c.l.b16 %v1451
      %v1491 = vunpack.c.l.b16 %v1452
      %v1492 = vunpack.c.l.b16 %v1453
      %v1493 = vunpack.c.l.b16 %v1454
      %v1494 = vunpack.c.l.b16 %v1455
      %v1495 = vunpack.c.l.b16 %v1456
      %v1496 = vunpack.c.l.b16 %v1457
      %v1497 = vpack.c.b16 %v1482, %v1481
      %v1498 = vpack.c.b16 %v1484, %v1483
      %v1499 = vpack.c.b16 %v1486, %v1485
      %v1500 = vpack.c.b16 %v1488, %v1487
      %v1501 = vpack.c.b16 %v1490, %v1489
      %v1502 = vpack.c.b16 %v1492, %v1491
      %v1503 = vpack.c.b16 %v1494, %v1493
      %v1504 = vpack.c.b16 %v1496, %v1495
      %1513 = vmatprep.subr.bf16.mxu0 0
      %1514 = vmatpush1.bf16.msra.mxu0 %v1497
      %1515 = vmatprep.subr.bf16.mxu0 0
      %1516 = vmatpush1.bf16.msra.mxu0 %v1498
      %1517 = vmatprep.subr.bf16.mxu0 0
      %1518 = vmatpush1.bf16.msra.mxu0 %v1499
      %1519 = vmatprep.subr.bf16.mxu0 0
      %1520 = vmatpush1.bf16.msra.mxu0 %v1500
      %1521 = vmatprep.subr.bf16.mxu0 0
      %1522 = vmatpush1.bf16.msra.mxu0 %v1501
      %1523 = vmatprep.subr.bf16.mxu0 0
      %1524 = vmatpush1.bf16.msra.mxu0 %v1502
      %1525 = vmatprep.subr.bf16.mxu0 0
      %1526 = vmatpush1.bf16.msra.mxu0 %v1503
      %1527 = vmatprep.subr.bf16.mxu0 0
      %1528 = vmatpush1.bf16.msra.mxu0 %v1504
      %1529 = vmatprep.subr.bf16.mxu0 0
      %1530 = vmatpush1.bf16.msra.mxu0 0
      %1531 = vmatprep.subr.bf16.mxu0 0
      %1532 = vmatpush1.bf16.msra.mxu0 0
      %1533 = vmatprep.subr.bf16.mxu0 0
      %1534 = vmatpush1.bf16.msra.mxu0 0
      %1535 = vmatprep.subr.bf16.mxu0 0
      %1536 = vmatpush1.bf16.msra.mxu0 0
      %1537 = vmatprep.subr.bf16.mxu0 0
      %1538 = vmatpush1.bf16.msra.mxu0 0
      %1539 = vmatprep.subr.bf16.mxu0 0
      %1540 = vmatpush1.bf16.msra.mxu0 0
      %1541 = vmatprep.subr.bf16.mxu0 0
      %1542 = vmatpush1.bf16.msra.mxu0 0
      %1543 = vmatprep.subr.bf16.mxu0 0
      %1544 = vmatpush1.bf16.msra.mxu0 0
      %1545 = vmatprep.mubr.bf16.mxu0 0
      %1546 = vmatmul.mubr.bf16.gmra.mrb[0].mxu0 %v1440
      %v1547 = vpop.f32.mrb[0].mxu0
      %v1548 = vadd.f32 %v1463, %v1547
      %v1549 = vpop.f32.mrb[0].mxu0
      %v1550 = vpop.f32.mrb[0].mxu0
      %v1551 = vadd.f32 %v1463, %v1550
      %v1552 = vpop.f32.mrb[0].mxu0
      %1553 = vmatprep.mubr.bf16.mxu0 0
      %1554 = vmatmul.mubr.bf16.gmra.mrb[0].mxu0 %v1441
      %v1555 = vpop.f32.mrb[0].mxu0
      %v1556 = vadd.f32 %v1463, %v1555
      %v1557 = vpop.f32.mrb[0].mxu0
      %v1558 = vpop.f32.mrb[0].mxu0
      %v1559 = vpop.f32.mrb[0].mxu0
      %1560 = vdwg.mxu0
      %v1561 = vadd.f32 %v1275, %v1548
      %v1562 = vadd.f32 %v1276, %v1551
      %v1563 = vadd.f32 %v1277, %v1556
      %1564 = vst.msk [vmem:[%s685] sm:$0xff] %vm703, %v1561
      %1565 = vst.msk [vmem:[%s685 + $0x8] sm:$0xff] %vm703, %v1562
      %1566 = vst.msk [vmem:[%s685 + $0x10] sm:$0xff] %vm703, %v1563
      %p1567 = scmp.lt.s32.totalorder %s29, 1
      %s1568 = scalar_select %p1567, %s29, 1
      %s1569 = smul.addr %s1568, 3
      %s1570 = smul.addr %s1569, 8
      %s1571 = scalar_lea.vmem %s14, %s1570
      // Predicated region
      $region81: #{openclip_vit_forward.4} parent=75 // pred_check
        %p1572 = pneg %p419
      $region82: #{openclip_vit_forward.4} parent=75 // pred_check_branch
        %1574 = sbr.rel (%p1572) target = $region84
      $region83: #{openclip_vit_forward.4} parent=75 // pred_region
        _
      $region84: #{openclip_vit_forward.4} parent=75 // pred_fallthru
        _
    $region76: #{openclip_vit_forward.4} parent=5 // pred_fallthru
      _
    %p1575 = scmp.le.s32.totalorder 2, %s20
    // Predicated region
    $region85: #{openclip_vit_forward.4} parent=5 // pred_check
      %p1576 = pneg %p1575
    $region86: #{openclip_vit_forward.4} parent=5 // pred_check_branch
      %1578 = sbr.rel (%p1576) target = $region88
    $region87: #{openclip_vit_forward.4} parent=5 // pred_region
      %s1579 = ssub.s32 %s20, 2
      // Predicated region
      $region89: #{openclip_vit_forward.4} parent=87 // pred_check
        %p1580 = pneg %p425
      $region90: #{openclip_vit_forward.4} parent=87 // pred_check_branch
        %1582 = sbr.rel (%p1580) target = $region92
      $region91: #{openclip_vit_forward.4} parent=87 // pred_region
        %p1583 = scmp.lt.s32.totalorder %s31, 1
        %s1584 = scalar_select %p1583, %s31, 1
        %s1585 = smul.addr %s1584, 3
        %s1586 = smul.addr %s1585, 8
        %s1587 = scalar_lea.vmem %s14, %s1586
      $region92: #{openclip_vit_forward.4} parent=87 // pred_fallthru
        _
    $region88: #{openclip_vit_forward.4} parent=5 // pred_fallthru
      _
  $region6: #{openclip_vit_forward.4} parent=0 // loop_footer
    %s24 = sadd.s32 1, %s20
  $region7: #{openclip_vit_forward.4} parent=0 // loop_footer_branch
    %19 = sbr.rel target = $region3
  $region8: #{openclip_vit_forward.4} parent=0 // loop_exit
    _

// kernel: custom-call.66
$region0: #{custom-call.66}
  %s0 = inlined_call_operand.vmem [shape: f32[32,32], index: 0, kind: input, shape index: {}]
  %s1 = inlined_call_operand.vmem [shape: f32[32,32], index: 1, kind: output, shape index: {}]
  $region1: #{custom-call.66} parent=0
    #allocation0 [shape = 'u8[16384]{0}', space=vmem, size = 0x4000, scoped, tag = 'operand span for operand 0']
    #allocation1 [shape = 'u8[16384]{0}', space=vmem, size = 0x4000, scoped, tag = 'operand span for operand 1']
    // Predicated region
    $region2: #{custom-call.66} parent=1 // pred_check
      _
    $region3: #{custom-call.66} parent=1 // pred_check_branch
      %3 = sbr.rel (0) target = $region5
    $region4: #{custom-call.66} parent=1 // pred_region
      // Predicated region
      $region6: #{custom-call.66} parent=4 // pred_check
        _
      $region7: #{custom-call.66} parent=4 // pred_check_branch
        %5 = sbr.rel (0) target = $region9
      $region8: #{custom-call.66} parent=4 // pred_region
        // Predicated region
        $region21: #{custom-call.66} parent=8 // pred_check
          _
        $region22: #{custom-call.66} parent=8 // pred_check_branch
          %26 = sbr.rel (0) target = $region24
        $region23: #{custom-call.66} parent=8 // pred_region
          loop: start=0, step=1, limit=1
          $region25: #{custom-call.66} parent=23 // loop_pre_header
            _
          $region26: #{custom-call.66} parent=23 // loop_header
            %s28 = sphi 0, %s32
            %p29 = scmp.ge.s32.totalorder %s28, 1
            %s33 = sphi %s0, %s0
            %s34 = sphi [#allocation0], [#allocation0]
          $region27: #{custom-call.66} parent=23 // loop_header_branch
            %31 = sbr.rel (%p29) target = $region31
          $region28: #{custom-call.66} parent=23 // loop_body
            %v35 = vld [vmem:[%s33] sm:$0xff]
            %36 = vst [vmem:[%s34] sm:$0xff] %v35
            %v37 = vld [vmem:[%s33 + $0x8] sm:$0xff]
            %38 = vst [vmem:[%s34 + $0x8] sm:$0xff] %v37
            %v39 = vld [vmem:[%s33 + $0x10] sm:$0xff]
            %40 = vst [vmem:[%s34 + $0x10] sm:$0xff] %v39
            %v41 = vld [vmem:[%s33 + $0x18] sm:$0xff]
            %42 = vst [vmem:[%s34 + $0x18] sm:$0xff] %v41
          $region29: #{custom-call.66} parent=23 // loop_footer
            %s32 = sadd.s32 1, %s28
          $region30: #{custom-call.66} parent=23 // loop_footer_branch
            %27 = sbr.rel target = $region26
          $region31: #{custom-call.66} parent=23 // loop_exit
            _
        $region24: #{custom-call.66} parent=8 // pred_fallthru
          _
        // Predicated region
        $region32: #{custom-call.66} parent=8 // pred_check
          _
        $region33: #{custom-call.66} parent=8 // pred_check_branch
          %44 = sbr.rel target = $region35
        $region34: #{custom-call.66} parent=8 // pred_region
          _
        $region35: #{custom-call.66} parent=8 // pred_fallthru
          _
      $region9: #{custom-call.66} parent=4 // pred_fallthru
        _
      // Predicated region
      $region10: #{custom-call.66} parent=4 // pred_check
        _
      $region11: #{custom-call.66} parent=4 // pred_check_branch
        %7 = sbr.rel target = $region13
      $region12: #{custom-call.66} parent=4 // pred_region
        loop: start=0, step=1, limit=1
        $region14: #{custom-call.66} parent=12 // loop_pre_header
          _
        $region15: #{custom-call.66} parent=12 // loop_header
          %s10 = sphi 0, %s14
          %p11 = scmp.ge.s32.totalorder %s10, 1
          %s15 = sphi %s0, %s0
          %s16 = sphi [#allocation0], [#allocation0]
        $region16: #{custom-call.66} parent=12 // loop_header_branch
          %13 = sbr.rel (%p11) target = $region20
        $region17: #{custom-call.66} parent=12 // loop_body
          %v17 = vld [vmem:[%s15] sm:$0xff]
          %18 = vst [vmem:[%s16] sm:$0xff] %v17
          %v19 = vld [vmem:[%s15 + $0x8] sm:$0xff]
          %20 = vst [vmem:[%s16 + $0x8] sm:$0xff] %v19
          %v21 = vld [vmem:[%s15 + $0x10] sm:$0xff]
          %22 = vst [vmem:[%s16 + $0x10] sm:$0xff] %v21
          %v23 = vld [vmem:[%s15 + $0x18] sm:$0xff]
          %24 = vst [vmem:[%s16 + $0x18] sm:$0xff] %v23
        $region18: #{custom-call.66} parent=12 // loop_footer
          %s14 = sadd.s32 1, %s10
        $region19: #{custom-call.66} parent=12 // loop_footer_branch
          %9 = sbr.rel target = $region15
        $region20: #{custom-call.66} parent=12 // loop_exit
          _
      $region13: #{custom-call.66} parent=4 // pred_fallthru
        _
    $region5: #{custom-call.66} parent=1 // pred_fallthru
      _
    %45 = vnop
    %46 = vst [vmem:[#allocation1] sm:$0xff] 0.0
    %s47 = scalar_lea.vmem [#allocation1], 8
    %48 = vst [vmem:[%s47] sm:$0xff] 0.0
    %s49 = scalar_lea.vmem [#allocation1], 16
    %50 = vst [vmem:[%s49] sm:$0xff] 0.0
    %s51 = scalar_lea.vmem [#allocation1], 24
    %52 = vst [vmem:[%s51] sm:$0xff] 0.0
    %vm53 = vcmask 7168
    %v54 = vld [vmem:[#allocation1] ss:$0 sm:$0xff]
    %v55 = vld [vmem:[#allocation0] ss:$0 sm:$0xff]
    %v56 = vmul.f32 %v54, %v54
    %57 = vadd.xlane.f32.xlu0 %v56
    %v58 = vpop.xlane.xlu0 %57
    %v59 = vsub.f32 %v55, %v58
    %v60 = vrsqrt.pop %v59
    %v61 = vld [vmem:[#allocation0] sm:$0xff]
    %v62 = vld [vmem:[#allocation1] sm:$0xff]
    %v63 = vmul.f32 %v62, %v54
    %64 = vadd.xlane.f32.xlu0 %v63
    %v65 = vpop.xlane.xlu0 %64
    %v66 = vsub.f32 %v61, %v65
    %v67 = vmul.f32 %v66, %v60
    %v68 = vsel %vm53, %v67, 0.0
    %v69 = vadd.f32 %v62, %v68
    %70 = vst [vmem:[#allocation1] sm:$0xff] %v69
    %s71 = scalar_lea.vmem [#allocation0], 8
    %v72 = vld [vmem:[%s71] sm:$0xff]
    %s73 = scalar_lea.vmem [#allocation1], 8
    %v74 = vld [vmem:[%s73] sm:$0xff]
    %v75 = vmul.f32 %v74, %v54
    %76 = vadd.xlane.f32.xlu0 %v75
    %v77 = vpop.xlane.xlu0 %76
    %v78 = vsub.f32 %v72, %v77
    %v79 = vmul.f32 %v78, %v60
    %v80 = vsel %vm53, %v79, 0.0
    %v81 = vadd.f32 %v74, %v80
    %s82 = scalar_lea.vmem [#allocation1], 8
    %83 = vst [vmem:[%s82] sm:$0xff] %v81
    %s84 = scalar_lea.vmem [#allocation0], 16
    %v85 = vld [vmem:[%s84] sm:$0xff]
    %s86 = scalar_lea.vmem [#allocation1], 16
    %v87 = vld [vmem:[%s86] sm:$0xff]
    %v88 = vmul.f32 %v87, %v54
    %89 = vadd.xlane.f32.xlu0 %v88
    %v90 = vpop.xlane.xlu0 %89
    %v91 = vsub.f32 %v85, %v90
    %v92 = vmul.f32 %v91, %v60
    %v93 = vsel %vm53, %v92, 0.0
    %v94 = vadd.f32 %v87, %v93
    %s95 = scalar_lea.vmem [#allocation1], 16
    %96 = vst [vmem:[%s95] sm:$0xff] %v94
    %s97 = scalar_lea.vmem [#allocation0], 24
    %v98 = vld [vmem:[%s97] sm:$0xff]
    %s99 = scalar_lea.vmem [#allocation1], 24
    %v100 = vld [vmem:[%s99] sm:$0xff]
    %v101 = vmul.f32 %v100, %v54
    %102 = vadd.xlane.f32.xlu0 %v101
    %v103 = vpop.xlane.xlu0 %102
    %v104 = vsub.f32 %v98, %v103
    %v105 = vmul.f32 %v104, %v60
    %v106 = vsel %vm53, %v105, 0.0
    %v107 = vadd.f32 %v100, %v106
    %s108 = scalar_lea.vmem [#allocation1], 24
    %109 = vst [vmem:[%s108] sm:$0xff] %v107
    %vm110 = vcmask 15368
    %s111 = scalar_lea.vmem [#allocation1], 1
    %v112 = vld [vmem:[%s111] ss:$0 sm:$0xff]
    %s113 = scalar_lea.vmem [#allocation0], 1
    %v114 = vld [vmem:[%s113] ss:$0 sm:$0xff]
    %v115 = vmul.f32 %v112, %v112
    %116 = vadd.xlane.f32.xlu0 %v115
    %v117 = vpop.xlane.xlu0 %116
    %v118 = vsub.f32 %v114, %v117
    %v119 = vrsqrt.pop %v118
    %v120 = vld [vmem:[#allocation0] sm:$0xff]
    %v121 = vld [vmem:[#allocation1] sm:$0xff]
    %v122 = vmul.f32 %v121, %v112
    %123 = vadd.xlane.f32.xlu0 %v122
    %v124 = vpop.xlane.xlu0 %123
    %v125 = vsub.f32 %v120, %v124
    %v126 = vmul.f32 %v125, %v119
    %vm127 = vcmask 1047553
    %vm128 = vmand %vm110, %vm127
    %v129 = vsel %vm128, %v126, 0.0
    %v130 = vadd.f32 %v121, %v129
    %131 = vst [vmem:[#allocation1] sm:$0xff] %v130
    %s132 = scalar_lea.vmem [#allocation0], 8
    %v133 = vld [vmem:[%s132] sm:$0xff]
    %s134 = scalar_lea.vmem [#allocation1], 8
    %v135 = vld [vmem:[%s134] sm:$0xff]
    %v136 = vmul.f32 %v135, %v112
    %137 = vadd.xlane.f32.xlu0 %v136
    %v138 = vpop.xlane.xlu0 %137
    %v139 = vsub.f32 %v133, %v138
    %v140 = vmul.f32 %v139, %v119
    %v141 = vsel %vm110, %v140, 0.0
    %v142 = vadd.f32 %v135, %v141
    %s143 = scalar_lea.vmem [#allocation1], 8
    %144 = vst [vmem:[%s143] sm:$0xff] %v142
    %s145 = scalar_lea.vmem [#allocation0], 16
    %v146 = vld [vmem:[%s145] sm:$0xff]
    %s147 = scalar_lea.vmem [#allocation1], 16
    %v148 = vld [vmem:[%s147] sm:$0xff]
    %v149 = vmul.f32 %v148, %v112
    %150 = vadd.xlane.f32.xlu0 %v149
    %v151 = vpop.xlane.xlu0 %150
    %v152 = vsub.f32 %v146, %v151
    %v153 = vmul.f32 %v152, %v119
    %v154 = vsel %vm110, %v153, 0.0
    %v155 = vadd.f32 %v148, %v154
    %s156 = scalar_lea.vmem [#allocation1], 16
    %157 = vst [vmem:[%s156] sm:$0xff] %v155
    %s158 = scalar_lea.vmem [#allocation0], 24
    %v159 = vld [vmem:[%s158] sm:$0xff]
    %s160 = scalar_lea.vmem [#allocation1], 24
    %v161 = vld [vmem:[%s160] sm:$0xff]
    %v162 = vmul.f32 %v161, %v112
    %163 = vadd.xlane.f32.xlu0 %v162
    %v164 = vpop.xlane.xlu0 %163
    %v165 = vsub.f32 %v159, %v164
    %v166 = vmul.f32 %v165, %v119
    %v167 = vsel %vm110, %v166, 0.0
    %v168 = vadd.f32 %v161, %v167
    %s169 = scalar_lea.vmem [#allocation1], 24
    %170 = vst [vmem:[%s169] sm:$0xff] %v168
    %vm171 = vcmask 23568
    %s172 = scalar_lea.vmem [#allocation1], 2
    %v173 = vld [vmem:[%s172] ss:$0 sm:$0xff]
    %s174 = scalar_lea.vmem [#allocation0], 2
    %v175 = vld [vmem:[%s174] ss:$0 sm:$0xff]
    %v176 = vmul.f32 %v173, %v173
    %177 = vadd.xlane.f32.xlu0 %v176
    %v178 = vpop.xlane.xlu0 %177
    %v179 = vsub.f32 %v175, %v178
    %v180 = vrsqrt.pop %v179
    %v181 = vld [vmem:[#allocation0] sm:$0xff]
    %v182 = vld [vmem:[#allocation1] sm:$0xff]
    %v183 = vmul.f32 %v182, %v173
    %184 = vadd.xlane.f32.xlu0 %v183
    %v185 = vpop.xlane.xlu0 %184
    %v186 = vsub.f32 %v181, %v185
    %v187 = vmul.f32 %v186, %v180
    %vm188 = vcmask 1047554
    %vm189 = vmand %vm171, %vm188
    %v190 = vsel %vm189, %v187, 0.0
    %v191 = vadd.f32 %v182, %v190
    %192 = vst [vmem:[#allocation1] sm:$0xff] %v191
    %s193 = scalar_lea.vmem [#allocation0], 8
    %v194 = vld [vmem:[%s193] sm:$0xff]
    %s195 = scalar_lea.vmem [#allocation1], 8
    %v196 = vld [vmem:[%s195] sm:$0xff]
    %v197 = vmul.f32 %v196, %v173
    %198 = vadd.xlane.f32.xlu0 %v197
    %v199 = vpop.xlane.xlu0 %198
    %v200 = vsub.f32 %v194, %v199
    %v201 = vmul.f32 %v200, %v180
    %v202 = vsel %vm171, %v201, 0.0
    %v203 = vadd.f32 %v196, %v202
    %s204 = scalar_lea.vmem [#allocation1], 8
    %205 = vst [vmem:[%s204] sm:$0xff] %v203
    %s206 = scalar_lea.vmem [#allocation0], 16
    %v207 = vld [vmem:[%s206] sm:$0xff]
    %s208 = scalar_lea.vmem [#allocation1], 16
    %v209 = vld [vmem:[%s208] sm:$0xff]
    %v210 = vmul.f32 %v209, %v173
    %211 = vadd.xlane.f32.xlu0 %v210
    %v212 = vpop.xlane.xlu0 %211
    %v213 = vsub.f32 %v207, %v212
    %v214 = vmul.f32 %v213, %v180
    %v215 = vsel %vm171, %v214, 0.0
    %v216 = vadd.f32 %v209, %v215
    %s217 = scalar_lea.vmem [#allocation1], 16
    %218 = vst [vmem:[%s217] sm:$0xff] %v216
    %s219 = scalar_lea.vmem [#allocation0], 24
    %v220 = vld [vmem:[%s219] sm:$0xff]
    %s221 = scalar_lea.vmem [#allocation1], 24
    %v222 = vld [vmem:[%s221] sm:$0xff]
    %v223 = vmul.f32 %v222, %v173
    %224 = vadd.xlane.f32.xlu0 %v223
    %v225 = vpop.xlane.xlu0 %224
    %v226 = vsub.f32 %v220, %v225
    %v227 = vmul.f32 %v226, %v180
    %v228 = vsel %vm171, %v227, 0.0
    %v229 = vadd.f32 %v222, %v228
    %s230 = scalar_lea.vmem [#allocation1], 24
    %231 = vst [vmem:[%s230] sm:$0xff] %v229
    %vm232 = vcmask 31768
    %s233 = scalar_lea.vmem [#allocation1], 3
    %v234 = vld [vmem:[%s233] ss:$0 sm:$0xff]
    %s235 = scalar_lea.vmem [#allocation0], 3
    %v236 = vld [vmem:[%s235] ss:$0 sm:$0xff]
    %v237 = vmul.f32 %v234, %v234
    %238 = vadd.xlane.f32.xlu0 %v237
    %v239 = vpop.xlane.xlu0 %238
    %v240 = vsub.f32 %v236, %v239
    %v241 = vrsqrt.pop %v240
    %v242 = vld [vmem:[#allocation0] sm:$0xff]
    %v243 = vld [vmem:[#allocation1] sm:$0xff]
    %v244 = vmul.f32 %v243, %v234
    %245 = vadd.xlane.f32.xlu0 %v244
    %v246 = vpop.xlane.xlu0 %245
    %v247 = vsub.f32 %v242, %v246
    %v248 = vmul.f32 %v247, %v241
    %vm249 = vcmask 1047555
    %vm250 = vmand %vm232, %vm249
    %v251 = vsel %vm250, %v248, 0.0
    %v252 = vadd.f32 %v243, %v251
    %253 = vst [vmem:[#allocation1] sm:$0xff] %v252
    %s254 = scalar_lea.vmem [#allocation0], 8
    %v255 = vld [vmem:[%s254] sm:$0xff]
    %s256 = scalar_lea.vmem [#allocation1], 8
    %v257 = vld [vmem:[%s256] sm:$0xff]
    %v258 = vmul.f32 %v257, %v234
    %259 = vadd.xlane.f32.xlu0 %v258
    %v260 = vpop.xlane.xlu0 %259
    %v261 = vsub.f32 %v255, %v260
    %v262 = vmul.f32 %v261, %v241
    %v263 = vsel %vm232, %v262, 0.0
    %v264 = vadd.f32 %v257, %v263
    %s265 = scalar_lea.vmem [#allocation1], 8
    %266 = vst [vmem:[%s265] sm:$0xff] %v264
    %s267 = scalar_lea.vmem [#allocation0], 16
    %v268 = vld [vmem:[%s267] sm:$0xff]
    %s269 = scalar_lea.vmem [#allocation1], 16
    %v270 = vld [vmem:[%s269] sm:$0xff]
    %v271 = vmul.f32 %v270, %v234
    %272 = vadd.xlane.f32.xlu0 %v271
    %v273 = vpop.xlane.xlu0 %272
    %v274 = vsub.f32 %v268, %v273
    %v275 = vmul.f32 %v274, %v241
    %v276 = vsel %vm232, %v275, 0.0
    %v277 = vadd.f32 %v270, %v276
    %s278 = scalar_lea.vmem [#allocation1], 16
    %279 = vst [vmem:[%s278] sm:$0xff] %v277
    %s280 = scalar_lea.vmem [#allocation0], 24
    %v281 = vld [vmem:[%s280] sm:$0xff]
    %s282 = scalar_lea.vmem [#allocation1], 24
    %v283 = vld [vmem:[%s282] sm:$0xff]
    %v284 = vmul.f32 %v283, %v234
    %285 = vadd.xlane.f32.xlu0 %v284
    %v286 = vpop.xlane.xlu0 %285
    %v287 = vsub.f32 %v281, %v286
    %v288 = vmul.f32 %v287, %v241
    %v289 = vsel %vm232, %v288, 0.0
    %v290 = vadd.f32 %v283, %v289
    %s291 = scalar_lea.vmem [#allocation1], 24
    %292 = vst [vmem:[%s291] sm:$0xff] %v290
    %vm293 = vcmask 39968
    %s294 = scalar_lea.vmem [#allocation1], 4
    %v295 = vld [vmem:[%s294] ss:$0 sm:$0xff]
    %s296 = scalar_lea.vmem [#allocation0], 4
    %v297 = vld [vmem:[%s296] ss:$0 sm:$0xff]
    %v298 = vmul.f32 %v295, %v295
    %299 = vadd.xlane.f32.xlu0 %v298
    %v300 = vpop.xlane.xlu0 %299
    %v301 = vsub.f32 %v297, %v300
    %v302 = vrsqrt.pop %v301
    %v303 = vld [vmem:[#allocation0] sm:$0xff]
    %v304 = vld [vmem:[#allocation1] sm:$0xff]
    %v305 = vmul.f32 %v304, %v295
    %306 = vadd.xlane.f32.xlu0 %v305
    %v307 = vpop.xlane.xlu0 %306
    %v308 = vsub.f32 %v303, %v307
    %v309 = vmul.f32 %v308, %v302
    %vm310 = vcmask 1047556
    %vm311 = vmand %vm293, %vm310
    %v312 = vsel %vm311, %v309, 0.0
    %v313 = vadd.f32 %v304, %v312
    %314 = vst [vmem:[#allocation1] sm:$0xff] %v313
    %s315 = scalar_lea.vmem [#allocation0], 8
    %v316 = vld [vmem:[%s315] sm:$0xff]
    %s317 = scalar_lea.vmem [#allocation1], 8
    %v318 = vld [vmem:[%s317] sm:$0xff]
    %v319 = vmul.f32 %v318, %v295
    %320 = vadd.xlane.f32.xlu0 %v319
    %v321 = vpop.xlane.xlu0 %320
    %v322 = vsub.f32 %v316, %v321
    %v323 = vmul.f32 %v322, %v302
    %v324 = vsel %vm293, %v323, 0.0
    %v325 = vadd.f32 %v318, %v324
    %s326 = scalar_lea.vmem [#allocation1], 8
    %327 = vst [vmem:[%s326] sm:$0xff] %v325
    %s328 = scalar_lea.vmem [#allocation0], 16
    %v329 = vld [vmem:[%s328] sm:$0xff]
    %s330 = scalar_lea.vmem [#allocation1], 16
    %v331 = vld [vmem:[%s330] sm:$0xff]
    %v332 = vmul.f32 %v331, %v295
    %333 = vadd.xlane.f32.xlu0 %v332
    %v334 = vpop.xlane.xlu0 %333
    %v335 = vsub.f32 %v329, %v334
    %v336 = vmul.f32 %v335, %v302
    %v337 = vsel %vm293, %v336, 0.0
    %v338 = vadd.f32 %v331, %v337
    %s339 = scalar_lea.vmem [#allocation1], 16
    %340 = vst [vmem:[%s339] sm:$0xff] %v338
    %s341 = scalar_lea.vmem [#allocation0], 24
    %v342 = vld [vmem:[%s341] sm:$0xff]
    %s343 = scalar_lea.vmem [#allocation1], 24
    %v344 = vld [vmem:[%s343] sm:$0xff]
    %v345 = vmul.f32 %v344, %v295
    %346 = vadd.xlane.f32.xlu0 %v345
    %v347 = vpop.xlane.xlu0 %346
    %v348 = vsub.f32 %v342, %v347
    %v349 = vmul.f32 %v348, %v302
    %v350 = vsel %vm293, %v349, 0.0
    %v351 = vadd.f32 %v344, %v350
    %s352 = scalar_lea.vmem [#allocation1], 24
    %353 = vst [vmem:[%s352] sm:$0xff] %v351
    %vm354 = vcmask 48168
    %s355 = scalar_lea.vmem [#allocation1], 5
    %v356 = vld [vmem:[%s355] ss:$0 sm:$0xff]
    %s357 = scalar_lea.vmem [#allocation0], 5
    %v358 = vld [vmem:[%s357] ss:$0 sm:$0xff]
    %v359 = vmul.f32 %v356, %v356
    %360 = vadd.xlane.f32.xlu0 %v359
    %v361 = vpop.xlane.xlu0 %360
    %v362 = vsub.f32 %v358, %v361
    %v363 = vrsqrt.pop %v362
    %v364 = vld [vmem:[#allocation0] sm:$0xff]
    %v365 = vld [vmem:[#allocation1] sm:$0xff]
    %v366 = vmul.f32 %v365, %v356
    %367 = vadd.xlane.f32.xlu0 %v366
    %v368 = vpop.xlane.xlu0 %367
    %v369 = vsub.f32 %v364, %v368
    %v370 = vmul.f32 %v369, %v363
    %vm371 = vcmask 1047557
    %vm372 = vmand %vm354, %vm371
    %v373 = vsel %vm372, %v370, 0.0
    %v374 = vadd.f32 %v365, %v373
    %375 = vst [vmem:[#allocation1] sm:$0xff] %v374
    %s376 = scalar_lea.vmem [#allocation0], 8
    %v377 = vld [vmem:[%s376] sm:$0xff]
    %s378 = scalar_lea.vmem [#allocation1], 8
    %v379 = vld [vmem:[%s378] sm:$0xff]
    %v380 = vmul.f32 %v379, %v356
    %381 = vadd.xlane.f32.xlu0 %v380
    %v382 = vpop.xlane.xlu0 %381
    %v383 = vsub.f32 %v377, %v382
    %v384 = vmul.f32 %v383, %v363
    %v385 = vsel %vm354, %v384, 0.0
    %v386 = vadd.f32 %v379, %v385
    %s387 = scalar_lea.vmem [#allocation1], 8
    %388 = vst [vmem:[%s387] sm:$0xff] %v386
    %s389 = scalar_lea.vmem [#allocation0], 16
    %v390 = vld [vmem:[%s389] sm:$0xff]
    %s391 = scalar_lea.vmem [#allocation1], 16
    %v392 = vld [vmem:[%s391] sm:$0xff]
    %v393 = vmul.f32 %v392, %v356
    %394 = vadd.xlane.f32.xlu0 %v393
    %v395 = vpop.xlane.xlu0 %394
    %v396 = vsub.f32 %v390, %v395
    %v397 = vmul.f32 %v396, %v363
    %v398 = vsel %vm354, %v397, 0.0
    %v399 = vadd.f32 %v392, %v398
    %s400 = scalar_lea.vmem [#allocation1], 16
    %401 = vst [vmem:[%s400] sm:$0xff] %v399
    %s402 = scalar_lea.vmem [#allocation0], 24
    %v403 = vld [vmem:[%s402] sm:$0xff]
    %s404 = scalar_lea.vmem [#allocation1], 24
    %v405 = vld [vmem:[%s404] sm:$0xff]
    %v406 = vmul.f32 %v405, %v356
    %407 = vadd.xlane.f32.xlu0 %v406
    %v408 = vpop.xlane.xlu0 %407
    %v409 = vsub.f32 %v403, %v408
    %v410 = vmul.f32 %v409, %v363
    %v411 = vsel %vm354, %v410, 0.0
    %v412 = vadd.f32 %v405, %v411
    %s413 = scalar_lea.vmem [#allocation1], 24
    %414 = vst [vmem:[%s413] sm:$0xff] %v412
    %vm415 = vcmask 56368
    %s416 = scalar_lea.vmem [#allocation1], 6
    %v417 = vld [vmem:[%s416] ss:$0 sm:$0xff]
    %s418 = scalar_lea.vmem [#allocation0], 6
    %v419 = vld [vmem:[%s418] ss:$0 sm:$0xff]
    %v420 = vmul.f32 %v417, %v417
    %421 = vadd.xlane.f32.xlu0 %v420
    %v422 = vpop.xlane.xlu0 %421
    %v423 = vsub.f32 %v419, %v422
    %v424 = vrsqrt.pop %v423
    %v425 = vld [vmem:[#allocation0] sm:$0xff]
    %v426 = vld [vmem:[#allocation1] sm:$0xff]
    %v427 = vmul.f32 %v426, %v417
    %428 = vadd.xlane.f32.xlu0 %v427
    %v429 = vpop.xlane.xlu0 %428
    %v430 = vsub.f32 %v425, %v429
    %v431 = vmul.f32 %v430, %v424
    %vm432 = vcmask 1047558
    %vm433 = vmand %vm415, %vm432
    %v434 = vsel %vm433, %v431, 0.0
    %v435 = vadd.f32 %v426, %v434
    %436 = vst [vmem:[#allocation1] sm:$0xff] %v435
    %s437 = scalar_lea.vmem [#allocation0], 8
    %v438 = vld [vmem:[%s437] sm:$0xff]
    %s439 = scalar_lea.vmem [#allocation1], 8
    %v440 = vld [vmem:[%s439] sm:$0xff]
    %v441 = vmul.f32 %v440, %v417
    %442 = vadd.xlane.f32.xlu0 %v441
    %v443 = vpop.xlane.xlu0 %442
    %v444 = vsub.f32 %v438, %v443
    %v445 = vmul.f32 %v444, %v424
    %v446 = vsel %vm415, %v445, 0.0
    %v447 = vadd.f32 %v440, %v446
    %s448 = scalar_lea.vmem [#allocation1], 8
    %449 = vst [vmem:[%s448] sm:$0xff] %v447
    %s450 = scalar_lea.vmem [#allocation0], 16
    %v451 = vld [vmem:[%s450] sm:$0xff]
    %s452 = scalar_lea.vmem [#allocation1], 16
    %v453 = vld [vmem:[%s452] sm:$0xff]
    %v454 = vmul.f32 %v453, %v417
    %455 = vadd.xlane.f32.xlu0 %v454
    %v456 = vpop.xlane.xlu0 %455
    %v457 = vsub.f32 %v451, %v456
    %v458 = vmul.f32 %v457, %v424
    %v459 = vsel %vm415, %v458, 0.0
    %v460 = vadd.f32 %v453, %v459
    %s461 = scalar_lea.vmem [#allocation1], 16
    %462 = vst [vmem:[%s461] sm:$0xff] %v460
    %s463 = scalar_lea.vmem [#allocation0], 24
    %v464 = vld [vmem:[%s463] sm:$0xff]
    %s465 = scalar_lea.vmem [#allocation1], 24
    %v466 = vld [vmem:[%s465] sm:$0xff]
    %v467 = vmul.f32 %v466, %v417
    %468 = vadd.xlane.f32.xlu0 %v467
    %v469 = vpop.xlane.xlu0 %468
    %v470 = vsub.f32 %v464, %v469
    %v471 = vmul.f32 %v470, %v424
    %v472 = vsel %vm415, %v471, 0.0
    %v473 = vadd.f32 %v466, %v472
    %s474 = scalar_lea.vmem [#allocation1], 24
    %475 = vst [vmem:[%s474] sm:$0xff] %v473
    %vm476 = vcmask 64568
    %s477 = scalar_lea.vmem [#allocation1], 7
    %v478 = vld [vmem:[%s477] ss:$0 sm:$0xff]
    %s479 = scalar_lea.vmem [#allocation0], 7
    %v480 = vld [vmem:[%s479] ss:$0 sm:$0xff]
    %v481 = vmul.f32 %v478, %v478
    %482 = vadd.xlane.f32.xlu0 %v481
    %v483 = vpop.xlane.xlu0 %482
    %v484 = vsub.f32 %v480, %v483
    %v485 = vrsqrt.pop %v484
    %v486 = vld [vmem:[#allocation0] sm:$0xff]
    %v487 = vld [vmem:[#allocation1] sm:$0xff]
    %v488 = vmul.f32 %v487, %v478
    %489 = vadd.xlane.f32.xlu0 %v488
    %v490 = vpop.xlane.xlu0 %489
    %v491 = vsub.f32 %v486, %v490
    %v492 = vmul.f32 %v491, %v485
    %vm493 = vcmask 1047559
    %vm494 = vmand %vm476, %vm493
    %v495 = vsel %vm494, %v492, 0.0
    %v496 = vadd.f32 %v487, %v495
    %497 = vst [vmem:[#allocation1] sm:$0xff] %v496
    %s498 = scalar_lea.vmem [#allocation0], 8
    %v499 = vld [vmem:[%s498] sm:$0xff]
    %s500 = scalar_lea.vmem [#allocation1], 8
    %v501 = vld [vmem:[%s500] sm:$0xff]
    %v502 = vmul.f32 %v501, %v478
    %503 = vadd.xlane.f32.xlu0 %v502
    %v504 = vpop.xlane.xlu0 %503
    %v505 = vsub.f32 %v499, %v504
    %v506 = vmul.f32 %v505, %v485
    %v507 = vsel %vm476, %v506, 0.0
    %v508 = vadd.f32 %v501, %v507
    %s509 = scalar_lea.vmem [#allocation1], 8
    %510 = vst [vmem:[%s509] sm:$0xff] %v508
    %s511 = scalar_lea.vmem [#allocation0], 16
    %v512 = vld [vmem:[%s511] sm:$0xff]
    %s513 = scalar_lea.vmem [#allocation1], 16
    %v514 = vld [vmem:[%s513] sm:$0xff]
    %v515 = vmul.f32 %v514, %v478
    %516 = vadd.xlane.f32.xlu0 %v515
    %v517 = vpop.xlane.xlu0 %516
    %v518 = vsub.f32 %v512, %v517
    %v519 = vmul.f32 %v518, %v485
    %v520 = vsel %vm476, %v519, 0.0
    %v521 = vadd.f32 %v514, %v520
    %s522 = scalar_lea.vmem [#allocation1], 16
    %523 = vst [vmem:[%s522] sm:$0xff] %v521
    %s524 = scalar_lea.vmem [#allocation0], 24
    %v525 = vld [vmem:[%s524] sm:$0xff]
    %s526 = scalar_lea.vmem [#allocation1], 24
    %v527 = vld [vmem:[%s526] sm:$0xff]
    %v528 = vmul.f32 %v527, %v478
    %529 = vadd.xlane.f32.xlu0 %v528
    %v530 = vpop.xlane.xlu0 %529
    %v531 = vsub.f32 %v525, %v530
    %v532 = vmul.f32 %v531, %v485
    %v533 = vsel %vm476, %v532, 0.0
    %v534 = vadd.f32 %v527, %v533
    %s535 = scalar_lea.vmem [#allocation1], 24
    %536 = vst [vmem:[%s535] sm:$0xff] %v534
    %vm537 = vcmask 72768
    %s538 = scalar_lea.vmem [#allocation1], 8
    %v539 = vld [vmem:[%s538] ss:$0 sm:$0xff]
    %s540 = scalar_lea.vmem [#allocation0], 8
    %v541 = vld [vmem:[%s540] ss:$0 sm:$0xff]
    %v542 = vmul.f32 %v539, %v539
    %543 = vadd.xlane.f32.xlu0 %v542
    %v544 = vpop.xlane.xlu0 %543
    %v545 = vsub.f32 %v541, %v544
    %v546 = vrsqrt.pop %v545
    %s547 = scalar_lea.vmem [#allocation0], 8
    %v548 = vld [vmem:[%s547] sm:$0xff]
    %s549 = scalar_lea.vmem [#allocation1], 8
    %v550 = vld [vmem:[%s549] sm:$0xff]
    %v551 = vmul.f32 %v550, %v539
    %552 = vadd.xlane.f32.xlu0 %v551
    %v553 = vpop.xlane.xlu0 %552
    %v554 = vsub.f32 %v548, %v553
    %v555 = vmul.f32 %v554, %v546
    %v556 = vsel %vm537, %v555, 0.0
    %v557 = vadd.f32 %v550, %v556
    %s558 = scalar_lea.vmem [#allocation1], 8
    %559 = vst [vmem:[%s558] sm:$0xff] %v557
    %s560 = scalar_lea.vmem [#allocation0], 16
    %v561 = vld [vmem:[%s560] sm:$0xff]
    %s562 = scalar_lea.vmem [#allocation1], 16
    %v563 = vld [vmem:[%s562] sm:$0xff]
    %v564 = vmul.f32 %v563, %v539
    %565 = vadd.xlane.f32.xlu0 %v564
    %v566 = vpop.xlane.xlu0 %565
    %v567 = vsub.f32 %v561, %v566
    %v568 = vmul.f32 %v567, %v546
    %v569 = vsel %vm537, %v568, 0.0
    %v570 = vadd.f32 %v563, %v569
    %s571 = scalar_lea.vmem [#allocation1], 16
    %572 = vst [vmem:[%s571] sm:$0xff] %v570
    %s573 = scalar_lea.vmem [#allocation0], 24
    %v574 = vld [vmem:[%s573] sm:$0xff]
    %s575 = scalar_lea.vmem [#allocation1], 24
    %v576 = vld [vmem:[%s575] sm:$0xff]
    %v577 = vmul.f32 %v576, %v539
    %578 = vadd.xlane.f32.xlu0 %v577
    %v579 = vpop.xlane.xlu0 %578
    %v580 = vsub.f32 %v574, %v579
    %v581 = vmul.f32 %v580, %v546
    %v582 = vsel %vm537, %v581, 0.0
    %v583 = vadd.f32 %v576, %v582
    %s584 = scalar_lea.vmem [#allocation1], 24
    %585 = vst [vmem:[%s584] sm:$0xff] %v583
    %vm586 = vcmask 80968
    %s587 = scalar_lea.vmem [#allocation1], 9
    %v588 = vld [vmem:[%s587] ss:$0 sm:$0xff]
    %s589 = scalar_lea.vmem [#allocation0], 9
    %v590 = vld [vmem:[%s589] ss:$0 sm:$0xff]
    %v591 = vmul.f32 %v588, %v588
    %592 = vadd.xlane.f32.xlu0 %v591
    %v593 = vpop.xlane.xlu0 %592
    %v594 = vsub.f32 %v590, %v593
    %v595 = vrsqrt.pop %v594
    %s596 = scalar_lea.vmem [#allocation0], 8
    %v597 = vld [vmem:[%s596] sm:$0xff]
    %s598 = scalar_lea.vmem [#allocation1], 8
    %v599 = vld [vmem:[%s598] sm:$0xff]
    %v600 = vmul.f32 %v599, %v588
    %601 = vadd.xlane.f32.xlu0 %v600
    %v602 = vpop.xlane.xlu0 %601
    %v603 = vsub.f32 %v597, %v602
    %v604 = vmul.f32 %v603, %v595
    %vm605 = vcmask 1047553
    %vm606 = vmand %vm586, %vm605
    %v607 = vsel %vm606, %v604, 0.0
    %v608 = vadd.f32 %v599, %v607
    %s609 = scalar_lea.vmem [#allocation1], 8
    %610 = vst [vmem:[%s609] sm:$0xff] %v608
    %s611 = scalar_lea.vmem [#allocation0], 16
    %v612 = vld [vmem:[%s611] sm:$0xff]
    %s613 = scalar_lea.vmem [#allocation1], 16
    %v614 = vld [vmem:[%s613] sm:$0xff]
    %v615 = vmul.f32 %v614, %v588
    %616 = vadd.xlane.f32.xlu0 %v615
    %v617 = vpop.xlane.xlu0 %616
    %v618 = vsub.f32 %v612, %v617
    %v619 = vmul.f32 %v618, %v595
    %v620 = vsel %vm586, %v619, 0.0
    %v621 = vadd.f32 %v614, %v620
    %s622 = scalar_lea.vmem [#allocation1], 16
    %623 = vst [vmem:[%s622] sm:$0xff] %v621
    %s624 = scalar_lea.vmem [#allocation0], 24
    %v625 = vld [vmem:[%s624] sm:$0xff]
    %s626 = scalar_lea.vmem [#allocation1], 24
    %v627 = vld [vmem:[%s626] sm:$0xff]
    %v628 = vmul.f32 %v627, %v588
    %629 = vadd.xlane.f32.xlu0 %v628
    %v630 = vpop.xlane.xlu0 %629
    %v631 = vsub.f32 %v625, %v630
    %v632 = vmul.f32 %v631, %v595
    %v633 = vsel %vm586, %v632, 0.0
    %v634 = vadd.f32 %v627, %v633
    %s635 = scalar_lea.vmem [#allocation1], 24
    %636 = vst [vmem:[%s635] sm:$0xff] %v634
    %vm637 = vcmask 89168
    %s638 = scalar_lea.vmem [#allocation1], 10
    %v639 = vld [vmem:[%s638] ss:$0 sm:$0xff]
    %s640 = scalar_lea.vmem [#allocation0], 10
    %v641 = vld [vmem:[%s640] ss:$0 sm:$0xff]
    %v642 = vmul.f32 %v639, %v639
    %643 = vadd.xlane.f32.xlu0 %v642
    %v644 = vpop.xlane.xlu0 %643
    %v645 = vsub.f32 %v641, %v644
    %v646 = vrsqrt.pop %v645
    %s647 = scalar_lea.vmem [#allocation0], 8
    %v648 = vld [vmem:[%s647] sm:$0xff]
    %s649 = scalar_lea.vmem [#allocation1], 8
    %v650 = vld [vmem:[%s649] sm:$0xff]
    %v651 = vmul.f32 %v650, %v639
    %652 = vadd.xlane.f32.xlu0 %v651
    %v653 = vpop.xlane.xlu0 %652
    %v654 = vsub.f32 %v648, %v653
    %v655 = vmul.f32 %v654, %v646
    %vm656 = vcmask 1047554
    %vm657 = vmand %vm637, %vm656
    %v658 = vsel %vm657, %v655, 0.0
    %v659 = vadd.f32 %v650, %v658
    %s660 = scalar_lea.vmem [#allocation1], 8
    %661 = vst [vmem:[%s660] sm:$0xff] %v659
    %s662 = scalar_lea.vmem [#allocation0], 16
    %v663 = vld [vmem:[%s662] sm:$0xff]
    %s664 = scalar_lea.vmem [#allocation1], 16
    %v665 = vld [vmem:[%s664] sm:$0xff]
    %v666 = vmul.f32 %v665, %v639
    %667 = vadd.xlane.f32.xlu0 %v666
    %v668 = vpop.xlane.xlu0 %667
    %v669 = vsub.f32 %v663, %v668
    %v670 = vmul.f32 %v669, %v646
    %v671 = vsel %vm637, %v670, 0.0
    %v672 = vadd.f32 %v665, %v671
    %s673 = scalar_lea.vmem [#allocation1], 16
    %674 = vst [vmem:[%s673] sm:$0xff] %v672
    %s675 = scalar_lea.vmem [#allocation0], 24
    %v676 = vld [vmem:[%s675] sm:$0xff]
    %s677 = scalar_lea.vmem [#allocation1], 24
    %v678 = vld [vmem:[%s677] sm:$0xff]
    %v679 = vmul.f32 %v678, %v639
    %680 = vadd.xlane.f32.xlu0 %v679
    %v681 = vpop.xlane.xlu0 %680
    %v682 = vsub.f32 %v676, %v681
    %v683 = vmul.f32 %v682, %v646
    %v684 = vsel %vm637, %v683, 0.0
    %v685 = vadd.f32 %v678, %v684
    %s686 = scalar_lea.vmem [#allocation1], 24
    %687 = vst [vmem:[%s686] sm:$0xff] %v685
    %vm688 = vcmask 97368
    %s689 = scalar_lea.vmem [#allocation1], 11
    %v690 = vld [vmem:[%s689] ss:$0 sm:$0xff]
    %s691 = scalar_lea.vmem [#allocation0], 11
    %v692 = vld [vmem:[%s691] ss:$0 sm:$0xff]
    %v693 = vmul.f32 %v690, %v690
    %694 = vadd.xlane.f32.xlu0 %v693
    %v695 = vpop.xlane.xlu0 %694
    %v696 = vsub.f32 %v692, %v695
    %v697 = vrsqrt.pop %v696
    %s698 = scalar_lea.vmem [#allocation0], 8
    %v699 = vld [vmem:[%s698] sm:$0xff]
    %s700 = scalar_lea.vmem [#allocation1], 8
    %v701 = vld [vmem:[%s700] sm:$0xff]
    %v702 = vmul.f32 %v701, %v690
    %703 = vadd.xlane.f32.xlu0 %v702
    %v704 = vpop.xlane.xlu0 %703
    %v705 = vsub.f32 %v699, %v704
    %v706 = vmul.f32 %v705, %v697
    %vm707 = vcmask 1047555
    %vm708 = vmand %vm688, %vm707
    %v709 = vsel %vm708, %v706, 0.0
    %v710 = vadd.f32 %v701, %v709
    %s711 = scalar_lea.vmem [#allocation1], 8
    %712 = vst [vmem:[%s711] sm:$0xff] %v710
    %s713 = scalar_lea.vmem [#allocation0], 16
    %v714 = vld [vmem:[%s713] sm:$0xff]
    %s715 = scalar_lea.vmem [#allocation1], 16
    %v716 = vld [vmem:[%s715] sm:$0xff]
    %v717 = vmul.f32 %v716, %v690
    %718 = vadd.xlane.f32.xlu0 %v717
    %v719 = vpop.xlane.xlu0 %718
    %v720 = vsub.f32 %v714, %v719
    %v721 = vmul.f32 %v720, %v697
    %v722 = vsel %vm688, %v721, 0.0
    %v723 = vadd.f32 %v716, %v722
    %s724 = scalar_lea.vmem [#allocation1], 16
    %725 = vst [vmem:[%s724] sm:$0xff] %v723
    %s726 = scalar_lea.vmem [#allocation0], 24
    %v727 = vld [vmem:[%s726] sm:$0xff]
    %s728 = scalar_lea.vmem [#allocation1], 24
    %v729 = vld [vmem:[%s728] sm:$0xff]
    %v730 = vmul.f32 %v729, %v690
    %731 = vadd.xlane.f32.xlu0 %v730
    %v732 = vpop.xlane.xlu0 %731
    %v733 = vsub.f32 %v727, %v732
    %v734 = vmul.f32 %v733, %v697
    %v735 = vsel %vm688, %v734, 0.0
    %v736 = vadd.f32 %v729, %v735
    %s737 = scalar_lea.vmem [#allocation1], 24
    %738 = vst [vmem:[%s737] sm:$0xff] %v736
    %vm739 = vcmask 105568
    %s740 = scalar_lea.vmem [#allocation1], 12
    %v741 = vld [vmem:[%s740] ss:$0 sm:$0xff]
    %s742 = scalar_lea.vmem [#allocation0], 12
    %v743 = vld [vmem:[%s742] ss:$0 sm:$0xff]
    %v744 = vmul.f32 %v741, %v741
    %745 = vadd.xlane.f32.xlu0 %v744
    %v746 = vpop.xlane.xlu0 %745
    %v747 = vsub.f32 %v743, %v746
    %v748 = vrsqrt.pop %v747
    %s749 = scalar_lea.vmem [#allocation0], 8
    %v750 = vld [vmem:[%s749] sm:$0xff]
    %s751 = scalar_lea.vmem [#allocation1], 8
    %v752 = vld [vmem:[%s751] sm:$0xff]
    %v753 = vmul.f32 %v752, %v741
    %754 = vadd.xlane.f32.xlu0 %v753
    %v755 = vpop.xlane.xlu0 %754
    %v756 = vsub.f32 %v750, %v755
    %v757 = vmul.f32 %v756, %v748
    %vm758 = vcmask 1047556
    %vm759 = vmand %vm739, %vm758
    %v760 = vsel %vm759, %v757, 0.0
    %v761 = vadd.f32 %v752, %v760
    %s762 = scalar_lea.vmem [#allocation1], 8
    %763 = vst [vmem:[%s762] sm:$0xff] %v761
    %s764 = scalar_lea.vmem [#allocation0], 16
    %v765 = vld [vmem:[%s764] sm:$0xff]
    %s766 = scalar_lea.vmem [#allocation1], 16
    %v767 = vld [vmem:[%s766] sm:$0xff]
    %v768 = vmul.f32 %v767, %v741
    %769 = vadd.xlane.f32.xlu0 %v768
    %v770 = vpop.xlane.xlu0 %769
    %v771 = vsub.f32 %v765, %v770
    %v772 = vmul.f32 %v771, %v748
    %v773 = vsel %vm739, %v772, 0.0
    %v774 = vadd.f32 %v767, %v773
    %s775 = scalar_lea.vmem [#allocation1], 16
    %776 = vst [vmem:[%s775] sm:$0xff] %v774
    %s777 = scalar_lea.vmem [#allocation0], 24
    %v778 = vld [vmem:[%s777] sm:$0xff]
    %s779 = scalar_lea.vmem [#allocation1], 24
    %v780 = vld [vmem:[%s779] sm:$0xff]
    %v781 = vmul.f32 %v780, %v741
    %782 = vadd.xlane.f32.xlu0 %v781
    %v783 = vpop.xlane.xlu0 %782
    %v784 = vsub.f32 %v778, %v783
    %v785 = vmul.f32 %v784, %v748
    %v786 = vsel %vm739, %v785, 0.0
    %v787 = vadd.f32 %v780, %v786
    %s788 = scalar_lea.vmem [#allocation1], 24
    %789 = vst [vmem:[%s788] sm:$0xff] %v787
    %vm790 = vcmask 113768
    %s791 = scalar_lea.vmem [#allocation1], 13
    %v792 = vld [vmem:[%s791] ss:$0 sm:$0xff]
    %s793 = scalar_lea.vmem [#allocation0], 13
    %v794 = vld [vmem:[%s793] ss:$0 sm:$0xff]
    %v795 = vmul.f32 %v792, %v792
    %796 = vadd.xlane.f32.xlu0 %v795
    %v797 = vpop.xlane.xlu0 %796
    %v798 = vsub.f32 %v794, %v797
    %v799 = vrsqrt.pop %v798
    %s800 = scalar_lea.vmem [#allocation0], 8
    %v801 = vld [vmem:[%s800] sm:$0xff]
    %s802 = scalar_lea.vmem [#allocation1], 8
    %v803 = vld [vmem:[%s802] sm:$0xff]
    %v804 = vmul.f32 %v803, %v792
    %805 = vadd.xlane.f32.xlu0 %v804
    %v806 = vpop.xlane.xlu0 %805
    %v807 = vsub.f32 %v801, %v806
    %v808 = vmul.f32 %v807, %v799
    %vm809 = vcmask 1047557
    %vm810 = vmand %vm790, %vm809
    %v811 = vsel %vm810, %v808, 0.0
    %v812 = vadd.f32 %v803, %v811
    %s813 = scalar_lea.vmem [#allocation1], 8
    %814 = vst [vmem:[%s813] sm:$0xff] %v812
    %s815 = scalar_lea.vmem [#allocation0], 16
    %v816 = vld [vmem:[%s815] sm:$0xff]
    %s817 = scalar_lea.vmem [#allocation1], 16
    %v818 = vld [vmem:[%s817] sm:$0xff]
    %v819 = vmul.f32 %v818, %v792
    %820 = vadd.xlane.f32.xlu0 %v819
    %v821 = vpop.xlane.xlu0 %820
    %v822 = vsub.f32 %v816, %v821
    %v823 = vmul.f32 %v822, %v799
    %v824 = vsel %vm790, %v823, 0.0
    %v825 = vadd.f32 %v818, %v824
    %s826 = scalar_lea.vmem [#allocation1], 16
    %827 = vst [vmem:[%s826] sm:$0xff] %v825
    %s828 = scalar_lea.vmem [#allocation0], 24
    %v829 = vld [vmem:[%s828] sm:$0xff]
    %s830 = scalar_lea.vmem [#allocation1], 24
    %v831 = vld [vmem:[%s830] sm:$0xff]
    %v832 = vmul.f32 %v831, %v792
    %833 = vadd.xlane.f32.xlu0 %v832
    %v834 = vpop.xlane.xlu0 %833
    %v835 = vsub.f32 %v829, %v834
    %v836 = vmul.f32 %v835, %v799
    %v837 = vsel %vm790, %v836, 0.0
    %v838 = vadd.f32 %v831, %v837
    %s839 = scalar_lea.vmem [#allocation1], 24
    %840 = vst [vmem:[%s839] sm:$0xff] %v838
    %vm841 = vcmask 121968
    %s842 = scalar_lea.vmem [#allocation1], 14
    %v843 = vld [vmem:[%s842] ss:$0 sm:$0xff]
    %s844 = scalar_lea.vmem [#allocation0], 14
    %v845 = vld [vmem:[%s844] ss:$0 sm:$0xff]
    %v846 = vmul.f32 %v843, %v843
    %847 = vadd.xlane.f32.xlu0 %v846
    %v848 = vpop.xlane.xlu0 %847
    %v849 = vsub.f32 %v845, %v848
    %v850 = vrsqrt.pop %v849
    %s851 = scalar_lea.vmem [#allocation0], 8
    %v852 = vld [vmem:[%s851] sm:$0xff]
    %s853 = scalar_lea.vmem [#allocation1], 8
    %v854 = vld [vmem:[%s853] sm:$0xff]
    %v855 = vmul.f32 %v854, %v843
    %856 = vadd.xlane.f32.xlu0 %v855
    %v857 = vpop.xlane.xlu0 %856
    %v858 = vsub.f32 %v852, %v857
    %v859 = vmul.f32 %v858, %v850
    %vm860 = vcmask 1047558
    %vm861 = vmand %vm841, %vm860
    %v862 = vsel %vm861, %v859, 0.0
    %v863 = vadd.f32 %v854, %v862
    %s864 = scalar_lea.vmem [#allocation1], 8
    %865 = vst [vmem:[%s864] sm:$0xff] %v863
    %s866 = scalar_lea.vmem [#allocation0], 16
    %v867 = vld [vmem:[%s866] sm:$0xff]
    %s868 = scalar_lea.vmem [#allocation1], 16
    %v869 = vld [vmem:[%s868] sm:$0xff]
    %v870 = vmul.f32 %v869, %v843
    %871 = vadd.xlane.f32.xlu0 %v870
    %v872 = vpop.xlane.xlu0 %871
    %v873 = vsub.f32 %v867, %v872
    %v874 = vmul.f32 %v873, %v850
    %v875 = vsel %vm841, %v874, 0.0
    %v876 = vadd.f32 %v869, %v875
    %s877 = scalar_lea.vmem [#allocation1], 16
    %878 = vst [vmem:[%s877] sm:$0xff] %v876
    %s879 = scalar_lea.vmem [#allocation0], 24
    %v880 = vld [vmem:[%s879] sm:$0xff]
    %s881 = scalar_lea.vmem [#allocation1], 24
    %v882 = vld [vmem:[%s881] sm:$0xff]
    %v883 = vmul.f32 %v882, %v843
    %884 = vadd.xlane.f32.xlu0 %v883
    %v885 = vpop.xlane.xlu0 %884
    %v886 = vsub.f32 %v880, %v885
    %v887 = vmul.f32 %v886, %v850
    %v888 = vsel %vm841, %v887, 0.0
    %v889 = vadd.f32 %v882, %v888
    %s890 = scalar_lea.vmem [#allocation1], 24
    %891 = vst [vmem:[%s890] sm:$0xff] %v889
    %vm892 = vcmask 130168
    %s893 = scalar_lea.vmem [#allocation1], 15
    %v894 = vld [vmem:[%s893] ss:$0 sm:$0xff]
    %s895 = scalar_lea.vmem [#allocation0], 15
    %v896 = vld [vmem:[%s895] ss:$0 sm:$0xff]
    %v897 = vmul.f32 %v894, %v894
    %898 = vadd.xlane.f32.xlu0 %v897
    %v899 = vpop.xlane.xlu0 %898
    %v900 = vsub.f32 %v896, %v899
    %v901 = vrsqrt.pop %v900
    %s902 = scalar_lea.vmem [#allocation0], 8
    %v903 = vld [vmem:[%s902] sm:$0xff]
    %s904 = scalar_lea.vmem [#allocation1], 8
    %v905 = vld [vmem:[%s904] sm:$0xff]
    %v906 = vmul.f32 %v905, %v894
    %907 = vadd.xlane.f32.xlu0 %v906
    %v908 = vpop.xlane.xlu0 %907
    %v909 = vsub.f32 %v903, %v908
    %v910 = vmul.f32 %v909, %v901
    %vm911 = vcmask 1047559
    %vm912 = vmand %vm892, %vm911
    %v913 = vsel %vm912, %v910, 0.0
    %v914 = vadd.f32 %v905, %v913
    %s915 = scalar_lea.vmem [#allocation1], 8
    %916 = vst [vmem:[%s915] sm:$0xff] %v914
    %s917 = scalar_lea.vmem [#allocation0], 16
    %v918 = vld [vmem:[%s917] sm:$0xff]
    %s919 = scalar_lea.vmem [#allocation1], 16
    %v920 = vld [vmem:[%s919] sm:$0xff]
    %v921 = vmul.f32 %v920, %v894
    %922 = vadd.xlane.f32.xlu0 %v921
    %v923 = vpop.xlane.xlu0 %922
    %v924 = vsub.f32 %v918, %v923
    %v925 = vmul.f32 %v924, %v901
    %v926 = vsel %vm892, %v925, 0.0
    %v927 = vadd.f32 %v920, %v926
    %s928 = scalar_lea.vmem [#allocation1], 16
    %929 = vst [vmem:[%s928] sm:$0xff] %v927
    %s930 = scalar_lea.vmem [#allocation0], 24
    %v931 = vld [vmem:[%s930] sm:$0xff]
    %s932 = scalar_lea.vmem [#allocation1], 24
    %v933 = vld [vmem:[%s932] sm:$0xff]
    %v934 = vmul.f32 %v933, %v894
    %935 = vadd.xlane.f32.xlu0 %v934
    %v936 = vpop.xlane.xlu0 %935
    %v937 = vsub.f32 %v931, %v936
    %v938 = vmul.f32 %v937, %v901
    %v939 = vsel %vm892, %v938, 0.0
    %v940 = vadd.f32 %v933, %v939
    %s941 = scalar_lea.vmem [#allocation1], 24
    %942 = vst [vmem:[%s941] sm:$0xff] %v940
    %vm943 = vcmask 138368
    %s944 = scalar_lea.vmem [#allocation1], 16
    %v945 = vld [vmem:[%s944] ss:$0 sm:$0xff]
    %s946 = scalar_lea.vmem [#allocation0], 16
    %v947 = vld [vmem:[%s946] ss:$0 sm:$0xff]
    %v948 = vmul.f32 %v945, %v945
    %949 = vadd.xlane.f32.xlu0 %v948
    %v950 = vpop.xlane.xlu0 %949
    %v951 = vsub.f32 %v947, %v950
    %v952 = vrsqrt.pop %v951
    %s953 = scalar_lea.vmem [#allocation0], 16
    %v954 = vld [vmem:[%s953] sm:$0xff]
    %s955 = scalar_lea.vmem [#allocation1], 16
    %v956 = vld [vmem:[%s955] sm:$0xff]
    %v957 = vmul.f32 %v956, %v945
    %958 = vadd.xlane.f32.xlu0 %v957
    %v959 = vpop.xlane.xlu0 %958
    %v960 = vsub.f32 %v954, %v959
    %v961 = vmul.f32 %v960, %v952
    %v962 = vsel %vm943, %v961, 0.0
    %v963 = vadd.f32 %v956, %v962
    %s964 = scalar_lea.vmem [#allocation1], 16
    %965 = vst [vmem:[%s964] sm:$0xff] %v963
    %s966 = scalar_lea.vmem [#allocation0], 24
    %v967 = vld [vmem:[%s966] sm:$0xff]
    %s968 = scalar_lea.vmem [#allocation1], 24
    %v969 = vld [vmem:[%s968] sm:$0xff]
    %v970 = vmul.f32 %v969, %v945
    %971 = vadd.xlane.f32.xlu0 %v970
    %v972 = vpop.xlane.xlu0 %971
    %v973 = vsub.f32 %v967, %v972
    %v974 = vmul.f32 %v973, %v952
    %v975 = vsel %vm943, %v974, 0.0
    %v976 = vadd.f32 %v969, %v975
    %s977 = scalar_lea.vmem [#allocation1], 24
    %978 = vst [vmem:[%s977] sm:$0xff] %v976
    %vm979 = vcmask 146568
    %s980 = scalar_lea.vmem [#allocation1], 17
    %v981 = vld [vmem:[%s980] ss:$0 sm:$0xff]
    %s982 = scalar_lea.vmem [#allocation0], 17
    %v983 = vld [vmem:[%s982] ss:$0 sm:$0xff]
    %v984 = vmul.f32 %v981, %v981
    %985 = vadd.xlane.f32.xlu0 %v984
    %v986 = vpop.xlane.xlu0 %985
    %v987 = vsub.f32 %v983, %v986
    %v988 = vrsqrt.pop %v987
    %s989 = scalar_lea.vmem [#allocation0], 16
    %v990 = vld [vmem:[%s989] sm:$0xff]
    %s991 = scalar_lea.vmem [#allocation1], 16
    %v992 = vld [vmem:[%s991] sm:$0xff]
    %v993 = vmul.f32 %v992, %v981
    %994 = vadd.xlane.f32.xlu0 %v993
    %v995 = vpop.xlane.xlu0 %994
    %v996 = vsub.f32 %v990, %v995
    %v997 = vmul.f32 %v996, %v988
    %vm998 = vcmask 1047553
    %vm999 = vmand %vm979, %vm998
    %v1000 = vsel %vm999, %v997, 0.0
    %v1001 = vadd.f32 %v992, %v1000
    %s1002 = scalar_lea.vmem [#allocation1], 16
    %1003 = vst [vmem:[%s1002] sm:$0xff] %v1001
    %s1004 = scalar_lea.vmem [#allocation0], 24
    %v1005 = vld [vmem:[%s1004] sm:$0xff]
    %s1006 = scalar_lea.vmem [#allocation1], 24
    %v1007 = vld [vmem:[%s1006] sm:$0xff]
    %v1008 = vmul.f32 %v1007, %v981
    %1009 = vadd.xlane.f32.xlu0 %v1008
    %v1010 = vpop.xlane.xlu0 %1009
    %v1011 = vsub.f32 %v1005, %v1010
    %v1012 = vmul.f32 %v1011, %v988
    %v1013 = vsel %vm979, %v1012, 0.0
    %v1014 = vadd.f32 %v1007, %v1013
    %s1015 = scalar_lea.vmem [#allocation1], 24
    %1016 = vst [vmem:[%s1015] sm:$0xff] %v1014
    %vm1017 = vcmask 154768
    %s1018 = scalar_lea.vmem [#allocation1], 18
    %v1019 = vld [vmem:[%s1018] ss:$0 sm:$0xff]
    %s1020 = scalar_lea.vmem [#allocation0], 18
    %v1021 = vld [vmem:[%s1020] ss:$0 sm:$0xff]
    %v1022 = vmul.f32 %v1019, %v1019
    %1023 = vadd.xlane.f32.xlu0 %v1022
    %v1024 = vpop.xlane.xlu0 %1023
    %v1025 = vsub.f32 %v1021, %v1024
    %v1026 = vrsqrt.pop %v1025
    %s1027 = scalar_lea.vmem [#allocation0], 16
    %v1028 = vld [vmem:[%s1027] sm:$0xff]
    %s1029 = scalar_lea.vmem [#allocation1], 16
    %v1030 = vld [vmem:[%s1029] sm:$0xff]
    %v1031 = vmul.f32 %v1030, %v1019
    %1032 = vadd.xlane.f32.xlu0 %v1031
    %v1033 = vpop.xlane.xlu0 %1032
    %v1034 = vsub.f32 %v1028, %v1033
    %v1035 = vmul.f32 %v1034, %v1026
    %vm1036 = vcmask 1047554
    %vm1037 = vmand %vm1017, %vm1036
    %v1038 = vsel %vm1037, %v1035, 0.0
    %v1039 = vadd.f32 %v1030, %v1038
    %s1040 = scalar_lea.vmem [#allocation1], 16
    %1041 = vst [vmem:[%s1040] sm:$0xff] %v1039
    %s1042 = scalar_lea.vmem [#allocation0], 24
    %v1043 = vld [vmem:[%s1042] sm:$0xff]
    %s1044 = scalar_lea.vmem [#allocation1], 24
    %v1045 = vld [vmem:[%s1044] sm:$0xff]
    %v1046 = vmul.f32 %v1045, %v1019
    %1047 = vadd.xlane.f32.xlu0 %v1046
    %v1048 = vpop.xlane.xlu0 %1047
    %v1049 = vsub.f32 %v1043, %v1048
    %v1050 = vmul.f32 %v1049, %v1026
    %v1051 = vsel %vm1017, %v1050, 0.0
    %v1052 = vadd.f32 %v1045, %v1051
    %s1053 = scalar_lea.vmem [#allocation1], 24
    %1054 = vst [vmem:[%s1053] sm:$0xff] %v1052
    %vm1055 = vcmask 162968
    %s1056 = scalar_lea.vmem [#allocation1], 19
    %v1057 = vld [vmem:[%s1056] ss:$0 sm:$0xff]
    %s1058 = scalar_lea.vmem [#allocation0], 19
    %v1059 = vld [vmem:[%s1058] ss:$0 sm:$0xff]
    %v1060 = vmul.f32 %v1057, %v1057
    %1061 = vadd.xlane.f32.xlu0 %v1060
    %v1062 = vpop.xlane.xlu0 %1061
    %v1063 = vsub.f32 %v1059, %v1062
    %v1064 = vrsqrt.pop %v1063
    %s1065 = scalar_lea.vmem [#allocation0], 16
    %v1066 = vld [vmem:[%s1065] sm:$0xff]
    %s1067 = scalar_lea.vmem [#allocation1], 16
    %v1068 = vld [vmem:[%s1067] sm:$0xff]
    %v1069 = vmul.f32 %v1068, %v1057
    %1070 = vadd.xlane.f32.xlu0 %v1069
    %v1071 = vpop.xlane.xlu0 %1070
    %v1072 = vsub.f32 %v1066, %v1071
    %v1073 = vmul.f32 %v1072, %v1064
    %vm1074 = vcmask 1047555
    %vm1075 = vmand %vm1055, %vm1074
    %v1076 = vsel %vm1075, %v1073, 0.0
    %v1077 = vadd.f32 %v1068, %v1076
    %s1078 = scalar_lea.vmem [#allocation1], 16
    %1079 = vst [vmem:[%s1078] sm:$0xff] %v1077
    %s1080 = scalar_lea.vmem [#allocation0], 24
    %v1081 = vld [vmem:[%s1080] sm:$0xff]
    %s1082 = scalar_lea.vmem [#allocation1], 24
    %v1083 = vld [vmem:[%s1082] sm:$0xff]
    %v1084 = vmul.f32 %v1083, %v1057
    %1085 = vadd.xlane.f32.xlu0 %v1084
    %v1086 = vpop.xlane.xlu0 %1085
    %v1087 = vsub.f32 %v1081, %v1086
    %v1088 = vmul.f32 %v1087, %v1064
    %v1089 = vsel %vm1055, %v1088, 0.0
    %v1090 = vadd.f32 %v1083, %v1089
    %s1091 = scalar_lea.vmem [#allocation1], 24
    %1092 = vst [vmem:[%s1091] sm:$0xff] %v1090
    %vm1093 = vcmask 171168
    %s1094 = scalar_lea.vmem [#allocation1], 20
    %v1095 = vld [vmem:[%s1094] ss:$0 sm:$0xff]
    %s1096 = scalar_lea.vmem [#allocation0], 20
    %v1097 = vld [vmem:[%s1096] ss:$0 sm:$0xff]
    %v1098 = vmul.f32 %v1095, %v1095
    %1099 = vadd.xlane.f32.xlu0 %v1098
    %v1100 = vpop.xlane.xlu0 %1099
    %v1101 = vsub.f32 %v1097, %v1100
    %v1102 = vrsqrt.pop %v1101
    %s1103 = scalar_lea.vmem [#allocation0], 16
    %v1104 = vld [vmem:[%s1103] sm:$0xff]
    %s1105 = scalar_lea.vmem [#allocation1], 16
    %v1106 = vld [vmem:[%s1105] sm:$0xff]
    %v1107 = vmul.f32 %v1106, %v1095
    %1108 = vadd.xlane.f32.xlu0 %v1107
    %v1109 = vpop.xlane.xlu0 %1108
    %v1110 = vsub.f32 %v1104, %v1109
    %v1111 = vmul.f32 %v1110, %v1102
    %vm1112 = vcmask 1047556
    %vm1113 = vmand %vm1093, %vm1112
    %v1114 = vsel %vm1113, %v1111, 0.0
    %v1115 = vadd.f32 %v1106, %v1114
    %s1116 = scalar_lea.vmem [#allocation1], 16
    %1117 = vst [vmem:[%s1116] sm:$0xff] %v1115
    %s1118 = scalar_lea.vmem [#allocation0], 24
    %v1119 = vld [vmem:[%s1118] sm:$0xff]
    %s1120 = scalar_lea.vmem [#allocation1], 24
    %v1121 = vld [vmem:[%s1120] sm:$0xff]
    %v1122 = vmul.f32 %v1121, %v1095
    %1123 = vadd.xlane.f32.xlu0 %v1122
    %v1124 = vpop.xlane.xlu0 %1123
    %v1125 = vsub.f32 %v1119, %v1124
    %v1126 = vmul.f32 %v1125, %v1102
    %v1127 = vsel %vm1093, %v1126, 0.0
    %v1128 = vadd.f32 %v1121, %v1127
    %s1129 = scalar_lea.vmem [#allocation1], 24
    %1130 = vst [vmem:[%s1129] sm:$0xff] %v1128
    %vm1131 = vcmask 179368
    %s1132 = scalar_lea.vmem [#allocation1], 21
    %v1133 = vld [vmem:[%s1132] ss:$0 sm:$0xff]
    %s1134 = scalar_lea.vmem [#allocation0], 21
    %v1135 = vld [vmem:[%s1134] ss:$0 sm:$0xff]
    %v1136 = vmul.f32 %v1133, %v1133
    %1137 = vadd.xlane.f32.xlu0 %v1136
    %v1138 = vpop.xlane.xlu0 %1137
    %v1139 = vsub.f32 %v1135, %v1138
    %v1140 = vrsqrt.pop %v1139
    %s1141 = scalar_lea.vmem [#allocation0], 16
    %v1142 = vld [vmem:[%s1141] sm:$0xff]
    %s1143 = scalar_lea.vmem [#allocation1], 16
    %v1144 = vld [vmem:[%s1143] sm:$0xff]
    %v1145 = vmul.f32 %v1144, %v1133
    %1146 = vadd.xlane.f32.xlu0 %v1145
    %v1147 = vpop.xlane.xlu0 %1146
    %v1148 = vsub.f32 %v1142, %v1147
    %v1149 = vmul.f32 %v1148, %v1140
    %vm1150 = vcmask 1047557
    %vm1151 = vmand %vm1131, %vm1150
    %v1152 = vsel %vm1151, %v1149, 0.0
    %v1153 = vadd.f32 %v1144, %v1152
    %s1154 = scalar_lea.vmem [#allocation1], 16
    %1155 = vst [vmem:[%s1154] sm:$0xff] %v1153
    %s1156 = scalar_lea.vmem [#allocation0], 24
    %v1157 = vld [vmem:[%s1156] sm:$0xff]
    %s1158 = scalar_lea.vmem [#allocation1], 24
    %v1159 = vld [vmem:[%s1158] sm:$0xff]
    %v1160 = vmul.f32 %v1159, %v1133
    %1161 = vadd.xlane.f32.xlu0 %v1160
    %v1162 = vpop.xlane.xlu0 %1161
    %v1163 = vsub.f32 %v1157, %v1162
    %v1164 = vmul.f32 %v1163, %v1140
    %v1165 = vsel %vm1131, %v1164, 0.0
    %v1166 = vadd.f32 %v1159, %v1165
    %s1167 = scalar_lea.vmem [#allocation1], 24
    %1168 = vst [vmem:[%s1167] sm:$0xff] %v1166
    %vm1169 = vcmask 187568
    %s1170 = scalar_lea.vmem [#allocation1], 22
    %v1171 = vld [vmem:[%s1170] ss:$0 sm:$0xff]
    %s1172 = scalar_lea.vmem [#allocation0], 22
    %v1173 = vld [vmem:[%s1172] ss:$0 sm:$0xff]
    %v1174 = vmul.f32 %v1171, %v1171
    %1175 = vadd.xlane.f32.xlu0 %v1174
    %v1176 = vpop.xlane.xlu0 %1175
    %v1177 = vsub.f32 %v1173, %v1176
    %v1178 = vrsqrt.pop %v1177
    %s1179 = scalar_lea.vmem [#allocation0], 16
    %v1180 = vld [vmem:[%s1179] sm:$0xff]
    %s1181 = scalar_lea.vmem [#allocation1], 16
    %v1182 = vld [vmem:[%s1181] sm:$0xff]
    %v1183 = vmul.f32 %v1182, %v1171
    %1184 = vadd.xlane.f32.xlu0 %v1183
    %v1185 = vpop.xlane.xlu0 %1184
    %v1186 = vsub.f32 %v1180, %v1185
    %v1187 = vmul.f32 %v1186, %v1178
    %vm1188 = vcmask 1047558
    %vm1189 = vmand %vm1169, %vm1188
    %v1190 = vsel %vm1189, %v1187, 0.0
    %v1191 = vadd.f32 %v1182, %v1190
    %s1192 = scalar_lea.vmem [#allocation1], 16
    %1193 = vst [vmem:[%s1192] sm:$0xff] %v1191
    %s1194 = scalar_lea.vmem [#allocation0], 24
    %v1195 = vld [vmem:[%s1194] sm:$0xff]
    %s1196 = scalar_lea.vmem [#allocation1], 24
    %v1197 = vld [vmem:[%s1196] sm:$0xff]
    %v1198 = vmul.f32 %v1197, %v1171
    %1199 = vadd.xlane.f32.xlu0 %v1198
    %v1200 = vpop.xlane.xlu0 %1199
    %v1201 = vsub.f32 %v1195, %v1200
    %v1202 = vmul.f32 %v1201, %v1178
    %v1203 = vsel %vm1169, %v1202, 0.0
    %v1204 = vadd.f32 %v1197, %v1203
    %s1205 = scalar_lea.vmem [#allocation1], 24
    %1206 = vst [vmem:[%s1205] sm:$0xff] %v1204
    %vm1207 = vcmask 195768
    %s1208 = scalar_lea.vmem [#allocation1], 23
    %v1209 = vld [vmem:[%s1208] ss:$0 sm:$0xff]
    %s1210 = scalar_lea.vmem [#allocation0], 23
    %v1211 = vld [vmem:[%s1210] ss:$0 sm:$0xff]
    %v1212 = vmul.f32 %v1209, %v1209
    %1213 = vadd.xlane.f32.xlu0 %v1212
    %v1214 = vpop.xlane.xlu0 %1213
    %v1215 = vsub.f32 %v1211, %v1214
    %v1216 = vrsqrt.pop %v1215
    %s1217 = scalar_lea.vmem [#allocation0], 16
    %v1218 = vld [vmem:[%s1217] sm:$0xff]
    %s1219 = scalar_lea.vmem [#allocation1], 16
    %v1220 = vld [vmem:[%s1219] sm:$0xff]
    %v1221 = vmul.f32 %v1220, %v1209
    %1222 = vadd.xlane.f32.xlu0 %v1221
    %v1223 = vpop.xlane.xlu0 %1222
    %v1224 = vsub.f32 %v1218, %v1223
    %v1225 = vmul.f32 %v1224, %v1216
    %vm1226 = vcmask 1047559
    %vm1227 = vmand %vm1207, %vm1226
    %v1228 = vsel %vm1227, %v1225, 0.0
    %v1229 = vadd.f32 %v1220, %v1228
    %s1230 = scalar_lea.vmem [#allocation1], 16
    %1231 = vst [vmem:[%s1230] sm:$0xff] %v1229
    %s1232 = scalar_lea.vmem [#allocation0], 24
    %v1233 = vld [vmem:[%s1232] sm:$0xff]
    %s1234 = scalar_lea.vmem [#allocation1], 24
    %v1235 = vld [vmem:[%s1234] sm:$0xff]
    %v1236 = vmul.f32 %v1235, %v1209
    %1237 = vadd.xlane.f32.xlu0 %v1236
    %v1238 = vpop.xlane.xlu0 %1237
    %v1239 = vsub.f32 %v1233, %v1238
    %v1240 = vmul.f32 %v1239, %v1216
    %v1241 = vsel %vm1207, %v1240, 0.0
    %v1242 = vadd.f32 %v1235, %v1241
    %s1243 = scalar_lea.vmem [#allocation1], 24
    %1244 = vst [vmem:[%s1243] sm:$0xff] %v1242
    %vm1245 = vcmask 203968
    %s1246 = scalar_lea.vmem [#allocation1], 24
    %v1247 = vld [vmem:[%s1246] ss:$0 sm:$0xff]
    %s1248 = scalar_lea.vmem [#allocation0], 24
    %v1249 = vld [vmem:[%s1248] ss:$0 sm:$0xff]
    %v1250 = vmul.f32 %v1247, %v1247
    %1251 = vadd.xlane.f32.xlu0 %v1250
    %v1252 = vpop.xlane.xlu0 %1251
    %v1253 = vsub.f32 %v1249, %v1252
    %v1254 = vrsqrt.pop %v1253
    %s1255 = scalar_lea.vmem [#allocation0], 24
    %v1256 = vld [vmem:[%s1255] sm:$0xff]
    %s1257 = scalar_lea.vmem [#allocation1], 24
    %v1258 = vld [vmem:[%s1257] sm:$0xff]
    %v1259 = vmul.f32 %v1258, %v1247
    %1260 = vadd.xlane.f32.xlu0 %v1259
    %v1261 = vpop.xlane.xlu0 %1260
    %v1262 = vsub.f32 %v1256, %v1261
    %v1263 = vmul.f32 %v1262, %v1254
    %v1264 = vsel %vm1245, %v1263, 0.0
    %v1265 = vadd.f32 %v1258, %v1264
    %s1266 = scalar_lea.vmem [#allocation1], 24
    %1267 = vst [vmem:[%s1266] sm:$0xff] %v1265
    %vm1268 = vcmask 212168
    %s1269 = scalar_lea.vmem [#allocation1], 25
    %v1270 = vld [vmem:[%s1269] ss:$0 sm:$0xff]
    %s1271 = scalar_lea.vmem [#allocation0], 25
    %v1272 = vld [vmem:[%s1271] ss:$0 sm:$0xff]
    %v1273 = vmul.f32 %v1270, %v1270
    %1274 = vadd.xlane.f32.xlu0 %v1273
    %v1275 = vpop.xlane.xlu0 %1274
    %v1276 = vsub.f32 %v1272, %v1275
    %v1277 = vrsqrt.pop %v1276
    %s1278 = scalar_lea.vmem [#allocation0], 24
    %v1279 = vld [vmem:[%s1278] sm:$0xff]
    %s1280 = scalar_lea.vmem [#allocation1], 24
    %v1281 = vld [vmem:[%s1280] sm:$0xff]
    %v1282 = vmul.f32 %v1281, %v1270
    %1283 = vadd.xlane.f32.xlu0 %v1282
    %v1284 = vpop.xlane.xlu0 %1283
    %v1285 = vsub.f32 %v1279, %v1284
    %v1286 = vmul.f32 %v1285, %v1277
    %vm1287 = vcmask 1047553
    %vm1288 = vmand %vm1268, %vm1287
    %v1289 = vsel %vm1288, %v1286, 0.0
    %v1290 = vadd.f32 %v1281, %v1289
    %s1291 = scalar_lea.vmem [#allocation1], 24
    %1292 = vst [vmem:[%s1291] sm:$0xff] %v1290
    %vm1293 = vcmask 220368
    %s1294 = scalar_lea.vmem [#allocation1], 26
    %v1295 = vld [vmem:[%s1294] ss:$0 sm:$0xff]
    %s1296 = scalar_lea.vmem [#allocation0], 26
    %v1297 = vld [vmem:[%s1296] ss:$0 sm:$0xff]
    %v1298 = vmul.f32 %v1295, %v1295
    %1299 = vadd.xlane.f32.xlu0 %v1298
    %v1300 = vpop.xlane.xlu0 %1299
    %v1301 = vsub.f32 %v1297, %v1300
    %v1302 = vrsqrt.pop %v1301
    %s1303 = scalar_lea.vmem [#allocation0], 24
    %v1304 = vld [vmem:[%s1303] sm:$0xff]
    %s1305 = scalar_lea.vmem [#allocation1], 24
    %v1306 = vld [vmem:[%s1305] sm:$0xff]
    %v1307 = vmul.f32 %v1306, %v1295
    %1308 = vadd.xlane.f32.xlu0 %v1307
    %v1309 = vpop.xlane.xlu0 %1308
    %v1310 = vsub.f32 %v1304, %v1309
    %v1311 = vmul.f32 %v1310, %v1302
    %vm1312 = vcmask 1047554
    %vm1313 = vmand %vm1293, %vm1312
    %v1314 = vsel %vm1313, %v1311, 0.0
    %v1315 = vadd.f32 %v1306, %v1314
    %s1316 = scalar_lea.vmem [#allocation1], 24
    %1317 = vst [vmem:[%s1316] sm:$0xff] %v1315
    %vm1318 = vcmask 228568
    %s1319 = scalar_lea.vmem [#allocation1], 27
    %v1320 = vld [vmem:[%s1319] ss:$0 sm:$0xff]
    %s1321 = scalar_lea.vmem [#allocation0], 27
    %v1322 = vld [vmem:[%s1321] ss:$0 sm:$0xff]
    %v1323 = vmul.f32 %v1320, %v1320
    %1324 = vadd.xlane.f32.xlu0 %v1323
    %v1325 = vpop.xlane.xlu0 %1324
    %v1326 = vsub.f32 %v1322, %v1325
    %v1327 = vrsqrt.pop %v1326
    %s1328 = scalar_lea.vmem [#allocation0], 24
    %v1329 = vld [vmem:[%s1328] sm:$0xff]
    %s1330 = scalar_lea.vmem [#allocation1], 24
    %v1331 = vld [vmem:[%s1330] sm:$0xff]
    %v1332 = vmul.f32 %v1331, %v1320
    %1333 = vadd.xlane.f32.xlu0 %v1332
    %v1334 = vpop.xlane.xlu0 %1333
    %v1335 = vsub.f32 %v1329, %v1334
    %v1336 = vmul.f32 %v1335, %v1327
    %vm1337 = vcmask 1047555
    %vm1338 = vmand %vm1318, %vm1337
    %v1339 = vsel %vm1338, %v1336, 0.0
    %v1340 = vadd.f32 %v1331, %v1339
    %s1341 = scalar_lea.vmem [#allocation1], 24
    %1342 = vst [vmem:[%s1341] sm:$0xff] %v1340
    %vm1343 = vcmask 236768
    %s1344 = scalar_lea.vmem [#allocation1], 28
    %v1345 = vld [vmem:[%s1344] ss:$0 sm:$0xff]
    %s1346 = scalar_lea.vmem [#allocation0], 28
    %v1347 = vld [vmem:[%s1346] ss:$0 sm:$0xff]
    %v1348 = vmul.f32 %v1345, %v1345
    %1349 = vadd.xlane.f32.xlu0 %v1348
    %v1350 = vpop.xlane.xlu0 %1349
    %v1351 = vsub.f32 %v1347, %v1350
    %v1352 = vrsqrt.pop %v1351
    %s1353 = scalar_lea.vmem [#allocation0], 24
    %v1354 = vld [vmem:[%s1353] sm:$0xff]
    %s1355 = scalar_lea.vmem [#allocation1], 24
    %v1356 = vld [vmem:[%s1355] sm:$0xff]
    %v1357 = vmul.f32 %v1356, %v1345
    %1358 = vadd.xlane.f32.xlu0 %v1357
    %v1359 = vpop.xlane.xlu0 %1358
    %v1360 = vsub.f32 %v1354, %v1359
    %v1361 = vmul.f32 %v1360, %v1352
    %vm1362 = vcmask 1047556
    %vm1363 = vmand %vm1343, %vm1362
    %v1364 = vsel %vm1363, %v1361, 0.0
    %v1365 = vadd.f32 %v1356, %v1364
    %s1366 = scalar_lea.vmem [#allocation1], 24
    %1367 = vst [vmem:[%s1366] sm:$0xff] %v1365
    %vm1368 = vcmask 244968
    %s1369 = scalar_lea.vmem [#allocation1], 29
    %v1370 = vld [vmem:[%s1369] ss:$0 sm:$0xff]
    %s1371 = scalar_lea.vmem [#allocation0], 29
    %v1372 = vld [vmem:[%s1371] ss:$0 sm:$0xff]
    %v1373 = vmul.f32 %v1370, %v1370
    %1374 = vadd.xlane.f32.xlu0 %v1373
    %v1375 = vpop.xlane.xlu0 %1374
    %v1376 = vsub.f32 %v1372, %v1375
    %v1377 = vrsqrt.pop %v1376
    %s1378 = scalar_lea.vmem [#allocation0], 24
    %v1379 = vld [vmem:[%s1378] sm:$0xff]
    %s1380 = scalar_lea.vmem [#allocation1], 24
    %v1381 = vld [vmem:[%s1380] sm:$0xff]
    %v1382 = vmul.f32 %v1381, %v1370
    %1383 = vadd.xlane.f32.xlu0 %v1382
    %v1384 = vpop.xlane.xlu0 %1383
    %v1385 = vsub.f32 %v1379, %v1384
    %v1386 = vmul.f32 %v1385, %v1377
    %vm1387 = vcmask 1047557
    %vm1388 = vmand %vm1368, %vm1387
    %v1389 = vsel %vm1388, %v1386, 0.0
    %v1390 = vadd.f32 %v1381, %v1389
    %s1391 = scalar_lea.vmem [#allocation1], 24
    %1392 = vst [vmem:[%s1391] sm:$0xff] %v1390
    %vm1393 = vcmask 253168
    %s1394 = scalar_lea.vmem [#allocation1], 30
    %v1395 = vld [vmem:[%s1394] ss:$0 sm:$0xff]
    %s1396 = scalar_lea.vmem [#allocation0], 30
    %v1397 = vld [vmem:[%s1396] ss:$0 sm:$0xff]
    %v1398 = vmul.f32 %v1395, %v1395
    %1399 = vadd.xlane.f32.xlu0 %v1398
    %v1400 = vpop.xlane.xlu0 %1399
    %v1401 = vsub.f32 %v1397, %v1400
    %v1402 = vrsqrt.pop %v1401
    %s1403 = scalar_lea.vmem [#allocation0], 24
    %v1404 = vld [vmem:[%s1403] sm:$0xff]
    %s1405 = scalar_lea.vmem [#allocation1], 24
    %v1406 = vld [vmem:[%s1405] sm:$0xff]
    %v1407 = vmul.f32 %v1406, %v1395
    %1408 = vadd.xlane.f32.xlu0 %v1407
    %v1409 = vpop.xlane.xlu0 %1408
    %v1410 = vsub.f32 %v1404, %v1409
    %v1411 = vmul.f32 %v1410, %v1402
    %vm1412 = vcmask 1047558
    %vm1413 = vmand %vm1393, %vm1412
    %v1414 = vsel %vm1413, %v1411, 0.0
    %v1415 = vadd.f32 %v1406, %v1414
    %s1416 = scalar_lea.vmem [#allocation1], 24
    %1417 = vst [vmem:[%s1416] sm:$0xff] %v1415
    %vm1418 = vcmask 261368
    %s1419 = scalar_lea.vmem [#allocation1], 31
    %v1420 = vld [vmem:[%s1419] ss:$0 sm:$0xff]
    %s1421 = scalar_lea.vmem [#allocation0], 31
    %v1422 = vld [vmem:[%s1421] ss:$0 sm:$0xff]
    %v1423 = vmul.f32 %v1420, %v1420
    %1424 = vadd.xlane.f32.xlu0 %v1423
    %v1425 = vpop.xlane.xlu0 %1424
    %v1426 = vsub.f32 %v1422, %v1425
    %v1427 = vrsqrt.pop %v1426
    %s1428 = scalar_lea.vmem [#allocation0], 24
    %v1429 = vld [vmem:[%s1428] sm:$0xff]
    %s1430 = scalar_lea.vmem [#allocation1], 24
    %v1431 = vld [vmem:[%s1430] sm:$0xff]
    %v1432 = vmul.f32 %v1431, %v1420
    %1433 = vadd.xlane.f32.xlu0 %v1432
    %v1434 = vpop.xlane.xlu0 %1433
    %v1435 = vsub.f32 %v1429, %v1434
    %v1436 = vmul.f32 %v1435, %v1427
    %vm1437 = vcmask 1047559
    %vm1438 = vmand %vm1418, %vm1437
    %v1439 = vsel %vm1438, %v1436, 0.0
    %v1440 = vadd.f32 %v1431, %v1439
    %s1441 = scalar_lea.vmem [#allocation1], 24
    %1442 = vst [vmem:[%s1441] sm:$0xff] %v1440
    // Predicated region
    $region36: #{custom-call.66} parent=1 // pred_check
      _
    $region37: #{custom-call.66} parent=1 // pred_check_branch
      %1444 = sbr.rel (0) target = $region39
    $region38: #{custom-call.66} parent=1 // pred_region
      // Predicated region
      $region40: #{custom-call.66} parent=38 // pred_check
        _
      $region41: #{custom-call.66} parent=38 // pred_check_branch
        %1446 = sbr.rel (0) target = $region43
      $region42: #{custom-call.66} parent=38 // pred_region
        // Predicated region
        $region55: #{custom-call.66} parent=42 // pred_check
          _
        $region56: #{custom-call.66} parent=42 // pred_check_branch
          %1467 = sbr.rel (0) target = $region58
        $region57: #{custom-call.66} parent=42 // pred_region
          loop: start=0, step=1, limit=1
          $region59: #{custom-call.66} parent=57 // loop_pre_header
            _
          $region60: #{custom-call.66} parent=57 // loop_header
            %s1469 = sphi 0, %s1473
            %p1470 = scmp.ge.s32.totalorder %s1469, 1
            %s1474 = sphi [#allocation1], [#allocation1]
            %s1475 = sphi %s1, %s1
          $region61: #{custom-call.66} parent=57 // loop_header_branch
            %1472 = sbr.rel (%p1470) target = $region65
          $region62: #{custom-call.66} parent=57 // loop_body
            %v1476 = vld [vmem:[%s1474] sm:$0xff]
            %1477 = vst [vmem:[%s1475] sm:$0xff] %v1476
            %v1478 = vld [vmem:[%s1474 + $0x8] sm:$0xff]
            %1479 = vst [vmem:[%s1475 + $0x8] sm:$0xff] %v1478
            %v1480 = vld [vmem:[%s1474 + $0x10] sm:$0xff]
            %1481 = vst [vmem:[%s1475 + $0x10] sm:$0xff] %v1480
            %v1482 = vld [vmem:[%s1474 + $0x18] sm:$0xff]
            %1483 = vst [vmem:[%s1475 + $0x18] sm:$0xff] %v1482
          $region63: #{custom-call.66} parent=57 // loop_footer
            %s1473 = sadd.s32 1, %s1469
          $region64: #{custom-call.66} parent=57 // loop_footer_branch
            %1468 = sbr.rel target = $region60
          $region65: #{custom-call.66} parent=57 // loop_exit
            _
        $region58: #{custom-call.66} parent=42 // pred_fallthru
          _
        // Predicated region
        $region66: #{custom-call.66} parent=42 // pred_check
          _
        $region67: #{custom-call.66} parent=42 // pred_check_branch
          %1485 = sbr.rel target = $region69
        $region68: #{custom-call.66} parent=42 // pred_region
          _
        $region69: #{custom-call.66} parent=42 // pred_fallthru
          _
      $region43: #{custom-call.66} parent=38 // pred_fallthru
        _
      // Predicated region
      $region44: #{custom-call.66} parent=38 // pred_check
        _
      $region45: #{custom-call.66} parent=38 // pred_check_branch
        %1448 = sbr.rel target = $region47
      $region46: #{custom-call.66} parent=38 // pred_region
        loop: start=0, step=1, limit=1
        $region48: #{custom-call.66} parent=46 // loop_pre_header
          _
        $region49: #{custom-call.66} parent=46 // loop_header
          %s1451 = sphi 0, %s1455
          %p1452 = scmp.ge.s32.totalorder %s1451, 1
          %s1456 = sphi [#allocation1], [#allocation1]
          %s1457 = sphi %s1, %s1
        $region50: #{custom-call.66} parent=46 // loop_header_branch
          %1454 = sbr.rel (%p1452) target = $region54
        $region51: #{custom-call.66} parent=46 // loop_body
          %v1458 = vld [vmem:[%s1456] sm:$0xff]
          %1459 = vst [vmem:[%s1457] sm:$0xff] %v1458
          %v1460 = vld [vmem:[%s1456 + $0x8] sm:$0xff]
          %1461 = vst [vmem:[%s1457 + $0x8] sm:$0xff] %v1460
          %v1462 = vld [vmem:[%s1456 + $0x10] sm:$0xff]
          %1463 = vst [vmem:[%s1457 + $0x10] sm:$0xff] %v1462
          %v1464 = vld [vmem:[%s1456 + $0x18] sm:$0xff]
          %1465 = vst [vmem:[%s1457 + $0x18] sm:$0xff] %v1464
        $region52: #{custom-call.66} parent=46 // loop_footer
          %s1455 = sadd.s32 1, %s1451
        $region53: #{custom-call.66} parent=46 // loop_footer_branch
          %1450 = sbr.rel target = $region49
        $region54: #{custom-call.66} parent=46 // loop_exit
          _
      $region47: #{custom-call.66} parent=38 // pred_fallthru
        _
    $region39: #{custom-call.66} parent=1 // pred_fallthru
      _
    %1486 = vnop

// kernel: custom-call.67
$region0: #{custom-call.67}
  %s0 = inlined_call_operand.vmem [shape: f32[1,32,32], index: 0, kind: input, shape index: {}]
  %s1 = inlined_call_operand.vmem [shape: f32[1,32,32], index: 1, kind: output, shape index: {}]
  $region1: #{custom-call.67} parent=0
    #allocation0 [shape = 'u8[16384]{0}', space=vmem, size = 0x4000, scoped, tag = 'operand span for operand 0']
    #allocation1 [shape = 'u8[16384]{0}', space=vmem, size = 0x4000, scoped, tag = 'operand span for operand 1']
    #allocation2 [shape = 'f32[32,32]{1,0}', space=vmem, size = 0x4000, scoped, tag = 'rescaled input a']
    // Predicated region
    $region2: #{custom-call.67} parent=1 // pred_check
      _
    $region3: #{custom-call.67} parent=1 // pred_check_branch
      %3 = sbr.rel (0) target = $region5
    $region4: #{custom-call.67} parent=1 // pred_region
      // Predicated region
      $region6: #{custom-call.67} parent=4 // pred_check
        _
      $region7: #{custom-call.67} parent=4 // pred_check_branch
        %5 = sbr.rel (0) target = $region9
      $region8: #{custom-call.67} parent=4 // pred_region
        // Predicated region
        $region21: #{custom-call.67} parent=8 // pred_check
          _
        $region22: #{custom-call.67} parent=8 // pred_check_branch
          %26 = sbr.rel (0) target = $region24
        $region23: #{custom-call.67} parent=8 // pred_region
          loop: start=0, step=1, limit=1
          $region25: #{custom-call.67} parent=23 // loop_pre_header
            _
          $region26: #{custom-call.67} parent=23 // loop_header
            %s28 = sphi 0, %s32
            %p29 = scmp.ge.s32.totalorder %s28, 1
            %s33 = sphi %s0, %s0
            %s34 = sphi [#allocation0], [#allocation0]
          $region27: #{custom-call.67} parent=23 // loop_header_branch
            %31 = sbr.rel (%p29) target = $region31
          $region28: #{custom-call.67} parent=23 // loop_body
            %v35 = vld [vmem:[%s33] sm:$0xff]
            %36 = vst [vmem:[%s34] sm:$0xff] %v35
            %v37 = vld [vmem:[%s33 + $0x8] sm:$0xff]
            %38 = vst [vmem:[%s34 + $0x8] sm:$0xff] %v37
            %v39 = vld [vmem:[%s33 + $0x10] sm:$0xff]
            %40 = vst [vmem:[%s34 + $0x10] sm:$0xff] %v39
            %v41 = vld [vmem:[%s33 + $0x18] sm:$0xff]
            %42 = vst [vmem:[%s34 + $0x18] sm:$0xff] %v41
          $region29: #{custom-call.67} parent=23 // loop_footer
            %s32 = sadd.s32 1, %s28
          $region30: #{custom-call.67} parent=23 // loop_footer_branch
            %27 = sbr.rel target = $region26
          $region31: #{custom-call.67} parent=23 // loop_exit
            _
        $region24: #{custom-call.67} parent=8 // pred_fallthru
          _
        // Predicated region
        $region32: #{custom-call.67} parent=8 // pred_check
          _
        $region33: #{custom-call.67} parent=8 // pred_check_branch
          %44 = sbr.rel target = $region35
        $region34: #{custom-call.67} parent=8 // pred_region
          _
        $region35: #{custom-call.67} parent=8 // pred_fallthru
          _
      $region9: #{custom-call.67} parent=4 // pred_fallthru
        _
      // Predicated region
      $region10: #{custom-call.67} parent=4 // pred_check
        _
      $region11: #{custom-call.67} parent=4 // pred_check_branch
        %7 = sbr.rel target = $region13
      $region12: #{custom-call.67} parent=4 // pred_region
        loop: start=0, step=1, limit=1
        $region14: #{custom-call.67} parent=12 // loop_pre_header
          _
        $region15: #{custom-call.67} parent=12 // loop_header
          %s10 = sphi 0, %s14
          %p11 = scmp.ge.s32.totalorder %s10, 1
          %s15 = sphi %s0, %s0
          %s16 = sphi [#allocation0], [#allocation0]
        $region16: #{custom-call.67} parent=12 // loop_header_branch
          %13 = sbr.rel (%p11) target = $region20
        $region17: #{custom-call.67} parent=12 // loop_body
          %v17 = vld [vmem:[%s15] sm:$0xff]
          %18 = vst [vmem:[%s16] sm:$0xff] %v17
          %v19 = vld [vmem:[%s15 + $0x8] sm:$0xff]
          %20 = vst [vmem:[%s16 + $0x8] sm:$0xff] %v19
          %v21 = vld [vmem:[%s15 + $0x10] sm:$0xff]
          %22 = vst [vmem:[%s16 + $0x10] sm:$0xff] %v21
          %v23 = vld [vmem:[%s15 + $0x18] sm:$0xff]
          %24 = vst [vmem:[%s16 + $0x18] sm:$0xff] %v23
        $region18: #{custom-call.67} parent=12 // loop_footer
          %s14 = sadd.s32 1, %s10
        $region19: #{custom-call.67} parent=12 // loop_footer_branch
          %9 = sbr.rel target = $region15
        $region20: #{custom-call.67} parent=12 // loop_exit
          _
      $region13: #{custom-call.67} parent=4 // pred_fallthru
        _
    $region5: #{custom-call.67} parent=1 // pred_fallthru
      _
    %45 = vnop
    %v46 = vlaneseq
    %v47 = vand.u32 %v46, 127
    %vm48 = vcmp.lt.s32.totalorder %v47, 32
    %v49 = vlaneseq
    %v50 = vshrl.u32 %v49, 7
    %vm52 = vcmp.eq.s32.totalorder %v50, %v47
    %v53 = vld [vmem:[#allocation0] sm:$0xff]
    %v54 = vsel %vm52, %v53, 0.0
    %55 = vadd.xlane.f32.xlu0 %v54
    %v56 = vpop.xlane.xlu0 %55
    %vm57 = vcmp.ge.s32.totalorder %v50, %v47
    %vm58 = vmand %vm57, %vm48
    %v59 = vsel %vm58, %v53, 0.0
    %v60 = vrcp.pop %v56
    %v61 = vmul.f32 %v59, %v60
    %62 = vst [vmem:[#allocation2] sm:$0xff] %v61
    %s63 = scalar_lea.vmem [#allocation0], 8
    %s64 = scalar_lea.vmem [#allocation2], 8
    %v65 = vlaneseq
    %v66 = vshrl.u32 %v65, 7
    %v67 = vadd.s32 %v66, 8
    %vm68 = vcmp.eq.s32.totalorder %v67, %v47
    %v69 = vld [vmem:[%s63] sm:$0xff]
    %v70 = vsel %vm68, %v69, 0.0
    %71 = vadd.xlane.f32.xlu0 %v70
    %v72 = vpop.xlane.xlu0 %71
    %vm73 = vcmp.ge.s32.totalorder %v67, %v47
    %vm74 = vmand %vm73, %vm48
    %v75 = vsel %vm74, %v69, 0.0
    %v76 = vrcp.pop %v72
    %v77 = vmul.f32 %v75, %v76
    %78 = vst [vmem:[%s64] sm:$0xff] %v77
    %s79 = scalar_lea.vmem [#allocation0], 16
    %s80 = scalar_lea.vmem [#allocation2], 16
    %v81 = vlaneseq
    %v82 = vshrl.u32 %v81, 7
    %v83 = vadd.s32 %v82, 16
    %vm84 = vcmp.eq.s32.totalorder %v83, %v47
    %v85 = vld [vmem:[%s79] sm:$0xff]
    %v86 = vsel %vm84, %v85, 0.0
    %87 = vadd.xlane.f32.xlu0 %v86
    %v88 = vpop.xlane.xlu0 %87
    %vm89 = vcmp.ge.s32.totalorder %v83, %v47
    %vm90 = vmand %vm89, %vm48
    %v91 = vsel %vm90, %v85, 0.0
    %v92 = vrcp.pop %v88
    %v93 = vmul.f32 %v91, %v92
    %94 = vst [vmem:[%s80] sm:$0xff] %v93
    %s95 = scalar_lea.vmem [#allocation0], 24
    %s96 = scalar_lea.vmem [#allocation2], 24
    %v97 = vlaneseq
    %v98 = vshrl.u32 %v97, 7
    %v99 = vadd.s32 %v98, 24
    %vm100 = vcmp.eq.s32.totalorder %v99, %v47
    %v101 = vld [vmem:[%s95] sm:$0xff]
    %v102 = vsel %vm100, %v101, 0.0
    %103 = vadd.xlane.f32.xlu0 %v102
    %v104 = vpop.xlane.xlu0 %103
    %vm105 = vcmp.ge.s32.totalorder %v99, %v47
    %vm106 = vmand %vm105, %vm48
    %v107 = vsel %vm106, %v101, 0.0
    %v108 = vrcp.pop %v104
    %v109 = vmul.f32 %v107, %v108
    %110 = vst [vmem:[%s96] sm:$0xff] %v109
    %v111 = vlaneseq
    %v112 = vand.u32 %v111, 127
    %v113 = vlaneseq
    %v114 = vshrl.u32 %v113, 7
    %vm116 = vcmp.eq.s32.totalorder %v112, %v114
    %v117 = vlaneseq
    %v118 = vand.u32 %v117, 127
    %vm119 = vcmp.eq.s32.totalorder %v118, 0
    %v120 = vsel %vm119, 1.0, -1.0
    %v121 = vsel %vm116, %v120, 0.0
    %v122 = vlaneseq
    %v123 = vand.u32 %v122, 127
    %v124 = vlaneseq
    %v125 = vshrl.u32 %v124, 7
    %v126 = vadd.s32 %v125, 8
    %vm127 = vcmp.eq.s32.totalorder %v123, %v126
    %v128 = vsel %vm127, -1.0, 0.0
    %v129 = vlaneseq
    %v130 = vand.u32 %v129, 127
    %v131 = vlaneseq
    %v132 = vshrl.u32 %v131, 7
    %v133 = vadd.s32 %v132, 16
    %vm134 = vcmp.eq.s32.totalorder %v130, %v133
    %v135 = vsel %vm134, -1.0, 0.0
    %v136 = vlaneseq
    %v137 = vand.u32 %v136, 127
    %v138 = vlaneseq
    %v139 = vshrl.u32 %v138, 7
    %v140 = vadd.s32 %v139, 24
    %vm141 = vcmp.eq.s32.totalorder %v137, %v140
    %v142 = vsel %vm141, -1.0, 0.0
    %s143 = scalar_lea.vmem [#allocation2], 1
    %v144 = vld [vmem:[%s143] ss:$0 sm:$0xff]
    %v145 = vxor.u32 %v144, 2147483648
    %v146 = vlaneseq
    %v147 = vand.u32 %v146, 127
    %vm148 = vcmp.eq.s32.totalorder %v147, 1
    %v149 = vmul.f32 %v145, %v121
    %150 = vadd.xlane.f32.xlu0 %v149
    %v151 = vpop.xlane.xlu0 %150
    %v152 = vsel %vm148, %v151, %v121
    %s153 = scalar_lea.vmem [#allocation2], 2
    %v154 = vld [vmem:[%s153] ss:$0 sm:$0xff]
    %v155 = vxor.u32 %v154, 2147483648
    %v156 = vlaneseq
    %v157 = vand.u32 %v156, 127
    %vm158 = vcmp.eq.s32.totalorder %v157, 2
    %v159 = vmul.f32 %v155, %v152
    %160 = vadd.xlane.f32.xlu0 %v159
    %v161 = vpop.xlane.xlu0 %160
    %v162 = vsel %vm158, %v161, %v152
    %s163 = scalar_lea.vmem [#allocation2], 3
    %v164 = vld [vmem:[%s163] ss:$0 sm:$0xff]
    %v165 = vxor.u32 %v164, 2147483648
    %v166 = vlaneseq
    %v167 = vand.u32 %v166, 127
    %vm168 = vcmp.eq.s32.totalorder %v167, 3
    %v169 = vmul.f32 %v165, %v162
    %170 = vadd.xlane.f32.xlu0 %v169
    %v171 = vpop.xlane.xlu0 %170
    %v172 = vsel %vm168, %v171, %v162
    %s173 = scalar_lea.vmem [#allocation2], 4
    %v174 = vld [vmem:[%s173] ss:$0 sm:$0xff]
    %v175 = vxor.u32 %v174, 2147483648
    %v176 = vlaneseq
    %v177 = vand.u32 %v176, 127
    %vm178 = vcmp.eq.s32.totalorder %v177, 4
    %v179 = vmul.f32 %v175, %v172
    %180 = vadd.xlane.f32.xlu0 %v179
    %v181 = vpop.xlane.xlu0 %180
    %v182 = vsel %vm178, %v181, %v172
    %s183 = scalar_lea.vmem [#allocation2], 5
    %v184 = vld [vmem:[%s183] ss:$0 sm:$0xff]
    %v185 = vxor.u32 %v184, 2147483648
    %v186 = vlaneseq
    %v187 = vand.u32 %v186, 127
    %vm188 = vcmp.eq.s32.totalorder %v187, 5
    %v189 = vmul.f32 %v185, %v182
    %190 = vadd.xlane.f32.xlu0 %v189
    %v191 = vpop.xlane.xlu0 %190
    %v192 = vsel %vm188, %v191, %v182
    %s193 = scalar_lea.vmem [#allocation2], 6
    %v194 = vld [vmem:[%s193] ss:$0 sm:$0xff]
    %v195 = vxor.u32 %v194, 2147483648
    %v196 = vlaneseq
    %v197 = vand.u32 %v196, 127
    %vm198 = vcmp.eq.s32.totalorder %v197, 6
    %v199 = vmul.f32 %v195, %v192
    %200 = vadd.xlane.f32.xlu0 %v199
    %v201 = vpop.xlane.xlu0 %200
    %v202 = vsel %vm198, %v201, %v192
    %s203 = scalar_lea.vmem [#allocation2], 7
    %v204 = vld [vmem:[%s203] ss:$0 sm:$0xff]
    %v205 = vxor.u32 %v204, 2147483648
    %v206 = vlaneseq
    %v207 = vand.u32 %v206, 127
    %vm208 = vcmp.eq.s32.totalorder %v207, 7
    %v209 = vmul.f32 %v205, %v202
    %210 = vadd.xlane.f32.xlu0 %v209
    %v211 = vpop.xlane.xlu0 %210
    %v212 = vsel %vm208, %v211, %v202
    %s213 = scalar_lea.vmem [#allocation2], 8
    %v214 = vld [vmem:[%s213] ss:$0 sm:$0xff]
    %v215 = vxor.u32 %v214, 2147483648
    %v216 = vlaneseq
    %v217 = vand.u32 %v216, 127
    %vm218 = vcmp.eq.s32.totalorder %v217, 8
    %v219 = vmul.f32 %v215, %v212
    %220 = vadd.xlane.f32.xlu0 %v219
    %v221 = vpop.xlane.xlu0 %220
    %v222 = vsel %vm218, %v221, %v212
    %v223 = vmul.f32 %v215, %v128
    %224 = vadd.xlane.f32.xlu0 %v223
    %v225 = vpop.xlane.xlu0 %224
    %v226 = vsel %vm218, %v225, %v128
    %s227 = scalar_lea.vmem [#allocation2], 9
    %v228 = vld [vmem:[%s227] ss:$0 sm:$0xff]
    %v229 = vxor.u32 %v228, 2147483648
    %v230 = vlaneseq
    %v231 = vand.u32 %v230, 127
    %vm232 = vcmp.eq.s32.totalorder %v231, 9
    %v233 = vmul.f32 %v229, %v222
    %234 = vadd.xlane.f32.xlu0 %v233
    %v235 = vpop.xlane.xlu0 %234
    %v236 = vsel %vm232, %v235, %v222
    %v237 = vmul.f32 %v229, %v226
    %238 = vadd.xlane.f32.xlu0 %v237
    %v239 = vpop.xlane.xlu0 %238
    %v240 = vsel %vm232, %v239, %v226
    %s241 = scalar_lea.vmem [#allocation2], 10
    %v242 = vld [vmem:[%s241] ss:$0 sm:$0xff]
    %v243 = vxor.u32 %v242, 2147483648
    %v244 = vlaneseq
    %v245 = vand.u32 %v244, 127
    %vm246 = vcmp.eq.s32.totalorder %v245, 10
    %v247 = vmul.f32 %v243, %v236
    %248 = vadd.xlane.f32.xlu0 %v247
    %v249 = vpop.xlane.xlu0 %248
    %v250 = vsel %vm246, %v249, %v236
    %v251 = vmul.f32 %v243, %v240
    %252 = vadd.xlane.f32.xlu0 %v251
    %v253 = vpop.xlane.xlu0 %252
    %v254 = vsel %vm246, %v253, %v240
    %s255 = scalar_lea.vmem [#allocation2], 11
    %v256 = vld [vmem:[%s255] ss:$0 sm:$0xff]
    %v257 = vxor.u32 %v256, 2147483648
    %v258 = vlaneseq
    %v259 = vand.u32 %v258, 127
    %vm260 = vcmp.eq.s32.totalorder %v259, 11
    %v261 = vmul.f32 %v257, %v250
    %262 = vadd.xlane.f32.xlu0 %v261
    %v263 = vpop.xlane.xlu0 %262
    %v264 = vsel %vm260, %v263, %v250
    %v265 = vmul.f32 %v257, %v254
    %266 = vadd.xlane.f32.xlu0 %v265
    %v267 = vpop.xlane.xlu0 %266
    %v268 = vsel %vm260, %v267, %v254
    %s269 = scalar_lea.vmem [#allocation2], 12
    %v270 = vld [vmem:[%s269] ss:$0 sm:$0xff]
    %v271 = vxor.u32 %v270, 2147483648
    %v272 = vlaneseq
    %v273 = vand.u32 %v272, 127
    %vm274 = vcmp.eq.s32.totalorder %v273, 12
    %v275 = vmul.f32 %v271, %v264
    %276 = vadd.xlane.f32.xlu0 %v275
    %v277 = vpop.xlane.xlu0 %276
    %v278 = vsel %vm274, %v277, %v264
    %v279 = vmul.f32 %v271, %v268
    %280 = vadd.xlane.f32.xlu0 %v279
    %v281 = vpop.xlane.xlu0 %280
    %v282 = vsel %vm274, %v281, %v268
    %s283 = scalar_lea.vmem [#allocation2], 13
    %v284 = vld [vmem:[%s283] ss:$0 sm:$0xff]
    %v285 = vxor.u32 %v284, 2147483648
    %v286 = vlaneseq
    %v287 = vand.u32 %v286, 127
    %vm288 = vcmp.eq.s32.totalorder %v287, 13
    %v289 = vmul.f32 %v285, %v278
    %290 = vadd.xlane.f32.xlu0 %v289
    %v291 = vpop.xlane.xlu0 %290
    %v292 = vsel %vm288, %v291, %v278
    %v293 = vmul.f32 %v285, %v282
    %294 = vadd.xlane.f32.xlu0 %v293
    %v295 = vpop.xlane.xlu0 %294
    %v296 = vsel %vm288, %v295, %v282
    %s297 = scalar_lea.vmem [#allocation2], 14
    %v298 = vld [vmem:[%s297] ss:$0 sm:$0xff]
    %v299 = vxor.u32 %v298, 2147483648
    %v300 = vlaneseq
    %v301 = vand.u32 %v300, 127
    %vm302 = vcmp.eq.s32.totalorder %v301, 14
    %v303 = vmul.f32 %v299, %v292
    %304 = vadd.xlane.f32.xlu0 %v303
    %v305 = vpop.xlane.xlu0 %304
    %v306 = vsel %vm302, %v305, %v292
    %v307 = vmul.f32 %v299, %v296
    %308 = vadd.xlane.f32.xlu0 %v307
    %v309 = vpop.xlane.xlu0 %308
    %v310 = vsel %vm302, %v309, %v296
    %s311 = scalar_lea.vmem [#allocation2], 15
    %v312 = vld [vmem:[%s311] ss:$0 sm:$0xff]
    %v313 = vxor.u32 %v312, 2147483648
    %v314 = vlaneseq
    %v315 = vand.u32 %v314, 127
    %vm316 = vcmp.eq.s32.totalorder %v315, 15
    %v317 = vmul.f32 %v313, %v306
    %318 = vadd.xlane.f32.xlu0 %v317
    %v319 = vpop.xlane.xlu0 %318
    %v320 = vsel %vm316, %v319, %v306
    %v321 = vmul.f32 %v313, %v310
    %322 = vadd.xlane.f32.xlu0 %v321
    %v323 = vpop.xlane.xlu0 %322
    %v324 = vsel %vm316, %v323, %v310
    %s325 = scalar_lea.vmem [#allocation2], 16
    %v326 = vld [vmem:[%s325] ss:$0 sm:$0xff]
    %v327 = vxor.u32 %v326, 2147483648
    %v328 = vlaneseq
    %v329 = vand.u32 %v328, 127
    %vm330 = vcmp.eq.s32.totalorder %v329, 16
    %v331 = vmul.f32 %v327, %v320
    %332 = vadd.xlane.f32.xlu0 %v331
    %v333 = vpop.xlane.xlu0 %332
    %v334 = vsel %vm330, %v333, %v320
    %v335 = vmul.f32 %v327, %v324
    %336 = vadd.xlane.f32.xlu0 %v335
    %v337 = vpop.xlane.xlu0 %336
    %v338 = vsel %vm330, %v337, %v324
    %v339 = vmul.f32 %v327, %v135
    %340 = vadd.xlane.f32.xlu0 %v339
    %v341 = vpop.xlane.xlu0 %340
    %v342 = vsel %vm330, %v341, %v135
    %s343 = scalar_lea.vmem [#allocation2], 17
    %v344 = vld [vmem:[%s343] ss:$0 sm:$0xff]
    %v345 = vxor.u32 %v344, 2147483648
    %v346 = vlaneseq
    %v347 = vand.u32 %v346, 127
    %vm348 = vcmp.eq.s32.totalorder %v347, 17
    %v349 = vmul.f32 %v345, %v334
    %350 = vadd.xlane.f32.xlu0 %v349
    %v351 = vpop.xlane.xlu0 %350
    %v352 = vsel %vm348, %v351, %v334
    %v353 = vmul.f32 %v345, %v338
    %354 = vadd.xlane.f32.xlu0 %v353
    %v355 = vpop.xlane.xlu0 %354
    %v356 = vsel %vm348, %v355, %v338
    %v357 = vmul.f32 %v345, %v342
    %358 = vadd.xlane.f32.xlu0 %v357
    %v359 = vpop.xlane.xlu0 %358
    %v360 = vsel %vm348, %v359, %v342
    %s361 = scalar_lea.vmem [#allocation2], 18
    %v362 = vld [vmem:[%s361] ss:$0 sm:$0xff]
    %v363 = vxor.u32 %v362, 2147483648
    %v364 = vlaneseq
    %v365 = vand.u32 %v364, 127
    %vm366 = vcmp.eq.s32.totalorder %v365, 18
    %v367 = vmul.f32 %v363, %v352
    %368 = vadd.xlane.f32.xlu0 %v367
    %v369 = vpop.xlane.xlu0 %368
    %v370 = vsel %vm366, %v369, %v352
    %v371 = vmul.f32 %v363, %v356
    %372 = vadd.xlane.f32.xlu0 %v371
    %v373 = vpop.xlane.xlu0 %372
    %v374 = vsel %vm366, %v373, %v356
    %v375 = vmul.f32 %v363, %v360
    %376 = vadd.xlane.f32.xlu0 %v375
    %v377 = vpop.xlane.xlu0 %376
    %v378 = vsel %vm366, %v377, %v360
    %s379 = scalar_lea.vmem [#allocation2], 19
    %v380 = vld [vmem:[%s379] ss:$0 sm:$0xff]
    %v381 = vxor.u32 %v380, 2147483648
    %v382 = vlaneseq
    %v383 = vand.u32 %v382, 127
    %vm384 = vcmp.eq.s32.totalorder %v383, 19
    %v385 = vmul.f32 %v381, %v370
    %386 = vadd.xlane.f32.xlu0 %v385
    %v387 = vpop.xlane.xlu0 %386
    %v388 = vsel %vm384, %v387, %v370
    %v389 = vmul.f32 %v381, %v374
    %390 = vadd.xlane.f32.xlu0 %v389
    %v391 = vpop.xlane.xlu0 %390
    %v392 = vsel %vm384, %v391, %v374
    %v393 = vmul.f32 %v381, %v378
    %394 = vadd.xlane.f32.xlu0 %v393
    %v395 = vpop.xlane.xlu0 %394
    %v396 = vsel %vm384, %v395, %v378
    %s397 = scalar_lea.vmem [#allocation2], 20
    %v398 = vld [vmem:[%s397] ss:$0 sm:$0xff]
    %v399 = vxor.u32 %v398, 2147483648
    %v400 = vlaneseq
    %v401 = vand.u32 %v400, 127
    %vm402 = vcmp.eq.s32.totalorder %v401, 20
    %v403 = vmul.f32 %v399, %v388
    %404 = vadd.xlane.f32.xlu0 %v403
    %v405 = vpop.xlane.xlu0 %404
    %v406 = vsel %vm402, %v405, %v388
    %v407 = vmul.f32 %v399, %v392
    %408 = vadd.xlane.f32.xlu0 %v407
    %v409 = vpop.xlane.xlu0 %408
    %v410 = vsel %vm402, %v409, %v392
    %v411 = vmul.f32 %v399, %v396
    %412 = vadd.xlane.f32.xlu0 %v411
    %v413 = vpop.xlane.xlu0 %412
    %v414 = vsel %vm402, %v413, %v396
    %s415 = scalar_lea.vmem [#allocation2], 21
    %v416 = vld [vmem:[%s415] ss:$0 sm:$0xff]
    %v417 = vxor.u32 %v416, 2147483648
    %v418 = vlaneseq
    %v419 = vand.u32 %v418, 127
    %vm420 = vcmp.eq.s32.totalorder %v419, 21
    %v421 = vmul.f32 %v417, %v406
    %422 = vadd.xlane.f32.xlu0 %v421
    %v423 = vpop.xlane.xlu0 %422
    %v424 = vsel %vm420, %v423, %v406
    %v425 = vmul.f32 %v417, %v410
    %426 = vadd.xlane.f32.xlu0 %v425
    %v427 = vpop.xlane.xlu0 %426
    %v428 = vsel %vm420, %v427, %v410
    %v429 = vmul.f32 %v417, %v414
    %430 = vadd.xlane.f32.xlu0 %v429
    %v431 = vpop.xlane.xlu0 %430
    %v432 = vsel %vm420, %v431, %v414
    %s433 = scalar_lea.vmem [#allocation2], 22
    %v434 = vld [vmem:[%s433] ss:$0 sm:$0xff]
    %v435 = vxor.u32 %v434, 2147483648
    %v436 = vlaneseq
    %v437 = vand.u32 %v436, 127
    %vm438 = vcmp.eq.s32.totalorder %v437, 22
    %v439 = vmul.f32 %v435, %v424
    %440 = vadd.xlane.f32.xlu0 %v439
    %v441 = vpop.xlane.xlu0 %440
    %v442 = vsel %vm438, %v441, %v424
    %v443 = vmul.f32 %v435, %v428
    %444 = vadd.xlane.f32.xlu0 %v443
    %v445 = vpop.xlane.xlu0 %444
    %v446 = vsel %vm438, %v445, %v428
    %v447 = vmul.f32 %v435, %v432
    %448 = vadd.xlane.f32.xlu0 %v447
    %v449 = vpop.xlane.xlu0 %448
    %v450 = vsel %vm438, %v449, %v432
    %s451 = scalar_lea.vmem [#allocation2], 23
    %v452 = vld [vmem:[%s451] ss:$0 sm:$0xff]
    %v453 = vxor.u32 %v452, 2147483648
    %v454 = vlaneseq
    %v455 = vand.u32 %v454, 127
    %vm456 = vcmp.eq.s32.totalorder %v455, 23
    %v457 = vmul.f32 %v453, %v442
    %458 = vadd.xlane.f32.xlu0 %v457
    %v459 = vpop.xlane.xlu0 %458
    %v460 = vsel %vm456, %v459, %v442
    %v461 = vmul.f32 %v453, %v446
    %462 = vadd.xlane.f32.xlu0 %v461
    %v463 = vpop.xlane.xlu0 %462
    %v464 = vsel %vm456, %v463, %v446
    %v465 = vmul.f32 %v453, %v450
    %466 = vadd.xlane.f32.xlu0 %v465
    %v467 = vpop.xlane.xlu0 %466
    %v468 = vsel %vm456, %v467, %v450
    %s469 = scalar_lea.vmem [#allocation2], 24
    %v470 = vld [vmem:[%s469] ss:$0 sm:$0xff]
    %v471 = vxor.u32 %v470, 2147483648
    %v472 = vlaneseq
    %v473 = vand.u32 %v472, 127
    %vm474 = vcmp.eq.s32.totalorder %v473, 24
    %v475 = vmul.f32 %v471, %v460
    %476 = vadd.xlane.f32.xlu0 %v475
    %v477 = vpop.xlane.xlu0 %476
    %v478 = vsel %vm474, %v477, %v460
    %v479 = vmul.f32 %v471, %v464
    %480 = vadd.xlane.f32.xlu0 %v479
    %v481 = vpop.xlane.xlu0 %480
    %v482 = vsel %vm474, %v481, %v464
    %v483 = vmul.f32 %v471, %v468
    %484 = vadd.xlane.f32.xlu0 %v483
    %v485 = vpop.xlane.xlu0 %484
    %v486 = vsel %vm474, %v485, %v468
    %v487 = vmul.f32 %v471, %v142
    %488 = vadd.xlane.f32.xlu0 %v487
    %v489 = vpop.xlane.xlu0 %488
    %v490 = vsel %vm474, %v489, %v142
    %s491 = scalar_lea.vmem [#allocation2], 25
    %v492 = vld [vmem:[%s491] ss:$0 sm:$0xff]
    %v493 = vxor.u32 %v492, 2147483648
    %v494 = vlaneseq
    %v495 = vand.u32 %v494, 127
    %vm496 = vcmp.eq.s32.totalorder %v495, 25
    %v497 = vmul.f32 %v493, %v478
    %498 = vadd.xlane.f32.xlu0 %v497
    %v499 = vpop.xlane.xlu0 %498
    %v500 = vsel %vm496, %v499, %v478
    %v501 = vmul.f32 %v493, %v482
    %502 = vadd.xlane.f32.xlu0 %v501
    %v503 = vpop.xlane.xlu0 %502
    %v504 = vsel %vm496, %v503, %v482
    %v505 = vmul.f32 %v493, %v486
    %506 = vadd.xlane.f32.xlu0 %v505
    %v507 = vpop.xlane.xlu0 %506
    %v508 = vsel %vm496, %v507, %v486
    %v509 = vmul.f32 %v493, %v490
    %510 = vadd.xlane.f32.xlu0 %v509
    %v511 = vpop.xlane.xlu0 %510
    %v512 = vsel %vm496, %v511, %v490
    %s513 = scalar_lea.vmem [#allocation2], 26
    %v514 = vld [vmem:[%s513] ss:$0 sm:$0xff]
    %v515 = vxor.u32 %v514, 2147483648
    %v516 = vlaneseq
    %v517 = vand.u32 %v516, 127
    %vm518 = vcmp.eq.s32.totalorder %v517, 26
    %v519 = vmul.f32 %v515, %v500
    %520 = vadd.xlane.f32.xlu0 %v519
    %v521 = vpop.xlane.xlu0 %520
    %v522 = vsel %vm518, %v521, %v500
    %v523 = vmul.f32 %v515, %v504
    %524 = vadd.xlane.f32.xlu0 %v523
    %v525 = vpop.xlane.xlu0 %524
    %v526 = vsel %vm518, %v525, %v504
    %v527 = vmul.f32 %v515, %v508
    %528 = vadd.xlane.f32.xlu0 %v527
    %v529 = vpop.xlane.xlu0 %528
    %v530 = vsel %vm518, %v529, %v508
    %v531 = vmul.f32 %v515, %v512
    %532 = vadd.xlane.f32.xlu0 %v531
    %v533 = vpop.xlane.xlu0 %532
    %v534 = vsel %vm518, %v533, %v512
    %s535 = scalar_lea.vmem [#allocation2], 27
    %v536 = vld [vmem:[%s535] ss:$0 sm:$0xff]
    %v537 = vxor.u32 %v536, 2147483648
    %v538 = vlaneseq
    %v539 = vand.u32 %v538, 127
    %vm540 = vcmp.eq.s32.totalorder %v539, 27
    %v541 = vmul.f32 %v537, %v522
    %542 = vadd.xlane.f32.xlu0 %v541
    %v543 = vpop.xlane.xlu0 %542
    %v544 = vsel %vm540, %v543, %v522
    %v545 = vmul.f32 %v537, %v526
    %546 = vadd.xlane.f32.xlu0 %v545
    %v547 = vpop.xlane.xlu0 %546
    %v548 = vsel %vm540, %v547, %v526
    %v549 = vmul.f32 %v537, %v530
    %550 = vadd.xlane.f32.xlu0 %v549
    %v551 = vpop.xlane.xlu0 %550
    %v552 = vsel %vm540, %v551, %v530
    %v553 = vmul.f32 %v537, %v534
    %554 = vadd.xlane.f32.xlu0 %v553
    %v555 = vpop.xlane.xlu0 %554
    %v556 = vsel %vm540, %v555, %v534
    %s557 = scalar_lea.vmem [#allocation2], 28
    %v558 = vld [vmem:[%s557] ss:$0 sm:$0xff]
    %v559 = vxor.u32 %v558, 2147483648
    %v560 = vlaneseq
    %v561 = vand.u32 %v560, 127
    %vm562 = vcmp.eq.s32.totalorder %v561, 28
    %v563 = vmul.f32 %v559, %v544
    %564 = vadd.xlane.f32.xlu0 %v563
    %v565 = vpop.xlane.xlu0 %564
    %v566 = vsel %vm562, %v565, %v544
    %v567 = vmul.f32 %v559, %v548
    %568 = vadd.xlane.f32.xlu0 %v567
    %v569 = vpop.xlane.xlu0 %568
    %v570 = vsel %vm562, %v569, %v548
    %v571 = vmul.f32 %v559, %v552
    %572 = vadd.xlane.f32.xlu0 %v571
    %v573 = vpop.xlane.xlu0 %572
    %v574 = vsel %vm562, %v573, %v552
    %v575 = vmul.f32 %v559, %v556
    %576 = vadd.xlane.f32.xlu0 %v575
    %v577 = vpop.xlane.xlu0 %576
    %v578 = vsel %vm562, %v577, %v556
    %s579 = scalar_lea.vmem [#allocation2], 29
    %v580 = vld [vmem:[%s579] ss:$0 sm:$0xff]
    %v581 = vxor.u32 %v580, 2147483648
    %v582 = vlaneseq
    %v583 = vand.u32 %v582, 127
    %vm584 = vcmp.eq.s32.totalorder %v583, 29
    %v585 = vmul.f32 %v581, %v566
    %586 = vadd.xlane.f32.xlu0 %v585
    %v587 = vpop.xlane.xlu0 %586
    %v588 = vsel %vm584, %v587, %v566
    %v589 = vmul.f32 %v581, %v570
    %590 = vadd.xlane.f32.xlu0 %v589
    %v591 = vpop.xlane.xlu0 %590
    %v592 = vsel %vm584, %v591, %v570
    %v593 = vmul.f32 %v581, %v574
    %594 = vadd.xlane.f32.xlu0 %v593
    %v595 = vpop.xlane.xlu0 %594
    %v596 = vsel %vm584, %v595, %v574
    %v597 = vmul.f32 %v581, %v578
    %598 = vadd.xlane.f32.xlu0 %v597
    %v599 = vpop.xlane.xlu0 %598
    %v600 = vsel %vm584, %v599, %v578
    %s601 = scalar_lea.vmem [#allocation2], 30
    %v602 = vld [vmem:[%s601] ss:$0 sm:$0xff]
    %v603 = vxor.u32 %v602, 2147483648
    %v604 = vlaneseq
    %v605 = vand.u32 %v604, 127
    %vm606 = vcmp.eq.s32.totalorder %v605, 30
    %v607 = vmul.f32 %v603, %v588
    %608 = vadd.xlane.f32.xlu0 %v607
    %v609 = vpop.xlane.xlu0 %608
    %v610 = vsel %vm606, %v609, %v588
    %v611 = vmul.f32 %v603, %v592
    %612 = vadd.xlane.f32.xlu0 %v611
    %v613 = vpop.xlane.xlu0 %612
    %v614 = vsel %vm606, %v613, %v592
    %v615 = vmul.f32 %v603, %v596
    %616 = vadd.xlane.f32.xlu0 %v615
    %v617 = vpop.xlane.xlu0 %616
    %v618 = vsel %vm606, %v617, %v596
    %v619 = vmul.f32 %v603, %v600
    %620 = vadd.xlane.f32.xlu0 %v619
    %v621 = vpop.xlane.xlu0 %620
    %v622 = vsel %vm606, %v621, %v600
    %s623 = scalar_lea.vmem [#allocation2], 31
    %v624 = vld [vmem:[%s623] ss:$0 sm:$0xff]
    %v625 = vxor.u32 %v624, 2147483648
    %v626 = vlaneseq
    %v627 = vand.u32 %v626, 127
    %vm628 = vcmp.eq.s32.totalorder %v627, 31
    %v629 = vmul.f32 %v625, %v610
    %630 = vadd.xlane.f32.xlu0 %v629
    %v631 = vpop.xlane.xlu0 %630
    %v632 = vsel %vm628, %v631, %v610
    %v633 = vmul.f32 %v625, %v614
    %634 = vadd.xlane.f32.xlu0 %v633
    %v635 = vpop.xlane.xlu0 %634
    %v636 = vsel %vm628, %v635, %v614
    %v637 = vmul.f32 %v625, %v618
    %638 = vadd.xlane.f32.xlu0 %v637
    %v639 = vpop.xlane.xlu0 %638
    %v640 = vsel %vm628, %v639, %v618
    %v641 = vmul.f32 %v625, %v622
    %642 = vadd.xlane.f32.xlu0 %v641
    %v643 = vpop.xlane.xlu0 %642
    %v644 = vsel %vm628, %v643, %v622
    %v645 = vrcp.pop %v56
    %v646 = vmul.f32 %v632, %v645
    %vm647 = vweird.f32 %v56
    %v648 = vsel %vm647, %v632, %v646
    %649 = vst [vmem:[#allocation1] sm:$0xff] %v648
    %v650 = vrcp.pop %v72
    %v651 = vmul.f32 %v636, %v650
    %vm652 = vweird.f32 %v72
    %v653 = vsel %vm652, %v636, %v651
    %s654 = scalar_lea.vmem [#allocation1], 8
    %655 = vst [vmem:[%s654] sm:$0xff] %v653
    %v656 = vrcp.pop %v88
    %v657 = vmul.f32 %v640, %v656
    %vm658 = vweird.f32 %v88
    %v659 = vsel %vm658, %v640, %v657
    %s660 = scalar_lea.vmem [#allocation1], 16
    %661 = vst [vmem:[%s660] sm:$0xff] %v659
    %v662 = vrcp.pop %v104
    %v663 = vmul.f32 %v644, %v662
    %vm664 = vweird.f32 %v104
    %v665 = vsel %vm664, %v644, %v663
    %s666 = scalar_lea.vmem [#allocation1], 24
    %667 = vst [vmem:[%s666] sm:$0xff] %v665
    // Predicated region
    $region36: #{custom-call.67} parent=1 // pred_check
      _
    $region37: #{custom-call.67} parent=1 // pred_check_branch
      %669 = sbr.rel (0) target = $region39
    $region38: #{custom-call.67} parent=1 // pred_region
      // Predicated region
      $region40: #{custom-call.67} parent=38 // pred_check
        _
      $region41: #{custom-call.67} parent=38 // pred_check_branch
        %671 = sbr.rel (0) target = $region43
      $region42: #{custom-call.67} parent=38 // pred_region
        // Predicated region
        $region55: #{custom-call.67} parent=42 // pred_check
          _
        $region56: #{custom-call.67} parent=42 // pred_check_branch
          %692 = sbr.rel (0) target = $region58
        $region57: #{custom-call.67} parent=42 // pred_region
          loop: start=0, step=1, limit=1
          $region59: #{custom-call.67} parent=57 // loop_pre_header
            _
          $region60: #{custom-call.67} parent=57 // loop_header
            %s694 = sphi 0, %s698
            %p695 = scmp.ge.s32.totalorder %s694, 1
            %s699 = sphi [#allocation1], [#allocation1]
            %s700 = sphi %s1, %s1
          $region61: #{custom-call.67} parent=57 // loop_header_branch
            %697 = sbr.rel (%p695) target = $region65
          $region62: #{custom-call.67} parent=57 // loop_body
            %v701 = vld [vmem:[%s699] sm:$0xff]
            %702 = vst [vmem:[%s700] sm:$0xff] %v701
            %v703 = vld [vmem:[%s699 + $0x8] sm:$0xff]
            %704 = vst [vmem:[%s700 + $0x8] sm:$0xff] %v703
            %v705 = vld [vmem:[%s699 + $0x10] sm:$0xff]
            %706 = vst [vmem:[%s700 + $0x10] sm:$0xff] %v705
            %v707 = vld [vmem:[%s699 + $0x18] sm:$0xff]
            %708 = vst [vmem:[%s700 + $0x18] sm:$0xff] %v707
          $region63: #{custom-call.67} parent=57 // loop_footer
            %s698 = sadd.s32 1, %s694
          $region64: #{custom-call.67} parent=57 // loop_footer_branch
            %693 = sbr.rel target = $region60
          $region65: #{custom-call.67} parent=57 // loop_exit
            _
        $region58: #{custom-call.67} parent=42 // pred_fallthru
          _
        // Predicated region
        $region66: #{custom-call.67} parent=42 // pred_check
          _
        $region67: #{custom-call.67} parent=42 // pred_check_branch
          %710 = sbr.rel target = $region69
        $region68: #{custom-call.67} parent=42 // pred_region
          _
        $region69: #{custom-call.67} parent=42 // pred_fallthru
          _
      $region43: #{custom-call.67} parent=38 // pred_fallthru
        _
      // Predicated region
      $region44: #{custom-call.67} parent=38 // pred_check
        _
      $region45: #{custom-call.67} parent=38 // pred_check_branch
        %673 = sbr.rel target = $region47
      $region46: #{custom-call.67} parent=38 // pred_region
        loop: start=0, step=1, limit=1
        $region48: #{custom-call.67} parent=46 // loop_pre_header
          _
        $region49: #{custom-call.67} parent=46 // loop_header
          %s676 = sphi 0, %s680
          %p677 = scmp.ge.s32.totalorder %s676, 1
          %s681 = sphi [#allocation1], [#allocation1]
          %s682 = sphi %s1, %s1
        $region50: #{custom-call.67} parent=46 // loop_header_branch
          %679 = sbr.rel (%p677) target = $region54
        $region51: #{custom-call.67} parent=46 // loop_body
          %v683 = vld [vmem:[%s681] sm:$0xff]
          %684 = vst [vmem:[%s682] sm:$0xff] %v683
          %v685 = vld [vmem:[%s681 + $0x8] sm:$0xff]
          %686 = vst [vmem:[%s682 + $0x8] sm:$0xff] %v685
          %v687 = vld [vmem:[%s681 + $0x10] sm:$0xff]
          %688 = vst [vmem:[%s682 + $0x10] sm:$0xff] %v687
          %v689 = vld [vmem:[%s681 + $0x18] sm:$0xff]
          %690 = vst [vmem:[%s682 + $0x18] sm:$0xff] %v689
        $region52: #{custom-call.67} parent=46 // loop_footer
          %s680 = sadd.s32 1, %s676
        $region53: #{custom-call.67} parent=46 // loop_footer_branch
          %675 = sbr.rel target = $region49
        $region54: #{custom-call.67} parent=46 // loop_exit
          _
      $region47: #{custom-call.67} parent=38 // pred_fallthru
        _
    $region39: #{custom-call.67} parent=1 // pred_fallthru
      _
    %711 = vnop

// kernel: custom-call.22
$region0: #{custom-call.22}
  %s0 = inlined_call_operand.vmem [shape: f32[16,16], index: 0, kind: input, shape index: {}]
  %s1 = inlined_call_operand.vmem [shape: f32[16,16], index: 1, kind: input, shape index: {}]
  %s2 = inlined_call_operand.vmem [shape: f32[16,16], index: 2, kind: input, shape index: {}]
  %s3 = inlined_call_operand.vmem [shape: f32[16,16], index: 3, kind: input, shape index: {}]
  %s4 = inlined_call_operand.vmem [shape: f32[16], index: 4, kind: output, shape index: {0}]
  %s5 = inlined_call_operand.vmem [shape: f32[16], index: 5, kind: output, shape index: {1}]
  %s6 = inlined_call_operand.vmem [shape: f32[16,16], index: 6, kind: output, shape index: {2}]
  %s7 = inlined_call_operand.vmem [shape: f32[16,16], index: 7, kind: output, shape index: {3}]
  %s8 = inlined_call_operand.vmem [shape: f32[16,16], index: 8, kind: output, shape index: {4}]
  %s9 = inlined_call_operand.vmem [shape: f32[16,16], index: 9, kind: output, shape index: {5}]
  %10 = xla_tuple %s4, %s5, %s6, %s7, %s8, %s9
  $region1: #{custom-call.22} parent=0
    #allocation0 [shape = 'u8[8192]{0}', space=vmem, size = 0x2000, scoped, tag = 'operand span for operand 0']
    #allocation1 [shape = 'u8[8192]{0}', space=vmem, size = 0x2000, scoped, tag = 'operand span for operand 1']
    #allocation2 [shape = 'u8[8192]{0}', space=vmem, size = 0x2000, scoped, tag = 'operand span for operand 2']
    #allocation3 [shape = 'u8[8192]{0}', space=vmem, size = 0x2000, scoped, tag = 'operand span for operand 3']
    #allocation4 [shape = 'u8[4096]{0}', space=vmem, size = 0x1000, scoped, tag = 'operand span for operand 4']
    #allocation5 [shape = 'u8[512]{0}', space=vmem, size = 0x400, scoped, tag = 'packed  for operand 4']
    #allocation6 [shape = 'u8[4096]{0}', space=vmem, size = 0x1000, scoped, tag = 'operand span for operand 5']
    #allocation7 [shape = 'u8[512]{0}', space=vmem, size = 0x400, scoped, tag = 'packed  for operand 5']
    #allocation8 [shape = 'u8[8192]{0}', space=vmem, size = 0x2000, scoped, tag = 'operand span for operand 6']
    #allocation9 [shape = 'u8[8192]{0}', space=vmem, size = 0x2000, scoped, tag = 'operand span for operand 7']
    #allocation10 [shape = 'u8[8192]{0}', space=vmem, size = 0x2000, scoped, tag = 'operand span for operand 8']
    #allocation11 [shape = 'u8[8192]{0}', space=vmem, size = 0x2000, scoped, tag = 'operand span for operand 9']
    #allocation12 [shape = 'f32[16,16]{1,0}', space=vmem, size = 0x2000, scoped, tag = 'a top-left matrix']
    #allocation13 [shape = 'f32[16,16]{1,0}', space=vmem, size = 0x2000, scoped, tag = 'a top-right matrix']
    #allocation14 [shape = 'f32[16,16]{1,0}', space=vmem, size = 0x2000, scoped, tag = 'a bottom-left matrix']
    #allocation15 [shape = 'f32[16,16]{1,0}', space=vmem, size = 0x2000, scoped, tag = 'a bottom-right matrix']
    %p12 = scmp.gt.s32.totalorder 16, 0
    // Predicated region
    $region2: #{custom-call.22} parent=1 // pred_check
      %p13 = pneg %p12
    $region3: #{custom-call.22} parent=1 // pred_check_branch
      %15 = sbr.rel (%p13) target = $region5
    $region4: #{custom-call.22} parent=1 // pred_region
      %s16 = sshra.s32 16, 3
      %p17 = scmp.gt.s32.totalorder %s16, 0
      // Predicated region
      $region6: #{custom-call.22} parent=4 // pred_check
        %p18 = pneg %p17
      $region7: #{custom-call.22} parent=4 // pred_check_branch
        %20 = sbr.rel (%p18) target = $region9
      $region8: #{custom-call.22} parent=4 // pred_region
        %s21 = ssub.s32 %s16, 1
        %s22 = smul.u32 %s21, 128
        %s23 = sshra.s32 %s22, 4
        %s24 = scalar_lea.vmem %s0, %s23
        %v25 = vld [vmem:[%s0] sm:$0xff]
        // While loop
        $region10: #{custom-call.22} parent=8 // loop_pre_header
          _
        $region11: #{custom-call.22} parent=8 // loop_header
          %s26 = sphi %s0, %s48
          %s27 = sphi [#allocation0], %s49
          %v28 = vphi %v25, %v50
          %s29 = ssub.s32 %s24, 64
          %p30 = scmp.gt.s32.totalorder %s26, %s29
        $region12: #{custom-call.22} parent=8 // loop_header_branch
          %32 = sbr.rel (%p30) target = $region16
        $region13: #{custom-call.22} parent=8 // loop_body
          %33 = vst [vmem:[%s27] sm:$0xff] %v28
          %v34 = vld [vmem:[%s26 + $0x8] sm:$0xff]
          %35 = vst [vmem:[%s27 + $0x8] sm:$0xff] %v34
          %v36 = vld [vmem:[%s26 + $0x10] sm:$0xff]
          %37 = vst [vmem:[%s27 + $0x10] sm:$0xff] %v36
          %v38 = vld [vmem:[%s26 + $0x18] sm:$0xff]
          %39 = vst [vmem:[%s27 + $0x18] sm:$0xff] %v38
          %v40 = vld [vmem:[%s26 + $0x20] sm:$0xff]
          %41 = vst [vmem:[%s27 + $0x20] sm:$0xff] %v40
          %v42 = vld [vmem:[%s26 + $0x28] sm:$0xff]
          %43 = vst [vmem:[%s27 + $0x28] sm:$0xff] %v42
          %v44 = vld [vmem:[%s26 + $0x30] sm:$0xff]
          %45 = vst [vmem:[%s27 + $0x30] sm:$0xff] %v44
          %v46 = vld [vmem:[%s26 + $0x38] sm:$0xff]
          %47 = vst [vmem:[%s27 + $0x38] sm:$0xff] %v46
        $region14: #{custom-call.22} parent=8 // loop_footer
          %s48 = scalar_lea.vmem %s26, 64
          %s49 = scalar_lea.vmem %s27, 64
          %v50 = vld [vmem:[%s26 + $0x40] sm:$0xff]
        $region15: #{custom-call.22} parent=8 // loop_footer_branch
          %51 = sbr.rel target = $region11
        $region16: #{custom-call.22} parent=8 // loop_exit
          _
        // While loop
        $region17: #{custom-call.22} parent=8 // loop_pre_header
          _
        $region18: #{custom-call.22} parent=8 // loop_header
          %s52 = sphi %s26, %s60
          %s53 = sphi %s27, %s61
          %v54 = vphi %v28, %v54
          %p55 = scmp.gt.s32.totalorder %s52, %s24
        $region19: #{custom-call.22} parent=8 // loop_header_branch
          %57 = sbr.rel (%p55) target = $region23
        $region20: #{custom-call.22} parent=8 // loop_body
          %v58 = vld [vmem:[%s52] sm:$0xff]
          %59 = vst [vmem:[%s53] sm:$0xff] %v58
        $region21: #{custom-call.22} parent=8 // loop_footer
          %s60 = scalar_lea.vmem %s52, 8
          %s61 = scalar_lea.vmem %s53, 8
        $region22: #{custom-call.22} parent=8 // loop_footer_branch
          %62 = sbr.rel target = $region18
        $region23: #{custom-call.22} parent=8 // loop_exit
          _
      $region9: #{custom-call.22} parent=4 // pred_fallthru
        _
      %s63 = sand.u32 16, 7
      %s64 = sshllo.u32 0, %s63
      %s65 = smul.u32 %s16, 128
      %s66 = sshra.s32 %s65, 4
      %s67 = scalar_lea.vmem [#allocation0], %s66
      %s68 = smul.u32 %s16, 128
      %s69 = sshra.s32 %s68, 4
      %s70 = scalar_lea.vmem %s0, %s69
      %v71 = vld [vmem:[%s70] sm:%s64]
      %72 = vst [vmem:[%s67] sm:%s64] %v71
    $region5: #{custom-call.22} parent=1 // pred_fallthru
      _
    %p74 = scmp.gt.s32.totalorder 16, 0
    // Predicated region
    $region24: #{custom-call.22} parent=1 // pred_check
      %p75 = pneg %p74
    $region25: #{custom-call.22} parent=1 // pred_check_branch
      %77 = sbr.rel (%p75) target = $region27
    $region26: #{custom-call.22} parent=1 // pred_region
      %s78 = sshra.s32 16, 3
      %p79 = scmp.gt.s32.totalorder %s78, 0
      // Predicated region
      $region28: #{custom-call.22} parent=26 // pred_check
        %p80 = pneg %p79
      $region29: #{custom-call.22} parent=26 // pred_check_branch
        %82 = sbr.rel (%p80) target = $region31
      $region30: #{custom-call.22} parent=26 // pred_region
        %s83 = ssub.s32 %s78, 1
        %s84 = smul.u32 %s83, 128
        %s85 = sshra.s32 %s84, 4
        %s86 = scalar_lea.vmem %s1, %s85
        %v87 = vld [vmem:[%s1] sm:$0xff]
        // While loop
        $region32: #{custom-call.22} parent=30 // loop_pre_header
          _
        $region33: #{custom-call.22} parent=30 // loop_header
          %s88 = sphi %s1, %s110
          %s89 = sphi [#allocation1], %s111
          %v90 = vphi %v87, %v112
          %s91 = ssub.s32 %s86, 64
          %p92 = scmp.gt.s32.totalorder %s88, %s91
        $region34: #{custom-call.22} parent=30 // loop_header_branch
          %94 = sbr.rel (%p92) target = $region38
        $region35: #{custom-call.22} parent=30 // loop_body
          %95 = vst [vmem:[%s89] sm:$0xff] %v90
          %v96 = vld [vmem:[%s88 + $0x8] sm:$0xff]
          %97 = vst [vmem:[%s89 + $0x8] sm:$0xff] %v96
          %v98 = vld [vmem:[%s88 + $0x10] sm:$0xff]
          %99 = vst [vmem:[%s89 + $0x10] sm:$0xff] %v98
          %v100 = vld [vmem:[%s88 + $0x18] sm:$0xff]
          %101 = vst [vmem:[%s89 + $0x18] sm:$0xff] %v100
          %v102 = vld [vmem:[%s88 + $0x20] sm:$0xff]
          %103 = vst [vmem:[%s89 + $0x20] sm:$0xff] %v102
          %v104 = vld [vmem:[%s88 + $0x28] sm:$0xff]
          %105 = vst [vmem:[%s89 + $0x28] sm:$0xff] %v104
          %v106 = vld [vmem:[%s88 + $0x30] sm:$0xff]
          %107 = vst [vmem:[%s89 + $0x30] sm:$0xff] %v106
          %v108 = vld [vmem:[%s88 + $0x38] sm:$0xff]
          %109 = vst [vmem:[%s89 + $0x38] sm:$0xff] %v108
        $region36: #{custom-call.22} parent=30 // loop_footer
          %s110 = scalar_lea.vmem %s88, 64
          %s111 = scalar_lea.vmem %s89, 64
          %v112 = vld [vmem:[%s88 + $0x40] sm:$0xff]
        $region37: #{custom-call.22} parent=30 // loop_footer_branch
          %113 = sbr.rel target = $region33
        $region38: #{custom-call.22} parent=30 // loop_exit
          _
        // While loop
        $region39: #{custom-call.22} parent=30 // loop_pre_header
          _
        $region40: #{custom-call.22} parent=30 // loop_header
          %s114 = sphi %s88, %s122
          %s115 = sphi %s89, %s123
          %v116 = vphi %v90, %v116
          %p117 = scmp.gt.s32.totalorder %s114, %s86
        $region41: #{custom-call.22} parent=30 // loop_header_branch
          %119 = sbr.rel (%p117) target = $region45
        $region42: #{custom-call.22} parent=30 // loop_body
          %v120 = vld [vmem:[%s114] sm:$0xff]
          %121 = vst [vmem:[%s115] sm:$0xff] %v120
        $region43: #{custom-call.22} parent=30 // loop_footer
          %s122 = scalar_lea.vmem %s114, 8
          %s123 = scalar_lea.vmem %s115, 8
        $region44: #{custom-call.22} parent=30 // loop_footer_branch
          %124 = sbr.rel target = $region40
        $region45: #{custom-call.22} parent=30 // loop_exit
          _
      $region31: #{custom-call.22} parent=26 // pred_fallthru
        _
      %s125 = sand.u32 16, 7
      %s126 = sshllo.u32 0, %s125
      %s127 = smul.u32 %s78, 128
      %s128 = sshra.s32 %s127, 4
      %s129 = scalar_lea.vmem [#allocation1], %s128
      %s130 = smul.u32 %s78, 128
      %s131 = sshra.s32 %s130, 4
      %s132 = scalar_lea.vmem %s1, %s131
      %v133 = vld [vmem:[%s132] sm:%s126]
      %134 = vst [vmem:[%s129] sm:%s126] %v133
    $region27: #{custom-call.22} parent=1 // pred_fallthru
      _
    %p136 = scmp.gt.s32.totalorder 16, 0
    // Predicated region
    $region46: #{custom-call.22} parent=1 // pred_check
      %p137 = pneg %p136
    $region47: #{custom-call.22} parent=1 // pred_check_branch
      %139 = sbr.rel (%p137) target = $region49
    $region48: #{custom-call.22} parent=1 // pred_region
      %s140 = sshra.s32 16, 3
      %p141 = scmp.gt.s32.totalorder %s140, 0
      // Predicated region
      $region50: #{custom-call.22} parent=48 // pred_check
        %p142 = pneg %p141
      $region51: #{custom-call.22} parent=48 // pred_check_branch
        %144 = sbr.rel (%p142) target = $region53
      $region52: #{custom-call.22} parent=48 // pred_region
        %s145 = ssub.s32 %s140, 1
        %s146 = smul.u32 %s145, 128
        %s147 = sshra.s32 %s146, 4
        %s148 = scalar_lea.vmem %s2, %s147
        %v149 = vld [vmem:[%s2] sm:$0xff]
        // While loop
        $region54: #{custom-call.22} parent=52 // loop_pre_header
          _
        $region55: #{custom-call.22} parent=52 // loop_header
          %s150 = sphi %s2, %s172
          %s151 = sphi [#allocation2], %s173
          %v152 = vphi %v149, %v174
          %s153 = ssub.s32 %s148, 64
          %p154 = scmp.gt.s32.totalorder %s150, %s153
        $region56: #{custom-call.22} parent=52 // loop_header_branch
          %156 = sbr.rel (%p154) target = $region60
        $region57: #{custom-call.22} parent=52 // loop_body
          %157 = vst [vmem:[%s151] sm:$0xff] %v152
          %v158 = vld [vmem:[%s150 + $0x8] sm:$0xff]
          %159 = vst [vmem:[%s151 + $0x8] sm:$0xff] %v158
          %v160 = vld [vmem:[%s150 + $0x10] sm:$0xff]
          %161 = vst [vmem:[%s151 + $0x10] sm:$0xff] %v160
          %v162 = vld [vmem:[%s150 + $0x18] sm:$0xff]
          %163 = vst [vmem:[%s151 + $0x18] sm:$0xff] %v162
          %v164 = vld [vmem:[%s150 + $0x20] sm:$0xff]
          %165 = vst [vmem:[%s151 + $0x20] sm:$0xff] %v164
          %v166 = vld [vmem:[%s150 + $0x28] sm:$0xff]
          %167 = vst [vmem:[%s151 + $0x28] sm:$0xff] %v166
          %v168 = vld [vmem:[%s150 + $0x30] sm:$0xff]
          %169 = vst [vmem:[%s151 + $0x30] sm:$0xff] %v168
          %v170 = vld [vmem:[%s150 + $0x38] sm:$0xff]
          %171 = vst [vmem:[%s151 + $0x38] sm:$0xff] %v170
        $region58: #{custom-call.22} parent=52 // loop_footer
          %s172 = scalar_lea.vmem %s150, 64
          %s173 = scalar_lea.vmem %s151, 64
          %v174 = vld [vmem:[%s150 + $0x40] sm:$0xff]
        $region59: #{custom-call.22} parent=52 // loop_footer_branch
          %175 = sbr.rel target = $region55
        $region60: #{custom-call.22} parent=52 // loop_exit
          _
        // While loop
        $region61: #{custom-call.22} parent=52 // loop_pre_header
          _
        $region62: #{custom-call.22} parent=52 // loop_header
          %s176 = sphi %s150, %s184
          %s177 = sphi %s151, %s185
          %v178 = vphi %v152, %v178
          %p179 = scmp.gt.s32.totalorder %s176, %s148
        $region63: #{custom-call.22} parent=52 // loop_header_branch
          %181 = sbr.rel (%p179) target = $region67
        $region64: #{custom-call.22} parent=52 // loop_body
          %v182 = vld [vmem:[%s176] sm:$0xff]
          %183 = vst [vmem:[%s177] sm:$0xff] %v182
        $region65: #{custom-call.22} parent=52 // loop_footer
          %s184 = scalar_lea.vmem %s176, 8
          %s185 = scalar_lea.vmem %s177, 8
        $region66: #{custom-call.22} parent=52 // loop_footer_branch
          %186 = sbr.rel target = $region62
        $region67: #{custom-call.22} parent=52 // loop_exit
          _
      $region53: #{custom-call.22} parent=48 // pred_fallthru
        _
      %s187 = sand.u32 16, 7
      %s188 = sshllo.u32 0, %s187
      %s189 = smul.u32 %s140, 128
      %s190 = sshra.s32 %s189, 4
      %s191 = scalar_lea.vmem [#allocation2], %s190
      %s192 = smul.u32 %s140, 128
      %s193 = sshra.s32 %s192, 4
      %s194 = scalar_lea.vmem %s2, %s193
      %v195 = vld [vmem:[%s194] sm:%s188]
      %196 = vst [vmem:[%s191] sm:%s188] %v195
    $region49: #{custom-call.22} parent=1 // pred_fallthru
      _
    %p198 = scmp.gt.s32.totalorder 16, 0
    // Predicated region
    $region68: #{custom-call.22} parent=1 // pred_check
      %p199 = pneg %p198
    $region69: #{custom-call.22} parent=1 // pred_check_branch
      %201 = sbr.rel (%p199) target = $region71
    $region70: #{custom-call.22} parent=1 // pred_region
      %s202 = sshra.s32 16, 3
      %p203 = scmp.gt.s32.totalorder %s202, 0
      // Predicated region
      $region72: #{custom-call.22} parent=70 // pred_check
        %p204 = pneg %p203
      $region73: #{custom-call.22} parent=70 // pred_check_branch
        %206 = sbr.rel (%p204) target = $region75
      $region74: #{custom-call.22} parent=70 // pred_region
        %s207 = ssub.s32 %s202, 1
        %s208 = smul.u32 %s207, 128
        %s209 = sshra.s32 %s208, 4
        %s210 = scalar_lea.vmem %s3, %s209
        %v211 = vld [vmem:[%s3] sm:$0xff]
        // While loop
        $region76: #{custom-call.22} parent=74 // loop_pre_header
          _
        $region77: #{custom-call.22} parent=74 // loop_header
          %s212 = sphi %s3, %s234
          %s213 = sphi [#allocation3], %s235
          %v214 = vphi %v211, %v236
          %s215 = ssub.s32 %s210, 64
          %p216 = scmp.gt.s32.totalorder %s212, %s215
        $region78: #{custom-call.22} parent=74 // loop_header_branch
          %218 = sbr.rel (%p216) target = $region82
        $region79: #{custom-call.22} parent=74 // loop_body
          %219 = vst [vmem:[%s213] sm:$0xff] %v214
          %v220 = vld [vmem:[%s212 + $0x8] sm:$0xff]
          %221 = vst [vmem:[%s213 + $0x8] sm:$0xff] %v220
          %v222 = vld [vmem:[%s212 + $0x10] sm:$0xff]
          %223 = vst [vmem:[%s213 + $0x10] sm:$0xff] %v222
          %v224 = vld [vmem:[%s212 + $0x18] sm:$0xff]
          %225 = vst [vmem:[%s213 + $0x18] sm:$0xff] %v224
          %v226 = vld [vmem:[%s212 + $0x20] sm:$0xff]
          %227 = vst [vmem:[%s213 + $0x20] sm:$0xff] %v226
          %v228 = vld [vmem:[%s212 + $0x28] sm:$0xff]
          %229 = vst [vmem:[%s213 + $0x28] sm:$0xff] %v228
          %v230 = vld [vmem:[%s212 + $0x30] sm:$0xff]
          %231 = vst [vmem:[%s213 + $0x30] sm:$0xff] %v230
          %v232 = vld [vmem:[%s212 + $0x38] sm:$0xff]
          %233 = vst [vmem:[%s213 + $0x38] sm:$0xff] %v232
        $region80: #{custom-call.22} parent=74 // loop_footer
          %s234 = scalar_lea.vmem %s212, 64
          %s235 = scalar_lea.vmem %s213, 64
          %v236 = vld [vmem:[%s212 + $0x40] sm:$0xff]
        $region81: #{custom-call.22} parent=74 // loop_footer_branch
          %237 = sbr.rel target = $region77
        $region82: #{custom-call.22} parent=74 // loop_exit
          _
        // While loop
        $region83: #{custom-call.22} parent=74 // loop_pre_header
          _
        $region84: #{custom-call.22} parent=74 // loop_header
          %s238 = sphi %s212, %s246
          %s239 = sphi %s213, %s247
          %v240 = vphi %v214, %v240
          %p241 = scmp.gt.s32.totalorder %s238, %s210
        $region85: #{custom-call.22} parent=74 // loop_header_branch
          %243 = sbr.rel (%p241) target = $region89
        $region86: #{custom-call.22} parent=74 // loop_body
          %v244 = vld [vmem:[%s238] sm:$0xff]
          %245 = vst [vmem:[%s239] sm:$0xff] %v244
        $region87: #{custom-call.22} parent=74 // loop_footer
          %s246 = scalar_lea.vmem %s238, 8
          %s247 = scalar_lea.vmem %s239, 8
        $region88: #{custom-call.22} parent=74 // loop_footer_branch
          %248 = sbr.rel target = $region84
        $region89: #{custom-call.22} parent=74 // loop_exit
          _
      $region75: #{custom-call.22} parent=70 // pred_fallthru
        _
      %s249 = sand.u32 16, 7
      %s250 = sshllo.u32 0, %s249
      %s251 = smul.u32 %s202, 128
      %s252 = sshra.s32 %s251, 4
      %s253 = scalar_lea.vmem [#allocation3], %s252
      %s254 = smul.u32 %s202, 128
      %s255 = sshra.s32 %s254, 4
      %s256 = scalar_lea.vmem %s3, %s255
      %v257 = vld [vmem:[%s256] sm:%s250]
      %258 = vst [vmem:[%s253] sm:%s250] %v257
    $region71: #{custom-call.22} parent=1 // pred_fallthru
      _
    %s259 = smov [#allocation12]
    %v260 = vld [vmem:[#allocation0] sm:$0xff]
    %261 = vst [vmem:[%s259] sm:$0xff] %v260
    %s262 = scalar_lea.vmem %s259, 8
    %s263 = scalar_lea.vmem [#allocation0], 8
    %v264 = vld [vmem:[%s263] sm:$0xff]
    %265 = vst [vmem:[%s262] sm:$0xff] %v264
    %s266 = smov [#allocation13]
    %v267 = vld [vmem:[#allocation1] sm:$0xff]
    %268 = vst [vmem:[%s266] sm:$0xff] %v267
    %s269 = scalar_lea.vmem %s266, 8
    %s270 = scalar_lea.vmem [#allocation1], 8
    %v271 = vld [vmem:[%s270] sm:$0xff]
    %272 = vst [vmem:[%s269] sm:$0xff] %v271
    %s273 = smov [#allocation14]
    %v274 = vld [vmem:[#allocation2] sm:$0xff]
    %275 = vst [vmem:[%s273] sm:$0xff] %v274
    %s276 = scalar_lea.vmem %s273, 8
    %s277 = scalar_lea.vmem [#allocation2], 8
    %v278 = vld [vmem:[%s277] sm:$0xff]
    %279 = vst [vmem:[%s276] sm:$0xff] %v278
    %s280 = smov [#allocation15]
    %v281 = vld [vmem:[#allocation3] sm:$0xff]
    %282 = vst [vmem:[%s280] sm:$0xff] %v281
    %s283 = scalar_lea.vmem %s280, 8
    %s284 = scalar_lea.vmem [#allocation3], 8
    %v285 = vld [vmem:[%s284] sm:$0xff]
    %286 = vst [vmem:[%s283] sm:$0xff] %v285
    %287 = vst [vmem:[#allocation8] sm:$0xff] 0.0
    %s288 = scalar_lea.vmem [#allocation8], 8
    %289 = vst [vmem:[%s288] sm:$0xff] 0.0
    %290 = vst [vmem:[#allocation9] sm:$0xff] 0.0
    %s291 = scalar_lea.vmem [#allocation9], 8
    %292 = vst [vmem:[%s291] sm:$0xff] 0.0
    %293 = vst [vmem:[#allocation10] sm:$0xff] 0.0
    %s294 = scalar_lea.vmem [#allocation10], 8
    %295 = vst [vmem:[%s294] sm:$0xff] 0.0
    %296 = vst [vmem:[#allocation11] sm:$0xff] 0.0
    %s297 = scalar_lea.vmem [#allocation11], 8
    %298 = vst [vmem:[%s297] sm:$0xff] 0.0
    %s299 = smov [#allocation8]
    %v300 = vlaneseq
    %v301 = vand.u32 %v300, 127
    %v302 = vmov %v301
    %v303 = vlaneseq
    %v304 = vshrl.u32 %v303, 7
    %v305 = vmov %v304
    %v306 = vld [vmem:[%s299] sm:$0xff]
    %vm309 = vcmp.eq.s32.totalorder %v305, %v302
    %v310 = vsel %vm309, 1.0, %v306
    %311 = vst [vmem:[%s299] sm:$0xff] %v310
    %s312 = scalar_lea.vmem %s299, 8
    %v313 = vld [vmem:[%s312] sm:$0xff]
    %v315 = vadd.s32 %v305, 8
    %vm316 = vcmp.eq.s32.totalorder %v315, %v302
    %v317 = vsel %vm316, 1.0, %v313
    %318 = vst [vmem:[%s312] sm:$0xff] %v317
    %s319 = smov [#allocation11]
    %v320 = vlaneseq
    %v321 = vand.u32 %v320, 127
    %v322 = vmov %v321
    %v323 = vlaneseq
    %v324 = vshrl.u32 %v323, 7
    %v325 = vmov %v324
    %v326 = vld [vmem:[%s319] sm:$0xff]
    %vm329 = vcmp.eq.s32.totalorder %v325, %v322
    %v330 = vsel %vm329, 1.0, %v326
    %331 = vst [vmem:[%s319] sm:$0xff] %v330
    %s332 = scalar_lea.vmem %s319, 8
    %v333 = vld [vmem:[%s332] sm:$0xff]
    %v335 = vadd.s32 %v325, 8
    %vm336 = vcmp.eq.s32.totalorder %v335, %v322
    %v337 = vsel %vm336, 1.0, %v333
    %338 = vst [vmem:[%s332] sm:$0xff] %v337
    // While loop
    $region90: #{custom-call.22} parent=1 // loop_pre_header
      _
    $region91: #{custom-call.22} parent=1 // loop_header
      %s340 = sphi 0, %s1238
      %v341 = vlaneseq
      %v342 = vand.u32 %v341, 127
      %v343 = vmov %v342
      %v344 = vlaneseq
      %v345 = vshrl.u32 %v344, 7
      %v346 = vmov %v345
      %s347 = smov [#allocation12]
      %v348 = vlaneseq
      %v349 = vand.u32 %v348, 127
      %vm350 = vcmp.ge.s32.totalorder %v349, 0
      %vm351 = vcmp.lt.s32.totalorder %v349, 16
      %vm352 = vmand %vm350, %vm351
      %v353 = vld [vmem:[%s347] sm:$0xff]
      %v354 = vsel %vm352, %v353, 0.0
      %v355 = vmul.f32 %v354, %v354
      %vm358 = vcmp.eq.s32.totalorder %v346, %v343
      %v359 = vsel %vm358, 0.0, %v355
      %s360 = scalar_lea.vmem %s347, 8
      %v361 = vld [vmem:[%s360] sm:$0xff]
      %v362 = vsel %vm352, %v361, 0.0
      %v363 = vmul.f32 %v362, %v362
      %v365 = vadd.s32 %v346, 8
      %vm366 = vcmp.eq.s32.totalorder %v365, %v343
      %v367 = vsel %vm366, 0.0, %v363
      %v368 = vadd.f32 %v359, %v367
      %v369 = vadd.f32 %v355, %v363
      %v370 = vlaneseq
      %v371 = vand.u32 %v370, 127
      %v372 = vmov %v371
      %v373 = vlaneseq
      %v374 = vshrl.u32 %v373, 7
      %v375 = vmov %v374
      %s376 = smov [#allocation13]
      %v377 = vlaneseq
      %v378 = vand.u32 %v377, 127
      %vm379 = vcmp.ge.s32.totalorder %v378, 0
      %vm380 = vcmp.lt.s32.totalorder %v378, 16
      %vm381 = vmand %vm379, %vm380
      %v382 = vld [vmem:[%s376] sm:$0xff]
      %v383 = vsel %vm381, %v382, 0.0
      %v384 = vmul.f32 %v383, %v383
      %v385 = vadd.f32 %v368, %v384
      %v386 = vadd.f32 %v369, %v384
      %s387 = scalar_lea.vmem %s376, 8
      %v388 = vld [vmem:[%s387] sm:$0xff]
      %v389 = vsel %vm381, %v388, 0.0
      %v390 = vmul.f32 %v389, %v389
      %v391 = vadd.f32 %v385, %v390
      %v392 = vadd.f32 %v386, %v390
      %v393 = vlaneseq
      %v394 = vand.u32 %v393, 127
      %v395 = vmov %v394
      %v396 = vlaneseq
      %v397 = vshrl.u32 %v396, 7
      %v398 = vmov %v397
      %s399 = smov [#allocation14]
      %v400 = vlaneseq
      %v401 = vand.u32 %v400, 127
      %vm402 = vcmp.ge.s32.totalorder %v401, 0
      %vm403 = vcmp.lt.s32.totalorder %v401, 16
      %vm404 = vmand %vm402, %vm403
      %v405 = vld [vmem:[%s399] sm:$0xff]
      %v406 = vsel %vm404, %v405, 0.0
      %v407 = vmul.f32 %v406, %v406
      %v408 = vadd.f32 %v391, %v407
      %v409 = vadd.f32 %v392, %v407
      %s410 = scalar_lea.vmem %s399, 8
      %v411 = vld [vmem:[%s410] sm:$0xff]
      %v412 = vsel %vm404, %v411, 0.0
      %v413 = vmul.f32 %v412, %v412
      %v414 = vadd.f32 %v408, %v413
      %v415 = vadd.f32 %v409, %v413
      %v416 = vlaneseq
      %v417 = vand.u32 %v416, 127
      %v418 = vmov %v417
      %v419 = vlaneseq
      %v420 = vshrl.u32 %v419, 7
      %v421 = vmov %v420
      %s422 = smov [#allocation15]
      %v423 = vlaneseq
      %v424 = vand.u32 %v423, 127
      %vm425 = vcmp.ge.s32.totalorder %v424, 0
      %vm426 = vcmp.lt.s32.totalorder %v424, 16
      %vm427 = vmand %vm425, %vm426
      %v428 = vld [vmem:[%s422] sm:$0xff]
      %v429 = vsel %vm427, %v428, 0.0
      %v430 = vmul.f32 %v429, %v429
      %vm433 = vcmp.eq.s32.totalorder %v421, %v418
      %v434 = vsel %vm433, 0.0, %v430
      %v435 = vadd.f32 %v414, %v434
      %v436 = vadd.f32 %v415, %v430
      %s437 = scalar_lea.vmem %s422, 8
      %v438 = vld [vmem:[%s437] sm:$0xff]
      %v439 = vsel %vm427, %v438, 0.0
      %v440 = vmul.f32 %v439, %v439
      %v442 = vadd.s32 %v421, 8
      %vm443 = vcmp.eq.s32.totalorder %v442, %v418
      %v444 = vsel %vm443, 0.0, %v440
      %v445 = vadd.f32 %v435, %v444
      %v446 = vadd.f32 %v436, %v440
      %447 = vadd.xlane.f32.xlu0 %v446
      %v448 = vpop.xlane.xlu0 %447
      %v449 = vrot.slane %v448, 4
      %v450 = vadd.f32 %v448, %v449
      %v451 = vrot.slane %v450, 2
      %v452 = vadd.f32 %v450, %v451
      %v453 = vrot.slane %v452, 1
      %v454 = vadd.f32 %v452, %v453
      %455 = vadd.xlane.f32.xlu0 %v445
      %v456 = vpop.xlane.xlu0 %455
      %v457 = vrot.slane %v456, 4
      %v458 = vadd.f32 %v456, %v457
      %v459 = vrot.slane %v458, 2
      %v460 = vadd.f32 %v458, %v459
      %v461 = vrot.slane %v460, 1
      %v462 = vadd.f32 %v460, %v461
      %s463 = vtos %v462
      %s464 = vtos %v454
      %s465 = smul.f32 1e-10, %s464
      %p466 = scmp.le.f32.partialorder %s463, %s465
      %p467 = scmp.ge.s32.totalorder %s340, 15
      %p468 = por %p466, %p467
    $region92: #{custom-call.22} parent=1 // loop_header_branch
      %1240 = sbr.rel (%p468) target = $region96
    $region93: #{custom-call.22} parent=1 // loop_body
      loop: start=0, step=1, limit=31
      $region97: #{custom-call.22} parent=93 // loop_pre_header
        _
      $region98: #{custom-call.22} parent=93 // loop_header
        %s470 = sphi 0, %s474
        %p471 = scmp.ge.s32.totalorder %s470, 31
      $region99: #{custom-call.22} parent=93 // loop_header_branch
        %473 = sbr.rel (%p471) target = $region103
      $region100: #{custom-call.22} parent=93 // loop_body
        #allocation16 [shape = 'f32[1024]{0}', space=vmem, size = 0x1000, scoped, tag = 'a_tl_diag vmem']
        #allocation17 [shape = 'f32[1024]{0}', space=vmem, size = 0x1000, scoped, tag = 'a_tr_diag vmem']
        #allocation18 [shape = 'f32[1024]{0}', space=vmem, size = 0x1000, scoped, tag = 'a_br_diag vmem']
        #allocation19 [shape = 'f32[1024]{0}', space=vmem, size = 0x1000, scoped, tag = 'rt1 vmem']
        #allocation20 [shape = 'f32[1024]{0}', space=vmem, size = 0x1000, scoped, tag = 'rt2 vmem']
        #allocation21 [shape = 'f32[1024]{0}', space=vmem, size = 0x1000, scoped, tag = 'c vmem']
        #allocation22 [shape = 'f32[1024]{0}', space=vmem, size = 0x1000, scoped, tag = 's vmem']
        #allocation23 [shape = 'f32[8192]{0}', space=vmem, size = 0x8000, scoped, tag = 'c broadcast']
        #allocation24 [shape = 'f32[8192]{0}', space=vmem, size = 0x8000, scoped, tag = 's broadcast']
        %s475 = smov [#allocation12]
        %s476 = smov [#allocation16]
        %v477 = vlaneseq
        %v478 = vand.u32 %v477, 127
        %v479 = vmov %v478
        %v480 = vlaneseq
        %v481 = vshrl.u32 %v480, 7
        %v482 = vmov %v481
        %v483 = vld [vmem:[%s475] sm:$0xff]
        %vm486 = vcmp.eq.s32.totalorder %v482, %v479
        %v487 = vsel %vm486, %v483, 0.0
        %s488 = scalar_lea.vmem %s475, 8
        %v489 = vld [vmem:[%s488] sm:$0xff]
        %v491 = vadd.s32 %v482, 8
        %vm492 = vcmp.eq.s32.totalorder %v491, %v479
        %v493 = vsel %vm492, %v489, %v487
        %v494 = vrot.slane %v493, 4
        %v495 = vadd.f32 %v493, %v494
        %v496 = vrot.slane %v495, 2
        %v497 = vadd.f32 %v495, %v496
        %v498 = vrot.slane %v497, 1
        %v499 = vadd.f32 %v497, %v498
        %500 = vst [vmem:[%s476] sm:$0x1] %v499
        %s501 = smov [#allocation13]
        %s502 = smov [#allocation17]
        %v503 = vlaneseq
        %v504 = vand.u32 %v503, 127
        %v505 = vmov %v504
        %v506 = vlaneseq
        %v507 = vshrl.u32 %v506, 7
        %v508 = vmov %v507
        %v509 = vld [vmem:[%s501] sm:$0xff]
        %vm512 = vcmp.eq.s32.totalorder %v508, %v505
        %v513 = vsel %vm512, %v509, 0.0
        %s514 = scalar_lea.vmem %s501, 8
        %v515 = vld [vmem:[%s514] sm:$0xff]
        %v517 = vadd.s32 %v508, 8
        %vm518 = vcmp.eq.s32.totalorder %v517, %v505
        %v519 = vsel %vm518, %v515, %v513
        %v520 = vrot.slane %v519, 4
        %v521 = vadd.f32 %v519, %v520
        %v522 = vrot.slane %v521, 2
        %v523 = vadd.f32 %v521, %v522
        %v524 = vrot.slane %v523, 1
        %v525 = vadd.f32 %v523, %v524
        %526 = vst [vmem:[%s502] sm:$0x1] %v525
        %s527 = smov [#allocation15]
        %s528 = smov [#allocation18]
        %v529 = vlaneseq
        %v530 = vand.u32 %v529, 127
        %v531 = vmov %v530
        %v532 = vlaneseq
        %v533 = vshrl.u32 %v532, 7
        %v534 = vmov %v533
        %v535 = vld [vmem:[%s527] sm:$0xff]
        %vm538 = vcmp.eq.s32.totalorder %v534, %v531
        %v539 = vsel %vm538, %v535, 0.0
        %s540 = scalar_lea.vmem %s527, 8
        %v541 = vld [vmem:[%s540] sm:$0xff]
        %v543 = vadd.s32 %v534, 8
        %vm544 = vcmp.eq.s32.totalorder %v543, %v531
        %v545 = vsel %vm544, %v541, %v539
        %v546 = vrot.slane %v545, 4
        %v547 = vadd.f32 %v545, %v546
        %v548 = vrot.slane %v547, 2
        %v549 = vadd.f32 %v547, %v548
        %v550 = vrot.slane %v549, 1
        %v551 = vadd.f32 %v549, %v550
        %552 = vst [vmem:[%s528] sm:$0x1] %v551
        %s553 = smov [#allocation21]
        %s554 = smov [#allocation22]
        %s555 = smov [#allocation16]
        %v556 = vld [vmem:[%s555] sm:$0xff]
        %s557 = smov [#allocation17]
        %v558 = vld [vmem:[%s557] sm:$0xff]
        %s559 = smov [#allocation18]
        %v560 = vld [vmem:[%s559] sm:$0xff]
        %v561 = vsub.f32 %v560, %v556
        %v562 = vmul.f32 2.0, %v558
        %v563 = vrcp.pop %v562
        %v564 = vmul.f32 %v561, %v563
        %vm565 = vcmp.ge.f32.partialorder %v564, 0.0
        %v566 = vmul.f32 %v564, %v564
        %v567 = vadd.f32 1.0, %v566
        %v568 = vrsqrt.pop %v567
        %v569 = vmul.f32 %v567, %v568
        %vm570 = vcmp.eq.f32.partialorder %v567, inf
        %v571 = vsel %vm570, %v567, %v569
        %vm572 = vcmp.eq.f32.partialorder %v567, 0.0
        %v573 = vand.u32 %v567, 2147483648
        %v574 = vsel %vm572, %v573, %v571
        %v575 = vxor.u32 %v574, 2147483648
        %v576 = vsel %vm565, %v574, %v575
        %v577 = vadd.f32 %v564, %v576
        %v578 = vrcp.pop %v577
        %v579 = vand.u32 2147483647, %v556
        %v580 = vand.u32 2147483647, %v558
        %v581 = vand.u32 2147483647, %v560
        %v582 = vmin.f32 %v579, %v581
        %v583 = vmul.f32 1.1920929e-08, %v582
        %vm584 = vcmp.le.f32.partialorder %v580, %v583
        %v585 = vsel %vm584, 0.0, %v578
        %v586 = vmul.f32 %v585, %v585
        %v587 = vadd.f32 1.0, %v586
        %v588 = vrsqrt.pop %v587
        %v589 = vmul.f32 %v585, %v588
        %v590 = vmul.f32 %v585, %v558
        %v591 = vsub.f32 %v556, %v590
        %v592 = vmul.f32 %v585, %v558
        %v593 = vadd.f32 %v560, %v592
        %s594 = smov [#allocation19]
        %595 = vst [vmem:[%s594] sm:$0xff] %v591
        %s596 = smov [#allocation20]
        %597 = vst [vmem:[%s596] sm:$0xff] %v593
        %s598 = smov %s553
        %599 = vst [vmem:[%s598] sm:$0xff] %v588
        %s600 = smov %s554
        %601 = vst [vmem:[%s600] sm:$0xff] %v589
        %s602 = smov [#allocation21]
        %v603 = vld [vmem:[%s602] ss:$0 sm:$0xff]
        %v604 = vlaneseq
        %v605 = vand.u32 %v604, 127
        %v606 = vmov %v605
        %v607 = vlaneseq
        %v608 = vshrl.u32 %v607, 7
        %v609 = vmov %v608
        %vm611 = vcmp.eq.s32.totalorder %v609, %v606
        %v612 = vsel %vm611, %v603, 0.0
        %613 = vadd.xlane.f32.xlu0 %v612
        %v614 = vpop.xlane.xlu0 %613
        %s615 = smov [#allocation23]
        %616 = vst [vmem:[%s615] sm:$0xff] %v614
        %s617 = smov [#allocation21]
        %v618 = vld [vmem:[%s617] ss:$0 sm:$0xff]
        %v619 = vlaneseq
        %v620 = vand.u32 %v619, 127
        %v621 = vmov %v620
        %v622 = vlaneseq
        %v623 = vshrl.u32 %v622, 7
        %v624 = vmov %v623
        %v625 = vadd.s32 %v624, 8
        %vm626 = vcmp.eq.s32.totalorder %v625, %v621
        %v627 = vsel %vm626, %v618, 0.0
        %628 = vadd.xlane.f32.xlu0 %v627
        %v629 = vpop.xlane.xlu0 %628
        %s630 = smov [#allocation23]
        %s631 = scalar_lea.vmem %s630, 8
        %632 = vst [vmem:[%s631] sm:$0xff] %v629
        %s633 = smov [#allocation22]
        %v634 = vld [vmem:[%s633] ss:$0 sm:$0xff]
        %v635 = vlaneseq
        %v636 = vand.u32 %v635, 127
        %v637 = vmov %v636
        %v638 = vlaneseq
        %v639 = vshrl.u32 %v638, 7
        %v640 = vmov %v639
        %vm642 = vcmp.eq.s32.totalorder %v640, %v637
        %v643 = vsel %vm642, %v634, 0.0
        %644 = vadd.xlane.f32.xlu0 %v643
        %v645 = vpop.xlane.xlu0 %644
        %s646 = smov [#allocation24]
        %647 = vst [vmem:[%s646] sm:$0xff] %v645
        %s648 = smov [#allocation22]
        %v649 = vld [vmem:[%s648] ss:$0 sm:$0xff]
        %v650 = vlaneseq
        %v651 = vand.u32 %v650, 127
        %v652 = vmov %v651
        %v653 = vlaneseq
        %v654 = vshrl.u32 %v653, 7
        %v655 = vmov %v654
        %v656 = vadd.s32 %v655, 8
        %vm657 = vcmp.eq.s32.totalorder %v656, %v652
        %v658 = vsel %vm657, %v649, 0.0
        %659 = vadd.xlane.f32.xlu0 %v658
        %v660 = vpop.xlane.xlu0 %659
        %s661 = smov [#allocation24]
        %s662 = scalar_lea.vmem %s661, 8
        %663 = vst [vmem:[%s662] sm:$0xff] %v660
        %s664 = smov [#allocation23]
        %v665 = vld [vmem:[%s664] sm:$0xff]
        %s666 = smov [#allocation24]
        %v667 = vld [vmem:[%s666] sm:$0xff]
        %s668 = smov [#allocation12]
        %s669 = smov [#allocation13]
        %s670 = smov [#allocation14]
        %s671 = smov [#allocation15]
        %v672 = vld [vmem:[%s668] sm:$0xff]
        %v673 = vld [vmem:[%s669] sm:$0xff]
        %v674 = vld [vmem:[%s670] sm:$0xff]
        %v675 = vld [vmem:[%s671] sm:$0xff]
        %v676 = vmul.f32 %v665, %v672
        %v677 = vmul.f32 %v667, %v674
        %v678 = vsub.f32 %v676, %v677
        %v679 = vmul.f32 %v665, %v673
        %v680 = vmul.f32 %v667, %v675
        %v681 = vsub.f32 %v679, %v680
        %v682 = vmul.f32 %v667, %v672
        %v683 = vmul.f32 %v665, %v674
        %v684 = vadd.f32 %v682, %v683
        %v685 = vmul.f32 %v667, %v673
        %v686 = vmul.f32 %v665, %v675
        %v687 = vadd.f32 %v685, %v686
        %688 = vst [vmem:[%s668] sm:$0xff] %v678
        %689 = vst [vmem:[%s669] sm:$0xff] %v681
        %690 = vst [vmem:[%s670] sm:$0xff] %v684
        %691 = vst [vmem:[%s671] sm:$0xff] %v687
        %s692 = smov [#allocation23]
        %s693 = scalar_lea.vmem %s692, 8
        %v694 = vld [vmem:[%s693] sm:$0xff]
        %s695 = smov [#allocation24]
        %s696 = scalar_lea.vmem %s695, 8
        %v697 = vld [vmem:[%s696] sm:$0xff]
        %s698 = smov [#allocation12]
        %s699 = scalar_lea.vmem %s698, 8
        %s700 = smov [#allocation13]
        %s701 = scalar_lea.vmem %s700, 8
        %s702 = smov [#allocation14]
        %s703 = scalar_lea.vmem %s702, 8
        %s704 = smov [#allocation15]
        %s705 = scalar_lea.vmem %s704, 8
        %v706 = vld [vmem:[%s699] sm:$0xff]
        %v707 = vld [vmem:[%s701] sm:$0xff]
        %v708 = vld [vmem:[%s703] sm:$0xff]
        %v709 = vld [vmem:[%s705] sm:$0xff]
        %v710 = vmul.f32 %v694, %v706
        %v711 = vmul.f32 %v697, %v708
        %v712 = vsub.f32 %v710, %v711
        %v713 = vmul.f32 %v694, %v707
        %v714 = vmul.f32 %v697, %v709
        %v715 = vsub.f32 %v713, %v714
        %v716 = vmul.f32 %v697, %v706
        %v717 = vmul.f32 %v694, %v708
        %v718 = vadd.f32 %v716, %v717
        %v719 = vmul.f32 %v697, %v707
        %v720 = vmul.f32 %v694, %v709
        %v721 = vadd.f32 %v719, %v720
        %722 = vst [vmem:[%s699] sm:$0xff] %v712
        %723 = vst [vmem:[%s701] sm:$0xff] %v715
        %724 = vst [vmem:[%s703] sm:$0xff] %v718
        %725 = vst [vmem:[%s705] sm:$0xff] %v721
        %s726 = smov [#allocation21]
        %v727 = vld [vmem:[%s726] ss:$0 sm:$0xff]
        %s728 = smov [#allocation22]
        %v729 = vld [vmem:[%s728] ss:$0 sm:$0xff]
        %s730 = smov [#allocation12]
        %s731 = smov [#allocation13]
        %s732 = smov [#allocation14]
        %s733 = smov [#allocation15]
        %v734 = vld [vmem:[%s730] sm:$0xff]
        %v735 = vld [vmem:[%s731] sm:$0xff]
        %v736 = vld [vmem:[%s732] sm:$0xff]
        %v737 = vld [vmem:[%s733] sm:$0xff]
        %v738 = vmul.f32 %v727, %v734
        %v739 = vmul.f32 %v729, %v735
        %v740 = vsub.f32 %v738, %v739
        %v741 = vmul.f32 %v729, %v734
        %v742 = vmul.f32 %v727, %v735
        %v743 = vadd.f32 %v741, %v742
        %v744 = vmul.f32 %v727, %v736
        %v745 = vmul.f32 %v729, %v737
        %v746 = vsub.f32 %v744, %v745
        %v747 = vmul.f32 %v729, %v736
        %v748 = vmul.f32 %v727, %v737
        %v749 = vadd.f32 %v747, %v748
        %750 = vst [vmem:[%s730] sm:$0xff] %v740
        %751 = vst [vmem:[%s731] sm:$0xff] %v743
        %752 = vst [vmem:[%s732] sm:$0xff] %v746
        %753 = vst [vmem:[%s733] sm:$0xff] %v749
        %s754 = smov [#allocation12]
        %s755 = scalar_lea.vmem %s754, 8
        %s756 = smov [#allocation13]
        %s757 = scalar_lea.vmem %s756, 8
        %s758 = smov [#allocation14]
        %s759 = scalar_lea.vmem %s758, 8
        %s760 = smov [#allocation15]
        %s761 = scalar_lea.vmem %s760, 8
        %v762 = vld [vmem:[%s755] sm:$0xff]
        %v763 = vld [vmem:[%s757] sm:$0xff]
        %v764 = vld [vmem:[%s759] sm:$0xff]
        %v765 = vld [vmem:[%s761] sm:$0xff]
        %v766 = vmul.f32 %v727, %v762
        %v767 = vmul.f32 %v729, %v763
        %v768 = vsub.f32 %v766, %v767
        %v769 = vmul.f32 %v729, %v762
        %v770 = vmul.f32 %v727, %v763
        %v771 = vadd.f32 %v769, %v770
        %v772 = vmul.f32 %v727, %v764
        %v773 = vmul.f32 %v729, %v765
        %v774 = vsub.f32 %v772, %v773
        %v775 = vmul.f32 %v729, %v764
        %v776 = vmul.f32 %v727, %v765
        %v777 = vadd.f32 %v775, %v776
        %778 = vst [vmem:[%s755] sm:$0xff] %v768
        %779 = vst [vmem:[%s757] sm:$0xff] %v771
        %780 = vst [vmem:[%s759] sm:$0xff] %v774
        %781 = vst [vmem:[%s761] sm:$0xff] %v777
        %s782 = smov [#allocation12]
        %s783 = smov [#allocation19]
        %v784 = vlaneseq
        %v785 = vand.u32 %v784, 127
        %v786 = vmov %v785
        %v787 = vlaneseq
        %v788 = vshrl.u32 %v787, 7
        %v789 = vmov %v788
        %v790 = vld [vmem:[%s783] ss:$0 sm:$0xff]
        %v791 = vld [vmem:[%s782] sm:$0xff]
        %vm794 = vcmp.eq.s32.totalorder %v789, %v786
        %v795 = vsel %vm794, %v790, %v791
        %796 = vst [vmem:[%s782] sm:$0xff] %v795
        %v797 = vld [vmem:[%s783] ss:$0 sm:$0xff]
        %s798 = scalar_lea.vmem %s782, 8
        %v799 = vld [vmem:[%s798] sm:$0xff]
        %v801 = vadd.s32 %v789, 8
        %vm802 = vcmp.eq.s32.totalorder %v801, %v786
        %v803 = vsel %vm802, %v797, %v799
        %804 = vst [vmem:[%s798] sm:$0xff] %v803
        %s805 = smov [#allocation13]
        %v806 = vlaneseq
        %v807 = vand.u32 %v806, 127
        %v808 = vmov %v807
        %v809 = vlaneseq
        %v810 = vshrl.u32 %v809, 7
        %v811 = vmov %v810
        %v812 = vld [vmem:[%s805] sm:$0xff]
        %vm815 = vcmp.eq.s32.totalorder %v811, %v808
        %v816 = vsel %vm815, 0.0, %v812
        %817 = vst [vmem:[%s805] sm:$0xff] %v816
        %s818 = scalar_lea.vmem %s805, 8
        %v819 = vld [vmem:[%s818] sm:$0xff]
        %v821 = vadd.s32 %v811, 8
        %vm822 = vcmp.eq.s32.totalorder %v821, %v808
        %v823 = vsel %vm822, 0.0, %v819
        %824 = vst [vmem:[%s818] sm:$0xff] %v823
        %s825 = smov [#allocation14]
        %v826 = vlaneseq
        %v827 = vand.u32 %v826, 127
        %v828 = vmov %v827
        %v829 = vlaneseq
        %v830 = vshrl.u32 %v829, 7
        %v831 = vmov %v830
        %v832 = vld [vmem:[%s825] sm:$0xff]
        %vm835 = vcmp.eq.s32.totalorder %v831, %v828
        %v836 = vsel %vm835, 0.0, %v832
        %837 = vst [vmem:[%s825] sm:$0xff] %v836
        %s838 = scalar_lea.vmem %s825, 8
        %v839 = vld [vmem:[%s838] sm:$0xff]
        %v841 = vadd.s32 %v831, 8
        %vm842 = vcmp.eq.s32.totalorder %v841, %v828
        %v843 = vsel %vm842, 0.0, %v839
        %844 = vst [vmem:[%s838] sm:$0xff] %v843
        %s845 = smov [#allocation15]
        %s846 = smov [#allocation20]
        %v847 = vlaneseq
        %v848 = vand.u32 %v847, 127
        %v849 = vmov %v848
        %v850 = vlaneseq
        %v851 = vshrl.u32 %v850, 7
        %v852 = vmov %v851
        %v853 = vld [vmem:[%s846] ss:$0 sm:$0xff]
        %v854 = vld [vmem:[%s845] sm:$0xff]
        %vm857 = vcmp.eq.s32.totalorder %v852, %v849
        %v858 = vsel %vm857, %v853, %v854
        %859 = vst [vmem:[%s845] sm:$0xff] %v858
        %v860 = vld [vmem:[%s846] ss:$0 sm:$0xff]
        %s861 = scalar_lea.vmem %s845, 8
        %v862 = vld [vmem:[%s861] sm:$0xff]
        %v864 = vadd.s32 %v852, 8
        %vm865 = vcmp.eq.s32.totalorder %v864, %v849
        %v866 = vsel %vm865, %v860, %v862
        %867 = vst [vmem:[%s861] sm:$0xff] %v866
        %s868 = smov [#allocation12]
        %s869 = smov [#allocation13]
        %v870 = vld [vmem:[%s869] sm:$0xff]
        %871 = vrot.lane.b32.xlu0 %v870, 1
        %v872 = vpop.permute.xlu0 %871
        %v873 = vld [vmem:[%s868] sm:$0xff]
        %v874 = vld [vmem:[%s868] sm:$0xff]
        %875 = vrot.lane.b32.xlu0 %v874, 1
        %v876 = vpop.permute.xlu0 %875
        %v877 = vlaneseq
        %v878 = vand.u32 %v877, 127
        %vm879 = vcmp.eq.s32.totalorder %v878, 0
        %v880 = vsel %vm879, %v874, %v876
        %v881 = vlaneseq
        %v882 = vand.u32 %v881, 127
        %vm883 = vcmp.eq.s32.totalorder %v882, 1
        %v884 = vsel %vm883, %v872, %v880
        %v885 = vlaneseq
        %v886 = vand.u32 %v885, 127
        %vm887 = vcmp.ge.s32.totalorder %v886, 0
        %vm888 = vcmp.lt.s32.totalorder %v886, 16
        %vm889 = vmand %vm887, %vm888
        %v890 = vsel %vm889, %v884, 0.0
        %v891 = vld [vmem:[%s869] sm:$0xff]
        %892 = vrot.lane.b32.xlu0 %v891, 127
        %v893 = vpop.permute.xlu0 %892
        %v894 = vlaneseq
        %v895 = vand.u32 %v894, 127
        %vm896 = vcmp.eq.s32.totalorder %v895, 15
        %v897 = vsel %vm896, %v873, %v893
        %s898 = smov [#allocation12]
        %s899 = scalar_lea.vmem %s898, 8
        %s900 = smov [#allocation13]
        %s901 = scalar_lea.vmem %s900, 8
        %v902 = vld [vmem:[%s901] sm:$0xff]
        %903 = vrot.lane.b32.xlu0 %v902, 1
        %v904 = vpop.permute.xlu0 %903
        %v905 = vld [vmem:[%s899] sm:$0xff]
        %v906 = vld [vmem:[%s899] sm:$0xff]
        %907 = vrot.lane.b32.xlu0 %v906, 1
        %v908 = vpop.permute.xlu0 %907
        %v909 = vlaneseq
        %v910 = vand.u32 %v909, 127
        %vm911 = vcmp.eq.s32.totalorder %v910, 0
        %v912 = vsel %vm911, %v906, %v908
        %v913 = vlaneseq
        %v914 = vand.u32 %v913, 127
        %vm915 = vcmp.eq.s32.totalorder %v914, 1
        %v916 = vsel %vm915, %v904, %v912
        %v917 = vlaneseq
        %v918 = vand.u32 %v917, 127
        %vm919 = vcmp.ge.s32.totalorder %v918, 0
        %vm920 = vcmp.lt.s32.totalorder %v918, 16
        %vm921 = vmand %vm919, %vm920
        %v922 = vsel %vm921, %v916, 0.0
        %v923 = vld [vmem:[%s901] sm:$0xff]
        %924 = vrot.lane.b32.xlu0 %v923, 127
        %v925 = vpop.permute.xlu0 %924
        %v926 = vlaneseq
        %v927 = vand.u32 %v926, 127
        %vm928 = vcmp.eq.s32.totalorder %v927, 15
        %v929 = vsel %vm928, %v905, %v925
        %930 = vst [vmem:[%s868] sm:$0xff] %v890
        %931 = vst [vmem:[%s869] sm:$0xff] %v897
        %932 = vst [vmem:[%s899] sm:$0xff] %v922
        %933 = vst [vmem:[%s901] sm:$0xff] %v929
        %s934 = smov [#allocation14]
        %s935 = smov [#allocation15]
        %v936 = vld [vmem:[%s935] sm:$0xff]
        %937 = vrot.lane.b32.xlu0 %v936, 1
        %v938 = vpop.permute.xlu0 %937
        %v939 = vld [vmem:[%s934] sm:$0xff]
        %v940 = vld [vmem:[%s934] sm:$0xff]
        %941 = vrot.lane.b32.xlu0 %v940, 1
        %v942 = vpop.permute.xlu0 %941
        %v943 = vlaneseq
        %v944 = vand.u32 %v943, 127
        %vm945 = vcmp.eq.s32.totalorder %v944, 0
        %v946 = vsel %vm945, %v940, %v942
        %v947 = vlaneseq
        %v948 = vand.u32 %v947, 127
        %vm949 = vcmp.eq.s32.totalorder %v948, 1
        %v950 = vsel %vm949, %v938, %v946
        %v951 = vlaneseq
        %v952 = vand.u32 %v951, 127
        %vm953 = vcmp.ge.s32.totalorder %v952, 0
        %vm954 = vcmp.lt.s32.totalorder %v952, 16
        %vm955 = vmand %vm953, %vm954
        %v956 = vsel %vm955, %v950, 0.0
        %v957 = vld [vmem:[%s935] sm:$0xff]
        %958 = vrot.lane.b32.xlu0 %v957, 127
        %v959 = vpop.permute.xlu0 %958
        %v960 = vlaneseq
        %v961 = vand.u32 %v960, 127
        %vm962 = vcmp.eq.s32.totalorder %v961, 15
        %v963 = vsel %vm962, %v939, %v959
        %s964 = smov [#allocation14]
        %s965 = scalar_lea.vmem %s964, 8
        %s966 = smov [#allocation15]
        %s967 = scalar_lea.vmem %s966, 8
        %v968 = vld [vmem:[%s967] sm:$0xff]
        %969 = vrot.lane.b32.xlu0 %v968, 1
        %v970 = vpop.permute.xlu0 %969
        %v971 = vld [vmem:[%s965] sm:$0xff]
        %v972 = vld [vmem:[%s965] sm:$0xff]
        %973 = vrot.lane.b32.xlu0 %v972, 1
        %v974 = vpop.permute.xlu0 %973
        %v975 = vlaneseq
        %v976 = vand.u32 %v975, 127
        %vm977 = vcmp.eq.s32.totalorder %v976, 0
        %v978 = vsel %vm977, %v972, %v974
        %v979 = vlaneseq
        %v980 = vand.u32 %v979, 127
        %vm981 = vcmp.eq.s32.totalorder %v980, 1
        %v982 = vsel %vm981, %v970, %v978
        %v983 = vlaneseq
        %v984 = vand.u32 %v983, 127
        %vm985 = vcmp.ge.s32.totalorder %v984, 0
        %vm986 = vcmp.lt.s32.totalorder %v984, 16
        %vm987 = vmand %vm985, %vm986
        %v988 = vsel %vm987, %v982, 0.0
        %v989 = vld [vmem:[%s967] sm:$0xff]
        %990 = vrot.lane.b32.xlu0 %v989, 127
        %v991 = vpop.permute.xlu0 %990
        %v992 = vlaneseq
        %v993 = vand.u32 %v992, 127
        %vm994 = vcmp.eq.s32.totalorder %v993, 15
        %v995 = vsel %vm994, %v971, %v991
        %996 = vst [vmem:[%s934] sm:$0xff] %v956
        %997 = vst [vmem:[%s935] sm:$0xff] %v963
        %998 = vst [vmem:[%s965] sm:$0xff] %v988
        %999 = vst [vmem:[%s967] sm:$0xff] %v995
        %s1000 = smov [#allocation12]
        %s1001 = smov [#allocation14]
        %v1002 = vld [vmem:[%s1000] ss:$0 sm:$0xff]
        %s1004 = scalar_lea.vmem %s1000, 4294967295
        %v1005 = vld [vmem:[%s1004] sm:$0xfe]
        %v1006 = vlaneseq
        %v1007 = vshrl.u32 %v1006, 7
        %vm1008 = vcmp.eq.s32.totalorder %v1007, 0
        %v1009 = vsel %vm1008, %v1002, %v1005
        %s1010 = scalar_lea.vmem %s1000, 7
        %v1011 = vld [vmem:[%s1010] ss:$0 sm:$0xff]
        %1012 = vst [vmem:[%s1000] sm:$0xff] %v1009
        %s1013 = scalar_lea.vmem %s1000, 8
        %s1015 = scalar_lea.vmem %s1013, 4294967295
        %v1016 = vld [vmem:[%s1015] sm:$0xfe]
        %v1017 = vlaneseq
        %v1018 = vshrl.u32 %v1017, 7
        %vm1019 = vcmp.eq.s32.totalorder %v1018, 0
        %v1020 = vsel %vm1019, %v1011, %v1016
        %s1021 = scalar_lea.vmem %s1013, 7
        %v1022 = vld [vmem:[%s1021] ss:$0 sm:$0xff]
        %1023 = vst [vmem:[%s1013] sm:$0xff] %v1020
        %v1024 = vld [vmem:[%s1001] ss:$0 sm:$0xff]
        %s1025 = scalar_lea.vmem %s1000, 1
        %1026 = vst [vmem:[%s1025] sm:$0x1] %v1024
        %s1027 = scalar_lea.vmem %s1001, 8
        %s1028 = scalar_lea.vmem %s1027, 1
        %v1029 = vld [vmem:[%s1028] sm:$0x7f]
        %v1030 = vlaneseq
        %v1031 = vshrl.u32 %v1030, 7
        %vm1032 = vcmp.eq.s32.totalorder %v1031, 7
        %v1033 = vsel %vm1032, %v1022, %v1029
        %v1034 = vld [vmem:[%s1027] ss:$0 sm:$0xff]
        %1035 = vst [vmem:[%s1027] sm:$0xff] %v1033
        %s1036 = scalar_lea.vmem %s1001, 1
        %v1037 = vld [vmem:[%s1036] sm:$0x7f]
        %v1038 = vlaneseq
        %v1039 = vshrl.u32 %v1038, 7
        %vm1040 = vcmp.eq.s32.totalorder %v1039, 7
        %v1041 = vsel %vm1040, %v1034, %v1037
        %v1042 = vld [vmem:[%s1001] ss:$0 sm:$0xff]
        %1043 = vst [vmem:[%s1001] sm:$0xff] %v1041
        %s1044 = smov [#allocation13]
        %s1045 = smov [#allocation15]
        %v1046 = vld [vmem:[%s1044] ss:$0 sm:$0xff]
        %s1048 = scalar_lea.vmem %s1044, 4294967295
        %v1049 = vld [vmem:[%s1048] sm:$0xfe]
        %v1050 = vlaneseq
        %v1051 = vshrl.u32 %v1050, 7
        %vm1052 = vcmp.eq.s32.totalorder %v1051, 0
        %v1053 = vsel %vm1052, %v1046, %v1049
        %s1054 = scalar_lea.vmem %s1044, 7
        %v1055 = vld [vmem:[%s1054] ss:$0 sm:$0xff]
        %1056 = vst [vmem:[%s1044] sm:$0xff] %v1053
        %s1057 = scalar_lea.vmem %s1044, 8
        %s1059 = scalar_lea.vmem %s1057, 4294967295
        %v1060 = vld [vmem:[%s1059] sm:$0xfe]
        %v1061 = vlaneseq
        %v1062 = vshrl.u32 %v1061, 7
        %vm1063 = vcmp.eq.s32.totalorder %v1062, 0
        %v1064 = vsel %vm1063, %v1055, %v1060
        %s1065 = scalar_lea.vmem %s1057, 7
        %v1066 = vld [vmem:[%s1065] ss:$0 sm:$0xff]
        %1067 = vst [vmem:[%s1057] sm:$0xff] %v1064
        %v1068 = vld [vmem:[%s1045] ss:$0 sm:$0xff]
        %s1069 = scalar_lea.vmem %s1044, 1
        %1070 = vst [vmem:[%s1069] sm:$0x1] %v1068
        %s1071 = scalar_lea.vmem %s1045, 8
        %s1072 = scalar_lea.vmem %s1071, 1
        %v1073 = vld [vmem:[%s1072] sm:$0x7f]
        %v1074 = vlaneseq
        %v1075 = vshrl.u32 %v1074, 7
        %vm1076 = vcmp.eq.s32.totalorder %v1075, 7
        %v1077 = vsel %vm1076, %v1066, %v1073
        %v1078 = vld [vmem:[%s1071] ss:$0 sm:$0xff]
        %1079 = vst [vmem:[%s1071] sm:$0xff] %v1077
        %s1080 = scalar_lea.vmem %s1045, 1
        %v1081 = vld [vmem:[%s1080] sm:$0x7f]
        %v1082 = vlaneseq
        %v1083 = vshrl.u32 %v1082, 7
        %vm1084 = vcmp.eq.s32.totalorder %v1083, 7
        %v1085 = vsel %vm1084, %v1078, %v1081
        %v1086 = vld [vmem:[%s1045] ss:$0 sm:$0xff]
        %1087 = vst [vmem:[%s1045] sm:$0xff] %v1085
        %s1088 = smov [#allocation23]
        %v1089 = vld [vmem:[%s1088] sm:$0xff]
        %s1090 = smov [#allocation24]
        %v1091 = vld [vmem:[%s1090] sm:$0xff]
        %s1092 = smov [#allocation8]
        %s1093 = smov [#allocation9]
        %s1094 = smov [#allocation10]
        %s1095 = smov [#allocation11]
        %v1096 = vld [vmem:[%s1092] sm:$0xff]
        %v1097 = vld [vmem:[%s1093] sm:$0xff]
        %v1098 = vld [vmem:[%s1094] sm:$0xff]
        %v1099 = vld [vmem:[%s1095] sm:$0xff]
        %v1100 = vmul.f32 %v1089, %v1096
        %v1101 = vmul.f32 %v1091, %v1098
        %v1102 = vsub.f32 %v1100, %v1101
        %v1103 = vmul.f32 %v1089, %v1097
        %v1104 = vmul.f32 %v1091, %v1099
        %v1105 = vsub.f32 %v1103, %v1104
        %v1106 = vmul.f32 %v1091, %v1096
        %v1107 = vmul.f32 %v1089, %v1098
        %v1108 = vadd.f32 %v1106, %v1107
        %v1109 = vmul.f32 %v1091, %v1097
        %v1110 = vmul.f32 %v1089, %v1099
        %v1111 = vadd.f32 %v1109, %v1110
        %1112 = vst [vmem:[%s1092] sm:$0xff] %v1102
        %1113 = vst [vmem:[%s1093] sm:$0xff] %v1105
        %1114 = vst [vmem:[%s1094] sm:$0xff] %v1108
        %1115 = vst [vmem:[%s1095] sm:$0xff] %v1111
        %s1116 = smov [#allocation23]
        %s1117 = scalar_lea.vmem %s1116, 8
        %v1118 = vld [vmem:[%s1117] sm:$0xff]
        %s1119 = smov [#allocation24]
        %s1120 = scalar_lea.vmem %s1119, 8
        %v1121 = vld [vmem:[%s1120] sm:$0xff]
        %s1122 = smov [#allocation8]
        %s1123 = scalar_lea.vmem %s1122, 8
        %s1124 = smov [#allocation9]
        %s1125 = scalar_lea.vmem %s1124, 8
        %s1126 = smov [#allocation10]
        %s1127 = scalar_lea.vmem %s1126, 8
        %s1128 = smov [#allocation11]
        %s1129 = scalar_lea.vmem %s1128, 8
        %v1130 = vld [vmem:[%s1123] sm:$0xff]
        %v1131 = vld [vmem:[%s1125] sm:$0xff]
        %v1132 = vld [vmem:[%s1127] sm:$0xff]
        %v1133 = vld [vmem:[%s1129] sm:$0xff]
        %v1134 = vmul.f32 %v1118, %v1130
        %v1135 = vmul.f32 %v1121, %v1132
        %v1136 = vsub.f32 %v1134, %v1135
        %v1137 = vmul.f32 %v1118, %v1131
        %v1138 = vmul.f32 %v1121, %v1133
        %v1139 = vsub.f32 %v1137, %v1138
        %v1140 = vmul.f32 %v1121, %v1130
        %v1141 = vmul.f32 %v1118, %v1132
        %v1142 = vadd.f32 %v1140, %v1141
        %v1143 = vmul.f32 %v1121, %v1131
        %v1144 = vmul.f32 %v1118, %v1133
        %v1145 = vadd.f32 %v1143, %v1144
        %1146 = vst [vmem:[%s1123] sm:$0xff] %v1136
        %1147 = vst [vmem:[%s1125] sm:$0xff] %v1139
        %1148 = vst [vmem:[%s1127] sm:$0xff] %v1142
        %1149 = vst [vmem:[%s1129] sm:$0xff] %v1145
        %s1150 = smov [#allocation8]
        %s1151 = smov [#allocation10]
        %v1152 = vld [vmem:[%s1150] ss:$0 sm:$0xff]
        %s1154 = scalar_lea.vmem %s1150, 4294967295
        %v1155 = vld [vmem:[%s1154] sm:$0xfe]
        %v1156 = vlaneseq
        %v1157 = vshrl.u32 %v1156, 7
        %vm1158 = vcmp.eq.s32.totalorder %v1157, 0
        %v1159 = vsel %vm1158, %v1152, %v1155
        %s1160 = scalar_lea.vmem %s1150, 7
        %v1161 = vld [vmem:[%s1160] ss:$0 sm:$0xff]
        %1162 = vst [vmem:[%s1150] sm:$0xff] %v1159
        %s1163 = scalar_lea.vmem %s1150, 8
        %s1165 = scalar_lea.vmem %s1163, 4294967295
        %v1166 = vld [vmem:[%s1165] sm:$0xfe]
        %v1167 = vlaneseq
        %v1168 = vshrl.u32 %v1167, 7
        %vm1169 = vcmp.eq.s32.totalorder %v1168, 0
        %v1170 = vsel %vm1169, %v1161, %v1166
        %s1171 = scalar_lea.vmem %s1163, 7
        %v1172 = vld [vmem:[%s1171] ss:$0 sm:$0xff]
        %1173 = vst [vmem:[%s1163] sm:$0xff] %v1170
        %v1174 = vld [vmem:[%s1151] ss:$0 sm:$0xff]
        %s1175 = scalar_lea.vmem %s1150, 1
        %1176 = vst [vmem:[%s1175] sm:$0x1] %v1174
        %s1177 = scalar_lea.vmem %s1151, 8
        %s1178 = scalar_lea.vmem %s1177, 1
        %v1179 = vld [vmem:[%s1178] sm:$0x7f]
        %v1180 = vlaneseq
        %v1181 = vshrl.u32 %v1180, 7
        %vm1182 = vcmp.eq.s32.totalorder %v1181, 7
        %v1183 = vsel %vm1182, %v1172, %v1179
        %v1184 = vld [vmem:[%s1177] ss:$0 sm:$0xff]
        %1185 = vst [vmem:[%s1177] sm:$0xff] %v1183
        %s1186 = scalar_lea.vmem %s1151, 1
        %v1187 = vld [vmem:[%s1186] sm:$0x7f]
        %v1188 = vlaneseq
        %v1189 = vshrl.u32 %v1188, 7
        %vm1190 = vcmp.eq.s32.totalorder %v1189, 7
        %v1191 = vsel %vm1190, %v1184, %v1187
        %v1192 = vld [vmem:[%s1151] ss:$0 sm:$0xff]
        %1193 = vst [vmem:[%s1151] sm:$0xff] %v1191
        %s1194 = smov [#allocation9]
        %s1195 = smov [#allocation11]
        %v1196 = vld [vmem:[%s1194] ss:$0 sm:$0xff]
        %s1198 = scalar_lea.vmem %s1194, 4294967295
        %v1199 = vld [vmem:[%s1198] sm:$0xfe]
        %v1200 = vlaneseq
        %v1201 = vshrl.u32 %v1200, 7
        %vm1202 = vcmp.eq.s32.totalorder %v1201, 0
        %v1203 = vsel %vm1202, %v1196, %v1199
        %s1204 = scalar_lea.vmem %s1194, 7
        %v1205 = vld [vmem:[%s1204] ss:$0 sm:$0xff]
        %1206 = vst [vmem:[%s1194] sm:$0xff] %v1203
        %s1207 = scalar_lea.vmem %s1194, 8
        %s1209 = scalar_lea.vmem %s1207, 4294967295
        %v1210 = vld [vmem:[%s1209] sm:$0xfe]
        %v1211 = vlaneseq
        %v1212 = vshrl.u32 %v1211, 7
        %vm1213 = vcmp.eq.s32.totalorder %v1212, 0
        %v1214 = vsel %vm1213, %v1205, %v1210
        %s1215 = scalar_lea.vmem %s1207, 7
        %v1216 = vld [vmem:[%s1215] ss:$0 sm:$0xff]
        %1217 = vst [vmem:[%s1207] sm:$0xff] %v1214
        %v1218 = vld [vmem:[%s1195] ss:$0 sm:$0xff]
        %s1219 = scalar_lea.vmem %s1194, 1
        %1220 = vst [vmem:[%s1219] sm:$0x1] %v1218
        %s1221 = scalar_lea.vmem %s1195, 8
        %s1222 = scalar_lea.vmem %s1221, 1
        %v1223 = vld [vmem:[%s1222] sm:$0x7f]
        %v1224 = vlaneseq
        %v1225 = vshrl.u32 %v1224, 7
        %vm1226 = vcmp.eq.s32.totalorder %v1225, 7
        %v1227 = vsel %vm1226, %v1216, %v1223
        %v1228 = vld [vmem:[%s1221] ss:$0 sm:$0xff]
        %1229 = vst [vmem:[%s1221] sm:$0xff] %v1227
        %s1230 = scalar_lea.vmem %s1195, 1
        %v1231 = vld [vmem:[%s1230] sm:$0x7f]
        %v1232 = vlaneseq
        %v1233 = vshrl.u32 %v1232, 7
        %vm1234 = vcmp.eq.s32.totalorder %v1233, 7
        %v1235 = vsel %vm1234, %v1228, %v1231
        %v1236 = vld [vmem:[%s1195] ss:$0 sm:$0xff]
        %1237 = vst [vmem:[%s1195] sm:$0xff] %v1235
      $region101: #{custom-call.22} parent=93 // loop_footer
        %s474 = sadd.s32 1, %s470
      $region102: #{custom-call.22} parent=93 // loop_footer_branch
        %469 = sbr.rel target = $region98
      $region103: #{custom-call.22} parent=93 // loop_exit
        _
      %s1238 = sadd.s32 %s340, 1
    $region94: #{custom-call.22} parent=1 // loop_footer
      _
    $region95: #{custom-call.22} parent=1 // loop_footer_branch
      %339 = sbr.rel target = $region91
    $region96: #{custom-call.22} parent=1 // loop_exit
      _
    %s1241 = smov [#allocation12]
    %s1242 = smov [#allocation4]
    %v1243 = vlaneseq
    %v1244 = vand.u32 %v1243, 127
    %v1245 = vmov %v1244
    %v1246 = vlaneseq
    %v1247 = vshrl.u32 %v1246, 7
    %v1248 = vmov %v1247
    %v1249 = vld [vmem:[%s1241] sm:$0xff]
    %vm1252 = vcmp.eq.s32.totalorder %v1248, %v1245
    %v1253 = vsel %vm1252, %v1249, 0.0
    %s1254 = scalar_lea.vmem %s1241, 8
    %v1255 = vld [vmem:[%s1254] sm:$0xff]
    %v1257 = vadd.s32 %v1248, 8
    %vm1258 = vcmp.eq.s32.totalorder %v1257, %v1245
    %v1259 = vsel %vm1258, %v1255, %v1253
    %v1260 = vrot.slane %v1259, 4
    %v1261 = vadd.f32 %v1259, %v1260
    %v1262 = vrot.slane %v1261, 2
    %v1263 = vadd.f32 %v1261, %v1262
    %v1264 = vrot.slane %v1263, 1
    %v1265 = vadd.f32 %v1263, %v1264
    %1266 = vst [vmem:[%s1242] sm:$0x1] %v1265
    %s1267 = smov [#allocation15]
    %s1268 = smov [#allocation6]
    %v1269 = vlaneseq
    %v1270 = vand.u32 %v1269, 127
    %v1271 = vmov %v1270
    %v1272 = vlaneseq
    %v1273 = vshrl.u32 %v1272, 7
    %v1274 = vmov %v1273
    %v1275 = vld [vmem:[%s1267] sm:$0xff]
    %vm1278 = vcmp.eq.s32.totalorder %v1274, %v1271
    %v1279 = vsel %vm1278, %v1275, 0.0
    %s1280 = scalar_lea.vmem %s1267, 8
    %v1281 = vld [vmem:[%s1280] sm:$0xff]
    %v1283 = vadd.s32 %v1274, 8
    %vm1284 = vcmp.eq.s32.totalorder %v1283, %v1271
    %v1285 = vsel %vm1284, %v1281, %v1279
    %v1286 = vrot.slane %v1285, 4
    %v1287 = vadd.f32 %v1285, %v1286
    %v1288 = vrot.slane %v1287, 2
    %v1289 = vadd.f32 %v1287, %v1288
    %v1290 = vrot.slane %v1289, 1
    %v1291 = vadd.f32 %v1289, %v1290
    %1292 = vst [vmem:[%s1268] sm:$0x1] %v1291
    %s1294 = sshllo.u32 0, 1
    %v1296 = vld [vmem:[#allocation4] sm:%s1294]
    %s1297 = sshllo.u32 0, 1
    %1298 = vst [vmem:[#allocation5] sm:%s1297] %v1296
    %s1300 = sshllo.u32 0, 1
    %v1302 = vld [vmem:[#allocation6] sm:%s1300]
    %s1303 = sshllo.u32 0, 1
    %1304 = vst [vmem:[#allocation7] sm:%s1303] %v1302
    // Predicated region
    $region104: #{custom-call.22} parent=1 // pred_check
      _
    $region105: #{custom-call.22} parent=1 // pred_check_branch
      %1306 = sbr.rel (0) target = $region107
    $region106: #{custom-call.22} parent=1 // pred_region
      %p1308 = scmp.gt.s32.totalorder 1, 0
      // Predicated region
      $region108: #{custom-call.22} parent=106 // pred_check
        %p1309 = pneg %p1308
      $region109: #{custom-call.22} parent=106 // pred_check_branch
        %1311 = sbr.rel (%p1309) target = $region111
      $region110: #{custom-call.22} parent=106 // pred_region
        %s1312 = sshra.s32 1, 3
        %p1313 = scmp.gt.s32.totalorder %s1312, 0
        // Predicated region
        $region112: #{custom-call.22} parent=110 // pred_check
          %p1314 = pneg %p1313
        $region113: #{custom-call.22} parent=110 // pred_check_branch
          %1316 = sbr.rel (%p1314) target = $region115
        $region114: #{custom-call.22} parent=110 // pred_region
          %s1317 = ssub.s32 %s1312, 1
          %s1318 = smul.u32 %s1317, 128
          %s1319 = sshra.s32 %s1318, 4
          %s1320 = scalar_lea.vmem [#allocation5], %s1319
          %v1321 = vld [vmem:[#allocation5] sm:$0xff]
          // While loop
          $region116: #{custom-call.22} parent=114 // loop_pre_header
            _
          $region117: #{custom-call.22} parent=114 // loop_header
            %s1322 = sphi [#allocation5], %s1344
            %s1323 = sphi %s4, %s1345
            %v1324 = vphi %v1321, %v1346
            %s1325 = ssub.s32 %s1320, 64
            %p1326 = scmp.gt.s32.totalorder %s1322, %s1325
          $region118: #{custom-call.22} parent=114 // loop_header_branch
            %1328 = sbr.rel (%p1326) target = $region122
          $region119: #{custom-call.22} parent=114 // loop_body
            %1329 = vst [vmem:[%s1323] sm:$0xff] %v1324
            %v1330 = vld [vmem:[%s1322 + $0x8] sm:$0xff]
            %1331 = vst [vmem:[%s1323 + $0x8] sm:$0xff] %v1330
            %v1332 = vld [vmem:[%s1322 + $0x10] sm:$0xff]
            %1333 = vst [vmem:[%s1323 + $0x10] sm:$0xff] %v1332
            %v1334 = vld [vmem:[%s1322 + $0x18] sm:$0xff]
            %1335 = vst [vmem:[%s1323 + $0x18] sm:$0xff] %v1334
            %v1336 = vld [vmem:[%s1322 + $0x20] sm:$0xff]
            %1337 = vst [vmem:[%s1323 + $0x20] sm:$0xff] %v1336
            %v1338 = vld [vmem:[%s1322 + $0x28] sm:$0xff]
            %1339 = vst [vmem:[%s1323 + $0x28] sm:$0xff] %v1338
            %v1340 = vld [vmem:[%s1322 + $0x30] sm:$0xff]
            %1341 = vst [vmem:[%s1323 + $0x30] sm:$0xff] %v1340
            %v1342 = vld [vmem:[%s1322 + $0x38] sm:$0xff]
            %1343 = vst [vmem:[%s1323 + $0x38] sm:$0xff] %v1342
          $region120: #{custom-call.22} parent=114 // loop_footer
            %s1344 = scalar_lea.vmem %s1322, 64
            %s1345 = scalar_lea.vmem %s1323, 64
            %v1346 = vld [vmem:[%s1322 + $0x40] sm:$0xff]
          $region121: #{custom-call.22} parent=114 // loop_footer_branch
            %1347 = sbr.rel target = $region117
          $region122: #{custom-call.22} parent=114 // loop_exit
            _
          // While loop
          $region123: #{custom-call.22} parent=114 // loop_pre_header
            _
          $region124: #{custom-call.22} parent=114 // loop_header
            %s1348 = sphi %s1322, %s1356
            %s1349 = sphi %s1323, %s1357
            %v1350 = vphi %v1324, %v1350
            %p1351 = scmp.gt.s32.totalorder %s1348, %s1320
          $region125: #{custom-call.22} parent=114 // loop_header_branch
            %1353 = sbr.rel (%p1351) target = $region129
          $region126: #{custom-call.22} parent=114 // loop_body
            %v1354 = vld [vmem:[%s1348] sm:$0xff]
            %1355 = vst [vmem:[%s1349] sm:$0xff] %v1354
          $region127: #{custom-call.22} parent=114 // loop_footer
            %s1356 = scalar_lea.vmem %s1348, 8
            %s1357 = scalar_lea.vmem %s1349, 8
          $region128: #{custom-call.22} parent=114 // loop_footer_branch
            %1358 = sbr.rel target = $region124
          $region129: #{custom-call.22} parent=114 // loop_exit
            _
        $region115: #{custom-call.22} parent=110 // pred_fallthru
          _
        %s1359 = sand.u32 1, 7
        %s1360 = sshllo.u32 0, %s1359
        %s1361 = smul.u32 %s1312, 128
        %s1362 = sshra.s32 %s1361, 4
        %s1363 = scalar_lea.vmem %s4, %s1362
        %s1364 = smul.u32 %s1312, 128
        %s1365 = sshra.s32 %s1364, 4
        %s1366 = scalar_lea.vmem [#allocation5], %s1365
        %v1367 = vld [vmem:[%s1366] sm:%s1360]
        %1368 = vst [vmem:[%s1363] sm:%s1360] %v1367
      $region111: #{custom-call.22} parent=106 // pred_fallthru
        _
    $region107: #{custom-call.22} parent=1 // pred_fallthru
      _
    // Predicated region
    $region130: #{custom-call.22} parent=1 // pred_check
      _
    $region131: #{custom-call.22} parent=1 // pred_check_branch
      %1370 = sbr.rel (0) target = $region133
    $region132: #{custom-call.22} parent=1 // pred_region
      %p1372 = scmp.gt.s32.totalorder 1, 0
      // Predicated region
      $region134: #{custom-call.22} parent=132 // pred_check
        %p1373 = pneg %p1372
      $region135: #{custom-call.22} parent=132 // pred_check_branch
        %1375 = sbr.rel (%p1373) target = $region137
      $region136: #{custom-call.22} parent=132 // pred_region
        %s1376 = sshra.s32 1, 3
        %p1377 = scmp.gt.s32.totalorder %s1376, 0
        // Predicated region
        $region138: #{custom-call.22} parent=136 // pred_check
          %p1378 = pneg %p1377
        $region139: #{custom-call.22} parent=136 // pred_check_branch
          %1380 = sbr.rel (%p1378) target = $region141
        $region140: #{custom-call.22} parent=136 // pred_region
          %s1381 = ssub.s32 %s1376, 1
          %s1382 = smul.u32 %s1381, 128
          %s1383 = sshra.s32 %s1382, 4
          %s1384 = scalar_lea.vmem [#allocation7], %s1383
          %v1385 = vld [vmem:[#allocation7] sm:$0xff]
          // While loop
          $region142: #{custom-call.22} parent=140 // loop_pre_header
            _
          $region143: #{custom-call.22} parent=140 // loop_header
            %s1386 = sphi [#allocation7], %s1408
            %s1387 = sphi %s5, %s1409
            %v1388 = vphi %v1385, %v1410
            %s1389 = ssub.s32 %s1384, 64
            %p1390 = scmp.gt.s32.totalorder %s1386, %s1389
          $region144: #{custom-call.22} parent=140 // loop_header_branch
            %1392 = sbr.rel (%p1390) target = $region148
          $region145: #{custom-call.22} parent=140 // loop_body
            %1393 = vst [vmem:[%s1387] sm:$0xff] %v1388
            %v1394 = vld [vmem:[%s1386 + $0x8] sm:$0xff]
            %1395 = vst [vmem:[%s1387 + $0x8] sm:$0xff] %v1394
            %v1396 = vld [vmem:[%s1386 + $0x10] sm:$0xff]
            %1397 = vst [vmem:[%s1387 + $0x10] sm:$0xff] %v1396
            %v1398 = vld [vmem:[%s1386 + $0x18] sm:$0xff]
            %1399 = vst [vmem:[%s1387 + $0x18] sm:$0xff] %v1398
            %v1400 = vld [vmem:[%s1386 + $0x20] sm:$0xff]
            %1401 = vst [vmem:[%s1387 + $0x20] sm:$0xff] %v1400
            %v1402 = vld [vmem:[%s1386 + $0x28] sm:$0xff]
            %1403 = vst [vmem:[%s1387 + $0x28] sm:$0xff] %v1402
            %v1404 = vld [vmem:[%s1386 + $0x30] sm:$0xff]
            %1405 = vst [vmem:[%s1387 + $0x30] sm:$0xff] %v1404
            %v1406 = vld [vmem:[%s1386 + $0x38] sm:$0xff]
            %1407 = vst [vmem:[%s1387 + $0x38] sm:$0xff] %v1406
          $region146: #{custom-call.22} parent=140 // loop_footer
            %s1408 = scalar_lea.vmem %s1386, 64
            %s1409 = scalar_lea.vmem %s1387, 64
            %v1410 = vld [vmem:[%s1386 + $0x40] sm:$0xff]
          $region147: #{custom-call.22} parent=140 // loop_footer_branch
            %1411 = sbr.rel target = $region143
          $region148: #{custom-call.22} parent=140 // loop_exit
            _
          // While loop
          $region149: #{custom-call.22} parent=140 // loop_pre_header
            _
          $region150: #{custom-call.22} parent=140 // loop_header
            %s1412 = sphi %s1386, %s1420
            %s1413 = sphi %s1387, %s1421
            %v1414 = vphi %v1388, %v1414
            %p1415 = scmp.gt.s32.totalorder %s1412, %s1384
          $region151: #{custom-call.22} parent=140 // loop_header_branch
            %1417 = sbr.rel (%p1415) target = $region155
          $region152: #{custom-call.22} parent=140 // loop_body
            %v1418 = vld [vmem:[%s1412] sm:$0xff]
            %1419 = vst [vmem:[%s1413] sm:$0xff] %v1418
          $region153: #{custom-call.22} parent=140 // loop_footer
            %s1420 = scalar_lea.vmem %s1412, 8
            %s1421 = scalar_lea.vmem %s1413, 8
          $region154: #{custom-call.22} parent=140 // loop_footer_branch
            %1422 = sbr.rel target = $region150
          $region155: #{custom-call.22} parent=140 // loop_exit
            _
        $region141: #{custom-call.22} parent=136 // pred_fallthru
          _
        %s1423 = sand.u32 1, 7
        %s1424 = sshllo.u32 0, %s1423
        %s1425 = smul.u32 %s1376, 128
        %s1426 = sshra.s32 %s1425, 4
        %s1427 = scalar_lea.vmem %s5, %s1426
        %s1428 = smul.u32 %s1376, 128
        %s1429 = sshra.s32 %s1428, 4
        %s1430 = scalar_lea.vmem [#allocation7], %s1429
        %v1431 = vld [vmem:[%s1430] sm:%s1424]
        %1432 = vst [vmem:[%s1427] sm:%s1424] %v1431
      $region137: #{custom-call.22} parent=132 // pred_fallthru
        _
    $region133: #{custom-call.22} parent=1 // pred_fallthru
      _
    %p1434 = scmp.gt.s32.totalorder 16, 0
    // Predicated region
    $region156: #{custom-call.22} parent=1 // pred_check
      %p1435 = pneg %p1434
    $region157: #{custom-call.22} parent=1 // pred_check_branch
      %1437 = sbr.rel (%p1435) target = $region159
    $region158: #{custom-call.22} parent=1 // pred_region
      %s1438 = sshra.s32 16, 3
      %p1439 = scmp.gt.s32.totalorder %s1438, 0
      // Predicated region
      $region160: #{custom-call.22} parent=158 // pred_check
        %p1440 = pneg %p1439
      $region161: #{custom-call.22} parent=158 // pred_check_branch
        %1442 = sbr.rel (%p1440) target = $region163
      $region162: #{custom-call.22} parent=158 // pred_region
        %s1443 = ssub.s32 %s1438, 1
        %s1444 = smul.u32 %s1443, 128
        %s1445 = sshra.s32 %s1444, 4
        %s1446 = scalar_lea.vmem [#allocation8], %s1445
        %v1447 = vld [vmem:[#allocation8] sm:$0xff]
        // While loop
        $region164: #{custom-call.22} parent=162 // loop_pre_header
          _
        $region165: #{custom-call.22} parent=162 // loop_header
          %s1448 = sphi [#allocation8], %s1470
          %s1449 = sphi %s6, %s1471
          %v1450 = vphi %v1447, %v1472
          %s1451 = ssub.s32 %s1446, 64
          %p1452 = scmp.gt.s32.totalorder %s1448, %s1451
        $region166: #{custom-call.22} parent=162 // loop_header_branch
          %1454 = sbr.rel (%p1452) target = $region170
        $region167: #{custom-call.22} parent=162 // loop_body
          %1455 = vst [vmem:[%s1449] sm:$0xff] %v1450
          %v1456 = vld [vmem:[%s1448 + $0x8] sm:$0xff]
          %1457 = vst [vmem:[%s1449 + $0x8] sm:$0xff] %v1456
          %v1458 = vld [vmem:[%s1448 + $0x10] sm:$0xff]
          %1459 = vst [vmem:[%s1449 + $0x10] sm:$0xff] %v1458
          %v1460 = vld [vmem:[%s1448 + $0x18] sm:$0xff]
          %1461 = vst [vmem:[%s1449 + $0x18] sm:$0xff] %v1460
          %v1462 = vld [vmem:[%s1448 + $0x20] sm:$0xff]
          %1463 = vst [vmem:[%s1449 + $0x20] sm:$0xff] %v1462
          %v1464 = vld [vmem:[%s1448 + $0x28] sm:$0xff]
          %1465 = vst [vmem:[%s1449 + $0x28] sm:$0xff] %v1464
          %v1466 = vld [vmem:[%s1448 + $0x30] sm:$0xff]
          %1467 = vst [vmem:[%s1449 + $0x30] sm:$0xff] %v1466
          %v1468 = vld [vmem:[%s1448 + $0x38] sm:$0xff]
          %1469 = vst [vmem:[%s1449 + $0x38] sm:$0xff] %v1468
        $region168: #{custom-call.22} parent=162 // loop_footer
          %s1470 = scalar_lea.vmem %s1448, 64
          %s1471 = scalar_lea.vmem %s1449, 64
          %v1472 = vld [vmem:[%s1448 + $0x40] sm:$0xff]
        $region169: #{custom-call.22} parent=162 // loop_footer_branch
          %1473 = sbr.rel target = $region165
        $region170: #{custom-call.22} parent=162 // loop_exit
          _
        // While loop
        $region171: #{custom-call.22} parent=162 // loop_pre_header
          _
        $region172: #{custom-call.22} parent=162 // loop_header
          %s1474 = sphi %s1448, %s1482
          %s1475 = sphi %s1449, %s1483
          %v1476 = vphi %v1450, %v1476
          %p1477 = scmp.gt.s32.totalorder %s1474, %s1446
        $region173: #{custom-call.22} parent=162 // loop_header_branch
          %1479 = sbr.rel (%p1477) target = $region177
        $region174: #{custom-call.22} parent=162 // loop_body
          %v1480 = vld [vmem:[%s1474] sm:$0xff]
          %1481 = vst [vmem:[%s1475] sm:$0xff] %v1480
        $region175: #{custom-call.22} parent=162 // loop_footer
          %s1482 = scalar_lea.vmem %s1474, 8
          %s1483 = scalar_lea.vmem %s1475, 8
        $region176: #{custom-call.22} parent=162 // loop_footer_branch
          %1484 = sbr.rel target = $region172
        $region177: #{custom-call.22} parent=162 // loop_exit
          _
      $region163: #{custom-call.22} parent=158 // pred_fallthru
        _
      %s1485 = sand.u32 16, 7
      %s1486 = sshllo.u32 0, %s1485
      %s1487 = smul.u32 %s1438, 128
      %s1488 = sshra.s32 %s1487, 4
      %s1489 = scalar_lea.vmem %s6, %s1488
      %s1490 = smul.u32 %s1438, 128
      %s1491 = sshra.s32 %s1490, 4
      %s1492 = scalar_lea.vmem [#allocation8], %s1491
      %v1493 = vld [vmem:[%s1492] sm:%s1486]
      %1494 = vst [vmem:[%s1489] sm:%s1486] %v1493
    $region159: #{custom-call.22} parent=1 // pred_fallthru
      _
    %p1496 = scmp.gt.s32.totalorder 16, 0
    // Predicated region
    $region178: #{custom-call.22} parent=1 // pred_check
      %p1497 = pneg %p1496
    $region179: #{custom-call.22} parent=1 // pred_check_branch
      %1499 = sbr.rel (%p1497) target = $region181
    $region180: #{custom-call.22} parent=1 // pred_region
      %s1500 = sshra.s32 16, 3
      %p1501 = scmp.gt.s32.totalorder %s1500, 0
      // Predicated region
      $region182: #{custom-call.22} parent=180 // pred_check
        %p1502 = pneg %p1501
      $region183: #{custom-call.22} parent=180 // pred_check_branch
        %1504 = sbr.rel (%p1502) target = $region185
      $region184: #{custom-call.22} parent=180 // pred_region
        %s1505 = ssub.s32 %s1500, 1
        %s1506 = smul.u32 %s1505, 128
        %s1507 = sshra.s32 %s1506, 4
        %s1508 = scalar_lea.vmem [#allocation9], %s1507
        %v1509 = vld [vmem:[#allocation9] sm:$0xff]
        // While loop
        $region186: #{custom-call.22} parent=184 // loop_pre_header
          _
        $region187: #{custom-call.22} parent=184 // loop_header
          %s1510 = sphi [#allocation9], %s1532
          %s1511 = sphi %s7, %s1533
          %v1512 = vphi %v1509, %v1534
          %s1513 = ssub.s32 %s1508, 64
          %p1514 = scmp.gt.s32.totalorder %s1510, %s1513
        $region188: #{custom-call.22} parent=184 // loop_header_branch
          %1516 = sbr.rel (%p1514) target = $region192
        $region189: #{custom-call.22} parent=184 // loop_body
          %1517 = vst [vmem:[%s1511] sm:$0xff] %v1512
          %v1518 = vld [vmem:[%s1510 + $0x8] sm:$0xff]
          %1519 = vst [vmem:[%s1511 + $0x8] sm:$0xff] %v1518
          %v1520 = vld [vmem:[%s1510 + $0x10] sm:$0xff]
          %1521 = vst [vmem:[%s1511 + $0x10] sm:$0xff] %v1520
          %v1522 = vld [vmem:[%s1510 + $0x18] sm:$0xff]
          %1523 = vst [vmem:[%s1511 + $0x18] sm:$0xff] %v1522
          %v1524 = vld [vmem:[%s1510 + $0x20] sm:$0xff]
          %1525 = vst [vmem:[%s1511 + $0x20] sm:$0xff] %v1524
          %v1526 = vld [vmem:[%s1510 + $0x28] sm:$0xff]
          %1527 = vst [vmem:[%s1511 + $0x28] sm:$0xff] %v1526
          %v1528 = vld [vmem:[%s1510 + $0x30] sm:$0xff]
          %1529 = vst [vmem:[%s1511 + $0x30] sm:$0xff] %v1528
          %v1530 = vld [vmem:[%s1510 + $0x38] sm:$0xff]
          %1531 = vst [vmem:[%s1511 + $0x38] sm:$0xff] %v1530
        $region190: #{custom-call.22} parent=184 // loop_footer
          %s1532 = scalar_lea.vmem %s1510, 64
          %s1533 = scalar_lea.vmem %s1511, 64
          %v1534 = vld [vmem:[%s1510 + $0x40] sm:$0xff]
        $region191: #{custom-call.22} parent=184 // loop_footer_branch
          %1535 = sbr.rel target = $region187
        $region192: #{custom-call.22} parent=184 // loop_exit
          _
        // While loop
        $region193: #{custom-call.22} parent=184 // loop_pre_header
          _
        $region194: #{custom-call.22} parent=184 // loop_header
          %s1536 = sphi %s1510, %s1544
          %s1537 = sphi %s1511, %s1545
          %v1538 = vphi %v1512, %v1538
          %p1539 = scmp.gt.s32.totalorder %s1536, %s1508
        $region195: #{custom-call.22} parent=184 // loop_header_branch
          %1541 = sbr.rel (%p1539) target = $region199
        $region196: #{custom-call.22} parent=184 // loop_body
          %v1542 = vld [vmem:[%s1536] sm:$0xff]
          %1543 = vst [vmem:[%s1537] sm:$0xff] %v1542
        $region197: #{custom-call.22} parent=184 // loop_footer
          %s1544 = scalar_lea.vmem %s1536, 8
          %s1545 = scalar_lea.vmem %s1537, 8
        $region198: #{custom-call.22} parent=184 // loop_footer_branch
          %1546 = sbr.rel target = $region194
        $region199: #{custom-call.22} parent=184 // loop_exit
          _
      $region185: #{custom-call.22} parent=180 // pred_fallthru
        _
      %s1547 = sand.u32 16, 7
      %s1548 = sshllo.u32 0, %s1547
      %s1549 = smul.u32 %s1500, 128
      %s1550 = sshra.s32 %s1549, 4
      %s1551 = scalar_lea.vmem %s7, %s1550
      %s1552 = smul.u32 %s1500, 128
      %s1553 = sshra.s32 %s1552, 4
      %s1554 = scalar_lea.vmem [#allocation9], %s1553
      %v1555 = vld [vmem:[%s1554] sm:%s1548]
      %1556 = vst [vmem:[%s1551] sm:%s1548] %v1555
    $region181: #{custom-call.22} parent=1 // pred_fallthru
      _
    %p1558 = scmp.gt.s32.totalorder 16, 0
    // Predicated region
    $region200: #{custom-call.22} parent=1 // pred_check
      %p1559 = pneg %p1558
    $region201: #{custom-call.22} parent=1 // pred_check_branch
      %1561 = sbr.rel (%p1559) target = $region203
    $region202: #{custom-call.22} parent=1 // pred_region
      %s1562 = sshra.s32 16, 3
      %p1563 = scmp.gt.s32.totalorder %s1562, 0
      // Predicated region
      $region204: #{custom-call.22} parent=202 // pred_check
        %p1564 = pneg %p1563
      $region205: #{custom-call.22} parent=202 // pred_check_branch
        %1566 = sbr.rel (%p1564) target = $region207
      $region206: #{custom-call.22} parent=202 // pred_region
        %s1567 = ssub.s32 %s1562, 1
        %s1568 = smul.u32 %s1567, 128
        %s1569 = sshra.s32 %s1568, 4
        %s1570 = scalar_lea.vmem [#allocation10], %s1569
        %v1571 = vld [vmem:[#allocation10] sm:$0xff]
        // While loop
        $region208: #{custom-call.22} parent=206 // loop_pre_header
          _
        $region209: #{custom-call.22} parent=206 // loop_header
          %s1572 = sphi [#allocation10], %s1594
          %s1573 = sphi %s8, %s1595
          %v1574 = vphi %v1571, %v1596
          %s1575 = ssub.s32 %s1570, 64
          %p1576 = scmp.gt.s32.totalorder %s1572, %s1575
        $region210: #{custom-call.22} parent=206 // loop_header_branch
          %1578 = sbr.rel (%p1576) target = $region214
        $region211: #{custom-call.22} parent=206 // loop_body
          %1579 = vst [vmem:[%s1573] sm:$0xff] %v1574
          %v1580 = vld [vmem:[%s1572 + $0x8] sm:$0xff]
          %1581 = vst [vmem:[%s1573 + $0x8] sm:$0xff] %v1580
          %v1582 = vld [vmem:[%s1572 + $0x10] sm:$0xff]
          %1583 = vst [vmem:[%s1573 + $0x10] sm:$0xff] %v1582
          %v1584 = vld [vmem:[%s1572 + $0x18] sm:$0xff]
          %1585 = vst [vmem:[%s1573 + $0x18] sm:$0xff] %v1584
          %v1586 = vld [vmem:[%s1572 + $0x20] sm:$0xff]
          %1587 = vst [vmem:[%s1573 + $0x20] sm:$0xff] %v1586
          %v1588 = vld [vmem:[%s1572 + $0x28] sm:$0xff]
          %1589 = vst [vmem:[%s1573 + $0x28] sm:$0xff] %v1588
          %v1590 = vld [vmem:[%s1572 + $0x30] sm:$0xff]
          %1591 = vst [vmem:[%s1573 + $0x30] sm:$0xff] %v1590
          %v1592 = vld [vmem:[%s1572 + $0x38] sm:$0xff]
          %1593 = vst [vmem:[%s1573 + $0x38] sm:$0xff] %v1592
        $region212: #{custom-call.22} parent=206 // loop_footer
          %s1594 = scalar_lea.vmem %s1572, 64
          %s1595 = scalar_lea.vmem %s1573, 64
          %v1596 = vld [vmem:[%s1572 + $0x40] sm:$0xff]
        $region213: #{custom-call.22} parent=206 // loop_footer_branch
          %1597 = sbr.rel target = $region209
        $region214: #{custom-call.22} parent=206 // loop_exit
          _
        // While loop
        $region215: #{custom-call.22} parent=206 // loop_pre_header
          _
        $region216: #{custom-call.22} parent=206 // loop_header
          %s1598 = sphi %s1572, %s1606
          %s1599 = sphi %s1573, %s1607
          %v1600 = vphi %v1574, %v1600
          %p1601 = scmp.gt.s32.totalorder %s1598, %s1570
        $region217: #{custom-call.22} parent=206 // loop_header_branch
          %1603 = sbr.rel (%p1601) target = $region221
        $region218: #{custom-call.22} parent=206 // loop_body
          %v1604 = vld [vmem:[%s1598] sm:$0xff]
          %1605 = vst [vmem:[%s1599] sm:$0xff] %v1604
        $region219: #{custom-call.22} parent=206 // loop_footer
          %s1606 = scalar_lea.vmem %s1598, 8
          %s1607 = scalar_lea.vmem %s1599, 8
        $region220: #{custom-call.22} parent=206 // loop_footer_branch
          %1608 = sbr.rel target = $region216
        $region221: #{custom-call.22} parent=206 // loop_exit
          _
      $region207: #{custom-call.22} parent=202 // pred_fallthru
        _
      %s1609 = sand.u32 16, 7
      %s1610 = sshllo.u32 0, %s1609
      %s1611 = smul.u32 %s1562, 128
      %s1612 = sshra.s32 %s1611, 4
      %s1613 = scalar_lea.vmem %s8, %s1612
      %s1614 = smul.u32 %s1562, 128
      %s1615 = sshra.s32 %s1614, 4
      %s1616 = scalar_lea.vmem [#allocation10], %s1615
      %v1617 = vld [vmem:[%s1616] sm:%s1610]
      %1618 = vst [vmem:[%s1613] sm:%s1610] %v1617
    $region203: #{custom-call.22} parent=1 // pred_fallthru
      _
    %p1620 = scmp.gt.s32.totalorder 16, 0
    // Predicated region
    $region222: #{custom-call.22} parent=1 // pred_check
      %p1621 = pneg %p1620
    $region223: #{custom-call.22} parent=1 // pred_check_branch
      %1623 = sbr.rel (%p1621) target = $region225
    $region224: #{custom-call.22} parent=1 // pred_region
      %s1624 = sshra.s32 16, 3
      %p1625 = scmp.gt.s32.totalorder %s1624, 0
      // Predicated region
      $region226: #{custom-call.22} parent=224 // pred_check
        %p1626 = pneg %p1625
      $region227: #{custom-call.22} parent=224 // pred_check_branch
        %1628 = sbr.rel (%p1626) target = $region229
      $region228: #{custom-call.22} parent=224 // pred_region
        %s1629 = ssub.s32 %s1624, 1
        %s1630 = smul.u32 %s1629, 128
        %s1631 = sshra.s32 %s1630, 4
        %s1632 = scalar_lea.vmem [#allocation11], %s1631
        %v1633 = vld [vmem:[#allocation11] sm:$0xff]
        // While loop
        $region230: #{custom-call.22} parent=228 // loop_pre_header
          _
        $region231: #{custom-call.22} parent=228 // loop_header
          %s1634 = sphi [#allocation11], %s1656
          %s1635 = sphi %s9, %s1657
          %v1636 = vphi %v1633, %v1658
          %s1637 = ssub.s32 %s1632, 64
          %p1638 = scmp.gt.s32.totalorder %s1634, %s1637
        $region232: #{custom-call.22} parent=228 // loop_header_branch
          %1640 = sbr.rel (%p1638) target = $region236
        $region233: #{custom-call.22} parent=228 // loop_body
          %1641 = vst [vmem:[%s1635] sm:$0xff] %v1636
          %v1642 = vld [vmem:[%s1634 + $0x8] sm:$0xff]
          %1643 = vst [vmem:[%s1635 + $0x8] sm:$0xff] %v1642
          %v1644 = vld [vmem:[%s1634 + $0x10] sm:$0xff]
          %1645 = vst [vmem:[%s1635 + $0x10] sm:$0xff] %v1644
          %v1646 = vld [vmem:[%s1634 + $0x18] sm:$0xff]
          %1647 = vst [vmem:[%s1635 + $0x18] sm:$0xff] %v1646
          %v1648 = vld [vmem:[%s1634 + $0x20] sm:$0xff]
          %1649 = vst [vmem:[%s1635 + $0x20] sm:$0xff] %v1648
          %v1650 = vld [vmem:[%s1634 + $0x28] sm:$0xff]
          %1651 = vst [vmem:[%s1635 + $0x28] sm:$0xff] %v1650
          %v1652 = vld [vmem:[%s1634 + $0x30] sm:$0xff]
          %1653 = vst [vmem:[%s1635 + $0x30] sm:$0xff] %v1652
          %v1654 = vld [vmem:[%s1634 + $0x38] sm:$0xff]
          %1655 = vst [vmem:[%s1635 + $0x38] sm:$0xff] %v1654
        $region234: #{custom-call.22} parent=228 // loop_footer
          %s1656 = scalar_lea.vmem %s1634, 64
          %s1657 = scalar_lea.vmem %s1635, 64
          %v1658 = vld [vmem:[%s1634 + $0x40] sm:$0xff]
        $region235: #{custom-call.22} parent=228 // loop_footer_branch
          %1659 = sbr.rel target = $region231
        $region236: #{custom-call.22} parent=228 // loop_exit
          _
        // While loop
        $region237: #{custom-call.22} parent=228 // loop_pre_header
          _
        $region238: #{custom-call.22} parent=228 // loop_header
          %s1660 = sphi %s1634, %s1668
          %s1661 = sphi %s1635, %s1669
          %v1662 = vphi %v1636, %v1662
          %p1663 = scmp.gt.s32.totalorder %s1660, %s1632
        $region239: #{custom-call.22} parent=228 // loop_header_branch
          %1665 = sbr.rel (%p1663) target = $region243
        $region240: #{custom-call.22} parent=228 // loop_body
          %v1666 = vld [vmem:[%s1660] sm:$0xff]
          %1667 = vst [vmem:[%s1661] sm:$0xff] %v1666
        $region241: #{custom-call.22} parent=228 // loop_footer
          %s1668 = scalar_lea.vmem %s1660, 8
          %s1669 = scalar_lea.vmem %s1661, 8
        $region242: #{custom-call.22} parent=228 // loop_footer_branch
          %1670 = sbr.rel target = $region238
        $region243: #{custom-call.22} parent=228 // loop_exit
          _
      $region229: #{custom-call.22} parent=224 // pred_fallthru
        _
      %s1671 = sand.u32 16, 7
      %s1672 = sshllo.u32 0, %s1671
      %s1673 = smul.u32 %s1624, 128
      %s1674 = sshra.s32 %s1673, 4
      %s1675 = scalar_lea.vmem %s9, %s1674
      %s1676 = smul.u32 %s1624, 128
      %s1677 = sshra.s32 %s1676, 4
      %s1678 = scalar_lea.vmem [#allocation11], %s1677
      %v1679 = vld [vmem:[%s1678] sm:%s1672]
      %1680 = vst [vmem:[%s1675] sm:%s1672] %v1679
    $region225: #{custom-call.22} parent=1 // pred_fallthru
      _
    // Predicated region
    $region244: #{custom-call.22} parent=1 // pred_check
      _
    $region245: #{custom-call.22} parent=1 // pred_check_branch
      %1682 = sbr.rel (0) target = $region247
    $region246: #{custom-call.22} parent=1 // pred_region
      _
    $region247: #{custom-call.22} parent=1 // pred_fallthru
      _
    // Predicated region
    $region248: #{custom-call.22} parent=1 // pred_check
      _
    $region249: #{custom-call.22} parent=1 // pred_check_branch
      %1684 = sbr.rel (0) target = $region251
    $region250: #{custom-call.22} parent=1 // pred_region
      _
    $region251: #{custom-call.22} parent=1 // pred_fallthru
      _

// kernel: reverse
$region0: #{reverse}
  %s0 = inlined_call_operand.vmem [shape: f32[32], index: 0, kind: input, shape index: {}]
  %s1 = inlined_call_operand.vmem [shape: f32[32], index: 1, kind: output, shape index: {}]
  %v2 = vlaneseq
  %v3 = vsub.s32 31, %v2
  %4 = vset.pattern.permute.xlu0 %v3
  $region1: #{reverse} parent=0
    #allocation0 [shape = 'u8[8192]{0}', space=vmem, size = 0x2000, scoped, tag = 'operand span for operand 0']
    #allocation1 [shape = 'u8[1024]{0}', space=vmem, size = 0x400, scoped, tag = 'packed  for operand 0']
    #allocation2 [shape = 'u8[4096]{0}', space=vmem, size = 0x1000, scoped, tag = 'operand span for operand 1']
    #allocation3 [shape = 'u8[512]{0}', space=vmem, size = 0x400, scoped, tag = 'packed  for operand 1']
    %s5 = scalar_lea.vmem [#allocation1], 1
    // Predicated region
    $region2: #{reverse} parent=1 // pred_check
      _
    $region3: #{reverse} parent=1 // pred_check_branch
      %7 = sbr.rel (0) target = $region5
    $region4: #{reverse} parent=1 // pred_region
      // Predicated region
      $region6: #{reverse} parent=4 // pred_check
        _
      $region7: #{reverse} parent=4 // pred_check_branch
        %9 = sbr.rel target = $region9
      $region8: #{reverse} parent=4 // pred_region
        // Predicated region
        $region21: #{reverse} parent=8 // pred_check
          _
        $region22: #{reverse} parent=8 // pred_check_branch
          %24 = sbr.rel (0) target = $region24
        $region23: #{reverse} parent=8 // pred_region
          loop: start=0, step=1, limit=1
          $region25: #{reverse} parent=23 // loop_pre_header
            _
          $region26: #{reverse} parent=23 // loop_header
            %s27 = sphi 0, %s31
            %p28 = scmp.ge.s32.totalorder %s27, 1
            %s32 = sphi %s0, %s0
            %s33 = sphi %s5, %s5
          $region27: #{reverse} parent=23 // loop_header_branch
            %30 = sbr.rel (%p28) target = $region31
          $region28: #{reverse} parent=23 // loop_body
            %v34 = vld [vmem:[%s32] sm:$0x1]
            %35 = vst [vmem:[%s33] sm:$0x1] %v34
          $region29: #{reverse} parent=23 // loop_footer
            %s31 = sadd.s32 1, %s27
          $region30: #{reverse} parent=23 // loop_footer_branch
            %26 = sbr.rel target = $region26
          $region31: #{reverse} parent=23 // loop_exit
            _
        $region24: #{reverse} parent=8 // pred_fallthru
          _
      $region9: #{reverse} parent=4 // pred_fallthru
        _
      // Predicated region
      $region10: #{reverse} parent=4 // pred_check
        _
      $region11: #{reverse} parent=4 // pred_check_branch
        %11 = sbr.rel (0) target = $region13
      $region12: #{reverse} parent=4 // pred_region
        loop: start=0, step=1, limit=1
        $region14: #{reverse} parent=12 // loop_pre_header
          _
        $region15: #{reverse} parent=12 // loop_header
          %s14 = sphi 0, %s18
          %p15 = scmp.ge.s32.totalorder %s14, 1
          %s19 = sphi %s0, %s0
          %s20 = sphi %s5, %s5
        $region16: #{reverse} parent=12 // loop_header_branch
          %17 = sbr.rel (%p15) target = $region20
        $region17: #{reverse} parent=12 // loop_body
          %v21 = vld [vmem:[%s19] sm:$0x1]
          %22 = vst [vmem:[%s20] sm:$0x1] %v21
        $region18: #{reverse} parent=12 // loop_footer
          %s18 = sadd.s32 1, %s14
        $region19: #{reverse} parent=12 // loop_footer_branch
          %13 = sbr.rel target = $region15
        $region20: #{reverse} parent=12 // loop_exit
          _
      $region13: #{reverse} parent=4 // pred_fallthru
        _
    $region5: #{reverse} parent=1 // pred_fallthru
      _
    %36 = vnop
    %s38 = sshllo.u32 0, 1
    %s39 = scalar_lea.vmem [#allocation1], 1
    %v40 = vld [vmem:[%s39] sm:%s38]
    %s41 = scalar_lea.vmem [#allocation0], 8
    %42 = vst [vmem:[%s41] sm:%s38] %v40
    %v43 = vld [vmem:[#allocation1] sm:%s38]
    %44 = vst [vmem:[#allocation0] sm:%s38] %v43
    %s45 = scalar_lea.vmem [#allocation0], 7
    %v46 = vld [vmem:[%s45] ss:$-1 sm:$0xff]
    %v47 = vrot.slane %v46, 7
    %48 = vperm.xlu0 %4, %v47
    %v49 = vpop.permute.xlu0 %48
    %50 = vst [vmem:[#allocation2] sm:$0xff] %v49
    %s51 = scalar_lea.vmem [#allocation0], 8
    %s52 = scalar_lea.vmem %s51, 7 [#allocation0]
    %v53 = vld [vmem:[%s52] ss:$-1 sm:$0xff]
    %v54 = vrot.slane %v53, 7
    %55 = vperm.xlu0 %4, %v54
    %v56 = vpop.permute.xlu0 %55
    %v57 = vlaneseq
    %v58 = vshrl.u32 %v57, 7
    %vm59 = vcmp.lt.s32.totalorder %v58, 1
    %60 = vst.msk [vmem:[#allocation2] sm:$0xff] %vm59, %v56
    %s62 = sshllo.u32 0, 1
    %v64 = vld [vmem:[#allocation2] sm:%s62]
    %s65 = sshllo.u32 0, 1
    %66 = vst [vmem:[#allocation3] sm:%s65] %v64
    // Predicated region
    $region32: #{reverse} parent=1 // pred_check
      _
    $region33: #{reverse} parent=1 // pred_check_branch
      %68 = sbr.rel (0) target = $region35
    $region34: #{reverse} parent=1 // pred_region
      // Predicated region
      $region36: #{reverse} parent=34 // pred_check
        _
      $region37: #{reverse} parent=34 // pred_check_branch
        %70 = sbr.rel target = $region39
      $region38: #{reverse} parent=34 // pred_region
        // Predicated region
        $region51: #{reverse} parent=38 // pred_check
          _
        $region52: #{reverse} parent=38 // pred_check_branch
          %85 = sbr.rel (0) target = $region54
        $region53: #{reverse} parent=38 // pred_region
          loop: start=0, step=1, limit=1
          $region55: #{reverse} parent=53 // loop_pre_header
            _
          $region56: #{reverse} parent=53 // loop_header
            %s88 = sphi 0, %s92
            %p89 = scmp.ge.s32.totalorder %s88, 1
            %s93 = sphi [#allocation3], [#allocation3]
            %s94 = sphi %s1, %s1
          $region57: #{reverse} parent=53 // loop_header_branch
            %91 = sbr.rel (%p89) target = $region61
          $region58: #{reverse} parent=53 // loop_body
            %v95 = vld [vmem:[%s93] sm:$0x1]
            %96 = vst [vmem:[%s94] sm:$0x1] %v95
          $region59: #{reverse} parent=53 // loop_footer
            %s92 = sadd.s32 1, %s88
          $region60: #{reverse} parent=53 // loop_footer_branch
            %87 = sbr.rel target = $region56
          $region61: #{reverse} parent=53 // loop_exit
            _
        $region54: #{reverse} parent=38 // pred_fallthru
          _
      $region39: #{reverse} parent=34 // pred_fallthru
        _
      // Predicated region
      $region40: #{reverse} parent=34 // pred_check
        _
      $region41: #{reverse} parent=34 // pred_check_branch
        %72 = sbr.rel (0) target = $region43
      $region42: #{reverse} parent=34 // pred_region
        loop: start=0, step=1, limit=1
        $region44: #{reverse} parent=42 // loop_pre_header
          _
        $region45: #{reverse} parent=42 // loop_header
          %s75 = sphi 0, %s79
          %p76 = scmp.ge.s32.totalorder %s75, 1
          %s80 = sphi [#allocation3], [#allocation3]
          %s81 = sphi %s1, %s1
        $region46: #{reverse} parent=42 // loop_header_branch
          %78 = sbr.rel (%p76) target = $region50
        $region47: #{reverse} parent=42 // loop_body
          %v82 = vld [vmem:[%s80] sm:$0x1]
          %83 = vst [vmem:[%s81] sm:$0x1] %v82
        $region48: #{reverse} parent=42 // loop_footer
          %s79 = sadd.s32 1, %s75
        $region49: #{reverse} parent=42 // loop_footer_branch
          %74 = sbr.rel target = $region45
        $region50: #{reverse} parent=42 // loop_exit
          _
      $region43: #{reverse} parent=34 // pred_fallthru
        _
    $region35: #{reverse} parent=1 // pred_fallthru
      _
    %97 = vnop

// kernel: openclip_vit_forward.5
$region0: #{openclip_vit_forward.5}
  #allocation0 [shape = 'u32[]', space=smem, size = 0x4, offset = 0x4, fixed_abs, tag = 'smem constant byte address 0x4 - core index']
  #allocation1 [shape = 'u32[144,128]{1,0:T(1,128)}', space=vmem, size = 0x12000, scoped, tag = 'internal scratch']
  %s0 = inlined_call_operand.vmem [shape: f32[2,40,32], index: 0, kind: input, shape index: {}]
  %s1 = inlined_call_operand.vmem [shape: f32[2,1,40], index: 1, kind: input, shape index: {}]
  %s2 = inlined_call_operand.vmem [shape: f32[1,1,32], index: 2, kind: input, shape index: {}]
  %s3 = inlined_call_operand.vmem [shape: f32[1,1,32], index: 3, kind: input, shape index: {}]
  %s4 = inlined_call_operand.vmem [shape: bf16[1,32,96], index: 4, kind: input, shape index: {}]
  %s5 = inlined_call_operand.vmem [shape: f32[1,1,96], index: 5, kind: input, shape index: {}]
  %s6 = inlined_call_operand.vmem [shape: bf16[1,32,32], index: 6, kind: input, shape index: {}]
  %s7 = inlined_call_operand.vmem [shape: f32[1,1,32], index: 7, kind: input, shape index: {}]
  %s8 = inlined_call_operand.vmem [shape: f32[1,1,32], index: 8, kind: input, shape index: {}]
  %s9 = inlined_call_operand.vmem [shape: f32[1,1,32], index: 9, kind: input, shape index: {}]
  %s10 = inlined_call_operand.vmem [shape: bf16[1,32,128], index: 10, kind: input, shape index: {}]
  %s11 = inlined_call_operand.vmem [shape: f32[1,1,128], index: 11, kind: input, shape index: {}]
  %s12 = inlined_call_operand.vmem [shape: bf16[1,128,32], index: 12, kind: input, shape index: {}]
  %s13 = inlined_call_operand.vmem [shape: f32[1,1,32], index: 13, kind: input, shape index: {}]
  %s14 = inlined_call_operand.vmem [shape: f32[2,40,32], index: 14, kind: output, shape index: {}]
  %s15 = sld [smem:[#allocation0]]
  $region93: #{openclip_vit_forward.5} parent=0
    _
  %s17 = ssub.s32 1, %s15
  %s18 = scalar_select 0, %s17, %s15
  loop: start=0, step=1, limit=4
  $region2: #{openclip_vit_forward.5} parent=0 // loop_pre_header
    _
  $region3: #{openclip_vit_forward.5} parent=0 // loop_header
    %s20 = sphi 0, %s24
    %p21 = scmp.ge.s32.totalorder %s20, 4
    %s27 = sphi 0, %s39
    %s28 = sphi 0, %s35
    %s29 = sphi 0, %s27
    %s30 = sphi 0, %s28
    %s31 = sphi 0, %s29
    %s32 = sphi 0, %s30
    %s42 = sphi 0, %s44
    %s45 = sphi 0, %s42
    %s46 = sphi 0, %s45
    %s62 = sphi 0, %s46
    %s68 = sphi 0, %s70
    %s71 = sphi 0, %s68
    %s72 = sphi 0, %s71
    %s88 = sphi 0, %s72
    %s94 = sphi 0, %s96
    %s97 = sphi 0, %s94
    %s98 = sphi 0, %s97
    %s114 = sphi 0, %s98
    %s120 = sphi 0, %s122
    %s123 = sphi 0, %s120
    %s124 = sphi 0, %s123
    %s140 = sphi 0, %s124
    %s146 = sphi 0, %s148
    %s149 = sphi 0, %s146
    %s150 = sphi 0, %s149
    %s166 = sphi 0, %s150
    %s172 = sphi 0, %s174
    %s175 = sphi 0, %s172
    %s176 = sphi 0, %s175
    %s192 = sphi 0, %s176
    %s198 = sphi 0, %s200
    %s201 = sphi 0, %s198
    %s202 = sphi 0, %s201
    %s218 = sphi 0, %s202
    %s224 = sphi 0, %s226
    %s227 = sphi 0, %s224
    %s228 = sphi 0, %s227
    %s244 = sphi 0, %s228
    %s250 = sphi 0, %s252
    %s253 = sphi 0, %s250
    %s254 = sphi 0, %s253
    %s270 = sphi 0, %s254
    %s276 = sphi 0, %s278
    %s279 = sphi 0, %s276
    %s280 = sphi 0, %s279
    %s296 = sphi 0, %s280
    %s302 = sphi 0, %s304
    %s305 = sphi 0, %s302
    %s306 = sphi 0, %s305
    %s322 = sphi 0, %s306
    %s328 = sphi 0, %s330
    %s331 = sphi 0, %s328
    %s332 = sphi 0, %s331
    %s348 = sphi 0, %s332
    %s354 = sphi 0, %s356
    %s357 = sphi 0, %s354
    %s358 = sphi 0, %s357
    %s374 = sphi 0, %s358
    %s380 = sphi 0, %s382
    %s383 = sphi 0, %s380
    %s384 = sphi 0, %s383
    %s400 = sphi 0, %s384
    %s406 = sphi 0, %s408
    %s409 = sphi 0, %s406
    %s410 = sphi 0, %s409
    %s426 = sphi 0, %s410
  $region4: #{openclip_vit_forward.5} parent=0 // loop_header_branch
    %23 = sbr.rel (%p21) target = $region8
  $region5: #{openclip_vit_forward.5} parent=0 // loop_body
    %s25 = ssub.s32 %s20, 1
    %s26 = ssub.s32 %s20, 2
    %s33 = sadd.s32 1, %s28
    %p34 = scmp.ge.s32.totalorder %s33, 1
    %s35 = scalar_select %p34, 0, %s33
    %s36 = sadd.s32 1, %s27
    %s37 = scalar_select %p34, %s36, %s27
    %p38 = scmp.ge.s32.totalorder %s37, 2
    %s39 = scalar_select %p38, 0, %s37
    %s40 = ssub.s32 %s27, %s39
    %p41 = scmp.eq.s32.totalorder %s40, 0
    %s43 = sadd.s32 %s42, 1
    %s44 = scalar_select %p41, %s42, %s43
    %p47 = pneg %p41
    %p48 = scmp.eq.s32.totalorder %s20, 1
    %p49 = por %p47, %p48
    %p50 = scmp.ne.s32.totalorder %s42, %s45
    %p51 = scmp.eq.s32.totalorder %s20, 0
    %p52 = por %p50, %p51
    %p53 = scmp.ne.s32.totalorder %s42, %s45
    %p54 = scmp.eq.s32.totalorder %s25, 1
    %p55 = por %p53, %p54
    %p56 = scmp.ne.s32.totalorder %s45, %s46
    %p57 = scmp.eq.s32.totalorder %s25, 0
    %p58 = por %p56, %p57
    %p59 = scmp.ne.s32.totalorder %s45, %s46
    %p60 = scmp.eq.s32.totalorder %s26, 1
    %p61 = por %p59, %p60
    %p63 = scmp.ne.s32.totalorder %s46, %s62
    %p64 = scmp.eq.s32.totalorder %s26, 0
    %p65 = por %p63, %p64
    %s66 = ssub.s32 %s27, %s39
    %p67 = scmp.eq.s32.totalorder %s66, 0
    %s69 = sadd.s32 %s68, 1
    %s70 = scalar_select %p67, %s68, %s69
    %p73 = pneg %p67
    %p74 = scmp.eq.s32.totalorder %s20, 1
    %p75 = por %p73, %p74
    %p76 = scmp.ne.s32.totalorder %s68, %s71
    %p77 = scmp.eq.s32.totalorder %s20, 0
    %p78 = por %p76, %p77
    %p79 = scmp.ne.s32.totalorder %s68, %s71
    %p80 = scmp.eq.s32.totalorder %s25, 1
    %p81 = por %p79, %p80
    %p82 = scmp.ne.s32.totalorder %s71, %s72
    %p83 = scmp.eq.s32.totalorder %s25, 0
    %p84 = por %p82, %p83
    %p85 = scmp.ne.s32.totalorder %s71, %s72
    %p86 = scmp.eq.s32.totalorder %s26, 1
    %p87 = por %p85, %p86
    %p89 = scmp.ne.s32.totalorder %s72, %s88
    %p90 = scmp.eq.s32.totalorder %s26, 0
    %p91 = por %p89, %p90
    %s92 = ssub.s32 %s28, %s35
    %p93 = scmp.eq.s32.totalorder %s92, 0
    %s95 = sadd.s32 %s94, 1
    %s96 = scalar_select %p93, %s94, %s95
    %p99 = pneg %p93
    %p100 = scmp.eq.s32.totalorder %s20, 1
    %p101 = por %p99, %p100
    %p102 = scmp.ne.s32.totalorder %s94, %s97
    %p103 = scmp.eq.s32.totalorder %s20, 0
    %p104 = por %p102, %p103
    %p105 = scmp.ne.s32.totalorder %s94, %s97
    %p106 = scmp.eq.s32.totalorder %s25, 1
    %p107 = por %p105, %p106
    %p108 = scmp.ne.s32.totalorder %s97, %s98
    %p109 = scmp.eq.s32.totalorder %s25, 0
    %p110 = por %p108, %p109
    %p111 = scmp.ne.s32.totalorder %s97, %s98
    %p112 = scmp.eq.s32.totalorder %s26, 1
    %p113 = por %p111, %p112
    %p115 = scmp.ne.s32.totalorder %s98, %s114
    %p116 = scmp.eq.s32.totalorder %s26, 0
    %p117 = por %p115, %p116
    %s118 = ssub.s32 %s28, %s35
    %p119 = scmp.eq.s32.totalorder %s118, 0
    %s121 = sadd.s32 %s120, 1
    %s122 = scalar_select %p119, %s120, %s121
    %p125 = pneg %p119
    %p126 = scmp.eq.s32.totalorder %s20, 1
    %p127 = por %p125, %p126
    %p128 = scmp.ne.s32.totalorder %s120, %s123
    %p129 = scmp.eq.s32.totalorder %s20, 0
    %p130 = por %p128, %p129
    %p131 = scmp.ne.s32.totalorder %s120, %s123
    %p132 = scmp.eq.s32.totalorder %s25, 1
    %p133 = por %p131, %p132
    %p134 = scmp.ne.s32.totalorder %s123, %s124
    %p135 = scmp.eq.s32.totalorder %s25, 0
    %p136 = por %p134, %p135
    %p137 = scmp.ne.s32.totalorder %s123, %s124
    %p138 = scmp.eq.s32.totalorder %s26, 1
    %p139 = por %p137, %p138
    %p141 = scmp.ne.s32.totalorder %s124, %s140
    %p142 = scmp.eq.s32.totalorder %s26, 0
    %p143 = por %p141, %p142
    %s144 = ssub.s32 %s28, %s35
    %p145 = scmp.eq.s32.totalorder %s144, 0
    %s147 = sadd.s32 %s146, 1
    %s148 = scalar_select %p145, %s146, %s147
    %p151 = pneg %p145
    %p152 = scmp.eq.s32.totalorder %s20, 1
    %p153 = por %p151, %p152
    %p154 = scmp.ne.s32.totalorder %s146, %s149
    %p155 = scmp.eq.s32.totalorder %s20, 0
    %p156 = por %p154, %p155
    %p157 = scmp.ne.s32.totalorder %s146, %s149
    %p158 = scmp.eq.s32.totalorder %s25, 1
    %p159 = por %p157, %p158
    %p160 = scmp.ne.s32.totalorder %s149, %s150
    %p161 = scmp.eq.s32.totalorder %s25, 0
    %p162 = por %p160, %p161
    %p163 = scmp.ne.s32.totalorder %s149, %s150
    %p164 = scmp.eq.s32.totalorder %s26, 1
    %p165 = por %p163, %p164
    %p167 = scmp.ne.s32.totalorder %s150, %s166
    %p168 = scmp.eq.s32.totalorder %s26, 0
    %p169 = por %p167, %p168
    %s170 = ssub.s32 %s28, %s35
    %p171 = scmp.eq.s32.totalorder %s170, 0
    %s173 = sadd.s32 %s172, 1
    %s174 = scalar_select %p171, %s172, %s173
    %p177 = pneg %p171
    %p178 = scmp.eq.s32.totalorder %s20, 1
    %p179 = por %p177, %p178
    %p180 = scmp.ne.s32.totalorder %s172, %s175
    %p181 = scmp.eq.s32.totalorder %s20, 0
    %p182 = por %p180, %p181
    %p183 = scmp.ne.s32.totalorder %s172, %s175
    %p184 = scmp.eq.s32.totalorder %s25, 1
    %p185 = por %p183, %p184
    %p186 = scmp.ne.s32.totalorder %s175, %s176
    %p187 = scmp.eq.s32.totalorder %s25, 0
    %p188 = por %p186, %p187
    %p189 = scmp.ne.s32.totalorder %s175, %s176
    %p190 = scmp.eq.s32.totalorder %s26, 1
    %p191 = por %p189, %p190
    %p193 = scmp.ne.s32.totalorder %s176, %s192
    %p194 = scmp.eq.s32.totalorder %s26, 0
    %p195 = por %p193, %p194
    %s196 = ssub.s32 %s28, %s35
    %p197 = scmp.eq.s32.totalorder %s196, 0
    %s199 = sadd.s32 %s198, 1
    %s200 = scalar_select %p197, %s198, %s199
    %p203 = pneg %p197
    %p204 = scmp.eq.s32.totalorder %s20, 1
    %p205 = por %p203, %p204
    %p206 = scmp.ne.s32.totalorder %s198, %s201
    %p207 = scmp.eq.s32.totalorder %s20, 0
    %p208 = por %p206, %p207
    %p209 = scmp.ne.s32.totalorder %s198, %s201
    %p210 = scmp.eq.s32.totalorder %s25, 1
    %p211 = por %p209, %p210
    %p212 = scmp.ne.s32.totalorder %s201, %s202
    %p213 = scmp.eq.s32.totalorder %s25, 0
    %p214 = por %p212, %p213
    %p215 = scmp.ne.s32.totalorder %s201, %s202
    %p216 = scmp.eq.s32.totalorder %s26, 1
    %p217 = por %p215, %p216
    %p219 = scmp.ne.s32.totalorder %s202, %s218
    %p220 = scmp.eq.s32.totalorder %s26, 0
    %p221 = por %p219, %p220
    %s222 = ssub.s32 %s28, %s35
    %p223 = scmp.eq.s32.totalorder %s222, 0
    %s225 = sadd.s32 %s224, 1
    %s226 = scalar_select %p223, %s224, %s225
    %p229 = pneg %p223
    %p230 = scmp.eq.s32.totalorder %s20, 1
    %p231 = por %p229, %p230
    %p232 = scmp.ne.s32.totalorder %s224, %s227
    %p233 = scmp.eq.s32.totalorder %s20, 0
    %p234 = por %p232, %p233
    %p235 = scmp.ne.s32.totalorder %s224, %s227
    %p236 = scmp.eq.s32.totalorder %s25, 1
    %p237 = por %p235, %p236
    %p238 = scmp.ne.s32.totalorder %s227, %s228
    %p239 = scmp.eq.s32.totalorder %s25, 0
    %p240 = por %p238, %p239
    %p241 = scmp.ne.s32.totalorder %s227, %s228
    %p242 = scmp.eq.s32.totalorder %s26, 1
    %p243 = por %p241, %p242
    %p245 = scmp.ne.s32.totalorder %s228, %s244
    %p246 = scmp.eq.s32.totalorder %s26, 0
    %p247 = por %p245, %p246
    %s248 = ssub.s32 %s28, %s35
    %p249 = scmp.eq.s32.totalorder %s248, 0
    %s251 = sadd.s32 %s250, 1
    %s252 = scalar_select %p249, %s250, %s251
    %p255 = pneg %p249
    %p256 = scmp.eq.s32.totalorder %s20, 1
    %p257 = por %p255, %p256
    %p258 = scmp.ne.s32.totalorder %s250, %s253
    %p259 = scmp.eq.s32.totalorder %s20, 0
    %p260 = por %p258, %p259
    %p261 = scmp.ne.s32.totalorder %s250, %s253
    %p262 = scmp.eq.s32.totalorder %s25, 1
    %p263 = por %p261, %p262
    %p264 = scmp.ne.s32.totalorder %s253, %s254
    %p265 = scmp.eq.s32.totalorder %s25, 0
    %p266 = por %p264, %p265
    %p267 = scmp.ne.s32.totalorder %s253, %s254
    %p268 = scmp.eq.s32.totalorder %s26, 1
    %p269 = por %p267, %p268
    %p271 = scmp.ne.s32.totalorder %s254, %s270
    %p272 = scmp.eq.s32.totalorder %s26, 0
    %p273 = por %p271, %p272
    %s274 = ssub.s32 %s28, %s35
    %p275 = scmp.eq.s32.totalorder %s274, 0
    %s277 = sadd.s32 %s276, 1
    %s278 = scalar_select %p275, %s276, %s277
    %p281 = pneg %p275
    %p282 = scmp.eq.s32.totalorder %s20, 1
    %p283 = por %p281, %p282
    %p284 = scmp.ne.s32.totalorder %s276, %s279
    %p285 = scmp.eq.s32.totalorder %s20, 0
    %p286 = por %p284, %p285
    %p287 = scmp.ne.s32.totalorder %s276, %s279
    %p288 = scmp.eq.s32.totalorder %s25, 1
    %p289 = por %p287, %p288
    %p290 = scmp.ne.s32.totalorder %s279, %s280
    %p291 = scmp.eq.s32.totalorder %s25, 0
    %p292 = por %p290, %p291
    %p293 = scmp.ne.s32.totalorder %s279, %s280
    %p294 = scmp.eq.s32.totalorder %s26, 1
    %p295 = por %p293, %p294
    %p297 = scmp.ne.s32.totalorder %s280, %s296
    %p298 = scmp.eq.s32.totalorder %s26, 0
    %p299 = por %p297, %p298
    %s300 = ssub.s32 %s28, %s35
    %p301 = scmp.eq.s32.totalorder %s300, 0
    %s303 = sadd.s32 %s302, 1
    %s304 = scalar_select %p301, %s302, %s303
    %p307 = pneg %p301
    %p308 = scmp.eq.s32.totalorder %s20, 1
    %p309 = por %p307, %p308
    %p310 = scmp.ne.s32.totalorder %s302, %s305
    %p311 = scmp.eq.s32.totalorder %s20, 0
    %p312 = por %p310, %p311
    %p313 = scmp.ne.s32.totalorder %s302, %s305
    %p314 = scmp.eq.s32.totalorder %s25, 1
    %p315 = por %p313, %p314
    %p316 = scmp.ne.s32.totalorder %s305, %s306
    %p317 = scmp.eq.s32.totalorder %s25, 0
    %p318 = por %p316, %p317
    %p319 = scmp.ne.s32.totalorder %s305, %s306
    %p320 = scmp.eq.s32.totalorder %s26, 1
    %p321 = por %p319, %p320
    %p323 = scmp.ne.s32.totalorder %s306, %s322
    %p324 = scmp.eq.s32.totalorder %s26, 0
    %p325 = por %p323, %p324
    %s326 = ssub.s32 %s28, %s35
    %p327 = scmp.eq.s32.totalorder %s326, 0
    %s329 = sadd.s32 %s328, 1
    %s330 = scalar_select %p327, %s328, %s329
    %p333 = pneg %p327
    %p334 = scmp.eq.s32.totalorder %s20, 1
    %p335 = por %p333, %p334
    %p336 = scmp.ne.s32.totalorder %s328, %s331
    %p337 = scmp.eq.s32.totalorder %s20, 0
    %p338 = por %p336, %p337
    %p339 = scmp.ne.s32.totalorder %s328, %s331
    %p340 = scmp.eq.s32.totalorder %s25, 1
    %p341 = por %p339, %p340
    %p342 = scmp.ne.s32.totalorder %s331, %s332
    %p343 = scmp.eq.s32.totalorder %s25, 0
    %p344 = por %p342, %p343
    %p345 = scmp.ne.s32.totalorder %s331, %s332
    %p346 = scmp.eq.s32.totalorder %s26, 1
    %p347 = por %p345, %p346
    %p349 = scmp.ne.s32.totalorder %s332, %s348
    %p350 = scmp.eq.s32.totalorder %s26, 0
    %p351 = por %p349, %p350
    %s352 = ssub.s32 %s28, %s35
    %p353 = scmp.eq.s32.totalorder %s352, 0
    %s355 = sadd.s32 %s354, 1
    %s356 = scalar_select %p353, %s354, %s355
    %p359 = pneg %p353
    %p360 = scmp.eq.s32.totalorder %s20, 1
    %p361 = por %p359, %p360
    %p362 = scmp.ne.s32.totalorder %s354, %s357
    %p363 = scmp.eq.s32.totalorder %s20, 0
    %p364 = por %p362, %p363
    %p365 = scmp.ne.s32.totalorder %s354, %s357
    %p366 = scmp.eq.s32.totalorder %s25, 1
    %p367 = por %p365, %p366
    %p368 = scmp.ne.s32.totalorder %s357, %s358
    %p369 = scmp.eq.s32.totalorder %s25, 0
    %p370 = por %p368, %p369
    %p371 = scmp.ne.s32.totalorder %s357, %s358
    %p372 = scmp.eq.s32.totalorder %s26, 1
    %p373 = por %p371, %p372
    %p375 = scmp.ne.s32.totalorder %s358, %s374
    %p376 = scmp.eq.s32.totalorder %s26, 0
    %p377 = por %p375, %p376
    %s378 = ssub.s32 %s28, %s35
    %p379 = scmp.eq.s32.totalorder %s378, 0
    %s381 = sadd.s32 %s380, 1
    %s382 = scalar_select %p379, %s380, %s381
    %p385 = pneg %p379
    %p386 = scmp.eq.s32.totalorder %s20, 1
    %p387 = por %p385, %p386
    %p388 = scmp.ne.s32.totalorder %s380, %s383
    %p389 = scmp.eq.s32.totalorder %s20, 0
    %p390 = por %p388, %p389
    %p391 = scmp.ne.s32.totalorder %s380, %s383
    %p392 = scmp.eq.s32.totalorder %s25, 1
    %p393 = por %p391, %p392
    %p394 = scmp.ne.s32.totalorder %s383, %s384
    %p395 = scmp.eq.s32.totalorder %s25, 0
    %p396 = por %p394, %p395
    %p397 = scmp.ne.s32.totalorder %s383, %s384
    %p398 = scmp.eq.s32.totalorder %s26, 1
    %p399 = por %p397, %p398
    %p401 = scmp.ne.s32.totalorder %s384, %s400
    %p402 = scmp.eq.s32.totalorder %s26, 0
    %p403 = por %p401, %p402
    %s404 = ssub.s32 %s27, %s39
    %p405 = scmp.eq.s32.totalorder %s404, 0
    %s407 = sadd.s32 %s406, 1
    %s408 = scalar_select %p405, %s406, %s407
    %p411 = pneg %p405
    %p412 = scmp.eq.s32.totalorder %s20, 1
    %p413 = por %p411, %p412
    %p414 = scmp.ne.s32.totalorder %s406, %s409
    %p415 = scmp.eq.s32.totalorder %s20, 0
    %p416 = por %p414, %p415
    %p417 = scmp.ne.s32.totalorder %s406, %s409
    %p418 = scmp.eq.s32.totalorder %s25, 1
    %p419 = por %p417, %p418
    %p420 = scmp.ne.s32.totalorder %s409, %s410
    %p421 = scmp.eq.s32.totalorder %s25, 0
    %p422 = por %p420, %p421
    %p423 = scmp.ne.s32.totalorder %s409, %s410
    %p424 = scmp.eq.s32.totalorder %s26, 1
    %p425 = por %p423, %p424
    %p427 = scmp.ne.s32.totalorder %s410, %s426
    %p428 = scmp.eq.s32.totalorder %s26, 0
    %p429 = por %p427, %p428
    %p430 = scmp.le.s32.totalorder 1, %s20
    %p431 = scmp.lt.s32.totalorder %s20, 3
    %p432 = pnand %p430, %p431
    %p433 = pneg %p432
    // Predicated region
    $region9: #{openclip_vit_forward.5} parent=5 // pred_check
      _
    $region10: #{openclip_vit_forward.5} parent=5 // pred_check_branch
      %435 = sbr.rel (%p432) target = $region12
    $region11: #{openclip_vit_forward.5} parent=5 // pred_region
      %s436 = ssub.s32 %s20, 1
      // Predicated region
      $region13: #{openclip_vit_forward.5} parent=11 // pred_check
        %p437 = pneg %p110
      $region14: #{openclip_vit_forward.5} parent=11 // pred_check_branch
        %439 = sbr.rel (%p437) target = $region16
      $region15: #{openclip_vit_forward.5} parent=11 // pred_region
        %p440 = scmp.lt.s32.totalorder %s30, 0
        %s441 = scalar_select %p440, %s30, 0
        %s442 = scalar_lea.vmem %s2, %s441
      $region16: #{openclip_vit_forward.5} parent=11 // pred_fallthru
        _
      // Predicated region
      $region17: #{openclip_vit_forward.5} parent=11 // pred_check
        %p443 = pneg %p136
      $region18: #{openclip_vit_forward.5} parent=11 // pred_check_branch
        %445 = sbr.rel (%p443) target = $region20
      $region19: #{openclip_vit_forward.5} parent=11 // pred_region
        %p446 = scmp.lt.s32.totalorder %s30, 0
        %s447 = scalar_select %p446, %s30, 0
        %s448 = scalar_lea.vmem %s3, %s447
      $region20: #{openclip_vit_forward.5} parent=11 // pred_fallthru
        _
      // Predicated region
      $region21: #{openclip_vit_forward.5} parent=11 // pred_check
        %p449 = pneg %p162
      $region22: #{openclip_vit_forward.5} parent=11 // pred_check_branch
        %451 = sbr.rel (%p449) target = $region24
      $region23: #{openclip_vit_forward.5} parent=11 // pred_region
        %p452 = scmp.lt.s32.totalorder %s30, 0
        %s453 = scalar_select %p452, %s30, 0
        %s454 = smul.addr %s453, 4
        %s455 = smul.addr %s454, 4
        %s456 = scalar_lea.vmem %s4, %s455
      $region24: #{openclip_vit_forward.5} parent=11 // pred_fallthru
        _
      // Predicated region
      $region25: #{openclip_vit_forward.5} parent=11 // pred_check
        %p457 = pneg %p188
      $region26: #{openclip_vit_forward.5} parent=11 // pred_check_branch
        %459 = sbr.rel (%p457) target = $region28
      $region27: #{openclip_vit_forward.5} parent=11 // pred_region
        %p460 = scmp.lt.s32.totalorder %s30, 0
        %s461 = scalar_select %p460, %s30, 0
        %s462 = scalar_lea.vmem %s5, %s461
      $region28: #{openclip_vit_forward.5} parent=11 // pred_fallthru
        _
      // Predicated region
      $region29: #{openclip_vit_forward.5} parent=11 // pred_check
        %p463 = pneg %p214
      $region30: #{openclip_vit_forward.5} parent=11 // pred_check_branch
        %465 = sbr.rel (%p463) target = $region32
      $region31: #{openclip_vit_forward.5} parent=11 // pred_region
        %p466 = scmp.lt.s32.totalorder %s30, 0
        %s467 = scalar_select %p466, %s30, 0
        %s468 = smul.addr %s467, 4
        %s469 = smul.addr %s468, 4
        %s470 = scalar_lea.vmem %s6, %s469
      $region32: #{openclip_vit_forward.5} parent=11 // pred_fallthru
        _
      // Predicated region
      $region33: #{openclip_vit_forward.5} parent=11 // pred_check
        %p471 = pneg %p240
      $region34: #{openclip_vit_forward.5} parent=11 // pred_check_branch
        %473 = sbr.rel (%p471) target = $region36
      $region35: #{openclip_vit_forward.5} parent=11 // pred_region
        %p474 = scmp.lt.s32.totalorder %s30, 0
        %s475 = scalar_select %p474, %s30, 0
        %s476 = scalar_lea.vmem %s7, %s475
      $region36: #{openclip_vit_forward.5} parent=11 // pred_fallthru
        _
      // Predicated region
      $region37: #{openclip_vit_forward.5} parent=11 // pred_check
        %p477 = pneg %p266
      $region38: #{openclip_vit_forward.5} parent=11 // pred_check_branch
        %479 = sbr.rel (%p477) target = $region40
      $region39: #{openclip_vit_forward.5} parent=11 // pred_region
        %p480 = scmp.lt.s32.totalorder %s30, 0
        %s481 = scalar_select %p480, %s30, 0
        %s482 = scalar_lea.vmem %s8, %s481
      $region40: #{openclip_vit_forward.5} parent=11 // pred_fallthru
        _
      // Predicated region
      $region41: #{openclip_vit_forward.5} parent=11 // pred_check
        %p483 = pneg %p292
      $region42: #{openclip_vit_forward.5} parent=11 // pred_check_branch
        %485 = sbr.rel (%p483) target = $region44
      $region43: #{openclip_vit_forward.5} parent=11 // pred_region
        %p486 = scmp.lt.s32.totalorder %s30, 0
        %s487 = scalar_select %p486, %s30, 0
        %s488 = scalar_lea.vmem %s9, %s487
      $region44: #{openclip_vit_forward.5} parent=11 // pred_fallthru
        _
      // Predicated region
      $region45: #{openclip_vit_forward.5} parent=11 // pred_check
        %p489 = pneg %p318
      $region46: #{openclip_vit_forward.5} parent=11 // pred_check_branch
        %491 = sbr.rel (%p489) target = $region48
      $region47: #{openclip_vit_forward.5} parent=11 // pred_region
        %p492 = scmp.lt.s32.totalorder %s30, 0
        %s493 = scalar_select %p492, %s30, 0
        %s494 = smul.addr %s493, 4
        %s495 = smul.addr %s494, 4
        %s496 = scalar_lea.vmem %s10, %s495
      $region48: #{openclip_vit_forward.5} parent=11 // pred_fallthru
        _
      // Predicated region
      $region49: #{openclip_vit_forward.5} parent=11 // pred_check
        %p497 = pneg %p344
      $region50: #{openclip_vit_forward.5} parent=11 // pred_check_branch
        %499 = sbr.rel (%p497) target = $region52
      $region51: #{openclip_vit_forward.5} parent=11 // pred_region
        %p500 = scmp.lt.s32.totalorder %s30, 0
        %s501 = scalar_select %p500, %s30, 0
        %s502 = scalar_lea.vmem %s11, %s501
      $region52: #{openclip_vit_forward.5} parent=11 // pred_fallthru
        _
      // Predicated region
      $region53: #{openclip_vit_forward.5} parent=11 // pred_check
        %p503 = pneg %p370
      $region54: #{openclip_vit_forward.5} parent=11 // pred_check_branch
        %505 = sbr.rel (%p503) target = $region56
      $region55: #{openclip_vit_forward.5} parent=11 // pred_region
        %p506 = scmp.lt.s32.totalorder %s30, 0
        %s507 = scalar_select %p506, %s30, 0
        %s508 = smul.addr %s507, 16
        %s509 = smul.addr %s508, 4
        %s510 = scalar_lea.vmem %s12, %s509
      $region56: #{openclip_vit_forward.5} parent=11 // pred_fallthru
        _
      // Predicated region
      $region57: #{openclip_vit_forward.5} parent=11 // pred_check
        %p511 = pneg %p396
      $region58: #{openclip_vit_forward.5} parent=11 // pred_check_branch
        %513 = sbr.rel (%p511) target = $region60
      $region59: #{openclip_vit_forward.5} parent=11 // pred_region
        %p514 = scmp.lt.s32.totalorder %s30, 0
        %s515 = scalar_select %p514, %s30, 0
        %s516 = scalar_lea.vmem %s13, %s515
      $region60: #{openclip_vit_forward.5} parent=11 // pred_fallthru
        _
    $region12: #{openclip_vit_forward.5} parent=5 // pred_fallthru
      _
    %p517 = scmp.lt.s32.totalorder %s20, 2
    // Predicated region
    $region61: #{openclip_vit_forward.5} parent=5 // pred_check
      %p518 = pneg %p517
    $region62: #{openclip_vit_forward.5} parent=5 // pred_check_branch
      %520 = sbr.rel (%p518) target = $region64
    $region63: #{openclip_vit_forward.5} parent=5 // pred_region
      // Predicated region
      $region65: #{openclip_vit_forward.5} parent=63 // pred_check
        %p521 = pneg %p52
      $region66: #{openclip_vit_forward.5} parent=63 // pred_check_branch
        %523 = sbr.rel (%p521) target = $region68
      $region67: #{openclip_vit_forward.5} parent=63 // pred_region
        %p524 = scmp.lt.s32.totalorder %s27, 1
        %s525 = scalar_select %p524, %s27, 1
        %s526 = smul.addr %s525, 5
        %s527 = smul.addr %s526, 8
        %s528 = scalar_lea.vmem %s0, %s527
      $region68: #{openclip_vit_forward.5} parent=63 // pred_fallthru
        _
      // Predicated region
      $region69: #{openclip_vit_forward.5} parent=63 // pred_check
        %p529 = pneg %p78
      $region70: #{openclip_vit_forward.5} parent=63 // pred_check_branch
        %531 = sbr.rel (%p529) target = $region72
      $region71: #{openclip_vit_forward.5} parent=63 // pred_region
        %p532 = scmp.lt.s32.totalorder %s27, 1
        %s533 = scalar_select %p532, %s27, 1
        %s534 = scalar_lea.vmem %s1, %s533
      $region72: #{openclip_vit_forward.5} parent=63 // pred_fallthru
        _
    $region64: #{openclip_vit_forward.5} parent=5 // pred_fallthru
      _
    %p535 = scmp.le.s32.totalorder 1, %s20
    %p536 = scmp.lt.s32.totalorder %s20, 3
    %p537 = pnand %p535, %p536
    %p538 = pneg %p537
    // Predicated region
    $region73: #{openclip_vit_forward.5} parent=5 // pred_check
      _
    $region74: #{openclip_vit_forward.5} parent=5 // pred_check_branch
      %540 = sbr.rel (%p537) target = $region76
    $region75: #{openclip_vit_forward.5} parent=5 // pred_region
      %s541 = ssub.s32 %s20, 1
      %p542 = scmp.lt.s32.totalorder %s29, 1
      %s543 = scalar_select %p542, %s29, 1
      %s544 = smul.addr %s543, 5
      %s545 = smul.addr %s544, 8
      %s546 = scalar_lea.vmem %s0, %s545
      %p547 = pneg %p58
      %p548 = pneg %p55
      %p549 = scmp.lt.s32.totalorder %s29, 1
      %s550 = scalar_select %p549, %s29, 1
      %s551 = scalar_lea.vmem %s1, %s550
      %p552 = pneg %p84
      %p553 = pneg %p81
      %p554 = scmp.lt.s32.totalorder %s30, 0
      %s555 = scalar_select %p554, %s30, 0
      %s556 = scalar_lea.vmem %s2, %s555
      %p557 = pneg %p110
      %p558 = pneg %p107
      %p559 = scmp.lt.s32.totalorder %s30, 0
      %s560 = scalar_select %p559, %s30, 0
      %s561 = scalar_lea.vmem %s3, %s560
      %p562 = pneg %p136
      %p563 = pneg %p133
      %p564 = scmp.lt.s32.totalorder %s30, 0
      %s565 = scalar_select %p564, %s30, 0
      %s566 = smul.addr %s565, 4
      %s567 = smul.addr %s566, 4
      %s568 = scalar_lea.vmem %s4, %s567
      %p569 = pneg %p162
      %p570 = pneg %p159
      %p571 = scmp.lt.s32.totalorder %s30, 0
      %s572 = scalar_select %p571, %s30, 0
      %s573 = scalar_lea.vmem %s5, %s572
      %p574 = pneg %p188
      %p575 = pneg %p185
      %p576 = scmp.lt.s32.totalorder %s30, 0
      %s577 = scalar_select %p576, %s30, 0
      %s578 = smul.addr %s577, 4
      %s579 = smul.addr %s578, 4
      %s580 = scalar_lea.vmem %s6, %s579
      %p581 = pneg %p214
      %p582 = pneg %p211
      %p583 = scmp.lt.s32.totalorder %s30, 0
      %s584 = scalar_select %p583, %s30, 0
      %s585 = scalar_lea.vmem %s7, %s584
      %p586 = pneg %p240
      %p587 = pneg %p237
      %p588 = scmp.lt.s32.totalorder %s30, 0
      %s589 = scalar_select %p588, %s30, 0
      %s590 = scalar_lea.vmem %s8, %s589
      %p591 = pneg %p266
      %p592 = pneg %p263
      %p593 = scmp.lt.s32.totalorder %s30, 0
      %s594 = scalar_select %p593, %s30, 0
      %s595 = scalar_lea.vmem %s9, %s594
      %p596 = pneg %p292
      %p597 = pneg %p289
      %p598 = scmp.lt.s32.totalorder %s30, 0
      %s599 = scalar_select %p598, %s30, 0
      %s600 = smul.addr %s599, 4
      %s601 = smul.addr %s600, 4
      %s602 = scalar_lea.vmem %s10, %s601
      %p603 = pneg %p318
      %p604 = pneg %p315
      %p605 = scmp.lt.s32.totalorder %s30, 0
      %s606 = scalar_select %p605, %s30, 0
      %s607 = scalar_lea.vmem %s11, %s606
      %p608 = pneg %p344
      %p609 = pneg %p341
      %p610 = scmp.lt.s32.totalorder %s30, 0
      %s611 = scalar_select %p610, %s30, 0
      %s612 = smul.addr %s611, 16
      %s613 = smul.addr %s612, 4
      %s614 = scalar_lea.vmem %s12, %s613
      %p615 = pneg %p370
      %p616 = pneg %p367
      %p617 = scmp.lt.s32.totalorder %s30, 0
      %s618 = scalar_select %p617, %s30, 0
      %s619 = scalar_lea.vmem %s13, %s618
      %p620 = pneg %p396
      %p621 = pneg %p393
      %p622 = pneg %p422
      %p623 = pneg %p419
      %p624 = scmp.lt.s32.totalorder %s29, 1
      %s625 = scalar_select %p624, %s29, 1
      %s626 = smul.addr %s625, 5
      %s627 = smul.addr %s626, 8
      %s628 = scalar_lea.vmem %s14, %s627
      %p629 = scmp.lt.s32.totalorder %s29, 1
      %s630 = scalar_select %p629, %s29, 1
      %s631 = smul.addr %s630, 5
      %s632 = smul.addr %s631, 8
      %s633 = scalar_lea.vmem %s0, %s632
      %p634 = scmp.lt.s32.totalorder %s29, 1
      %s635 = scalar_select %p634, %s29, 1
      %s636 = scalar_lea.vmem %s1, %s635
      %p637 = scmp.lt.s32.totalorder %s30, 0
      %s638 = scalar_select %p637, %s30, 0
      %s639 = scalar_lea.vmem %s2, %s638
      %p640 = scmp.lt.s32.totalorder %s30, 0
      %s641 = scalar_select %p640, %s30, 0
      %s642 = scalar_lea.vmem %s3, %s641
      %p643 = scmp.lt.s32.totalorder %s30, 0
      %s644 = scalar_select %p643, %s30, 0
      %s645 = smul.addr %s644, 4
      %s646 = smul.addr %s645, 4
      %s647 = scalar_lea.vmem %s4, %s646
      %p648 = scmp.lt.s32.totalorder %s30, 0
      %s649 = scalar_select %p648, %s30, 0
      %s650 = scalar_lea.vmem %s5, %s649
      %p651 = scmp.lt.s32.totalorder %s30, 0
      %s652 = scalar_select %p651, %s30, 0
      %s653 = smul.addr %s652, 4
      %s654 = smul.addr %s653, 4
      %s655 = scalar_lea.vmem %s6, %s654
      %p656 = scmp.lt.s32.totalorder %s30, 0
      %s657 = scalar_select %p656, %s30, 0
      %s658 = scalar_lea.vmem %s7, %s657
      %p659 = scmp.lt.s32.totalorder %s30, 0
      %s660 = scalar_select %p659, %s30, 0
      %s661 = scalar_lea.vmem %s8, %s660
      %p662 = scmp.lt.s32.totalorder %s30, 0
      %s663 = scalar_select %p662, %s30, 0
      %s664 = scalar_lea.vmem %s9, %s663
      %p665 = scmp.lt.s32.totalorder %s30, 0
      %s666 = scalar_select %p665, %s30, 0
      %s667 = smul.addr %s666, 4
      %s668 = smul.addr %s667, 4
      %s669 = scalar_lea.vmem %s10, %s668
      %p670 = scmp.lt.s32.totalorder %s30, 0
      %s671 = scalar_select %p670, %s30, 0
      %s672 = scalar_lea.vmem %s11, %s671
      %p673 = scmp.lt.s32.totalorder %s30, 0
      %s674 = scalar_select %p673, %s30, 0
      %s675 = smul.addr %s674, 16
      %s676 = smul.addr %s675, 4
      %s677 = scalar_lea.vmem %s12, %s676
      %p678 = scmp.lt.s32.totalorder %s30, 0
      %s679 = scalar_select %p678, %s30, 0
      %s680 = scalar_lea.vmem %s13, %s679
      %p681 = scmp.lt.s32.totalorder %s29, 1
      %s682 = scalar_select %p681, %s29, 1
      %s683 = smul.addr %s682, 5
      %s684 = smul.addr %s683, 8
      %s685 = scalar_lea.vmem %s14, %s684
      %p687 = scmp.eq.s32.totalorder %s30, 0
      // Predicated region
      $region77: #{openclip_vit_forward.5} parent=75 // pred_check
        %p688 = pneg %p687
      $region78: #{openclip_vit_forward.5} parent=75 // pred_check_branch
        %690 = sbr.rel (%p688) target = $region80
      $region79: #{openclip_vit_forward.5} parent=75 // pred_region
        %v691 = vld [vmem:[%s633] sm:$0xff]
        %v692 = vld [vmem:[%s633 + $0x8] sm:$0xff]
        %v693 = vld [vmem:[%s633 + $0x10] sm:$0xff]
        %v694 = vld [vmem:[%s633 + $0x18] sm:$0xff]
        %v695 = vld [vmem:[%s633 + $0x20] sm:$0xff]
        %vm696 = vcmask 261120
        %697 = vst.msk [vmem:[%s685] sm:$0xff] %vm696, %v691
        %698 = vst.msk [vmem:[%s685 + $0x8] sm:$0xff] %vm696, %v692
        %699 = vst.msk [vmem:[%s685 + $0x10] sm:$0xff] %vm696, %v693
        %700 = vst.msk [vmem:[%s685 + $0x18] sm:$0xff] %vm696, %v694
        %701 = vst.msk [vmem:[%s685 + $0x20] sm:$0xff] %vm696, %v695
      $region80: #{openclip_vit_forward.5} parent=75 // pred_fallthru
        _
      %v702 = vld [vmem:[%s685] sm:$0xff]
      %v703 = vld [vmem:[%s685 + $0x8] sm:$0xff]
      %v704 = vld [vmem:[%s685 + $0x10] sm:$0xff]
      %v705 = vld [vmem:[%s685 + $0x18] sm:$0xff]
      %v706 = vld [vmem:[%s685 + $0x20] sm:$0xff]
      %v707 = vld [vmem:[%s639] sm:$0x1]
      %v708 = vld [vmem:[%s642] sm:$0x1]
      %vm709 = vcmask 261120
      %v710 = vsel %vm709, %v702, 0.0
      %711 = vadd.xlane.f32.xlu0 %v710
      %v712 = vpop.xlane.xlu0 %711
      %v713 = vsel %vm709, %v703, 0.0
      %714 = vadd.xlane.f32.xlu0 %v713
      %v715 = vpop.xlane.xlu0 %714
      %v716 = vsel %vm709, %v704, 0.0
      %717 = vadd.xlane.f32.xlu0 %v716
      %v718 = vpop.xlane.xlu0 %717
      %v719 = vsel %vm709, %v705, 0.0
      %720 = vadd.xlane.f32.xlu0 %v719
      %v721 = vpop.xlane.xlu0 %720
      %v722 = vsel %vm709, %v706, 0.0
      %723 = vadd.xlane.f32.xlu0 %v722
      %v724 = vpop.xlane.xlu0 %723
      %v725 = vrcp.pop 32.0
      %v726 = vmul.f32 %v712, %v725
      %v727 = vmul.f32 %v715, %v725
      %v728 = vmul.f32 %v718, %v725
      %v729 = vmul.f32 %v721, %v725
      %v730 = vmul.f32 %v724, %v725
      %v731 = vsub.f32 %v702, %v726
      %v732 = vsub.f32 %v703, %v727
      %v733 = vsub.f32 %v704, %v728
      %v734 = vsub.f32 %v705, %v729
      %v735 = vsub.f32 %v706, %v730
      %v736 = vmul.f32 %v731, %v731
      %v737 = vmul.f32 %v732, %v732
      %v738 = vmul.f32 %v733, %v733
      %v739 = vmul.f32 %v734, %v734
      %v740 = vmul.f32 %v735, %v735
      %v741 = vsel %vm709, %v736, 0.0
      %742 = vadd.xlane.f32.xlu0 %v741
      %v743 = vpop.xlane.xlu0 %742
      %v744 = vsel %vm709, %v737, 0.0
      %745 = vadd.xlane.f32.xlu0 %v744
      %v746 = vpop.xlane.xlu0 %745
      %v747 = vsel %vm709, %v738, 0.0
      %748 = vadd.xlane.f32.xlu0 %v747
      %v749 = vpop.xlane.xlu0 %748
      %v750 = vsel %vm709, %v739, 0.0
      %751 = vadd.xlane.f32.xlu0 %v750
      %v752 = vpop.xlane.xlu0 %751
      %v753 = vsel %vm709, %v740, 0.0
      %754 = vadd.xlane.f32.xlu0 %v753
      %v755 = vpop.xlane.xlu0 %754
      %v756 = vmul.f32 %v743, %v725
      %v757 = vmul.f32 %v746, %v725
      %v758 = vmul.f32 %v749, %v725
      %v759 = vmul.f32 %v752, %v725
      %v760 = vmul.f32 %v755, %v725
      %v761 = vadd.f32 %v756, 1e-05
      %v762 = vadd.f32 %v757, 1e-05
      %v763 = vadd.f32 %v758, 1e-05
      %v764 = vadd.f32 %v759, 1e-05
      %v765 = vadd.f32 %v760, 1e-05
      %v766 = vrsqrt.pop %v761
      %v767 = vrsqrt.pop %v762
      %v768 = vrsqrt.pop %v763
      %v769 = vrsqrt.pop %v764
      %v770 = vrsqrt.pop %v765
      %v771 = vmul.f32 %v731, %v766
      %v772 = vmul.f32 %v732, %v767
      %v773 = vmul.f32 %v733, %v768
      %v774 = vmul.f32 %v734, %v769
      %v775 = vmul.f32 %v735, %v770
      %v777 = vlaneseq
      %v778 = vshrl.u32 %v777, 7
      %v779 = vsub.s32 0, %v778
      %v780 = vrot.slane %v707, %v779
      %v782 = vmul.f32 %v771, %v780
      %v783 = vmul.f32 %v772, %v780
      %v784 = vmul.f32 %v773, %v780
      %v785 = vmul.f32 %v774, %v780
      %v786 = vmul.f32 %v775, %v780
      %v788 = vlaneseq
      %v789 = vshrl.u32 %v788, 7
      %v790 = vsub.s32 0, %v789
      %v791 = vrot.slane %v708, %v790
      %v793 = vadd.f32 %v782, %v791
      %v794 = vadd.f32 %v783, %v791
      %v795 = vadd.f32 %v784, %v791
      %v796 = vadd.f32 %v785, %v791
      %v797 = vadd.f32 %v786, %v791
      %v798 = vpack.c.bf16 %v794, %v793
      %v799 = vpack.c.bf16 %v796, %v795
      %v800 = vpack.c.bf16 %v797, %v797
      %v801 = vld [vmem:[%s647] sm:$0xf]
      %v802 = vld [vmem:[%s647 + $0x4] sm:$0xf]
      %v803 = vld [vmem:[%s647 + $0x8] sm:$0xf]
      %v804 = vld [vmem:[%s647 + $0xc] sm:$0xf]
      %v805 = vld [vmem:[%s650] sm:$0x1]
      %v807 = vlaneseq
      %v808 = vshrl.u32 %v807, 7
      %v809 = vsub.s32 0, %v808
      %v810 = vrot.slane %v805, %v809
      %v816 = vunpack.c.l.b16 %v801
      %v817 = vunpack.c.l.b16 %v802
      %v818 = vunpack.c.l.b16 %v803
      %v819 = vunpack.c.l.b16 %v804
      %v820 = vpack.c.b16 %v817, %v816
      %v821 = vpack.c.b16 %v819, %v818
      %v825 = vsel %vm709, %v798, 0
      %v828 = vsel %vm709, %v799, 0
      %v831 = vsel %vm709, %v800, 0
      %833 = vmatprep.subr.bf16.mxu0 0
      %834 = vmatpush1.bf16.msra.mxu0 %v820
      %835 = vmatprep.subr.bf16.mxu0 0
      %836 = vmatpush1.bf16.msra.mxu0 %v821
      %837 = vmatprep.subr.bf16.mxu0 0
      %838 = vmatpush1.bf16.msra.mxu0 0
      %839 = vmatprep.subr.bf16.mxu0 0
      %840 = vmatpush1.bf16.msra.mxu0 0
      %841 = vmatprep.subr.bf16.mxu0 0
      %842 = vmatpush1.bf16.msra.mxu0 0
      %843 = vmatprep.subr.bf16.mxu0 0
      %844 = vmatpush1.bf16.msra.mxu0 0
      %845 = vmatprep.subr.bf16.mxu0 0
      %846 = vmatpush1.bf16.msra.mxu0 0
      %847 = vmatprep.subr.bf16.mxu0 0
      %848 = vmatpush1.bf16.msra.mxu0 0
      %849 = vmatprep.subr.bf16.mxu0 0
      %850 = vmatpush1.bf16.msra.mxu0 0
      %851 = vmatprep.subr.bf16.mxu0 0
      %852 = vmatpush1.bf16.msra.mxu0 0
      %853 = vmatprep.subr.bf16.mxu0 0
      %854 = vmatpush1.bf16.msra.mxu0 0
      %855 = vmatprep.subr.bf16.mxu0 0
      %856 = vmatpush1.bf16.msra.mxu0 0
      %857 = vmatprep.subr.bf16.mxu0 0
      %858 = vmatpush1.bf16.msra.mxu0 0
      %859 = vmatprep.subr.bf16.mxu0 0
      %860 = vmatpush1.bf16.msra.mxu0 0
      %861 = vmatprep.subr.bf16.mxu0 0
      %862 = vmatpush1.bf16.msra.mxu0 0
      %863 = vmatprep.subr.bf16.mxu0 0
      %864 = vmatpush1.bf16.msra.mxu0 0
      %865 = vmatprep.mubr.bf16.mxu0 0
      %866 = vmatmul.mubr.bf16.gmra.mrb[0].mxu0 %v825
      %v867 = vpop.f32.mrb[0].mxu0
      %v868 = vadd.f32 %v810, %v867
      %v869 = vpop.f32.mrb[0].mxu0
      %v870 = vpop.f32.mrb[0].mxu0
      %v871 = vadd.f32 %v810, %v870
      %v872 = vpop.f32.mrb[0].mxu0
      %873 = vmatprep.mubr.bf16.mxu0 0
      %874 = vmatmul.mubr.bf16.gmra.mrb[0].mxu0 %v828
      %v875 = vpop.f32.mrb[0].mxu0
      %v876 = vadd.f32 %v810, %v875
      %v877 = vpop.f32.mrb[0].mxu0
      %v878 = vpop.f32.mrb[0].mxu0
      %v879 = vadd.f32 %v810, %v878
      %v880 = vpop.f32.mrb[0].mxu0
      %881 = vmatprep.mubr.bf16.mxu0 0
      %882 = vmatmul.mubr.bf16.gmra.mrb[0].mxu0 %v831
      %v883 = vpop.f32.mrb[0].mxu0
      %v884 = vadd.f32 %v810, %v883
      %v885 = vpop.f32.mrb[0].mxu0
      %v886 = vpop.f32.mrb[0].mxu0
      %v887 = vpop.f32.mrb[0].mxu0
      %888 = vdwg.mxu0
      %v889 = vld [vmem:[%s636] sm:$0x1]
      %v891 = vlaneseq
      %v892 = vshrl.u32 %v891, 7
      %v893 = vsub.s32 0, %v892
      %v894 = vrot.slane %v889, %v893
      %v896 = vpack.c.bf16 %v871, %v868
      %v897 = vpack.c.bf16 %v879, %v876
      %v898 = vpack.c.bf16 %v884, %v884
      %902 = vrot.lane.b32.xlu0 %v896, 96
      %v903 = vpop.permute.xlu0 %902
      %904 = vrot.lane.b32.xlu0 %v897, 96
      %v905 = vpop.permute.xlu0 %904
      %906 = vrot.lane.b32.xlu0 %v898, 96
      %v907 = vpop.permute.xlu0 %906
      %vm908 = vcmask 130048
      %v910 = vsel %vm908, %v896, 0
      %v913 = vsel %vm908, %v897, 0
      %v916 = vsel %vm908, %v898, 0
      %v919 = vsel %vm908, %v903, 0
      %v922 = vsel %vm908, %v905, 0
      %v925 = vsel %vm908, %v907, 0
      %927 = vmatprep.subr.bf16.mxu0 0
      %928 = vmatpush1.bf16.xpose.msra.mxu0 %v919
      %929 = vmatprep.subr.bf16.mxu0 0
      %930 = vmatpush1.bf16.xpose.msra.mxu0 %v922
      %931 = vmatprep.subr.bf16.mxu0 0
      %932 = vmatpush1.bf16.xpose.msra.mxu0 %v925
      %933 = vmatprep.subr.bf16.mxu0 0
      %934 = vmatpush1.bf16.xpose.msra.mxu0 0
      %935 = vmatprep.subr.bf16.mxu0 0
      %936 = vmatpush1.bf16.xpose.msra.mxu0 0
      %937 = vmatprep.subr.bf16.mxu0 0
      %938 = vmatpush1.bf16.xpose.msra.mxu0 0
      %939 = vmatprep.subr.bf16.mxu0 0
      %940 = vmatpush1.bf16.xpose.msra.mxu0 0
      %941 = vmatprep.subr.bf16.mxu0 0
      %942 = vmatpush1.bf16.xpose.msra.mxu0 0
      %943 = vmatprep.subr.bf16.mxu0 0
      %944 = vmatpush1.bf16.xpose.msra.mxu0 0
      %945 = vmatprep.subr.bf16.mxu0 0
      %946 = vmatpush1.bf16.xpose.msra.mxu0 0
      %947 = vmatprep.subr.bf16.mxu0 0
      %948 = vmatpush1.bf16.xpose.msra.mxu0 0
      %949 = vmatprep.subr.bf16.mxu0 0
      %950 = vmatpush1.bf16.xpose.msra.mxu0 0
      %951 = vmatprep.subr.bf16.mxu0 0
      %952 = vmatpush1.bf16.xpose.msra.mxu0 0
      %953 = vmatprep.subr.bf16.mxu0 0
      %954 = vmatpush1.bf16.xpose.msra.mxu0 0
      %955 = vmatprep.subr.bf16.mxu0 0
      %956 = vmatpush1.bf16.xpose.msra.mxu0 0
      %957 = vmatprep.subr.bf16.mxu0 0
      %958 = vmatpush1.bf16.xpose.msra.mxu0 0
      %959 = vmatprep.mubr.bf16.mxu0 0
      %960 = vmatmul.mubr.bf16.gmra.mrb[0].mxu0 %v910
      %v961 = vpop.f32.mrb[0].mxu0
      %v962 = vadd.f32 %v894, %v961
      %v963 = vpop.f32.mrb[0].mxu0
      %v964 = vpop.f32.mrb[0].mxu0
      %v965 = vadd.f32 %v894, %v964
      %v966 = vpop.f32.mrb[0].mxu0
      %967 = vmatprep.mubr.bf16.mxu0 0
      %968 = vmatmul.mubr.bf16.gmra.mrb[0].mxu0 %v913
      %v969 = vpop.f32.mrb[0].mxu0
      %v970 = vadd.f32 %v894, %v969
      %v971 = vpop.f32.mrb[0].mxu0
      %v972 = vpop.f32.mrb[0].mxu0
      %v973 = vadd.f32 %v894, %v972
      %v974 = vpop.f32.mrb[0].mxu0
      %975 = vmatprep.mubr.bf16.mxu0 0
      %976 = vmatmul.mubr.bf16.gmra.mrb[0].mxu0 %v916
      %v977 = vpop.f32.mrb[0].mxu0
      %v978 = vadd.f32 %v894, %v977
      %v979 = vpop.f32.mrb[0].mxu0
      %v980 = vpop.f32.mrb[0].mxu0
      %v981 = vpop.f32.mrb[0].mxu0
      %982 = vdwg.mxu0
      %vm983 = vcmask 326656
      %v984 = vsel %vm983, %v962, -inf
      %985 = vmax.xlane.f32.xlu0 %v984
      %v986 = vpop.xlane.xlu0 %985
      %v987 = vsel %vm983, %v965, -inf
      %988 = vmax.xlane.f32.xlu0 %v987
      %v989 = vpop.xlane.xlu0 %988
      %v990 = vsel %vm983, %v970, -inf
      %991 = vmax.xlane.f32.xlu0 %v990
      %v992 = vpop.xlane.xlu0 %991
      %v993 = vsel %vm983, %v973, -inf
      %994 = vmax.xlane.f32.xlu0 %v993
      %v995 = vpop.xlane.xlu0 %994
      %v996 = vsel %vm983, %v978, -inf
      %997 = vmax.xlane.f32.xlu0 %v996
      %v998 = vpop.xlane.xlu0 %997
      %v999 = vsub.f32 %v962, %v986
      %v1000 = vsub.f32 %v965, %v989
      %v1001 = vsub.f32 %v970, %v992
      %v1002 = vsub.f32 %v973, %v995
      %v1003 = vsub.f32 %v978, %v998
      %v1004 = vmul.f32 %v999, 1.442695
      %v1005 = vpow.pop %v1004
      %v1006 = vmul.f32 %v1000, 1.442695
      %v1007 = vpow.pop %v1006
      %v1008 = vmul.f32 %v1001, 1.442695
      %v1009 = vpow.pop %v1008
      %v1010 = vmul.f32 %v1002, 1.442695
      %v1011 = vpow.pop %v1010
      %v1012 = vmul.f32 %v1003, 1.442695
      %v1013 = vpow.pop %v1012
      %v1014 = vsel %vm983, %v1005, 0.0
      %1015 = vadd.xlane.f32.xlu0 %v1014
      %v1016 = vpop.xlane.xlu0 %1015
      %v1017 = vsel %vm983, %v1007, 0.0
      %1018 = vadd.xlane.f32.xlu0 %v1017
      %v1019 = vpop.xlane.xlu0 %1018
      %v1020 = vsel %vm983, %v1009, 0.0
      %1021 = vadd.xlane.f32.xlu0 %v1020
      %v1022 = vpop.xlane.xlu0 %1021
      %v1023 = vsel %vm983, %v1011, 0.0
      %1024 = vadd.xlane.f32.xlu0 %v1023
      %v1025 = vpop.xlane.xlu0 %1024
      %v1026 = vsel %vm983, %v1013, 0.0
      %1027 = vadd.xlane.f32.xlu0 %v1026
      %v1028 = vpop.xlane.xlu0 %1027
      %v1029 = vrcp.pop %v1016
      %v1030 = vrcp.pop %v1019
      %v1031 = vrcp.pop %v1022
      %v1032 = vrcp.pop %v1025
      %v1033 = vrcp.pop %v1028
      %v1034 = vmul.f32 %v1005, %v1029
      %v1035 = vmul.f32 %v1007, %v1030
      %v1036 = vmul.f32 %v1009, %v1031
      %v1037 = vmul.f32 %v1011, %v1032
      %v1038 = vmul.f32 %v1013, %v1033
      %v1039 = vpack.c.bf16 %v1035, %v1034
      %v1040 = vpack.c.bf16 %v1037, %v1036
      %v1041 = vpack.c.bf16 %v1038, %v1038
      %1042 = vrot.lane.b32.xlu0 %v896, 64
      %v1043 = vpop.permute.xlu0 %1042
      %1044 = vrot.lane.b32.xlu0 %v897, 64
      %v1045 = vpop.permute.xlu0 %1044
      %1046 = vrot.lane.b32.xlu0 %v898, 64
      %v1047 = vpop.permute.xlu0 %1046
      %v1051 = vsel %vm983, %v1039, 0
      %v1054 = vsel %vm983, %v1040, 0
      %v1057 = vsel %vm983, %v1041, 0
      %vm1059 = vcmask 1043456
      %v1061 = vsel %vm1059, %v1047, 0
      %1063 = vmatprep.subr.bf16.mxu0 0
      %1064 = vmatpush1.bf16.msra.mxu0 %v1043
      %1065 = vmatprep.subr.bf16.mxu0 0
      %1066 = vmatpush1.bf16.msra.mxu0 %v1045
      %1067 = vmatprep.subr.bf16.mxu0 0
      %1068 = vmatpush1.bf16.msra.mxu0 %v1061
      %1069 = vmatprep.subr.bf16.mxu0 0
      %1070 = vmatpush1.bf16.msra.mxu0 0
      %1071 = vmatprep.subr.bf16.mxu0 0
      %1072 = vmatpush1.bf16.msra.mxu0 0
      %1073 = vmatprep.subr.bf16.mxu0 0
      %1074 = vmatpush1.bf16.msra.mxu0 0
      %1075 = vmatprep.subr.bf16.mxu0 0
      %1076 = vmatpush1.bf16.msra.mxu0 0
      %1077 = vmatprep.subr.bf16.mxu0 0
      %1078 = vmatpush1.bf16.msra.mxu0 0
      %1079 = vmatprep.subr.bf16.mxu0 0
      %1080 = vmatpush1.bf16.msra.mxu0 0
      %1081 = vmatprep.subr.bf16.mxu0 0
      %1082 = vmatpush1.bf16.msra.mxu0 0
      %1083 = vmatprep.subr.bf16.mxu0 0
      %1084 = vmatpush1.bf16.msra.mxu0 0
      %1085 = vmatprep.subr.bf16.mxu0 0
      %1086 = vmatpush1.bf16.msra.mxu0 0
      %1087 = vmatprep.subr.bf16.mxu0 0
      %1088 = vmatpush1.bf16.msra.mxu0 0
      %1089 = vmatprep.subr.bf16.mxu0 0
      %1090 = vmatpush1.bf16.msra.mxu0 0
      %1091 = vmatprep.subr.bf16.mxu0 0
      %1092 = vmatpush1.bf16.msra.mxu0 0
      %1093 = vmatprep.subr.bf16.mxu0 0
      %1094 = vmatpush1.bf16.msra.mxu0 0
      %1095 = vmatprep.mubr.bf16.mxu0 0
      %1096 = vmatmul.mubr.bf16.gmra.mrb[0].mxu0 %v1051
      %v1097 = vpop.f32.mrb[0].mxu0
      %v1098 = vadd.f32 0.0, %v1097
      %v1099 = vpop.f32.mrb[0].mxu0
      %v1100 = vpop.f32.mrb[0].mxu0
      %v1101 = vadd.f32 0.0, %v1100
      %v1102 = vpop.f32.mrb[0].mxu0
      %1103 = vmatprep.mubr.bf16.mxu0 0
      %1104 = vmatmul.mubr.bf16.gmra.mrb[0].mxu0 %v1054
      %v1105 = vpop.f32.mrb[0].mxu0
      %v1106 = vadd.f32 0.0, %v1105
      %v1107 = vpop.f32.mrb[0].mxu0
      %v1108 = vpop.f32.mrb[0].mxu0
      %v1109 = vadd.f32 0.0, %v1108
      %v1110 = vpop.f32.mrb[0].mxu0
      %1111 = vmatprep.mubr.bf16.mxu0 0
      %1112 = vmatmul.mubr.bf16.gmra.mrb[0].mxu0 %v1057
      %v1113 = vpop.f32.mrb[0].mxu0
      %v1114 = vadd.f32 0.0, %v1113
      %v1115 = vpop.f32.mrb[0].mxu0
      %v1116 = vpop.f32.mrb[0].mxu0
      %v1117 = vpop.f32.mrb[0].mxu0
      %1118 = vdwg.mxu0
      %1119 = vrot.lane.b32.xlu0 %v896, 112
      %v1120 = vpop.permute.xlu0 %1119
      %1121 = vrot.lane.b32.xlu0 %v897, 112
      %v1122 = vpop.permute.xlu0 %1121
      %1123 = vrot.lane.b32.xlu0 %v898, 112
      %v1124 = vpop.permute.xlu0 %1123
      %1125 = vrot.lane.b32.xlu0 %v896, 80
      %v1126 = vpop.permute.xlu0 %1125
      %1127 = vrot.lane.b32.xlu0 %v897, 80
      %v1128 = vpop.permute.xlu0 %1127
      %1129 = vrot.lane.b32.xlu0 %v898, 80
      %v1130 = vpop.permute.xlu0 %1129
      %v1132 = vsel %vm908, %v1120, 0
      %v1135 = vsel %vm908, %v1122, 0
      %v1138 = vsel %vm908, %v1124, 0
      %v1141 = vsel %vm908, %v1126, 0
      %v1144 = vsel %vm908, %v1128, 0
      %v1147 = vsel %vm908, %v1130, 0
      %1149 = vmatprep.subr.bf16.mxu0 0
      %1150 = vmatpush1.bf16.xpose.msra.mxu0 %v1141
      %1151 = vmatprep.subr.bf16.mxu0 0
      %1152 = vmatpush1.bf16.xpose.msra.mxu0 %v1144
      %1153 = vmatprep.subr.bf16.mxu0 0
      %1154 = vmatpush1.bf16.xpose.msra.mxu0 %v1147
      %1155 = vmatprep.subr.bf16.mxu0 0
      %1156 = vmatpush1.bf16.xpose.msra.mxu0 0
      %1157 = vmatprep.subr.bf16.mxu0 0
      %1158 = vmatpush1.bf16.xpose.msra.mxu0 0
      %1159 = vmatprep.subr.bf16.mxu0 0
      %1160 = vmatpush1.bf16.xpose.msra.mxu0 0
      %1161 = vmatprep.subr.bf16.mxu0 0
      %1162 = vmatpush1.bf16.xpose.msra.mxu0 0
      %1163 = vmatprep.subr.bf16.mxu0 0
      %1164 = vmatpush1.bf16.xpose.msra.mxu0 0
      %1165 = vmatprep.subr.bf16.mxu0 0
      %1166 = vmatpush1.bf16.xpose.msra.mxu0 0
      %1167 = vmatprep.subr.bf16.mxu0 0
      %1168 = vmatpush1.bf16.xpose.msra.mxu0 0
      %1169 = vmatprep.subr.bf16.mxu0 0
      %1170 = vmatpush1.bf16.xpose.msra.mxu0 0
      %1171 = vmatprep.subr.bf16.mxu0 0
      %1172 = vmatpush1.bf16.xpose.msra.mxu0 0
      %1173 = vmatprep.subr.bf16.mxu0 0
      %1174 = vmatpush1.bf16.xpose.msra.mxu0 0
      %1175 = vmatprep.subr.bf16.mxu0 0
      %1176 = vmatpush1.bf16.xpose.msra.mxu0 0
      %1177 = vmatprep.subr.bf16.mxu0 0
      %1178 = vmatpush1.bf16.xpose.msra.mxu0 0
      %1179 = vmatprep.subr.bf16.mxu0 0
      %1180 = vmatpush1.bf16.xpose.msra.mxu0 0
      %1181 = vmatprep.mubr.bf16.mxu0 0
      %1182 = vmatmul.mubr.bf16.gmra.mrb[0].mxu0 %v1132
      %v1183 = vpop.f32.mrb[0].mxu0
      %v1184 = vadd.f32 %v894, %v1183
      %v1185 = vpop.f32.mrb[0].mxu0
      %v1186 = vpop.f32.mrb[0].mxu0
      %v1187 = vadd.f32 %v894, %v1186
      %v1188 = vpop.f32.mrb[0].mxu0
      %1189 = vmatprep.mubr.bf16.mxu0 0
      %1190 = vmatmul.mubr.bf16.gmra.mrb[0].mxu0 %v1135
      %v1191 = vpop.f32.mrb[0].mxu0
      %v1192 = vadd.f32 %v894, %v1191
      %v1193 = vpop.f32.mrb[0].mxu0
      %v1194 = vpop.f32.mrb[0].mxu0
      %v1195 = vadd.f32 %v894, %v1194
      %v1196 = vpop.f32.mrb[0].mxu0
      %1197 = vmatprep.mubr.bf16.mxu0 0
      %1198 = vmatmul.mubr.bf16.gmra.mrb[0].mxu0 %v1138
      %v1199 = vpop.f32.mrb[0].mxu0
      %v1200 = vadd.f32 %v894, %v1199
      %v1201 = vpop.f32.mrb[0].mxu0
      %v1202 = vpop.f32.mrb[0].mxu0
      %v1203 = vpop.f32.mrb[0].mxu0
      %1204 = vdwg.mxu0
      %v1205 = vsel %vm983, %v1184, -inf
      %1206 = vmax.xlane.f32.xlu0 %v1205
      %v1207 = vpop.xlane.xlu0 %1206
      %v1208 = vsel %vm983, %v1187, -inf
      %1209 = vmax.xlane.f32.xlu0 %v1208
      %v1210 = vpop.xlane.xlu0 %1209
      %v1211 = vsel %vm983, %v1192, -inf
      %1212 = vmax.xlane.f32.xlu0 %v1211
      %v1213 = vpop.xlane.xlu0 %1212
      %v1214 = vsel %vm983, %v1195, -inf
      %1215 = vmax.xlane.f32.xlu0 %v1214
      %v1216 = vpop.xlane.xlu0 %1215
      %v1217 = vsel %vm983, %v1200, -inf
      %1218 = vmax.xlane.f32.xlu0 %v1217
      %v1219 = vpop.xlane.xlu0 %1218
      %v1220 = vsub.f32 %v1184, %v1207
      %v1221 = vsub.f32 %v1187, %v1210
      %v1222 = vsub.f32 %v1192, %v1213
      %v1223 = vsub.f32 %v1195, %v1216
      %v1224 = vsub.f32 %v1200, %v1219
      %v1225 = vmul.f32 %v1220, 1.442695
      %v1226 = vpow.pop %v1225
      %v1227 = vmul.f32 %v1221, 1.442695
      %v1228 = vpow.pop %v1227
      %v1229 = vmul.f32 %v1222, 1.442695
      %v1230 = vpow.pop %v1229
      %v1231 = vmul.f32 %v1223, 1.442695
      %v1232 = vpow.pop %v1231
      %v1233 = vmul.f32 %v1224, 1.442695
      %v1234 = vpow.pop %v1233
      %v1235 = vsel %vm983, %v1226, 0.0
      %1236 = vadd.xlane.f32.xlu0 %v1235
      %v1237 = vpop.xlane.xlu0 %1236
      %v1238 = vsel %vm983, %v1228, 0.0
      %1239 = vadd.xlane.f32.xlu0 %v1238
      %v1240 = vpop.xlane.xlu0 %1239
      %v1241 = vsel %vm983, %v1230, 0.0
      %1242 = vadd.xlane.f32.xlu0 %v1241
      %v1243 = vpop.xlane.xlu0 %1242
      %v1244 = vsel %vm983, %v1232, 0.0
      %1245 = vadd.xlane.f32.xlu0 %v1244
      %v1246 = vpop.xlane.xlu0 %1245
      %v1247 = vsel %vm983, %v1234, 0.0
      %1248 = vadd.xlane.f32.xlu0 %v1247
      %v1249 = vpop.xlane.xlu0 %1248
      %v1250 = vrcp.pop %v1237
      %v1251 = vrcp.pop %v1240
      %v1252 = vrcp.pop %v1243
      %v1253 = vrcp.pop %v1246
      %v1254 = vrcp.pop %v1249
      %v1255 = vmul.f32 %v1226, %v1250
      %v1256 = vmul.f32 %v1228, %v1251
      %v1257 = vmul.f32 %v1230, %v1252
      %v1258 = vmul.f32 %v1232, %v1253
      %v1259 = vmul.f32 %v1234, %v1254
      %v1260 = vpack.c.bf16 %v1256, %v1255
      %v1261 = vpack.c.bf16 %v1258, %v1257
      %v1262 = vpack.c.bf16 %v1259, %v1259
      %1263 = vrot.lane.b32.xlu0 %v896, 48
      %v1264 = vpop.permute.xlu0 %1263
      %1265 = vrot.lane.b32.xlu0 %v897, 48
      %v1266 = vpop.permute.xlu0 %1265
      %1267 = vrot.lane.b32.xlu0 %v898, 48
      %v1268 = vpop.permute.xlu0 %1267
      %v1272 = vsel %vm983, %v1260, 0
      %v1275 = vsel %vm983, %v1261, 0
      %v1278 = vsel %vm983, %v1262, 0
      %v1281 = vsel %vm1059, %v1268, 0
      %1283 = vmatprep.subr.bf16.mxu0 0
      %1284 = vmatpush1.bf16.msra.mxu0 %v1264
      %1285 = vmatprep.subr.bf16.mxu0 0
      %1286 = vmatpush1.bf16.msra.mxu0 %v1266
      %1287 = vmatprep.subr.bf16.mxu0 0
      %1288 = vmatpush1.bf16.msra.mxu0 %v1281
      %1289 = vmatprep.subr.bf16.mxu0 0
      %1290 = vmatpush1.bf16.msra.mxu0 0
      %1291 = vmatprep.subr.bf16.mxu0 0
      %1292 = vmatpush1.bf16.msra.mxu0 0
      %1293 = vmatprep.subr.bf16.mxu0 0
      %1294 = vmatpush1.bf16.msra.mxu0 0
      %1295 = vmatprep.subr.bf16.mxu0 0
      %1296 = vmatpush1.bf16.msra.mxu0 0
      %1297 = vmatprep.subr.bf16.mxu0 0
      %1298 = vmatpush1.bf16.msra.mxu0 0
      %1299 = vmatprep.subr.bf16.mxu0 0
      %1300 = vmatpush1.bf16.msra.mxu0 0
      %1301 = vmatprep.subr.bf16.mxu0 0
      %1302 = vmatpush1.bf16.msra.mxu0 0
      %1303 = vmatprep.subr.bf16.mxu0 0
      %1304 = vmatpush1.bf16.msra.mxu0 0
      %1305 = vmatprep.subr.bf16.mxu0 0
      %1306 = vmatpush1.bf16.msra.mxu0 0
      %1307 = vmatprep.subr.bf16.mxu0 0
      %1308 = vmatpush1.bf16.msra.mxu0 0
      %1309 = vmatprep.subr.bf16.mxu0 0
      %1310 = vmatpush1.bf16.msra.mxu0 0
      %1311 = vmatprep.subr.bf16.mxu0 0
      %1312 = vmatpush1.bf16.msra.mxu0 0
      %1313 = vmatprep.subr.bf16.mxu0 0
      %1314 = vmatpush1.bf16.msra.mxu0 0
      %1315 = vmatprep.mubr.bf16.mxu0 0
      %1316 = vmatmul.mubr.bf16.gmra.mrb[0].mxu0 %v1272
      %v1317 = vpop.f32.mrb[0].mxu0
      %v1318 = vadd.f32 0.0, %v1317
      %v1319 = vpop.f32.mrb[0].mxu0
      %v1320 = vpop.f32.mrb[0].mxu0
      %v1321 = vadd.f32 0.0, %v1320
      %v1322 = vpop.f32.mrb[0].mxu0
      %1323 = vmatprep.mubr.bf16.mxu0 0
      %1324 = vmatmul.mubr.bf16.gmra.mrb[0].mxu0 %v1275
      %v1325 = vpop.f32.mrb[0].mxu0
      %v1326 = vadd.f32 0.0, %v1325
      %v1327 = vpop.f32.mrb[0].mxu0
      %v1328 = vpop.f32.mrb[0].mxu0
      %v1329 = vadd.f32 0.0, %v1328
      %v1330 = vpop.f32.mrb[0].mxu0
      %1331 = vmatprep.mubr.bf16.mxu0 0
      %1332 = vmatmul.mubr.bf16.gmra.mrb[0].mxu0 %v1278
      %v1333 = vpop.f32.mrb[0].mxu0
      %v1334 = vadd.f32 0.0, %v1333
      %v1335 = vpop.f32.mrb[0].mxu0
      %v1336 = vpop.f32.mrb[0].mxu0
      %v1337 = vpop.f32.mrb[0].mxu0
      %1338 = vdwg.mxu0
      %1344 = vrot.lane.b32.xlu0 %v1318, 16
      %v1345 = vpop.permute.xlu0 %1344
      %1346 = vrot.lane.b32.xlu0 %v1321, 16
      %v1347 = vpop.permute.xlu0 %1346
      %1348 = vrot.lane.b32.xlu0 %v1326, 16
      %v1349 = vpop.permute.xlu0 %1348
      %1350 = vrot.lane.b32.xlu0 %v1329, 16
      %v1351 = vpop.permute.xlu0 %1350
      %1352 = vrot.lane.b32.xlu0 %v1334, 16
      %v1353 = vpop.permute.xlu0 %1352
      %v1359 = vsel %vm908, %v1098, %v1345
      %v1360 = vsel %vm908, %v1101, %v1347
      %v1361 = vsel %vm908, %v1106, %v1349
      %v1362 = vsel %vm908, %v1109, %v1351
      %v1363 = vsel %vm908, %v1114, %v1353
      %v1364 = vpack.c.bf16 %v1360, %v1359
      %v1365 = vpack.c.bf16 %v1362, %v1361
      %v1366 = vpack.c.bf16 %v1363, %v1363
      %v1367 = vld [vmem:[%s655] sm:$0xf]
      %v1368 = vld [vmem:[%s655 + $0x4] sm:$0xf]
      %v1369 = vld [vmem:[%s655 + $0x8] sm:$0xf]
      %v1370 = vld [vmem:[%s655 + $0xc] sm:$0xf]
      %v1371 = vld [vmem:[%s658] sm:$0x1]
      %v1373 = vlaneseq
      %v1374 = vshrl.u32 %v1373, 7
      %v1375 = vsub.s32 0, %v1374
      %v1376 = vrot.slane %v1371, %v1375
      %v1382 = vunpack.c.l.b16 %v1367
      %v1383 = vunpack.c.l.b16 %v1368
      %v1384 = vunpack.c.l.b16 %v1369
      %v1385 = vunpack.c.l.b16 %v1370
      %v1386 = vpack.c.b16 %v1383, %v1382
      %v1387 = vpack.c.b16 %v1385, %v1384
      %v1391 = vsel %vm709, %v1364, 0
      %v1394 = vsel %vm709, %v1365, 0
      %v1397 = vsel %vm709, %v1366, 0
      %1399 = vmatprep.subr.bf16.mxu0 0
      %1400 = vmatpush1.bf16.msra.mxu0 %v1386
      %1401 = vmatprep.subr.bf16.mxu0 0
      %1402 = vmatpush1.bf16.msra.mxu0 %v1387
      %1403 = vmatprep.subr.bf16.mxu0 0
      %1404 = vmatpush1.bf16.msra.mxu0 0
      %1405 = vmatprep.subr.bf16.mxu0 0
      %1406 = vmatpush1.bf16.msra.mxu0 0
      %1407 = vmatprep.subr.bf16.mxu0 0
      %1408 = vmatpush1.bf16.msra.mxu0 0
      %1409 = vmatprep.subr.bf16.mxu0 0
      %1410 = vmatpush1.bf16.msra.mxu0 0
      %1411 = vmatprep.subr.bf16.mxu0 0
      %1412 = vmatpush1.bf16.msra.mxu0 0
      %1413 = vmatprep.subr.bf16.mxu0 0
      %1414 = vmatpush1.bf16.msra.mxu0 0
      %1415 = vmatprep.subr.bf16.mxu0 0
      %1416 = vmatpush1.bf16.msra.mxu0 0
      %1417 = vmatprep.subr.bf16.mxu0 0
      %1418 = vmatpush1.bf16.msra.mxu0 0
      %1419 = vmatprep.subr.bf16.mxu0 0
      %1420 = vmatpush1.bf16.msra.mxu0 0
      %1421 = vmatprep.subr.bf16.mxu0 0
      %1422 = vmatpush1.bf16.msra.mxu0 0
      %1423 = vmatprep.subr.bf16.mxu0 0
      %1424 = vmatpush1.bf16.msra.mxu0 0
      %1425 = vmatprep.subr.bf16.mxu0 0
      %1426 = vmatpush1.bf16.msra.mxu0 0
      %1427 = vmatprep.subr.bf16.mxu0 0
      %1428 = vmatpush1.bf16.msra.mxu0 0
      %1429 = vmatprep.subr.bf16.mxu0 0
      %1430 = vmatpush1.bf16.msra.mxu0 0
      %1431 = vmatprep.mubr.bf16.mxu0 0
      %1432 = vmatmul.mubr.bf16.gmra.mrb[0].mxu0 %v1391
      %v1433 = vpop.f32.mrb[0].mxu0
      %v1434 = vadd.f32 %v1376, %v1433
      %v1435 = vpop.f32.mrb[0].mxu0
      %v1436 = vpop.f32.mrb[0].mxu0
      %v1437 = vadd.f32 %v1376, %v1436
      %v1438 = vpop.f32.mrb[0].mxu0
      %1439 = vmatprep.mubr.bf16.mxu0 0
      %1440 = vmatmul.mubr.bf16.gmra.mrb[0].mxu0 %v1394
      %v1441 = vpop.f32.mrb[0].mxu0
      %v1442 = vadd.f32 %v1376, %v1441
      %v1443 = vpop.f32.mrb[0].mxu0
      %v1444 = vpop.f32.mrb[0].mxu0
      %v1445 = vadd.f32 %v1376, %v1444
      %v1446 = vpop.f32.mrb[0].mxu0
      %1447 = vmatprep.mubr.bf16.mxu0 0
      %1448 = vmatmul.mubr.bf16.gmra.mrb[0].mxu0 %v1397
      %v1449 = vpop.f32.mrb[0].mxu0
      %v1450 = vadd.f32 %v1376, %v1449
      %v1451 = vpop.f32.mrb[0].mxu0
      %v1452 = vpop.f32.mrb[0].mxu0
      %v1453 = vpop.f32.mrb[0].mxu0
      %1454 = vdwg.mxu0
      %v1455 = vadd.f32 %v702, %v1434
      %v1456 = vadd.f32 %v703, %v1437
      %v1457 = vadd.f32 %v704, %v1442
      %v1458 = vadd.f32 %v705, %v1445
      %v1459 = vadd.f32 %v706, %v1450
      %v1460 = vld [vmem:[%s661] sm:$0x1]
      %v1461 = vld [vmem:[%s664] sm:$0x1]
      %v1462 = vsel %vm709, %v1455, 0.0
      %1463 = vadd.xlane.f32.xlu0 %v1462
      %v1464 = vpop.xlane.xlu0 %1463
      %v1465 = vsel %vm709, %v1456, 0.0
      %1466 = vadd.xlane.f32.xlu0 %v1465
      %v1467 = vpop.xlane.xlu0 %1466
      %v1468 = vsel %vm709, %v1457, 0.0
      %1469 = vadd.xlane.f32.xlu0 %v1468
      %v1470 = vpop.xlane.xlu0 %1469
      %v1471 = vsel %vm709, %v1458, 0.0
      %1472 = vadd.xlane.f32.xlu0 %v1471
      %v1473 = vpop.xlane.xlu0 %1472
      %v1474 = vsel %vm709, %v1459, 0.0
      %1475 = vadd.xlane.f32.xlu0 %v1474
      %v1476 = vpop.xlane.xlu0 %1475
      %v1477 = vmul.f32 %v1464, %v725
      %v1478 = vmul.f32 %v1467, %v725
      %v1479 = vmul.f32 %v1470, %v725
      %v1480 = vmul.f32 %v1473, %v725
      %v1481 = vmul.f32 %v1476, %v725
      %v1482 = vsub.f32 %v1455, %v1477
      %v1483 = vsub.f32 %v1456, %v1478
      %v1484 = vsub.f32 %v1457, %v1479
      %v1485 = vsub.f32 %v1458, %v1480
      %v1486 = vsub.f32 %v1459, %v1481
      %v1487 = vmul.f32 %v1482, %v1482
      %v1488 = vmul.f32 %v1483, %v1483
      %v1489 = vmul.f32 %v1484, %v1484
      %v1490 = vmul.f32 %v1485, %v1485
      %v1491 = vmul.f32 %v1486, %v1486
      %v1492 = vsel %vm709, %v1487, 0.0
      %1493 = vadd.xlane.f32.xlu0 %v1492
      %v1494 = vpop.xlane.xlu0 %1493
      %v1495 = vsel %vm709, %v1488, 0.0
      %1496 = vadd.xlane.f32.xlu0 %v1495
      %v1497 = vpop.xlane.xlu0 %1496
      %v1498 = vsel %vm709, %v1489, 0.0
      %1499 = vadd.xlane.f32.xlu0 %v1498
      %v1500 = vpop.xlane.xlu0 %1499
      %v1501 = vsel %vm709, %v1490, 0.0
      %1502 = vadd.xlane.f32.xlu0 %v1501
      %v1503 = vpop.xlane.xlu0 %1502
      %v1504 = vsel %vm709, %v1491, 0.0
      %1505 = vadd.xlane.f32.xlu0 %v1504
      %v1506 = vpop.xlane.xlu0 %1505
      %v1507 = vmul.f32 %v1494, %v725
      %v1508 = vmul.f32 %v1497, %v725
      %v1509 = vmul.f32 %v1500, %v725
      %v1510 = vmul.f32 %v1503, %v725
      %v1511 = vmul.f32 %v1506, %v725
      %v1512 = vadd.f32 %v1507, 1e-05
      %v1513 = vadd.f32 %v1508, 1e-05
      %v1514 = vadd.f32 %v1509, 1e-05
      %v1515 = vadd.f32 %v1510, 1e-05
      %v1516 = vadd.f32 %v1511, 1e-05
      %v1517 = vrsqrt.pop %v1512
      %v1518 = vrsqrt.pop %v1513
      %v1519 = vrsqrt.pop %v1514
      %v1520 = vrsqrt.pop %v1515
      %v1521 = vrsqrt.pop %v1516
      %v1522 = vmul.f32 %v1482, %v1517
      %v1523 = vmul.f32 %v1483, %v1518
      %v1524 = vmul.f32 %v1484, %v1519
      %v1525 = vmul.f32 %v1485, %v1520
      %v1526 = vmul.f32 %v1486, %v1521
      %v1528 = vlaneseq
      %v1529 = vshrl.u32 %v1528, 7
      %v1530 = vsub.s32 0, %v1529
      %v1531 = vrot.slane %v1460, %v1530
      %v1533 = vmul.f32 %v1522, %v1531
      %v1534 = vmul.f32 %v1523, %v1531
      %v1535 = vmul.f32 %v1524, %v1531
      %v1536 = vmul.f32 %v1525, %v1531
      %v1537 = vmul.f32 %v1526, %v1531
      %v1539 = vlaneseq
      %v1540 = vshrl.u32 %v1539, 7
      %v1541 = vsub.s32 0, %v1540
      %v1542 = vrot.slane %v1461, %v1541
      %v1544 = vadd.f32 %v1533, %v1542
      %v1545 = vadd.f32 %v1534, %v1542
      %v1546 = vadd.f32 %v1535, %v1542
      %v1547 = vadd.f32 %v1536, %v1542
      %v1548 = vadd.f32 %v1537, %v1542
      %v1549 = vpack.c.bf16 %v1545, %v1544
      %v1550 = vpack.c.bf16 %v1547, %v1546
      %v1551 = vpack.c.bf16 %v1548, %v1548
      %v1552 = vld [vmem:[%s669] sm:$0xf]
      %v1553 = vld [vmem:[%s669 + $0x4] sm:$0xf]
      %v1554 = vld [vmem:[%s669 + $0x8] sm:$0xf]
      %v1555 = vld [vmem:[%s669 + $0xc] sm:$0xf]
      %v1556 = vld [vmem:[%s672] sm:$0x1]
      %v1558 = vlaneseq
      %v1559 = vshrl.u32 %v1558, 7
      %v1560 = vsub.s32 0, %v1559
      %v1561 = vrot.slane %v1556, %v1560
      %v1567 = vunpack.c.l.b16 %v1552
      %v1568 = vunpack.c.l.b16 %v1553
      %v1569 = vunpack.c.l.b16 %v1554
      %v1570 = vunpack.c.l.b16 %v1555
      %v1571 = vpack.c.b16 %v1568, %v1567
      %v1572 = vpack.c.b16 %v1570, %v1569
      %v1576 = vsel %vm709, %v1549, 0
      %v1579 = vsel %vm709, %v1550, 0
      %v1582 = vsel %vm709, %v1551, 0
      %1584 = vmatprep.subr.bf16.mxu0 0
      %1585 = vmatpush1.bf16.msra.mxu0 %v1571
      %1586 = vmatprep.subr.bf16.mxu0 0
      %1587 = vmatpush1.bf16.msra.mxu0 %v1572
      %1588 = vmatprep.subr.bf16.mxu0 0
      %1589 = vmatpush1.bf16.msra.mxu0 0
      %1590 = vmatprep.subr.bf16.mxu0 0
      %1591 = vmatpush1.bf16.msra.mxu0 0
      %1592 = vmatprep.subr.bf16.mxu0 0
      %1593 = vmatpush1.bf16.msra.mxu0 0
      %1594 = vmatprep.subr.bf16.mxu0 0
      %1595 = vmatpush1.bf16.msra.mxu0 0
      %1596 = vmatprep.subr.bf16.mxu0 0
      %1597 = vmatpush1.bf16.msra.mxu0 0
      %1598 = vmatprep.subr.bf16.mxu0 0
      %1599 = vmatpush1.bf16.msra.mxu0 0
      %1600 = vmatprep.subr.bf16.mxu0 0
      %1601 = vmatpush1.bf16.msra.mxu0 0
      %1602 = vmatprep.subr.bf16.mxu0 0
      %1603 = vmatpush1.bf16.msra.mxu0 0
      %1604 = vmatprep.subr.bf16.mxu0 0
      %1605 = vmatpush1.bf16.msra.mxu0 0
      %1606 = vmatprep.subr.bf16.mxu0 0
      %1607 = vmatpush1.bf16.msra.mxu0 0
      %1608 = vmatprep.subr.bf16.mxu0 0
      %1609 = vmatpush1.bf16.msra.mxu0 0
      %1610 = vmatprep.subr.bf16.mxu0 0
      %1611 = vmatpush1.bf16.msra.mxu0 0
      %1612 = vmatprep.subr.bf16.mxu0 0
      %1613 = vmatpush1.bf16.msra.mxu0 0
      %1614 = vmatprep.subr.bf16.mxu0 0
      %1615 = vmatpush1.bf16.msra.mxu0 0
      %1616 = vmatprep.mubr.bf16.mxu0 0
      %1617 = vmatmul.mubr.bf16.gmra.mrb[0].mxu0 %v1576
      %v1618 = vpop.f32.mrb[0].mxu0
      %v1619 = vadd.f32 %v1561, %v1618
      %v1620 = vpop.f32.mrb[0].mxu0
      %v1621 = vpop.f32.mrb[0].mxu0
      %v1622 = vadd.f32 %v1561, %v1621
      %v1623 = vpop.f32.mrb[0].mxu0
      %1624 = vmatprep.mubr.bf16.mxu0 0
      %1625 = vmatmul.mubr.bf16.gmra.mrb[0].mxu0 %v1579
      %v1626 = vpop.f32.mrb[0].mxu0
      %v1627 = vadd.f32 %v1561, %v1626
      %v1628 = vpop.f32.mrb[0].mxu0
      %v1629 = vpop.f32.mrb[0].mxu0
      %v1630 = vadd.f32 %v1561, %v1629
      %v1631 = vpop.f32.mrb[0].mxu0
      %1632 = vmatprep.mubr.bf16.mxu0 0
      %1633 = vmatmul.mubr.bf16.gmra.mrb[0].mxu0 %v1582
      %v1634 = vpop.f32.mrb[0].mxu0
      %v1635 = vadd.f32 %v1561, %v1634
      %v1636 = vpop.f32.mrb[0].mxu0
      %v1637 = vpop.f32.mrb[0].mxu0
      %v1638 = vpop.f32.mrb[0].mxu0
      %1639 = vdwg.mxu0
      %v1640 = vmul.f32 %v1619, 1.702
      %v1641 = vmul.f32 %v1622, 1.702
      %v1642 = vmul.f32 %v1627, 1.702
      %v1643 = vmul.f32 %v1630, 1.702
      %v1644 = vmul.f32 %v1635, 1.702
      %v1645 = vxor.u32 %v1640, 2147483648
      %v1646 = vxor.u32 %v1641, 2147483648
      %v1647 = vxor.u32 %v1642, 2147483648
      %v1648 = vxor.u32 %v1643, 2147483648
      %v1649 = vxor.u32 %v1644, 2147483648
      %v1650 = vmul.f32 %v1645, 1.442695
      %v1651 = vpow.pop %v1650
      %v1652 = vmul.f32 %v1646, 1.442695
      %v1653 = vpow.pop %v1652
      %v1654 = vmul.f32 %v1647, 1.442695
      %v1655 = vpow.pop %v1654
      %v1656 = vmul.f32 %v1648, 1.442695
      %v1657 = vpow.pop %v1656
      %v1658 = vmul.f32 %v1649, 1.442695
      %v1659 = vpow.pop %v1658
      %v1660 = vadd.f32 %v1651, 1.0
      %v1661 = vadd.f32 %v1653, 1.0
      %v1662 = vadd.f32 %v1655, 1.0
      %v1663 = vadd.f32 %v1657, 1.0
      %v1664 = vadd.f32 %v1659, 1.0
      %v1665 = vrcp.pop %v1660
      %v1666 = vmul.f32 1.0, %v1665
      %v1667 = vrcp.pop %v1661
      %v1668 = vmul.f32 1.0, %v1667
      %v1669 = vrcp.pop %v1662
      %v1670 = vmul.f32 1.0, %v1669
      %v1671 = vrcp.pop %v1663
      %v1672 = vmul.f32 1.0, %v1671
      %v1673 = vrcp.pop %v1664
      %v1674 = vmul.f32 1.0, %v1673
      %v1675 = vmul.f32 %v1619, %v1666
      %v1676 = vmul.f32 %v1622, %v1668
      %v1677 = vmul.f32 %v1627, %v1670
      %v1678 = vmul.f32 %v1630, %v1672
      %v1679 = vmul.f32 %v1635, %v1674
      %v1680 = vpack.c.bf16 %v1676, %v1675
      %v1681 = vpack.c.bf16 %v1678, %v1677
      %v1682 = vpack.c.bf16 %v1679, %v1679
      %v1683 = vld [vmem:[%s677] sm:$0xf]
      %v1684 = vld [vmem:[%s677 + $0x4] sm:$0xf]
      %v1685 = vld [vmem:[%s677 + $0x8] sm:$0xf]
      %v1686 = vld [vmem:[%s677 + $0xc] sm:$0xf]
      %v1687 = vld [vmem:[%s677 + $0x10] sm:$0xf]
      %v1688 = vld [vmem:[%s677 + $0x14] sm:$0xf]
      %v1689 = vld [vmem:[%s677 + $0x18] sm:$0xf]
      %v1690 = vld [vmem:[%s677 + $0x1c] sm:$0xf]
      %v1691 = vld [vmem:[%s677 + $0x20] sm:$0xf]
      %v1692 = vld [vmem:[%s677 + $0x24] sm:$0xf]
      %v1693 = vld [vmem:[%s677 + $0x28] sm:$0xf]
      %v1694 = vld [vmem:[%s677 + $0x2c] sm:$0xf]
      %v1695 = vld [vmem:[%s677 + $0x30] sm:$0xf]
      %v1696 = vld [vmem:[%s677 + $0x34] sm:$0xf]
      %v1697 = vld [vmem:[%s677 + $0x38] sm:$0xf]
      %v1698 = vld [vmem:[%s677 + $0x3c] sm:$0xf]
      %v1699 = vld [vmem:[%s680] sm:$0x1]
      %v1701 = vlaneseq
      %v1702 = vshrl.u32 %v1701, 7
      %v1703 = vsub.s32 0, %v1702
      %v1704 = vrot.slane %v1699, %v1703
      %v1722 = vunpack.c.l.b16 %v1683
      %v1723 = vunpack.c.l.b16 %v1684
      %v1724 = vunpack.c.l.b16 %v1685
      %v1725 = vunpack.c.l.b16 %v1686
      %v1726 = vunpack.c.l.b16 %v1687
      %v1727 = vunpack.c.l.b16 %v1688
      %v1728 = vunpack.c.l.b16 %v1689
      %v1729 = vunpack.c.l.b16 %v1690
      %v1730 = vunpack.c.l.b16 %v1691
      %v1731 = vunpack.c.l.b16 %v1692
      %v1732 = vunpack.c.l.b16 %v1693
      %v1733 = vunpack.c.l.b16 %v1694
      %v1734 = vunpack.c.l.b16 %v1695
      %v1735 = vunpack.c.l.b16 %v1696
      %v1736 = vunpack.c.l.b16 %v1697
      %v1737 = vunpack.c.l.b16 %v1698
      %v1738 = vpack.c.b16 %v1723, %v1722
      %v1739 = vpack.c.b16 %v1725, %v1724
      %v1740 = vpack.c.b16 %v1727, %v1726
      %v1741 = vpack.c.b16 %v1729, %v1728
      %v1742 = vpack.c.b16 %v1731, %v1730
      %v1743 = vpack.c.b16 %v1733, %v1732
      %v1744 = vpack.c.b16 %v1735, %v1734
      %v1745 = vpack.c.b16 %v1737, %v1736
      %1754 = vmatprep.subr.bf16.mxu0 0
      %1755 = vmatpush1.bf16.msra.mxu0 %v1738
      %1756 = vmatprep.subr.bf16.mxu0 0
      %1757 = vmatpush1.bf16.msra.mxu0 %v1739
      %1758 = vmatprep.subr.bf16.mxu0 0
      %1759 = vmatpush1.bf16.msra.mxu0 %v1740
      %1760 = vmatprep.subr.bf16.mxu0 0
      %1761 = vmatpush1.bf16.msra.mxu0 %v1741
      %1762 = vmatprep.subr.bf16.mxu0 0
      %1763 = vmatpush1.bf16.msra.mxu0 %v1742
      %1764 = vmatprep.subr.bf16.mxu0 0
      %1765 = vmatpush1.bf16.msra.mxu0 %v1743
      %1766 = vmatprep.subr.bf16.mxu0 0
      %1767 = vmatpush1.bf16.msra.mxu0 %v1744
      %1768 = vmatprep.subr.bf16.mxu0 0
      %1769 = vmatpush1.bf16.msra.mxu0 %v1745
      %1770 = vmatprep.subr.bf16.mxu0 0
      %1771 = vmatpush1.bf16.msra.mxu0 0
      %1772 = vmatprep.subr.bf16.mxu0 0
      %1773 = vmatpush1.bf16.msra.mxu0 0
      %1774 = vmatprep.subr.bf16.mxu0 0
      %1775 = vmatpush1.bf16.msra.mxu0 0
      %1776 = vmatprep.subr.bf16.mxu0 0
      %1777 = vmatpush1.bf16.msra.mxu0 0
      %1778 = vmatprep.subr.bf16.mxu0 0
      %1779 = vmatpush1.bf16.msra.mxu0 0
      %1780 = vmatprep.subr.bf16.mxu0 0
      %1781 = vmatpush1.bf16.msra.mxu0 0
      %1782 = vmatprep.subr.bf16.mxu0 0
      %1783 = vmatpush1.bf16.msra.mxu0 0
      %1784 = vmatprep.subr.bf16.mxu0 0
      %1785 = vmatpush1.bf16.msra.mxu0 0
      %1786 = vmatprep.mubr.bf16.mxu0 0
      %1787 = vmatmul.mubr.bf16.gmra.mrb[0].mxu0 %v1680
      %v1788 = vpop.f32.mrb[0].mxu0
      %v1789 = vadd.f32 %v1704, %v1788
      %v1790 = vpop.f32.mrb[0].mxu0
      %v1791 = vpop.f32.mrb[0].mxu0
      %v1792 = vadd.f32 %v1704, %v1791
      %v1793 = vpop.f32.mrb[0].mxu0
      %1794 = vmatprep.mubr.bf16.mxu0 0
      %1795 = vmatmul.mubr.bf16.gmra.mrb[0].mxu0 %v1681
      %v1796 = vpop.f32.mrb[0].mxu0
      %v1797 = vadd.f32 %v1704, %v1796
      %v1798 = vpop.f32.mrb[0].mxu0
      %v1799 = vpop.f32.mrb[0].mxu0
      %v1800 = vadd.f32 %v1704, %v1799
      %v1801 = vpop.f32.mrb[0].mxu0
      %1802 = vmatprep.mubr.bf16.mxu0 0
      %1803 = vmatmul.mubr.bf16.gmra.mrb[0].mxu0 %v1682
      %v1804 = vpop.f32.mrb[0].mxu0
      %v1805 = vadd.f32 %v1704, %v1804
      %v1806 = vpop.f32.mrb[0].mxu0
      %v1807 = vpop.f32.mrb[0].mxu0
      %v1808 = vpop.f32.mrb[0].mxu0
      %1809 = vdwg.mxu0
      %v1810 = vadd.f32 %v1455, %v1789
      %v1811 = vadd.f32 %v1456, %v1792
      %v1812 = vadd.f32 %v1457, %v1797
      %v1813 = vadd.f32 %v1458, %v1800
      %v1814 = vadd.f32 %v1459, %v1805
      %1815 = vst.msk [vmem:[%s685] sm:$0xff] %vm709, %v1810
      %1816 = vst.msk [vmem:[%s685 + $0x8] sm:$0xff] %vm709, %v1811
      %1817 = vst.msk [vmem:[%s685 + $0x10] sm:$0xff] %vm709, %v1812
      %1818 = vst.msk [vmem:[%s685 + $0x18] sm:$0xff] %vm709, %v1813
      %1819 = vst.msk [vmem:[%s685 + $0x20] sm:$0xff] %vm709, %v1814
      %p1820 = scmp.lt.s32.totalorder %s29, 1
      %s1821 = scalar_select %p1820, %s29, 1
      %s1822 = smul.addr %s1821, 5
      %s1823 = smul.addr %s1822, 8
      %s1824 = scalar_lea.vmem %s14, %s1823
      // Predicated region
      $region81: #{openclip_vit_forward.5} parent=75 // pred_check
        %p1825 = pneg %p419
      $region82: #{openclip_vit_forward.5} parent=75 // pred_check_branch
        %1827 = sbr.rel (%p1825) target = $region84
      $region83: #{openclip_vit_forward.5} parent=75 // pred_region
        _
      $region84: #{openclip_vit_forward.5} parent=75 // pred_fallthru
        _
    $region76: #{openclip_vit_forward.5} parent=5 // pred_fallthru
      _
    %p1828 = scmp.le.s32.totalorder 2, %s20
    // Predicated region
    $region85: #{openclip_vit_forward.5} parent=5 // pred_check
      %p1829 = pneg %p1828
    $region86: #{openclip_vit_forward.5} parent=5 // pred_check_branch
      %1831 = sbr.rel (%p1829) target = $region88
    $region87: #{openclip_vit_forward.5} parent=5 // pred_region
      %s1832 = ssub.s32 %s20, 2
      // Predicated region
      $region89: #{openclip_vit_forward.5} parent=87 // pred_check
        %p1833 = pneg %p425
      $region90: #{openclip_vit_forward.5} parent=87 // pred_check_branch
        %1835 = sbr.rel (%p1833) target = $region92
      $region91: #{openclip_vit_forward.5} parent=87 // pred_region
        %p1836 = scmp.lt.s32.totalorder %s31, 1
        %s1837 = scalar_select %p1836, %s31, 1
        %s1838 = smul.addr %s1837, 5
        %s1839 = smul.addr %s1838, 8
        %s1840 = scalar_lea.vmem %s14, %s1839
      $region92: #{openclip_vit_forward.5} parent=87 // pred_fallthru
        _
    $region88: #{openclip_vit_forward.5} parent=5 // pred_fallthru
      _
  $region6: #{openclip_vit_forward.5} parent=0 // loop_footer
    %s24 = sadd.s32 1, %s20
  $region7: #{openclip_vit_forward.5} parent=0 // loop_footer_branch
    %19 = sbr.rel target = $region3
  $region8: #{openclip_vit_forward.5} parent=0 // loop_exit
    _

</llo_original>
